<compile_context>
chip_gen: v7x
topology: tpu7x:2x2x1
jax: 0.10.0
libtpu: 0.0.40
codegen_flags: <defaults>
</compile_context>

<pallas_src>
import jax
import jax.numpy as jnp
from jax.experimental import pallas as pl
from jax.experimental.pallas import tpu as pltpu  # noqa: F401  (TPU backend)

# Full f32 matmul precision everywhere (kernel and reference) so the
# correctness check compares like against like.
jax.config.update("jax_default_matmul_precision", "highest")

EMBED = 32
HEADS = 4
HEAD_DIM = EMBED // HEADS
FF_EXPANSION = 4
HIDDEN = EMBED * FF_EXPANSION
LN_EPS = 1e-5
NEG_INF = -1e9


# --------------------------------------------------------------------------
# In-kernel helpers (traced inside the fused kernel body)
# --------------------------------------------------------------------------
def _layernorm(x, g, b):
    mean = jnp.mean(x, axis=-1, keepdims=True)
    c = x - mean
    var = jnp.mean(c * c, axis=-1, keepdims=True)
    return c * jax.lax.rsqrt(var + LN_EPS) * g + b


def _to_heads(a, col0):
    """Gather head columns into rows: (R, >=col0+E) -> (HEADS*R, HEAD_DIM).

    Row ordering is (head, r); the lane slices + sublane concat ride the
    otherwise-idle XLU/store slots, no MXU work."""
    return jnp.concatenate(
        [a[:, col0 + h * HEAD_DIM: col0 + (h + 1) * HEAD_DIM]
         for h in range(HEADS)], axis=0)


def _from_heads(a, rows):
    """Inverse of _to_heads: (HEADS*rows, HEAD_DIM) -> (rows, EMBED)."""
    return jnp.concatenate(
        [a[h * rows:(h + 1) * rows, :] for h in range(HEADS)], axis=1)


def _attend(q_hs, k_hs, v_hs, bias, wo, bo, rows):
    """Block-diagonal multi-head attention over the whole (batch, head) slab.

    q_hs: (HEADS*B*Sq, D), k_hs/v_hs: (HEADS*B*Skv, D),
    bias:  (HEADS*B*Sq, HEADS*B*Skv) additive; off-diagonal (head,batch)
           blocks carry -1e9 so one big softmax == per-(head,batch) softmax.
    Returns (rows, EMBED) already output-projected."""
    # scores = q @ k^T (contract the HEAD_DIM lanes) — single MXU push.
    s = jax.lax.dot_general(q_hs, k_hs, (((1,), (1,)), ((), ())),
                            preferred_element_type=jnp.float32)
    s = s + bias
    m = jnp.max(s, axis=-1, keepdims=True)
    e = jnp.exp(s - m)
    inv = pl.reciprocal(jnp.sum(e, axis=-1, keepdims=True), approx=True)
    p = e * inv
    o_hs = jnp.dot(p, v_hs, preferred_element_type=jnp.float32)   # (H*B*Sq, D)
    o = _from_heads(o_hs, rows)                                   # (B*Sq, E)
    return jnp.dot(o, wo, preferred_element_type=jnp.float32) + bo


# --------------------------------------------------------------------------
# Fused decoder-block kernel — single program, whole batch resident in VMEM
# --------------------------------------------------------------------------
def _decoder_block_kernel(
        x_ref, enc_ref, trg_bias_ref, src_bias_ref,
        sa_wqkv_ref, sa_bqkv_ref, sa_wo_ref, sa_bo_ref, n0_g_ref, n0_b_ref,
        ca_wq_ref, ca_bq_ref, ca_wkv_ref, ca_bkv_ref, ca_wo_ref, ca_bo_ref,
        n1_g_ref, n1_b_ref,
        ff_w1_ref, ff_b1_ref, ff_w2_ref, ff_b2_ref, n2_g_ref, n2_b_ref,
        out_ref):
    x = x_ref[...].astype(jnp.float32)        # (B*S_trg, E)
    enc = enc_ref[...].astype(jnp.float32)    # (B*S_src, E)
    r_trg = x.shape[0]

    # ---- masked self-attention + add & norm ----
    # fused QKV projection (Wq already carries the 1/sqrt(D) scale)
    qkv = (jnp.dot(x, sa_wqkv_ref[...], preferred_element_type=jnp.float32)
           + sa_bqkv_ref[...])                                     # (B*S, 3E)
    attn = _attend(_to_heads(qkv, 0),
                   _to_heads(qkv, EMBED),
                   _to_heads(qkv, 2 * EMBED),
                   trg_bias_ref[...], sa_wo_ref[...], sa_bo_ref[...], r_trg)
    query = _layernorm(attn + x, n0_g_ref[...], n0_b_ref[...])

    # ---- cross-attention (EncoderBlock) + add & norm ----
    q = (jnp.dot(query, ca_wq_ref[...], preferred_element_type=jnp.float32)
         + ca_bq_ref[...])                                         # (B*S, E)
    kv = (jnp.dot(enc, ca_wkv_ref[...], preferred_element_type=jnp.float32)
          + ca_bkv_ref[...])                                       # (B*S_src, 2E)
    cross = _attend(_to_heads(q, 0),
                    _to_heads(kv, 0),
                    _to_heads(kv, EMBED),
                    src_bias_ref[...], ca_wo_ref[...], ca_bo_ref[...], r_trg)
    x1 = _layernorm(cross + query, n1_g_ref[...], n1_b_ref[...])

    # ---- feed-forward + add & norm ----
    h = jnp.maximum(
        jnp.dot(x1, ff_w1_ref[...], preferred_element_type=jnp.float32)
        + ff_b1_ref[...], 0.0)
    ff = (jnp.dot(h, ff_w2_ref[...], preferred_element_type=jnp.float32)
          + ff_b2_ref[...])
    out = _layernorm(ff + x1, n2_g_ref[...], n2_b_ref[...])

    out_ref[...] = out.astype(out_ref.dtype)


# --------------------------------------------------------------------------
# Wrapper
# --------------------------------------------------------------------------
def _expand_mask(mask, nblocks):
    """(Sq, Skv) 0/1 mask -> (nblocks*Sq, nblocks*Skv) additive bias.

    Diagonal (head,batch) blocks carry the mask bias; off-diagonal blocks
    carry -1e9 so heads/batches cannot attend across each other."""
    bias = jnp.where(mask == 0, NEG_INF, 0.0).astype(jnp.float32)
    eye = jnp.eye(nblocks, dtype=jnp.float32)
    on = jnp.kron(eye, jnp.ones_like(bias))
    return jnp.kron(eye, bias) + (1.0 - on) * NEG_INF


@jax.jit
def decoder_block(x, enc_out, src_mask, trg_mask, fp):
    """x: (B, S_trg, E), enc_out: (B, S_src, E), masks: 2-D (shared over batch),
    fp: fused parameter dict from fuse_params()."""
    B, S_trg, E = x.shape
    S_src = enc_out.shape[1]
    x2 = x.reshape(B * S_trg, E)
    enc2 = enc_out.reshape(B * S_src, E)

    nb = HEADS * B
    trg_bias = _expand_mask(trg_mask, nb)      # (H*B*S_trg, H*B*S_trg)
    src_bias = _expand_mask(src_mask, nb)      # (H*B*S_trg, H*B*S_src)

    operands = (
        x2, enc2, trg_bias, src_bias,
        fp["sa_wqkv"], fp["sa_bqkv"], fp["sa_wo"], fp["sa_bo"],
        fp["n0_g"], fp["n0_b"],
        fp["ca_wq"], fp["ca_bq"], fp["ca_wkv"], fp["ca_bkv"],
        fp["ca_wo"], fp["ca_bo"], fp["n1_g"], fp["n1_b"],
        fp["ff_w1"], fp["ff_b1"], fp["ff_w2"], fp["ff_b2"],
        fp["n2_g"], fp["n2_b"],
    )

    # advisory cost estimate for XLA's scheduler
    rt, rs = B * S_trg, B * S_src
    mm_flops = 2 * (
        rt * E * 3 * E                      # fused QKV
        + 2 * (HEADS * rt) * (HEADS * rt) * HEAD_DIM   # self scores + PV
        + rt * E * E                        # self out-proj
        + rt * E * E + rs * E * 2 * E       # cross Q, fused KV
        + 2 * (HEADS * rt) * (HEADS * rs) * HEAD_DIM   # cross scores + PV
        + rt * E * E                        # cross out-proj
        + 2 * rt * E * HIDDEN)              # FFN
    transcendentals = (HEADS * rt) * (HEADS * rt) + (HEADS * rt) * (HEADS * rs)
    bytes_accessed = 4 * (sum(int(op.size) for op in operands) + rt * E)

    out2 = pl.pallas_call(
        _decoder_block_kernel,
        out_shape=jax.ShapeDtypeStruct((B * S_trg, E), x.dtype),
        cost_estimate=pl.CostEstimate(
            flops=mm_flops,
            transcendentals=transcendentals,
            bytes_accessed=bytes_accessed),
    )(*operands)
    return out2.reshape(B, S_trg, E)


# --------------------------------------------------------------------------
# Parameters
# --------------------------------------------------------------------------
def init_params(key, embed=EMBED, hidden=HIDDEN):
    ks = jax.random.split(key, 12)
    w = lambda k, shape: (jax.random.normal(k, shape, jnp.float32) * 0.02)
    zeros = lambda shape: jnp.zeros(shape, jnp.float32)
    ones = lambda shape: jnp.ones(shape, jnp.float32)
    return {
        # self-attention
        "sa_wq": w(ks[0], (embed, embed)), "sa_bq": zeros((1, embed)),
        "sa_wk": w(ks[1], (embed, embed)), "sa_bk": zeros((1, embed)),
        "sa_wv": w(ks[2], (embed, embed)), "sa_bv": zeros((1, embed)),
        "sa_wo": w(ks[3], (embed, embed)), "sa_bo": zeros((1, embed)),
        "norm_g": ones((1, embed)), "norm_b": zeros((1, embed)),
        # cross-attention (inside EncoderBlock)
        "ca_wq": w(ks[4], (embed, embed)), "ca_bq": zeros((1, embed)),
        "ca_wk": w(ks[5], (embed, embed)), "ca_bk": zeros((1, embed)),
        "ca_wv": w(ks[6], (embed, embed)), "ca_bv": zeros((1, embed)),
        "ca_wo": w(ks[7], (embed, embed)), "ca_bo": zeros((1, embed)),
        "norm1_g": ones((1, embed)), "norm1_b": zeros((1, embed)),
        # feed-forward
        "ff_w1": w(ks[8], (embed, hidden)), "ff_b1": zeros((1, hidden)),
        "ff_w2": w(ks[9], (hidden, embed)), "ff_b2": zeros((1, embed)),
        "norm2_g": ones((1, embed)), "norm2_b": zeros((1, embed)),
    }


def fuse_params(p):
    """One-time parameter prep: fold 1/sqrt(D) into Wq/bq, fuse QKV / KV."""
    scale = 1.0 / (HEAD_DIM ** 0.5)
    return {
        "sa_wqkv": jnp.concatenate(
            [p["sa_wq"] * scale, p["sa_wk"], p["sa_wv"]], axis=1),   # (E, 3E)
        "sa_bqkv": jnp.concatenate(
            [p["sa_bq"] * scale, p["sa_bk"], p["sa_bv"]], axis=1),   # (1, 3E)
        "sa_wo": p["sa_wo"], "sa_bo": p["sa_bo"],
        "n0_g": p["norm_g"], "n0_b": p["norm_b"],
        "ca_wq": p["ca_wq"] * scale, "ca_bq": p["ca_bq"] * scale,
        "ca_wkv": jnp.concatenate([p["ca_wk"], p["ca_wv"]], axis=1),  # (E, 2E)
        "ca_bkv": jnp.concatenate([p["ca_bk"], p["ca_bv"]], axis=1),  # (1, 2E)
        "ca_wo": p["ca_wo"], "ca_bo": p["ca_bo"],
        "n1_g": p["norm1_g"], "n1_b": p["norm1_b"],
        "ff_w1": p["ff_w1"], "ff_b1": p["ff_b1"],
        "ff_w2": p["ff_w2"], "ff_b2": p["ff_b2"],
        "n2_g": p["norm2_g"], "n2_b": p["norm2_b"],
    }


# --------------------------------------------------------------------------
# Pure-JAX reference (correctness check)
# --------------------------------------------------------------------------
def _ref_mha(x_q, x_kv, mask, wq, bq, wk, bk, wv, bv, wo, bo):
    B, Sq, E = x_q.shape
    Skv = x_kv.shape[1]
    q = (x_q @ wq + bq).reshape(B, Sq, HEADS, HEAD_DIM)
    k = (x_kv @ wk + bk).reshape(B, Skv, HEADS, HEAD_DIM)
    v = (x_kv @ wv + bv).reshape(B, Skv, HEADS, HEAD_DIM)
    scores = jnp.einsum("bqhd,bkhd->bhqk", q, k) / (HEAD_DIM ** 0.5)
    scores = jnp.where(mask[None, None] == 0, NEG_INF, scores)
    p = jax.nn.softmax(scores, axis=-1)
    o = jnp.einsum("bhqk,bkhd->bqhd", p, v).reshape(B, Sq, E)
    return o @ wo + bo


def _ref_ln(x, g, b):
    m = jnp.mean(x, axis=-1, keepdims=True)
    v = jnp.mean((x - m) ** 2, axis=-1, keepdims=True)
    return (x - m) * jax.lax.rsqrt(v + LN_EPS) * g + b


def _ref_decoder_block(x, enc_out, src_mask, trg_mask, p):
    attn = _ref_mha(x, x, trg_mask, p["sa_wq"], p["sa_bq"], p["sa_wk"], p["sa_bk"],
                    p["sa_wv"], p["sa_bv"], p["sa_wo"], p["sa_bo"])
    query = _ref_ln(attn + x, p["norm_g"], p["norm_b"])
    cross = _ref_mha(query, enc_out, src_mask, p["ca_wq"], p["ca_bq"], p["ca_wk"],
                     p["ca_bk"], p["ca_wv"], p["ca_bv"], p["ca_wo"], p["ca_bo"])
    x1 = _ref_ln(cross + query, p["norm1_g"], p["norm1_b"])
    ff = jnp.maximum(x1 @ p["ff_w1"] + p["ff_b1"], 0.0) @ p["ff_w2"] + p["ff_b2"]
    return _ref_ln(ff + x1, p["norm2_g"], p["norm2_b"])


if __name__ == "__main__":
    B, S_TRG, S_SRC, E = 2, 8, 8, EMBED
    key = jax.random.PRNGKey(0)
    k_x, k_enc, k_p = jax.random.split(key, 3)

    x = jax.random.normal(k_x, (B, S_TRG, E), jnp.float32)
    enc_out = jax.random.normal(k_enc, (B, S_SRC, E), jnp.float32)
    trg_mask = jnp.tril(jnp.ones((S_TRG, S_TRG), jnp.float32))   # causal mask
    src_mask = jnp.ones((S_TRG, S_SRC), jnp.float32)             # no src padding
    params = init_params(k_p)
    fused = fuse_params(params)                                  # one-time prep

    out = decoder_block(x, enc_out, src_mask, trg_mask, fused)
    out = jax.block_until_ready(out)

    ref = _ref_decoder_block(x, enc_out, src_mask, trg_mask, params)
    assert out.shape == (B, S_TRG, E)
    # slight tolerance: EUP approximate reciprocal in the softmax denominator
    assert jnp.allclose(out, ref, atol=2e-3, rtol=2e-3), "mismatch vs. reference"

    print("KERNEL_OK")
</pallas_src>

<mosaic_0001>
module attributes {stable_mosaic.version = 11 : i64} {
  func.func @_decoder_block_kernel(%arg0: memref<16x32xf32, #tpu.memory_space<vmem>>, %arg1: memref<16x32xf32, #tpu.memory_space<vmem>>, %arg2: memref<64x64xf32, #tpu.memory_space<vmem>>, %arg3: memref<64x64xf32, #tpu.memory_space<vmem>>, %arg4: memref<32x96xf32, #tpu.memory_space<vmem>>, %arg5: memref<1x96xf32, #tpu.memory_space<vmem>>, %arg6: memref<32x32xf32, #tpu.memory_space<vmem>>, %arg7: memref<1x32xf32, #tpu.memory_space<vmem>>, %arg8: memref<1x32xf32, #tpu.memory_space<vmem>>, %arg9: memref<1x32xf32, #tpu.memory_space<vmem>>, %arg10: memref<32x32xf32, #tpu.memory_space<vmem>>, %arg11: memref<1x32xf32, #tpu.memory_space<vmem>>, %arg12: memref<32x64xf32, #tpu.memory_space<vmem>>, %arg13: memref<1x64xf32, #tpu.memory_space<vmem>>, %arg14: memref<32x32xf32, #tpu.memory_space<vmem>>, %arg15: memref<1x32xf32, #tpu.memory_space<vmem>>, %arg16: memref<1x32xf32, #tpu.memory_space<vmem>>, %arg17: memref<1x32xf32, #tpu.memory_space<vmem>>, %arg18: memref<32x128xf32, #tpu.memory_space<vmem>>, %arg19: memref<1x128xf32, #tpu.memory_space<vmem>>, %arg20: memref<128x32xf32, #tpu.memory_space<vmem>>, %arg21: memref<1x32xf32, #tpu.memory_space<vmem>>, %arg22: memref<1x32xf32, #tpu.memory_space<vmem>>, %arg23: memref<1x32xf32, #tpu.memory_space<vmem>>, %arg24: memref<16x32xf32, #tpu.memory_space<vmem>>) attributes {dimension_semantics = [], scalar_prefetch = 0 : i64, scratch_operands = 0 : i64, tpu.core_type = #tpu.core_type<tc>} {
    %c0 = arith.constant 0 : index
    %c0_0 = arith.constant 0 : index
    %0 = vector.load %arg0[%c0, %c0_0] : memref<16x32xf32, #tpu.memory_space<vmem>>, vector<16x32xf32>
    %c0_1 = arith.constant 0 : index
    %c0_2 = arith.constant 0 : index
    %1 = vector.load %arg1[%c0_1, %c0_2] : memref<16x32xf32, #tpu.memory_space<vmem>>, vector<16x32xf32>
    %c0_3 = arith.constant 0 : index
    %c0_4 = arith.constant 0 : index
    %2 = vector.load %arg4[%c0_3, %c0_4] : memref<32x96xf32, #tpu.memory_space<vmem>>, vector<32x96xf32>
    %cst = arith.constant dense<0.000000e+00> : vector<16x96xf32>
    %3 = tpu.matmul %0, %2, %cst {dimension_numbers = #tpu.dot_dimension_numbers<[1], [0], [0], [1], [0, 0, 1, 1], [], []>, precision = #tpu.contract_precision<fp32>} : vector<16x32xf32>, vector<32x96xf32>, vector<16x96xf32> -> vector<16x96xf32>
    %c0_5 = arith.constant 0 : index
    %c0_6 = arith.constant 0 : index
    %4 = vector.load %arg5[%c0_5, %c0_6] : memref<1x96xf32, #tpu.memory_space<vmem>>, vector<1x96xf32>
    %5 = vector.broadcast %4 : vector<1x96xf32> to vector<16x96xf32>
    %6 = arith.addf %3, %5 : vector<16x96xf32>
    %7 = vector.extract_strided_slice %6 {offsets = [0, 0], sizes = [16, 8], strides = [1, 1]} : vector<16x96xf32> to vector<16x8xf32>
    %8 = vector.extract_strided_slice %6 {offsets = [0, 8], sizes = [16, 8], strides = [1, 1]} : vector<16x96xf32> to vector<16x8xf32>
    %9 = vector.extract_strided_slice %6 {offsets = [0, 16], sizes = [16, 8], strides = [1, 1]} : vector<16x96xf32> to vector<16x8xf32>
    %10 = vector.extract_strided_slice %6 {offsets = [0, 24], sizes = [16, 8], strides = [1, 1]} : vector<16x96xf32> to vector<16x8xf32>
    %11 = tpu.concatenate %7, %8, %9, %10 in 0 : vector<16x8xf32>, vector<16x8xf32>, vector<16x8xf32>, vector<16x8xf32> -> vector<64x8xf32>
    %12 = vector.extract_strided_slice %6 {offsets = [0, 32], sizes = [16, 8], strides = [1, 1]} : vector<16x96xf32> to vector<16x8xf32>
    %13 = vector.extract_strided_slice %6 {offsets = [0, 40], sizes = [16, 8], strides = [1, 1]} : vector<16x96xf32> to vector<16x8xf32>
    %14 = vector.extract_strided_slice %6 {offsets = [0, 48], sizes = [16, 8], strides = [1, 1]} : vector<16x96xf32> to vector<16x8xf32>
    %15 = vector.extract_strided_slice %6 {offsets = [0, 56], sizes = [16, 8], strides = [1, 1]} : vector<16x96xf32> to vector<16x8xf32>
    %16 = tpu.concatenate %12, %13, %14, %15 in 0 : vector<16x8xf32>, vector<16x8xf32>, vector<16x8xf32>, vector<16x8xf32> -> vector<64x8xf32>
    %17 = vector.extract_strided_slice %6 {offsets = [0, 64], sizes = [16, 8], strides = [1, 1]} : vector<16x96xf32> to vector<16x8xf32>
    %18 = vector.extract_strided_slice %6 {offsets = [0, 72], sizes = [16, 8], strides = [1, 1]} : vector<16x96xf32> to vector<16x8xf32>
    %19 = vector.extract_strided_slice %6 {offsets = [0, 80], sizes = [16, 8], strides = [1, 1]} : vector<16x96xf32> to vector<16x8xf32>
    %20 = vector.extract_strided_slice %6 {offsets = [0, 88], sizes = [16, 8], strides = [1, 1]} : vector<16x96xf32> to vector<16x8xf32>
    %21 = tpu.concatenate %17, %18, %19, %20 in 0 : vector<16x8xf32>, vector<16x8xf32>, vector<16x8xf32>, vector<16x8xf32> -> vector<64x8xf32>
    %c0_7 = arith.constant 0 : index
    %c0_8 = arith.constant 0 : index
    %22 = vector.load %arg2[%c0_7, %c0_8] : memref<64x64xf32, #tpu.memory_space<vmem>>, vector<64x64xf32>
    %c0_9 = arith.constant 0 : index
    %c0_10 = arith.constant 0 : index
    %23 = vector.load %arg6[%c0_9, %c0_10] : memref<32x32xf32, #tpu.memory_space<vmem>>, vector<32x32xf32>
    %c0_11 = arith.constant 0 : index
    %c0_12 = arith.constant 0 : index
    %24 = vector.load %arg7[%c0_11, %c0_12] : memref<1x32xf32, #tpu.memory_space<vmem>>, vector<1x32xf32>
    %cst_13 = arith.constant dense<0.000000e+00> : vector<64x64xf32>
    %25 = tpu.matmul %11, %16, %cst_13 {dimension_numbers = #tpu.dot_dimension_numbers<[1], [1], [0], [0], [0, 0, 1, 0], [], []>, precision = #tpu.contract_precision<fp32>} : vector<64x8xf32>, vector<64x8xf32>, vector<64x64xf32> -> vector<64x64xf32>
    %26 = arith.addf %25, %22 : vector<64x64xf32>
    %cst_14 = arith.constant dense<0xFF800000> : vector<64xf32>
    %27 = vector.multi_reduction <maximumf>, %26, %cst_14 [1] : vector<64x64xf32> to vector<64xf32>
    %28 = vector.shape_cast %27 : vector<64xf32> to vector<64x1xf32>
    %29 = vector.broadcast %28 : vector<64x1xf32> to vector<64x64xf32>
    %30 = arith.subf %26, %29 : vector<64x64xf32>
    %31 = math.exp %30 : vector<64x64xf32>
    %cst_15 = arith.constant dense<0.000000e+00> : vector<64xf32>
    %32 = vector.multi_reduction <add>, %31, %cst_15 [1] : vector<64x64xf32> to vector<64xf32>
    %33 = vector.shape_cast %32 : vector<64xf32> to vector<64x1xf32>
    %34 = tpu.reciprocal %33 {approx = true} : vector<64x1xf32> -> vector<64x1xf32>
    %35 = vector.broadcast %34 : vector<64x1xf32> to vector<64x64xf32>
    %36 = arith.mulf %31, %35 : vector<64x64xf32>
    %cst_16 = arith.constant dense<0.000000e+00> : vector<64x8xf32>
    %37 = tpu.matmul %36, %21, %cst_16 {dimension_numbers = #tpu.dot_dimension_numbers<[1], [0], [0], [1], [0, 0, 1, 1], [], []>, precision = #tpu.contract_precision<fp32>} : vector<64x64xf32>, vector<64x8xf32>, vector<64x8xf32> -> vector<64x8xf32>
    %38 = vector.extract_strided_slice %37 {offsets = [0, 0], sizes = [16, 8], strides = [1, 1]} : vector<64x8xf32> to vector<16x8xf32>
    %39 = vector.extract_strided_slice %37 {offsets = [16, 0], sizes = [16, 8], strides = [1, 1]} : vector<64x8xf32> to vector<16x8xf32>
    %40 = vector.extract_strided_slice %37 {offsets = [32, 0], sizes = [16, 8], strides = [1, 1]} : vector<64x8xf32> to vector<16x8xf32>
    %41 = vector.extract_strided_slice %37 {offsets = [48, 0], sizes = [16, 8], strides = [1, 1]} : vector<64x8xf32> to vector<16x8xf32>
    %42 = tpu.concatenate %38, %39, %40, %41 in 1 : vector<16x8xf32>, vector<16x8xf32>, vector<16x8xf32>, vector<16x8xf32> -> vector<16x32xf32>
    %cst_17 = arith.constant dense<0.000000e+00> : vector<16x32xf32>
    %43 = tpu.matmul %42, %23, %cst_17 {dimension_numbers = #tpu.dot_dimension_numbers<[1], [0], [0], [1], [0, 0, 1, 1], [], []>, precision = #tpu.contract_precision<fp32>} : vector<16x32xf32>, vector<32x32xf32>, vector<16x32xf32> -> vector<16x32xf32>
    %44 = vector.broadcast %24 : vector<1x32xf32> to vector<16x32xf32>
    %45 = arith.addf %43, %44 : vector<16x32xf32>
    %46 = arith.addf %45, %0 : vector<16x32xf32>
    %c0_18 = arith.constant 0 : index
    %c0_19 = arith.constant 0 : index
    %47 = vector.load %arg8[%c0_18, %c0_19] : memref<1x32xf32, #tpu.memory_space<vmem>>, vector<1x32xf32>
    %c0_20 = arith.constant 0 : index
    %c0_21 = arith.constant 0 : index
    %48 = vector.load %arg9[%c0_20, %c0_21] : memref<1x32xf32, #tpu.memory_space<vmem>>, vector<1x32xf32>
    %cst_22 = arith.constant dense<0.000000e+00> : vector<16xf32>
    %49 = vector.multi_reduction <add>, %46, %cst_22 [1] : vector<16x32xf32> to vector<16xf32>
    %50 = vector.shape_cast %49 : vector<16xf32> to vector<16x1xf32>
    %cst_23 = arith.constant 3.200000e+01 : f32
    %51 = vector.broadcast %cst_23 : f32 to vector<16x1xf32>
    %52 = arith.divf %50, %51 : vector<16x1xf32>
    %53 = vector.broadcast %52 : vector<16x1xf32> to vector<16x32xf32>
    %54 = arith.subf %46, %53 : vector<16x32xf32>
    %55 = arith.mulf %54, %54 : vector<16x32xf32>
    %cst_24 = arith.constant dense<0.000000e+00> : vector<16xf32>
    %56 = vector.multi_reduction <add>, %55, %cst_24 [1] : vector<16x32xf32> to vector<16xf32>
    %57 = vector.shape_cast %56 : vector<16xf32> to vector<16x1xf32>
    %cst_25 = arith.constant 3.200000e+01 : f32
    %58 = vector.broadcast %cst_25 : f32 to vector<16x1xf32>
    %59 = arith.divf %57, %58 : vector<16x1xf32>
    %cst_26 = arith.constant 9.99999974E-6 : f32
    %60 = vector.broadcast %cst_26 : f32 to vector<16x1xf32>
    %61 = arith.addf %59, %60 : vector<16x1xf32>
    %62 = math.rsqrt %61 : vector<16x1xf32>
    %63 = vector.broadcast %62 : vector<16x1xf32> to vector<16x32xf32>
    %64 = arith.mulf %54, %63 : vector<16x32xf32>
    %65 = vector.broadcast %47 : vector<1x32xf32> to vector<16x32xf32>
    %66 = arith.mulf %64, %65 : vector<16x32xf32>
    %67 = vector.broadcast %48 : vector<1x32xf32> to vector<16x32xf32>
    %68 = arith.addf %66, %67 : vector<16x32xf32>
    %c0_27 = arith.constant 0 : index
    %c0_28 = arith.constant 0 : index
    %69 = vector.load %arg10[%c0_27, %c0_28] : memref<32x32xf32, #tpu.memory_space<vmem>>, vector<32x32xf32>
    %cst_29 = arith.constant dense<0.000000e+00> : vector<16x32xf32>
    %70 = tpu.matmul %68, %69, %cst_29 {dimension_numbers = #tpu.dot_dimension_numbers<[1], [0], [0], [1], [0, 0, 1, 1], [], []>, precision = #tpu.contract_precision<fp32>} : vector<16x32xf32>, vector<32x32xf32>, vector<16x32xf32> -> vector<16x32xf32>
    %c0_30 = arith.constant 0 : index
    %c0_31 = arith.constant 0 : index
    %71 = vector.load %arg11[%c0_30, %c0_31] : memref<1x32xf32, #tpu.memory_space<vmem>>, vector<1x32xf32>
    %72 = vector.broadcast %71 : vector<1x32xf32> to vector<16x32xf32>
    %73 = arith.addf %70, %72 : vector<16x32xf32>
    %c0_32 = arith.constant 0 : index
    %c0_33 = arith.constant 0 : index
    %74 = vector.load %arg12[%c0_32, %c0_33] : memref<32x64xf32, #tpu.memory_space<vmem>>, vector<32x64xf32>
    %cst_34 = arith.constant dense<0.000000e+00> : vector<16x64xf32>
    %75 = tpu.matmul %1, %74, %cst_34 {dimension_numbers = #tpu.dot_dimension_numbers<[1], [0], [0], [1], [0, 0, 1, 1], [], []>, precision = #tpu.contract_precision<fp32>} : vector<16x32xf32>, vector<32x64xf32>, vector<16x64xf32> -> vector<16x64xf32>
    %c0_35 = arith.constant 0 : index
    %c0_36 = arith.constant 0 : index
    %76 = vector.load %arg13[%c0_35, %c0_36] : memref<1x64xf32, #tpu.memory_space<vmem>>, vector<1x64xf32>
    %77 = vector.broadcast %76 : vector<1x64xf32> to vector<16x64xf32>
    %78 = arith.addf %75, %77 : vector<16x64xf32>
    %79 = vector.extract_strided_slice %73 {offsets = [0, 0], sizes = [16, 8], strides = [1, 1]} : vector<16x32xf32> to vector<16x8xf32>
    %80 = vector.extract_strided_slice %73 {offsets = [0, 8], sizes = [16, 8], strides = [1, 1]} : vector<16x32xf32> to vector<16x8xf32>
    %81 = vector.extract_strided_slice %73 {offsets = [0, 16], sizes = [16, 8], strides = [1, 1]} : vector<16x32xf32> to vector<16x8xf32>
    %82 = vector.extract_strided_slice %73 {offsets = [0, 24], sizes = [16, 8], strides = [1, 1]} : vector<16x32xf32> to vector<16x8xf32>
    %83 = tpu.concatenate %79, %80, %81, %82 in 0 : vector<16x8xf32>, vector<16x8xf32>, vector<16x8xf32>, vector<16x8xf32> -> vector<64x8xf32>
    %84 = vector.extract_strided_slice %78 {offsets = [0, 0], sizes = [16, 8], strides = [1, 1]} : vector<16x64xf32> to vector<16x8xf32>
    %85 = vector.extract_strided_slice %78 {offsets = [0, 8], sizes = [16, 8], strides = [1, 1]} : vector<16x64xf32> to vector<16x8xf32>
    %86 = vector.extract_strided_slice %78 {offsets = [0, 16], sizes = [16, 8], strides = [1, 1]} : vector<16x64xf32> to vector<16x8xf32>
    %87 = vector.extract_strided_slice %78 {offsets = [0, 24], sizes = [16, 8], strides = [1, 1]} : vector<16x64xf32> to vector<16x8xf32>
    %88 = tpu.concatenate %84, %85, %86, %87 in 0 : vector<16x8xf32>, vector<16x8xf32>, vector<16x8xf32>, vector<16x8xf32> -> vector<64x8xf32>
    %89 = vector.extract_strided_slice %78 {offsets = [0, 32], sizes = [16, 8], strides = [1, 1]} : vector<16x64xf32> to vector<16x8xf32>
    %90 = vector.extract_strided_slice %78 {offsets = [0, 40], sizes = [16, 8], strides = [1, 1]} : vector<16x64xf32> to vector<16x8xf32>
    %91 = vector.extract_strided_slice %78 {offsets = [0, 48], sizes = [16, 8], strides = [1, 1]} : vector<16x64xf32> to vector<16x8xf32>
    %92 = vector.extract_strided_slice %78 {offsets = [0, 56], sizes = [16, 8], strides = [1, 1]} : vector<16x64xf32> to vector<16x8xf32>
    %93 = tpu.concatenate %89, %90, %91, %92 in 0 : vector<16x8xf32>, vector<16x8xf32>, vector<16x8xf32>, vector<16x8xf32> -> vector<64x8xf32>
    %c0_37 = arith.constant 0 : index
    %c0_38 = arith.constant 0 : index
    %94 = vector.load %arg3[%c0_37, %c0_38] : memref<64x64xf32, #tpu.memory_space<vmem>>, vector<64x64xf32>
    %c0_39 = arith.constant 0 : index
    %c0_40 = arith.constant 0 : index
    %95 = vector.load %arg14[%c0_39, %c0_40] : memref<32x32xf32, #tpu.memory_space<vmem>>, vector<32x32xf32>
    %c0_41 = arith.constant 0 : index
    %c0_42 = arith.constant 0 : index
    %96 = vector.load %arg15[%c0_41, %c0_42] : memref<1x32xf32, #tpu.memory_space<vmem>>, vector<1x32xf32>
    %cst_43 = arith.constant dense<0.000000e+00> : vector<64x64xf32>
    %97 = tpu.matmul %83, %88, %cst_43 {dimension_numbers = #tpu.dot_dimension_numbers<[1], [1], [0], [0], [0, 0, 1, 0], [], []>, precision = #tpu.contract_precision<fp32>} : vector<64x8xf32>, vector<64x8xf32>, vector<64x64xf32> -> vector<64x64xf32>
    %98 = arith.addf %97, %94 : vector<64x64xf32>
    %cst_44 = arith.constant dense<0xFF800000> : vector<64xf32>
    %99 = vector.multi_reduction <maximumf>, %98, %cst_44 [1] : vector<64x64xf32> to vector<64xf32>
    %100 = vector.shape_cast %99 : vector<64xf32> to vector<64x1xf32>
    %101 = vector.broadcast %100 : vector<64x1xf32> to vector<64x64xf32>
    %102 = arith.subf %98, %101 : vector<64x64xf32>
    %103 = math.exp %102 : vector<64x64xf32>
    %cst_45 = arith.constant dense<0.000000e+00> : vector<64xf32>
    %104 = vector.multi_reduction <add>, %103, %cst_45 [1] : vector<64x64xf32> to vector<64xf32>
    %105 = vector.shape_cast %104 : vector<64xf32> to vector<64x1xf32>
    %106 = tpu.reciprocal %105 {approx = true} : vector<64x1xf32> -> vector<64x1xf32>
    %107 = vector.broadcast %106 : vector<64x1xf32> to vector<64x64xf32>
    %108 = arith.mulf %103, %107 : vector<64x64xf32>
    %cst_46 = arith.constant dense<0.000000e+00> : vector<64x8xf32>
    %109 = tpu.matmul %108, %93, %cst_46 {dimension_numbers = #tpu.dot_dimension_numbers<[1], [0], [0], [1], [0, 0, 1, 1], [], []>, precision = #tpu.contract_precision<fp32>} : vector<64x64xf32>, vector<64x8xf32>, vector<64x8xf32> -> vector<64x8xf32>
    %110 = vector.extract_strided_slice %109 {offsets = [0, 0], sizes = [16, 8], strides = [1, 1]} : vector<64x8xf32> to vector<16x8xf32>
    %111 = vector.extract_strided_slice %109 {offsets = [16, 0], sizes = [16, 8], strides = [1, 1]} : vector<64x8xf32> to vector<16x8xf32>
    %112 = vector.extract_strided_slice %109 {offsets = [32, 0], sizes = [16, 8], strides = [1, 1]} : vector<64x8xf32> to vector<16x8xf32>
    %113 = vector.extract_strided_slice %109 {offsets = [48, 0], sizes = [16, 8], strides = [1, 1]} : vector<64x8xf32> to vector<16x8xf32>
    %114 = tpu.concatenate %110, %111, %112, %113 in 1 : vector<16x8xf32>, vector<16x8xf32>, vector<16x8xf32>, vector<16x8xf32> -> vector<16x32xf32>
    %cst_47 = arith.constant dense<0.000000e+00> : vector<16x32xf32>
    %115 = tpu.matmul %114, %95, %cst_47 {dimension_numbers = #tpu.dot_dimension_numbers<[1], [0], [0], [1], [0, 0, 1, 1], [], []>, precision = #tpu.contract_precision<fp32>} : vector<16x32xf32>, vector<32x32xf32>, vector<16x32xf32> -> vector<16x32xf32>
    %116 = vector.broadcast %96 : vector<1x32xf32> to vector<16x32xf32>
    %117 = arith.addf %115, %116 : vector<16x32xf32>
    %118 = arith.addf %117, %68 : vector<16x32xf32>
    %c0_48 = arith.constant 0 : index
    %c0_49 = arith.constant 0 : index
    %119 = vector.load %arg16[%c0_48, %c0_49] : memref<1x32xf32, #tpu.memory_space<vmem>>, vector<1x32xf32>
    %c0_50 = arith.constant 0 : index
    %c0_51 = arith.constant 0 : index
    %120 = vector.load %arg17[%c0_50, %c0_51] : memref<1x32xf32, #tpu.memory_space<vmem>>, vector<1x32xf32>
    %cst_52 = arith.constant dense<0.000000e+00> : vector<16xf32>
    %121 = vector.multi_reduction <add>, %118, %cst_52 [1] : vector<16x32xf32> to vector<16xf32>
    %122 = vector.shape_cast %121 : vector<16xf32> to vector<16x1xf32>
    %cst_53 = arith.constant 3.200000e+01 : f32
    %123 = vector.broadcast %cst_53 : f32 to vector<16x1xf32>
    %124 = arith.divf %122, %123 : vector<16x1xf32>
    %125 = vector.broadcast %124 : vector<16x1xf32> to vector<16x32xf32>
    %126 = arith.subf %118, %125 : vector<16x32xf32>
    %127 = arith.mulf %126, %126 : vector<16x32xf32>
    %cst_54 = arith.constant dense<0.000000e+00> : vector<16xf32>
    %128 = vector.multi_reduction <add>, %127, %cst_54 [1] : vector<16x32xf32> to vector<16xf32>
    %129 = vector.shape_cast %128 : vector<16xf32> to vector<16x1xf32>
    %cst_55 = arith.constant 3.200000e+01 : f32
    %130 = vector.broadcast %cst_55 : f32 to vector<16x1xf32>
    %131 = arith.divf %129, %130 : vector<16x1xf32>
    %cst_56 = arith.constant 9.99999974E-6 : f32
    %132 = vector.broadcast %cst_56 : f32 to vector<16x1xf32>
    %133 = arith.addf %131, %132 : vector<16x1xf32>
    %134 = math.rsqrt %133 : vector<16x1xf32>
    %135 = vector.broadcast %134 : vector<16x1xf32> to vector<16x32xf32>
    %136 = arith.mulf %126, %135 : vector<16x32xf32>
    %137 = vector.broadcast %119 : vector<1x32xf32> to vector<16x32xf32>
    %138 = arith.mulf %136, %137 : vector<16x32xf32>
    %139 = vector.broadcast %120 : vector<1x32xf32> to vector<16x32xf32>
    %140 = arith.addf %138, %139 : vector<16x32xf32>
    %c0_57 = arith.constant 0 : index
    %c0_58 = arith.constant 0 : index
    %141 = vector.load %arg18[%c0_57, %c0_58] : memref<32x128xf32, #tpu.memory_space<vmem>>, vector<32x128xf32>
    %cst_59 = arith.constant dense<0.000000e+00> : vector<16x128xf32>
    %142 = tpu.matmul %140, %141, %cst_59 {dimension_numbers = #tpu.dot_dimension_numbers<[1], [0], [0], [1], [0, 0, 1, 1], [], []>, precision = #tpu.contract_precision<fp32>} : vector<16x32xf32>, vector<32x128xf32>, vector<16x128xf32> -> vector<16x128xf32>
    %c0_60 = arith.constant 0 : index
    %c0_61 = arith.constant 0 : index
    %143 = vector.load %arg19[%c0_60, %c0_61] : memref<1x128xf32, #tpu.memory_space<vmem>>, vector<1x128xf32>
    %144 = vector.broadcast %143 : vector<1x128xf32> to vector<16x128xf32>
    %145 = arith.addf %142, %144 : vector<16x128xf32>
    %cst_62 = arith.constant 0.000000e+00 : f32
    %146 = vector.broadcast %cst_62 : f32 to vector<16x128xf32>
    %147 = arith.maximumf %145, %146 : vector<16x128xf32>
    %c0_63 = arith.constant 0 : index
    %c0_64 = arith.constant 0 : index
    %148 = vector.load %arg20[%c0_63, %c0_64] : memref<128x32xf32, #tpu.memory_space<vmem>>, vector<128x32xf32>
    %cst_65 = arith.constant dense<0.000000e+00> : vector<16x32xf32>
    %149 = tpu.matmul %147, %148, %cst_65 {dimension_numbers = #tpu.dot_dimension_numbers<[1], [0], [0], [1], [0, 0, 1, 1], [], []>, precision = #tpu.contract_precision<fp32>} : vector<16x128xf32>, vector<128x32xf32>, vector<16x32xf32> -> vector<16x32xf32>
    %c0_66 = arith.constant 0 : index
    %c0_67 = arith.constant 0 : index
    %150 = vector.load %arg21[%c0_66, %c0_67] : memref<1x32xf32, #tpu.memory_space<vmem>>, vector<1x32xf32>
    %151 = vector.broadcast %150 : vector<1x32xf32> to vector<16x32xf32>
    %152 = arith.addf %149, %151 : vector<16x32xf32>
    %153 = arith.addf %152, %140 : vector<16x32xf32>
    %c0_68 = arith.constant 0 : index
    %c0_69 = arith.constant 0 : index
    %154 = vector.load %arg22[%c0_68, %c0_69] : memref<1x32xf32, #tpu.memory_space<vmem>>, vector<1x32xf32>
    %c0_70 = arith.constant 0 : index
    %c0_71 = arith.constant 0 : index
    %155 = vector.load %arg23[%c0_70, %c0_71] : memref<1x32xf32, #tpu.memory_space<vmem>>, vector<1x32xf32>
    %cst_72 = arith.constant dense<0.000000e+00> : vector<16xf32>
    %156 = vector.multi_reduction <add>, %153, %cst_72 [1] : vector<16x32xf32> to vector<16xf32>
    %157 = vector.shape_cast %156 : vector<16xf32> to vector<16x1xf32>
    %cst_73 = arith.constant 3.200000e+01 : f32
    %158 = vector.broadcast %cst_73 : f32 to vector<16x1xf32>
    %159 = arith.divf %157, %158 : vector<16x1xf32>
    %160 = vector.broadcast %159 : vector<16x1xf32> to vector<16x32xf32>
    %161 = arith.subf %153, %160 : vector<16x32xf32>
    %162 = arith.mulf %161, %161 : vector<16x32xf32>
    %cst_74 = arith.constant dense<0.000000e+00> : vector<16xf32>
    %163 = vector.multi_reduction <add>, %162, %cst_74 [1] : vector<16x32xf32> to vector<16xf32>
    %164 = vector.shape_cast %163 : vector<16xf32> to vector<16x1xf32>
    %cst_75 = arith.constant 3.200000e+01 : f32
    %165 = vector.broadcast %cst_75 : f32 to vector<16x1xf32>
    %166 = arith.divf %164, %165 : vector<16x1xf32>
    %cst_76 = arith.constant 9.99999974E-6 : f32
    %167 = vector.broadcast %cst_76 : f32 to vector<16x1xf32>
    %168 = arith.addf %166, %167 : vector<16x1xf32>
    %169 = math.rsqrt %168 : vector<16x1xf32>
    %170 = vector.broadcast %169 : vector<16x1xf32> to vector<16x32xf32>
    %171 = arith.mulf %161, %170 : vector<16x32xf32>
    %172 = vector.broadcast %154 : vector<1x32xf32> to vector<16x32xf32>
    %173 = arith.mulf %171, %172 : vector<16x32xf32>
    %174 = vector.broadcast %155 : vector<1x32xf32> to vector<16x32xf32>
    %175 = arith.addf %173, %174 : vector<16x32xf32>
    %c0_77 = arith.constant 0 : index
    %c0_78 = arith.constant 0 : index
    %176 = vector.load %arg24[%c0_77, %c0_78] : memref<16x32xf32, #tpu.memory_space<vmem>>, vector<16x32xf32>
    tpu.vector_store %arg24[%c0_77, %c0_78], %175 {strides = array<i32>} : memref<16x32xf32, #tpu.memory_space<vmem>>, vector<16x32xf32>,
    return
  }
}

</mosaic_0001>

<llo_original>
// kernel: decoder_block.1
$region0: #{decoder_block.1}
  #allocation0 [shape = 'u32[]', space=smem, size = 0x4, offset = 0x4, fixed_abs, tag = 'smem constant byte address 0x4 - core index']
  #allocation1 [shape = 'u32[144,128]{1,0:T(1,128)}', space=vmem, size = 0x12000, scoped, tag = 'internal scratch']
  %s0 = inlined_call_operand.vmem [shape: f32[16,32], index: 0, kind: input, shape index: {}]
  %s1 = inlined_call_operand.vmem [shape: f32[16,32], index: 1, kind: input, shape index: {}]
  %s2 = inlined_call_operand.vmem [shape: f32[64,64], index: 2, kind: input, shape index: {}]
  %s3 = inlined_call_operand.vmem [shape: f32[64,64], index: 3, kind: input, shape index: {}]
  %s4 = inlined_call_operand.vmem [shape: f32[32,96], index: 4, kind: input, shape index: {}]
  %s5 = inlined_call_operand.vmem [shape: f32[1,96], index: 5, kind: input, shape index: {}]
  %s6 = inlined_call_operand.vmem [shape: f32[32,32], index: 6, kind: input, shape index: {}]
  %s7 = inlined_call_operand.vmem [shape: f32[1,32], index: 7, kind: input, shape index: {}]
  %s8 = inlined_call_operand.vmem [shape: f32[1,32], index: 8, kind: input, shape index: {}]
  %s9 = inlined_call_operand.vmem [shape: f32[1,32], index: 9, kind: input, shape index: {}]
  %s10 = inlined_call_operand.vmem [shape: f32[32,32], index: 10, kind: input, shape index: {}]
  %s11 = inlined_call_operand.vmem [shape: f32[1,32], index: 11, kind: input, shape index: {}]
  %s12 = inlined_call_operand.vmem [shape: f32[32,64], index: 12, kind: input, shape index: {}]
  %s13 = inlined_call_operand.vmem [shape: f32[1,64], index: 13, kind: input, shape index: {}]
  %s14 = inlined_call_operand.vmem [shape: f32[32,32], index: 14, kind: input, shape index: {}]
  %s15 = inlined_call_operand.vmem [shape: f32[1,32], index: 15, kind: input, shape index: {}]
  %s16 = inlined_call_operand.vmem [shape: f32[1,32], index: 16, kind: input, shape index: {}]
  %s17 = inlined_call_operand.vmem [shape: f32[1,32], index: 17, kind: input, shape index: {}]
  %s18 = inlined_call_operand.vmem [shape: f32[32,128], index: 18, kind: input, shape index: {}]
  %s19 = inlined_call_operand.vmem [shape: f32[1,128], index: 19, kind: input, shape index: {}]
  %s20 = inlined_call_operand.vmem [shape: f32[128,32], index: 20, kind: input, shape index: {}]
  %s21 = inlined_call_operand.vmem [shape: f32[1,32], index: 21, kind: input, shape index: {}]
  %s22 = inlined_call_operand.vmem [shape: f32[1,32], index: 22, kind: input, shape index: {}]
  %s23 = inlined_call_operand.vmem [shape: f32[1,32], index: 23, kind: input, shape index: {}]
  %s24 = inlined_call_operand.hbm [shape: f32[16,32], index: 24, kind: output, shape index: {}]
  %s25 = sld [smem:[#allocation0]]
  $region106: #{decoder_block.1} parent=0
    _
  %s27 = ssub.s32 1, %s25
  %s28 = scalar_select 0, %s27, %s25
  $region1: #{decoder_block.1} parent=0
    #allocation2 [shape = 'u8[8192]{0}', space=vmem, size = 0x2000, scoped, tag = 'output window, operand 0, single buffered']
    #allocation3 [shape = 's32[1]{0}', space=sflag, size = 0x4, scoped, tag = 'scoped memory for decoder_block.1']
    %29 = vsyncpa [#allocation3], 0
    // Predicated region
    $region2: #{decoder_block.1} parent=1 // pred_check
      _
    $region3: #{decoder_block.1} parent=1 // pred_check_branch
      %31 = sbr.rel (0) target = $region5
    $region4: #{decoder_block.1} parent=1 // pred_region
      _
    $region5: #{decoder_block.1} parent=1 // pred_fallthru
      _
    // Predicated region
    $region6: #{decoder_block.1} parent=1 // pred_check
      _
    $region7: #{decoder_block.1} parent=1 // pred_check_branch
      %33 = sbr.rel (0) target = $region9
    $region8: #{decoder_block.1} parent=1 // pred_region
      _
    $region9: #{decoder_block.1} parent=1 // pred_fallthru
      _
    // Predicated region
    $region10: #{decoder_block.1} parent=1 // pred_check
      _
    $region11: #{decoder_block.1} parent=1 // pred_check_branch
      %35 = sbr.rel (0) target = $region13
    $region12: #{decoder_block.1} parent=1 // pred_region
      _
    $region13: #{decoder_block.1} parent=1 // pred_fallthru
      _
    // Predicated region
    $region14: #{decoder_block.1} parent=1 // pred_check
      _
    $region15: #{decoder_block.1} parent=1 // pred_check_branch
      %37 = sbr.rel (0) target = $region17
    $region16: #{decoder_block.1} parent=1 // pred_region
      _
    $region17: #{decoder_block.1} parent=1 // pred_fallthru
      _
    // Predicated region
    $region18: #{decoder_block.1} parent=1 // pred_check
      _
    $region19: #{decoder_block.1} parent=1 // pred_check_branch
      %39 = sbr.rel (0) target = $region21
    $region20: #{decoder_block.1} parent=1 // pred_region
      _
    $region21: #{decoder_block.1} parent=1 // pred_fallthru
      _
    // Predicated region
    $region22: #{decoder_block.1} parent=1 // pred_check
      _
    $region23: #{decoder_block.1} parent=1 // pred_check_branch
      %41 = sbr.rel (0) target = $region25
    $region24: #{decoder_block.1} parent=1 // pred_region
      _
    $region25: #{decoder_block.1} parent=1 // pred_fallthru
      _
    // Predicated region
    $region26: #{decoder_block.1} parent=1 // pred_check
      _
    $region27: #{decoder_block.1} parent=1 // pred_check_branch
      %43 = sbr.rel (0) target = $region29
    $region28: #{decoder_block.1} parent=1 // pred_region
      _
    $region29: #{decoder_block.1} parent=1 // pred_fallthru
      _
    // Predicated region
    $region30: #{decoder_block.1} parent=1 // pred_check
      _
    $region31: #{decoder_block.1} parent=1 // pred_check_branch
      %45 = sbr.rel (0) target = $region33
    $region32: #{decoder_block.1} parent=1 // pred_region
      _
    $region33: #{decoder_block.1} parent=1 // pred_fallthru
      _
    // Predicated region
    $region34: #{decoder_block.1} parent=1 // pred_check
      _
    $region35: #{decoder_block.1} parent=1 // pred_check_branch
      %47 = sbr.rel (0) target = $region37
    $region36: #{decoder_block.1} parent=1 // pred_region
      _
    $region37: #{decoder_block.1} parent=1 // pred_fallthru
      _
    // Predicated region
    $region38: #{decoder_block.1} parent=1 // pred_check
      _
    $region39: #{decoder_block.1} parent=1 // pred_check_branch
      %49 = sbr.rel (0) target = $region41
    $region40: #{decoder_block.1} parent=1 // pred_region
      _
    $region41: #{decoder_block.1} parent=1 // pred_fallthru
      _
    // Predicated region
    $region42: #{decoder_block.1} parent=1 // pred_check
      _
    $region43: #{decoder_block.1} parent=1 // pred_check_branch
      %51 = sbr.rel (0) target = $region45
    $region44: #{decoder_block.1} parent=1 // pred_region
      _
    $region45: #{decoder_block.1} parent=1 // pred_fallthru
      _
    // Predicated region
    $region46: #{decoder_block.1} parent=1 // pred_check
      _
    $region47: #{decoder_block.1} parent=1 // pred_check_branch
      %53 = sbr.rel (0) target = $region49
    $region48: #{decoder_block.1} parent=1 // pred_region
      _
    $region49: #{decoder_block.1} parent=1 // pred_fallthru
      _
    // Predicated region
    $region50: #{decoder_block.1} parent=1 // pred_check
      _
    $region51: #{decoder_block.1} parent=1 // pred_check_branch
      %55 = sbr.rel (0) target = $region53
    $region52: #{decoder_block.1} parent=1 // pred_region
      _
    $region53: #{decoder_block.1} parent=1 // pred_fallthru
      _
    // Predicated region
    $region54: #{decoder_block.1} parent=1 // pred_check
      _
    $region55: #{decoder_block.1} parent=1 // pred_check_branch
      %57 = sbr.rel (0) target = $region57
    $region56: #{decoder_block.1} parent=1 // pred_region
      _
    $region57: #{decoder_block.1} parent=1 // pred_fallthru
      _
    // Predicated region
    $region58: #{decoder_block.1} parent=1 // pred_check
      _
    $region59: #{decoder_block.1} parent=1 // pred_check_branch
      %59 = sbr.rel (0) target = $region61
    $region60: #{decoder_block.1} parent=1 // pred_region
      _
    $region61: #{decoder_block.1} parent=1 // pred_fallthru
      _
    // Predicated region
    $region62: #{decoder_block.1} parent=1 // pred_check
      _
    $region63: #{decoder_block.1} parent=1 // pred_check_branch
      %61 = sbr.rel (0) target = $region65
    $region64: #{decoder_block.1} parent=1 // pred_region
      _
    $region65: #{decoder_block.1} parent=1 // pred_fallthru
      _
    // Predicated region
    $region66: #{decoder_block.1} parent=1 // pred_check
      _
    $region67: #{decoder_block.1} parent=1 // pred_check_branch
      %63 = sbr.rel (0) target = $region69
    $region68: #{decoder_block.1} parent=1 // pred_region
      _
    $region69: #{decoder_block.1} parent=1 // pred_fallthru
      _
    // Predicated region
    $region70: #{decoder_block.1} parent=1 // pred_check
      _
    $region71: #{decoder_block.1} parent=1 // pred_check_branch
      %65 = sbr.rel (0) target = $region73
    $region72: #{decoder_block.1} parent=1 // pred_region
      _
    $region73: #{decoder_block.1} parent=1 // pred_fallthru
      _
    // Predicated region
    $region74: #{decoder_block.1} parent=1 // pred_check
      _
    $region75: #{decoder_block.1} parent=1 // pred_check_branch
      %67 = sbr.rel (0) target = $region77
    $region76: #{decoder_block.1} parent=1 // pred_region
      _
    $region77: #{decoder_block.1} parent=1 // pred_fallthru
      _
    // Predicated region
    $region78: #{decoder_block.1} parent=1 // pred_check
      _
    $region79: #{decoder_block.1} parent=1 // pred_check_branch
      %69 = sbr.rel (0) target = $region81
    $region80: #{decoder_block.1} parent=1 // pred_region
      _
    $region81: #{decoder_block.1} parent=1 // pred_fallthru
      _
    // Predicated region
    $region82: #{decoder_block.1} parent=1 // pred_check
      _
    $region83: #{decoder_block.1} parent=1 // pred_check_branch
      %71 = sbr.rel (0) target = $region85
    $region84: #{decoder_block.1} parent=1 // pred_region
      _
    $region85: #{decoder_block.1} parent=1 // pred_fallthru
      _
    // Predicated region
    $region86: #{decoder_block.1} parent=1 // pred_check
      _
    $region87: #{decoder_block.1} parent=1 // pred_check_branch
      %73 = sbr.rel (0) target = $region89
    $region88: #{decoder_block.1} parent=1 // pred_region
      _
    $region89: #{decoder_block.1} parent=1 // pred_fallthru
      _
    // Predicated region
    $region90: #{decoder_block.1} parent=1 // pred_check
      _
    $region91: #{decoder_block.1} parent=1 // pred_check_branch
      %75 = sbr.rel (0) target = $region93
    $region92: #{decoder_block.1} parent=1 // pred_region
      _
    $region93: #{decoder_block.1} parent=1 // pred_fallthru
      _
    // Predicated region
    $region94: #{decoder_block.1} parent=1 // pred_check
      _
    $region95: #{decoder_block.1} parent=1 // pred_check_branch
      %77 = sbr.rel (0) target = $region97
    $region96: #{decoder_block.1} parent=1 // pred_region
      _
    $region97: #{decoder_block.1} parent=1 // pred_fallthru
      _
    %v78 = vld [vmem:[%s0] sm:$0xff]
    %v79 = vld [vmem:[%s0 + $0x8] sm:$0xff]
    %v80 = vld [vmem:[%s1] sm:$0xff]
    %v81 = vld [vmem:[%s1 + $0x8] sm:$0xff]
    %v82 = vld [vmem:[%s4] sm:$0xff]
    %v83 = vld [vmem:[%s4 + $0x8] sm:$0xff]
    %v84 = vld [vmem:[%s4 + $0x10] sm:$0xff]
    %v85 = vld [vmem:[%s4 + $0x18] sm:$0xff]
    %v86 = vld [vmem:[%s5] sm:$0x1]
    %v88 = vlaneseq
    %v89 = vshrl.u32 %v88, 7
    %v90 = vsub.s32 0, %v89
    %v91 = vrot.slane %v86, %v90
    %vm93 = vcmask 261120
    %v95 = vsel %vm93, %v78, 0
    %v98 = vsel %vm93, %v79, 0
    %100 = vmatprep.subr.mxu0 0.0
    %v101 = vand.u32 %v82, 4294901760
    %102 = vmatpush1.msra.mxu0 %v101
    %103 = vmatprep.subr.mxu0 0.0
    %v104 = vand.u32 %v83, 4294901760
    %105 = vmatpush1.msra.mxu0 %v104
    %106 = vmatprep.subr.mxu0 0.0
    %v107 = vand.u32 %v84, 4294901760
    %108 = vmatpush1.msra.mxu0 %v107
    %109 = vmatprep.subr.mxu0 0.0
    %v110 = vand.u32 %v85, 4294901760
    %111 = vmatpush1.msra.mxu0 %v110
    %112 = vmatprep.subr.mxu0 0.0
    %113 = vmatpush1.msra.mxu0 0.0
    %114 = vmatprep.subr.mxu0 0.0
    %115 = vmatpush1.msra.mxu0 0.0
    %116 = vmatprep.subr.mxu0 0.0
    %117 = vmatpush1.msra.mxu0 0.0
    %118 = vmatprep.subr.mxu0 0.0
    %119 = vmatpush1.msra.mxu0 0.0
    %120 = vmatprep.subr.mxu0 0.0
    %121 = vmatpush1.msra.mxu0 0.0
    %122 = vmatprep.subr.mxu0 0.0
    %123 = vmatpush1.msra.mxu0 0.0
    %124 = vmatprep.subr.mxu0 0.0
    %125 = vmatpush1.msra.mxu0 0.0
    %126 = vmatprep.subr.mxu0 0.0
    %127 = vmatpush1.msra.mxu0 0.0
    %128 = vmatprep.subr.mxu0 0.0
    %129 = vmatpush1.msra.mxu0 0.0
    %130 = vmatprep.subr.mxu0 0.0
    %131 = vmatpush1.msra.mxu0 0.0
    %132 = vmatprep.subr.mxu0 0.0
    %133 = vmatpush1.msra.mxu0 0.0
    %134 = vmatprep.subr.mxu0 0.0
    %135 = vmatpush1.msra.mxu0 0.0
    %136 = vmatprep.subr.mxu0 0.0
    %137 = vmatpush1.msra.mxu0 0.0
    %138 = vmatprep.subr.mxu0 0.0
    %139 = vmatpush1.msra.mxu0 0.0
    %140 = vmatprep.subr.mxu0 0.0
    %141 = vmatpush1.msra.mxu0 0.0
    %142 = vmatprep.subr.mxu0 0.0
    %143 = vmatpush1.msra.mxu0 0.0
    %144 = vmatprep.subr.mxu0 0.0
    %145 = vmatpush1.msra.mxu0 0.0
    %146 = vmatprep.subr.mxu0 0.0
    %147 = vmatpush1.msra.mxu0 0.0
    %148 = vmatprep.subr.mxu0 0.0
    %149 = vmatpush1.msra.mxu0 0.0
    %150 = vmatprep.subr.mxu0 0.0
    %151 = vmatpush1.msra.mxu0 0.0
    %152 = vmatprep.subr.mxu0 0.0
    %153 = vmatpush1.msra.mxu0 0.0
    %154 = vmatprep.subr.mxu0 0.0
    %155 = vmatpush1.msra.mxu0 0.0
    %156 = vmatprep.subr.mxu0 0.0
    %157 = vmatpush1.msra.mxu0 0.0
    %158 = vmatprep.subr.mxu0 0.0
    %159 = vmatpush1.msra.mxu0 0.0
    %160 = vmatprep.subr.mxu0 0.0
    %161 = vmatpush1.msra.mxu0 0.0
    %162 = vmatprep.subr.mxu0 0.0
    %163 = vmatpush1.msra.mxu0 0.0
    %164 = vmatprep.subr.mxu0 0.0
    %165 = vmatpush1.msra.mxu0 0.0
    %166 = vmatprep.subr.mxu0 0.0
    %167 = vmatpush1.msra.mxu0 0.0
    %168 = vmatprep.mubr.f32.mxu0 0.0
    %v169 = vand.u32 %v95, 4294901760
    %v170 = vsub.f32 %v95, %v169
    %v171 = vand.u32 %v170, 4294901760
    %v172 = vsub.f32 %v170, %v171
    %v173 = vand.u32 %v172, 4294901760
    %174 = vmatmul.mubr.f32.gmra.mrb[0].mxu0 %v173
    %v175 = vpop.f32.mrb[0].mxu0
    %v176 = vadd.f32 %v91, %v175
    %v177 = vpop.f32.mrb[0].mxu0
    %178 = vmatprep.mubr.f32.mxu0 0.0
    %v179 = vand.u32 %v98, 4294901760
    %v180 = vsub.f32 %v98, %v179
    %v181 = vand.u32 %v180, 4294901760
    %v182 = vsub.f32 %v180, %v181
    %v183 = vand.u32 %v182, 4294901760
    %184 = vmatmul.mubr.f32.gmra.mrb[0].mxu0 %v183
    %v185 = vpop.f32.mrb[0].mxu0
    %v186 = vadd.f32 %v91, %v185
    %v187 = vpop.f32.mrb[0].mxu0
    %188 = vdwg.mxu0
    %189 = vmatprep.subr.mxu0 0.0
    %v190 = vand.u32 %v82, 4294901760
    %v191 = vsub.f32 %v82, %v190
    %v192 = vand.u32 %v191, 4294901760
    %v193 = vsub.f32 %v191, %v192
    %v194 = vand.u32 %v193, 4294901760
    %195 = vmatpush1.msra.mxu0 %v194
    %196 = vmatprep.subr.mxu0 0.0
    %v197 = vand.u32 %v83, 4294901760
    %v198 = vsub.f32 %v83, %v197
    %v199 = vand.u32 %v198, 4294901760
    %v200 = vsub.f32 %v198, %v199
    %v201 = vand.u32 %v200, 4294901760
    %202 = vmatpush1.msra.mxu0 %v201
    %203 = vmatprep.subr.mxu0 0.0
    %v204 = vand.u32 %v84, 4294901760
    %v205 = vsub.f32 %v84, %v204
    %v206 = vand.u32 %v205, 4294901760
    %v207 = vsub.f32 %v205, %v206
    %v208 = vand.u32 %v207, 4294901760
    %209 = vmatpush1.msra.mxu0 %v208
    %210 = vmatprep.subr.mxu0 0.0
    %v211 = vand.u32 %v85, 4294901760
    %v212 = vsub.f32 %v85, %v211
    %v213 = vand.u32 %v212, 4294901760
    %v214 = vsub.f32 %v212, %v213
    %v215 = vand.u32 %v214, 4294901760
    %216 = vmatpush1.msra.mxu0 %v215
    %217 = vmatprep.subr.mxu0 0.0
    %218 = vmatpush1.msra.mxu0 0.0
    %219 = vmatprep.subr.mxu0 0.0
    %220 = vmatpush1.msra.mxu0 0.0
    %221 = vmatprep.subr.mxu0 0.0
    %222 = vmatpush1.msra.mxu0 0.0
    %223 = vmatprep.subr.mxu0 0.0
    %224 = vmatpush1.msra.mxu0 0.0
    %225 = vmatprep.subr.mxu0 0.0
    %226 = vmatpush1.msra.mxu0 0.0
    %227 = vmatprep.subr.mxu0 0.0
    %228 = vmatpush1.msra.mxu0 0.0
    %229 = vmatprep.subr.mxu0 0.0
    %230 = vmatpush1.msra.mxu0 0.0
    %231 = vmatprep.subr.mxu0 0.0
    %232 = vmatpush1.msra.mxu0 0.0
    %233 = vmatprep.subr.mxu0 0.0
    %234 = vmatpush1.msra.mxu0 0.0
    %235 = vmatprep.subr.mxu0 0.0
    %236 = vmatpush1.msra.mxu0 0.0
    %237 = vmatprep.subr.mxu0 0.0
    %238 = vmatpush1.msra.mxu0 0.0
    %239 = vmatprep.subr.mxu0 0.0
    %240 = vmatpush1.msra.mxu0 0.0
    %241 = vmatprep.subr.mxu0 0.0
    %242 = vmatpush1.msra.mxu0 0.0
    %243 = vmatprep.subr.mxu0 0.0
    %244 = vmatpush1.msra.mxu0 0.0
    %245 = vmatprep.subr.mxu0 0.0
    %246 = vmatpush1.msra.mxu0 0.0
    %247 = vmatprep.subr.mxu0 0.0
    %248 = vmatpush1.msra.mxu0 0.0
    %249 = vmatprep.subr.mxu0 0.0
    %250 = vmatpush1.msra.mxu0 0.0
    %251 = vmatprep.subr.mxu0 0.0
    %252 = vmatpush1.msra.mxu0 0.0
    %253 = vmatprep.subr.mxu0 0.0
    %254 = vmatpush1.msra.mxu0 0.0
    %255 = vmatprep.subr.mxu0 0.0
    %256 = vmatpush1.msra.mxu0 0.0
    %257 = vmatprep.subr.mxu0 0.0
    %258 = vmatpush1.msra.mxu0 0.0
    %259 = vmatprep.subr.mxu0 0.0
    %260 = vmatpush1.msra.mxu0 0.0
    %261 = vmatprep.subr.mxu0 0.0
    %262 = vmatpush1.msra.mxu0 0.0
    %263 = vmatprep.subr.mxu0 0.0
    %264 = vmatpush1.msra.mxu0 0.0
    %265 = vmatprep.subr.mxu0 0.0
    %266 = vmatpush1.msra.mxu0 0.0
    %267 = vmatprep.subr.mxu0 0.0
    %268 = vmatpush1.msra.mxu0 0.0
    %269 = vmatprep.subr.mxu0 0.0
    %270 = vmatpush1.msra.mxu0 0.0
    %271 = vmatprep.subr.mxu0 0.0
    %272 = vmatpush1.msra.mxu0 0.0
    %273 = vmatprep.mubr.f32.mxu0 0.0
    %v274 = vand.u32 %v95, 4294901760
    %275 = vmatmul.mubr.f32.gmra.mrb[0].mxu0 %v274
    %v276 = vpop.f32.mrb[0].mxu0
    %v277 = vadd.f32 %v176, %v276
    %v278 = vpop.f32.mrb[0].mxu0
    %279 = vmatprep.mubr.f32.mxu0 0.0
    %v280 = vand.u32 %v98, 4294901760
    %281 = vmatmul.mubr.f32.gmra.mrb[0].mxu0 %v280
    %v282 = vpop.f32.mrb[0].mxu0
    %v283 = vadd.f32 %v186, %v282
    %v284 = vpop.f32.mrb[0].mxu0
    %285 = vdwg.mxu0
    %286 = vmatprep.subr.mxu0 0.0
    %v287 = vand.u32 %v82, 4294901760
    %v288 = vsub.f32 %v82, %v287
    %289 = vmatpush1.msra.mxu0 %v288
    %290 = vmatprep.subr.mxu0 0.0
    %v291 = vand.u32 %v83, 4294901760
    %v292 = vsub.f32 %v83, %v291
    %293 = vmatpush1.msra.mxu0 %v292
    %294 = vmatprep.subr.mxu0 0.0
    %v295 = vand.u32 %v84, 4294901760
    %v296 = vsub.f32 %v84, %v295
    %297 = vmatpush1.msra.mxu0 %v296
    %298 = vmatprep.subr.mxu0 0.0
    %v299 = vand.u32 %v85, 4294901760
    %v300 = vsub.f32 %v85, %v299
    %301 = vmatpush1.msra.mxu0 %v300
    %302 = vmatprep.subr.mxu0 0.0
    %303 = vmatpush1.msra.mxu0 0.0
    %304 = vmatprep.subr.mxu0 0.0
    %305 = vmatpush1.msra.mxu0 0.0
    %306 = vmatprep.subr.mxu0 0.0
    %307 = vmatpush1.msra.mxu0 0.0
    %308 = vmatprep.subr.mxu0 0.0
    %309 = vmatpush1.msra.mxu0 0.0
    %310 = vmatprep.subr.mxu0 0.0
    %311 = vmatpush1.msra.mxu0 0.0
    %312 = vmatprep.subr.mxu0 0.0
    %313 = vmatpush1.msra.mxu0 0.0
    %314 = vmatprep.subr.mxu0 0.0
    %315 = vmatpush1.msra.mxu0 0.0
    %316 = vmatprep.subr.mxu0 0.0
    %317 = vmatpush1.msra.mxu0 0.0
    %318 = vmatprep.subr.mxu0 0.0
    %319 = vmatpush1.msra.mxu0 0.0
    %320 = vmatprep.subr.mxu0 0.0
    %321 = vmatpush1.msra.mxu0 0.0
    %322 = vmatprep.subr.mxu0 0.0
    %323 = vmatpush1.msra.mxu0 0.0
    %324 = vmatprep.subr.mxu0 0.0
    %325 = vmatpush1.msra.mxu0 0.0
    %326 = vmatprep.subr.mxu0 0.0
    %327 = vmatpush1.msra.mxu0 0.0
    %328 = vmatprep.subr.mxu0 0.0
    %329 = vmatpush1.msra.mxu0 0.0
    %330 = vmatprep.subr.mxu0 0.0
    %331 = vmatpush1.msra.mxu0 0.0
    %332 = vmatprep.subr.mxu0 0.0
    %333 = vmatpush1.msra.mxu0 0.0
    %334 = vmatprep.subr.mxu0 0.0
    %335 = vmatpush1.msra.mxu0 0.0
    %336 = vmatprep.subr.mxu0 0.0
    %337 = vmatpush1.msra.mxu0 0.0
    %338 = vmatprep.subr.mxu0 0.0
    %339 = vmatpush1.msra.mxu0 0.0
    %340 = vmatprep.subr.mxu0 0.0
    %341 = vmatpush1.msra.mxu0 0.0
    %342 = vmatprep.subr.mxu0 0.0
    %343 = vmatpush1.msra.mxu0 0.0
    %344 = vmatprep.subr.mxu0 0.0
    %345 = vmatpush1.msra.mxu0 0.0
    %346 = vmatprep.subr.mxu0 0.0
    %347 = vmatpush1.msra.mxu0 0.0
    %348 = vmatprep.subr.mxu0 0.0
    %349 = vmatpush1.msra.mxu0 0.0
    %350 = vmatprep.subr.mxu0 0.0
    %351 = vmatpush1.msra.mxu0 0.0
    %352 = vmatprep.subr.mxu0 0.0
    %353 = vmatpush1.msra.mxu0 0.0
    %354 = vmatprep.subr.mxu0 0.0
    %355 = vmatpush1.msra.mxu0 0.0
    %356 = vmatprep.subr.mxu0 0.0
    %357 = vmatpush1.msra.mxu0 0.0
    %358 = vmatprep.mubr.f32.mxu0 0.0
    %v359 = vand.u32 %v95, 4294901760
    %v360 = vsub.f32 %v95, %v359
    %361 = vmatmul.mubr.f32.gmra.mrb[0].mxu0 %v360
    %v362 = vpop.f32.mrb[0].mxu0
    %v363 = vadd.f32 %v277, %v362
    %v364 = vpop.f32.mrb[0].mxu0
    %365 = vmatprep.mubr.f32.mxu0 0.0
    %v366 = vand.u32 %v98, 4294901760
    %v367 = vsub.f32 %v98, %v366
    %368 = vmatmul.mubr.f32.gmra.mrb[0].mxu0 %v367
    %v369 = vpop.f32.mrb[0].mxu0
    %v370 = vadd.f32 %v283, %v369
    %v371 = vpop.f32.mrb[0].mxu0
    %372 = vdwg.mxu0
    %373 = vmatprep.subr.mxu0 0.0
    %v374 = vand.u32 %v82, 4294901760
    %375 = vmatpush1.msra.mxu0 %v374
    %376 = vmatprep.subr.mxu0 0.0
    %v377 = vand.u32 %v83, 4294901760
    %378 = vmatpush1.msra.mxu0 %v377
    %379 = vmatprep.subr.mxu0 0.0
    %v380 = vand.u32 %v84, 4294901760
    %381 = vmatpush1.msra.mxu0 %v380
    %382 = vmatprep.subr.mxu0 0.0
    %v383 = vand.u32 %v85, 4294901760
    %384 = vmatpush1.msra.mxu0 %v383
    %385 = vmatprep.subr.mxu0 0.0
    %386 = vmatpush1.msra.mxu0 0.0
    %387 = vmatprep.subr.mxu0 0.0
    %388 = vmatpush1.msra.mxu0 0.0
    %389 = vmatprep.subr.mxu0 0.0
    %390 = vmatpush1.msra.mxu0 0.0
    %391 = vmatprep.subr.mxu0 0.0
    %392 = vmatpush1.msra.mxu0 0.0
    %393 = vmatprep.subr.mxu0 0.0
    %394 = vmatpush1.msra.mxu0 0.0
    %395 = vmatprep.subr.mxu0 0.0
    %396 = vmatpush1.msra.mxu0 0.0
    %397 = vmatprep.subr.mxu0 0.0
    %398 = vmatpush1.msra.mxu0 0.0
    %399 = vmatprep.subr.mxu0 0.0
    %400 = vmatpush1.msra.mxu0 0.0
    %401 = vmatprep.subr.mxu0 0.0
    %402 = vmatpush1.msra.mxu0 0.0
    %403 = vmatprep.subr.mxu0 0.0
    %404 = vmatpush1.msra.mxu0 0.0
    %405 = vmatprep.subr.mxu0 0.0
    %406 = vmatpush1.msra.mxu0 0.0
    %407 = vmatprep.subr.mxu0 0.0
    %408 = vmatpush1.msra.mxu0 0.0
    %409 = vmatprep.subr.mxu0 0.0
    %410 = vmatpush1.msra.mxu0 0.0
    %411 = vmatprep.subr.mxu0 0.0
    %412 = vmatpush1.msra.mxu0 0.0
    %413 = vmatprep.subr.mxu0 0.0
    %414 = vmatpush1.msra.mxu0 0.0
    %415 = vmatprep.subr.mxu0 0.0
    %416 = vmatpush1.msra.mxu0 0.0
    %417 = vmatprep.subr.mxu0 0.0
    %418 = vmatpush1.msra.mxu0 0.0
    %419 = vmatprep.subr.mxu0 0.0
    %420 = vmatpush1.msra.mxu0 0.0
    %421 = vmatprep.subr.mxu0 0.0
    %422 = vmatpush1.msra.mxu0 0.0
    %423 = vmatprep.subr.mxu0 0.0
    %424 = vmatpush1.msra.mxu0 0.0
    %425 = vmatprep.subr.mxu0 0.0
    %426 = vmatpush1.msra.mxu0 0.0
    %427 = vmatprep.subr.mxu0 0.0
    %428 = vmatpush1.msra.mxu0 0.0
    %429 = vmatprep.subr.mxu0 0.0
    %430 = vmatpush1.msra.mxu0 0.0
    %431 = vmatprep.subr.mxu0 0.0
    %432 = vmatpush1.msra.mxu0 0.0
    %433 = vmatprep.subr.mxu0 0.0
    %434 = vmatpush1.msra.mxu0 0.0
    %435 = vmatprep.subr.mxu0 0.0
    %436 = vmatpush1.msra.mxu0 0.0
    %437 = vmatprep.subr.mxu0 0.0
    %438 = vmatpush1.msra.mxu0 0.0
    %439 = vmatprep.subr.mxu0 0.0
    %440 = vmatpush1.msra.mxu0 0.0
    %441 = vmatprep.mubr.f32.mxu0 0.0
    %v442 = vand.u32 %v95, 4294901760
    %v443 = vsub.f32 %v95, %v442
    %v444 = vand.u32 %v443, 4294901760
    %445 = vmatmul.mubr.f32.gmra.mrb[0].mxu0 %v444
    %v446 = vpop.f32.mrb[0].mxu0
    %v447 = vadd.f32 %v363, %v446
    %v448 = vpop.f32.mrb[0].mxu0
    %449 = vmatprep.mubr.f32.mxu0 0.0
    %v450 = vand.u32 %v98, 4294901760
    %v451 = vsub.f32 %v98, %v450
    %v452 = vand.u32 %v451, 4294901760
    %453 = vmatmul.mubr.f32.gmra.mrb[0].mxu0 %v452
    %v454 = vpop.f32.mrb[0].mxu0
    %v455 = vadd.f32 %v370, %v454
    %v456 = vpop.f32.mrb[0].mxu0
    %457 = vdwg.mxu0
    %458 = vmatprep.subr.mxu0 0.0
    %v459 = vand.u32 %v82, 4294901760
    %v460 = vsub.f32 %v82, %v459
    %v461 = vand.u32 %v460, 4294901760
    %462 = vmatpush1.msra.mxu0 %v461
    %463 = vmatprep.subr.mxu0 0.0
    %v464 = vand.u32 %v83, 4294901760
    %v465 = vsub.f32 %v83, %v464
    %v466 = vand.u32 %v465, 4294901760
    %467 = vmatpush1.msra.mxu0 %v466
    %468 = vmatprep.subr.mxu0 0.0
    %v469 = vand.u32 %v84, 4294901760
    %v470 = vsub.f32 %v84, %v469
    %v471 = vand.u32 %v470, 4294901760
    %472 = vmatpush1.msra.mxu0 %v471
    %473 = vmatprep.subr.mxu0 0.0
    %v474 = vand.u32 %v85, 4294901760
    %v475 = vsub.f32 %v85, %v474
    %v476 = vand.u32 %v475, 4294901760
    %477 = vmatpush1.msra.mxu0 %v476
    %478 = vmatprep.subr.mxu0 0.0
    %479 = vmatpush1.msra.mxu0 0.0
    %480 = vmatprep.subr.mxu0 0.0
    %481 = vmatpush1.msra.mxu0 0.0
    %482 = vmatprep.subr.mxu0 0.0
    %483 = vmatpush1.msra.mxu0 0.0
    %484 = vmatprep.subr.mxu0 0.0
    %485 = vmatpush1.msra.mxu0 0.0
    %486 = vmatprep.subr.mxu0 0.0
    %487 = vmatpush1.msra.mxu0 0.0
    %488 = vmatprep.subr.mxu0 0.0
    %489 = vmatpush1.msra.mxu0 0.0
    %490 = vmatprep.subr.mxu0 0.0
    %491 = vmatpush1.msra.mxu0 0.0
    %492 = vmatprep.subr.mxu0 0.0
    %493 = vmatpush1.msra.mxu0 0.0
    %494 = vmatprep.subr.mxu0 0.0
    %495 = vmatpush1.msra.mxu0 0.0
    %496 = vmatprep.subr.mxu0 0.0
    %497 = vmatpush1.msra.mxu0 0.0
    %498 = vmatprep.subr.mxu0 0.0
    %499 = vmatpush1.msra.mxu0 0.0
    %500 = vmatprep.subr.mxu0 0.0
    %501 = vmatpush1.msra.mxu0 0.0
    %502 = vmatprep.subr.mxu0 0.0
    %503 = vmatpush1.msra.mxu0 0.0
    %504 = vmatprep.subr.mxu0 0.0
    %505 = vmatpush1.msra.mxu0 0.0
    %506 = vmatprep.subr.mxu0 0.0
    %507 = vmatpush1.msra.mxu0 0.0
    %508 = vmatprep.subr.mxu0 0.0
    %509 = vmatpush1.msra.mxu0 0.0
    %510 = vmatprep.subr.mxu0 0.0
    %511 = vmatpush1.msra.mxu0 0.0
    %512 = vmatprep.subr.mxu0 0.0
    %513 = vmatpush1.msra.mxu0 0.0
    %514 = vmatprep.subr.mxu0 0.0
    %515 = vmatpush1.msra.mxu0 0.0
    %516 = vmatprep.subr.mxu0 0.0
    %517 = vmatpush1.msra.mxu0 0.0
    %518 = vmatprep.subr.mxu0 0.0
    %519 = vmatpush1.msra.mxu0 0.0
    %520 = vmatprep.subr.mxu0 0.0
    %521 = vmatpush1.msra.mxu0 0.0
    %522 = vmatprep.subr.mxu0 0.0
    %523 = vmatpush1.msra.mxu0 0.0
    %524 = vmatprep.subr.mxu0 0.0
    %525 = vmatpush1.msra.mxu0 0.0
    %526 = vmatprep.subr.mxu0 0.0
    %527 = vmatpush1.msra.mxu0 0.0
    %528 = vmatprep.subr.mxu0 0.0
    %529 = vmatpush1.msra.mxu0 0.0
    %530 = vmatprep.subr.mxu0 0.0
    %531 = vmatpush1.msra.mxu0 0.0
    %532 = vmatprep.subr.mxu0 0.0
    %533 = vmatpush1.msra.mxu0 0.0
    %534 = vmatprep.mubr.f32.mxu0 0.0
    %v535 = vand.u32 %v95, 4294901760
    %536 = vmatmul.mubr.f32.gmra.mrb[0].mxu0 %v535
    %v537 = vpop.f32.mrb[0].mxu0
    %v538 = vadd.f32 %v447, %v537
    %v539 = vpop.f32.mrb[0].mxu0
    %540 = vmatprep.mubr.f32.mxu0 0.0
    %v541 = vand.u32 %v98, 4294901760
    %542 = vmatmul.mubr.f32.gmra.mrb[0].mxu0 %v541
    %v543 = vpop.f32.mrb[0].mxu0
    %v544 = vadd.f32 %v455, %v543
    %v545 = vpop.f32.mrb[0].mxu0
    %546 = vdwg.mxu0
    %547 = vmatprep.subr.mxu0 0.0
    %v548 = vand.u32 %v82, 4294901760
    %549 = vmatpush1.msra.mxu0 %v548
    %550 = vmatprep.subr.mxu0 0.0
    %v551 = vand.u32 %v83, 4294901760
    %552 = vmatpush1.msra.mxu0 %v551
    %553 = vmatprep.subr.mxu0 0.0
    %v554 = vand.u32 %v84, 4294901760
    %555 = vmatpush1.msra.mxu0 %v554
    %556 = vmatprep.subr.mxu0 0.0
    %v557 = vand.u32 %v85, 4294901760
    %558 = vmatpush1.msra.mxu0 %v557
    %559 = vmatprep.subr.mxu0 0.0
    %560 = vmatpush1.msra.mxu0 0.0
    %561 = vmatprep.subr.mxu0 0.0
    %562 = vmatpush1.msra.mxu0 0.0
    %563 = vmatprep.subr.mxu0 0.0
    %564 = vmatpush1.msra.mxu0 0.0
    %565 = vmatprep.subr.mxu0 0.0
    %566 = vmatpush1.msra.mxu0 0.0
    %567 = vmatprep.subr.mxu0 0.0
    %568 = vmatpush1.msra.mxu0 0.0
    %569 = vmatprep.subr.mxu0 0.0
    %570 = vmatpush1.msra.mxu0 0.0
    %571 = vmatprep.subr.mxu0 0.0
    %572 = vmatpush1.msra.mxu0 0.0
    %573 = vmatprep.subr.mxu0 0.0
    %574 = vmatpush1.msra.mxu0 0.0
    %575 = vmatprep.subr.mxu0 0.0
    %576 = vmatpush1.msra.mxu0 0.0
    %577 = vmatprep.subr.mxu0 0.0
    %578 = vmatpush1.msra.mxu0 0.0
    %579 = vmatprep.subr.mxu0 0.0
    %580 = vmatpush1.msra.mxu0 0.0
    %581 = vmatprep.subr.mxu0 0.0
    %582 = vmatpush1.msra.mxu0 0.0
    %583 = vmatprep.subr.mxu0 0.0
    %584 = vmatpush1.msra.mxu0 0.0
    %585 = vmatprep.subr.mxu0 0.0
    %586 = vmatpush1.msra.mxu0 0.0
    %587 = vmatprep.subr.mxu0 0.0
    %588 = vmatpush1.msra.mxu0 0.0
    %589 = vmatprep.subr.mxu0 0.0
    %590 = vmatpush1.msra.mxu0 0.0
    %591 = vmatprep.subr.mxu0 0.0
    %592 = vmatpush1.msra.mxu0 0.0
    %593 = vmatprep.subr.mxu0 0.0
    %594 = vmatpush1.msra.mxu0 0.0
    %595 = vmatprep.subr.mxu0 0.0
    %596 = vmatpush1.msra.mxu0 0.0
    %597 = vmatprep.subr.mxu0 0.0
    %598 = vmatpush1.msra.mxu0 0.0
    %599 = vmatprep.subr.mxu0 0.0
    %600 = vmatpush1.msra.mxu0 0.0
    %601 = vmatprep.subr.mxu0 0.0
    %602 = vmatpush1.msra.mxu0 0.0
    %603 = vmatprep.subr.mxu0 0.0
    %604 = vmatpush1.msra.mxu0 0.0
    %605 = vmatprep.subr.mxu0 0.0
    %606 = vmatpush1.msra.mxu0 0.0
    %607 = vmatprep.subr.mxu0 0.0
    %608 = vmatpush1.msra.mxu0 0.0
    %609 = vmatprep.subr.mxu0 0.0
    %610 = vmatpush1.msra.mxu0 0.0
    %611 = vmatprep.subr.mxu0 0.0
    %612 = vmatpush1.msra.mxu0 0.0
    %613 = vmatprep.subr.mxu0 0.0
    %614 = vmatpush1.msra.mxu0 0.0
    %615 = vmatprep.mubr.f32.mxu0 0.0
    %v616 = vand.u32 %v95, 4294901760
    %617 = vmatmul.mubr.f32.gmra.mrb[0].mxu0 %v616
    %v618 = vpop.f32.mrb[0].mxu0
    %v619 = vadd.f32 %v538, %v618
    %v620 = vpop.f32.mrb[0].mxu0
    %621 = vmatprep.mubr.f32.mxu0 0.0
    %v622 = vand.u32 %v98, 4294901760
    %623 = vmatmul.mubr.f32.gmra.mrb[0].mxu0 %v622
    %v624 = vpop.f32.mrb[0].mxu0
    %v625 = vadd.f32 %v544, %v624
    %v626 = vpop.f32.mrb[0].mxu0
    %627 = vdwg.mxu0
    %630 = vrot.lane.b32.xlu0 %v619, 120
    %v631 = vpop.permute.xlu0 %630
    %632 = vrot.lane.b32.xlu0 %v625, 120
    %v633 = vpop.permute.xlu0 %632
    %634 = vrot.lane.b32.xlu0 %v619, 112
    %v635 = vpop.permute.xlu0 %634
    %636 = vrot.lane.b32.xlu0 %v625, 112
    %v637 = vpop.permute.xlu0 %636
    %638 = vrot.lane.b32.xlu0 %v619, 104
    %v639 = vpop.permute.xlu0 %638
    %640 = vrot.lane.b32.xlu0 %v625, 104
    %v641 = vpop.permute.xlu0 %640
    %v642 = vld [vmem:[%s2] sm:$0xff]
    %v643 = vld [vmem:[%s2 + $0x8] sm:$0xff]
    %v644 = vld [vmem:[%s2 + $0x10] sm:$0xff]
    %v645 = vld [vmem:[%s2 + $0x18] sm:$0xff]
    %v646 = vld [vmem:[%s2 + $0x20] sm:$0xff]
    %v647 = vld [vmem:[%s2 + $0x28] sm:$0xff]
    %v648 = vld [vmem:[%s2 + $0x30] sm:$0xff]
    %v649 = vld [vmem:[%s2 + $0x38] sm:$0xff]
    %v650 = vld [vmem:[%s6] sm:$0xff]
    %v651 = vld [vmem:[%s6 + $0x8] sm:$0xff]
    %v652 = vld [vmem:[%s6 + $0x10] sm:$0xff]
    %v653 = vld [vmem:[%s6 + $0x18] sm:$0xff]
    %v654 = vld [vmem:[%s7] sm:$0x1]
    %655 = vrot.lane.b32.xlu0 %v619, 96
    %v656 = vpop.permute.xlu0 %655
    %657 = vrot.lane.b32.xlu0 %v625, 96
    %v658 = vpop.permute.xlu0 %657
    %659 = vrot.lane.b32.xlu0 %v631, 96
    %v660 = vpop.permute.xlu0 %659
    %661 = vrot.lane.b32.xlu0 %v633, 96
    %v662 = vpop.permute.xlu0 %661
    %663 = vrot.lane.b32.xlu0 %v635, 96
    %v664 = vpop.permute.xlu0 %663
    %665 = vrot.lane.b32.xlu0 %v637, 96
    %v666 = vpop.permute.xlu0 %665
    %667 = vrot.lane.b32.xlu0 %v639, 96
    %v668 = vpop.permute.xlu0 %667
    %669 = vrot.lane.b32.xlu0 %v641, 96
    %v670 = vpop.permute.xlu0 %669
    %vm671 = vcmask 64512
    %v672 = vsel %vm671, %v619, 0
    %v674 = vsel %vm671, %v625, 0
    %v676 = vsel %vm671, %v631, 0
    %v678 = vsel %vm671, %v633, 0
    %v680 = vsel %vm671, %v635, 0
    %v682 = vsel %vm671, %v637, 0
    %v684 = vsel %vm671, %v639, 0
    %v686 = vsel %vm671, %v641, 0
    %v688 = vsel %vm671, %v656, 0
    %v690 = vsel %vm671, %v658, 0
    %v692 = vsel %vm671, %v660, 0
    %v694 = vsel %vm671, %v662, 0
    %v696 = vsel %vm671, %v664, 0
    %v698 = vsel %vm671, %v666, 0
    %v700 = vsel %vm671, %v668, 0
    %v702 = vsel %vm671, %v670, 0
    %704 = vmatprep.subr.mxu0 0.0
    %v705 = vand.u32 %v688, 4294901760
    %706 = vmatpush1.xpose.msra.mxu0 %v705
    %707 = vmatprep.subr.mxu0 0.0
    %v708 = vand.u32 %v690, 4294901760
    %709 = vmatpush1.xpose.msra.mxu0 %v708
    %710 = vmatprep.subr.mxu0 0.0
    %v711 = vand.u32 %v692, 4294901760
    %712 = vmatpush1.xpose.msra.mxu0 %v711
    %713 = vmatprep.subr.mxu0 0.0
    %v714 = vand.u32 %v694, 4294901760
    %715 = vmatpush1.xpose.msra.mxu0 %v714
    %716 = vmatprep.subr.mxu0 0.0
    %v717 = vand.u32 %v696, 4294901760
    %718 = vmatpush1.xpose.msra.mxu0 %v717
    %719 = vmatprep.subr.mxu0 0.0
    %v720 = vand.u32 %v698, 4294901760
    %721 = vmatpush1.xpose.msra.mxu0 %v720
    %722 = vmatprep.subr.mxu0 0.0
    %v723 = vand.u32 %v700, 4294901760
    %724 = vmatpush1.xpose.msra.mxu0 %v723
    %725 = vmatprep.subr.mxu0 0.0
    %v726 = vand.u32 %v702, 4294901760
    %727 = vmatpush1.xpose.msra.mxu0 %v726
    %728 = vmatprep.subr.mxu0 0.0
    %729 = vmatpush1.xpose.msra.mxu0 0.0
    %730 = vmatprep.subr.mxu0 0.0
    %731 = vmatpush1.xpose.msra.mxu0 0.0
    %732 = vmatprep.subr.mxu0 0.0
    %733 = vmatpush1.xpose.msra.mxu0 0.0
    %734 = vmatprep.subr.mxu0 0.0
    %735 = vmatpush1.xpose.msra.mxu0 0.0
    %736 = vmatprep.subr.mxu0 0.0
    %737 = vmatpush1.xpose.msra.mxu0 0.0
    %738 = vmatprep.subr.mxu0 0.0
    %739 = vmatpush1.xpose.msra.mxu0 0.0
    %740 = vmatprep.subr.mxu0 0.0
    %741 = vmatpush1.xpose.msra.mxu0 0.0
    %742 = vmatprep.subr.mxu0 0.0
    %743 = vmatpush1.xpose.msra.mxu0 0.0
    %744 = vmatprep.subr.mxu0 0.0
    %745 = vmatpush1.xpose.msra.mxu0 0.0
    %746 = vmatprep.subr.mxu0 0.0
    %747 = vmatpush1.xpose.msra.mxu0 0.0
    %748 = vmatprep.subr.mxu0 0.0
    %749 = vmatpush1.xpose.msra.mxu0 0.0
    %750 = vmatprep.subr.mxu0 0.0
    %751 = vmatpush1.xpose.msra.mxu0 0.0
    %752 = vmatprep.subr.mxu0 0.0
    %753 = vmatpush1.xpose.msra.mxu0 0.0
    %754 = vmatprep.subr.mxu0 0.0
    %755 = vmatpush1.xpose.msra.mxu0 0.0
    %756 = vmatprep.subr.mxu0 0.0
    %757 = vmatpush1.xpose.msra.mxu0 0.0
    %758 = vmatprep.subr.mxu0 0.0
    %759 = vmatpush1.xpose.msra.mxu0 0.0
    %760 = vmatprep.subr.mxu0 0.0
    %761 = vmatpush1.xpose.msra.mxu0 0.0
    %762 = vmatprep.subr.mxu0 0.0
    %763 = vmatpush1.xpose.msra.mxu0 0.0
    %764 = vmatprep.subr.mxu0 0.0
    %765 = vmatpush1.xpose.msra.mxu0 0.0
    %766 = vmatprep.subr.mxu0 0.0
    %767 = vmatpush1.xpose.msra.mxu0 0.0
    %768 = vmatprep.subr.mxu0 0.0
    %769 = vmatpush1.xpose.msra.mxu0 0.0
    %770 = vmatprep.subr.mxu0 0.0
    %771 = vmatpush1.xpose.msra.mxu0 0.0
    %772 = vmatprep.subr.mxu0 0.0
    %773 = vmatpush1.xpose.msra.mxu0 0.0
    %774 = vmatprep.subr.mxu0 0.0
    %775 = vmatpush1.xpose.msra.mxu0 0.0
    %776 = vmatprep.mubr.f32.mxu0 0.0
    %v777 = vand.u32 %v672, 4294901760
    %v778 = vsub.f32 %v672, %v777
    %v779 = vand.u32 %v778, 4294901760
    %v780 = vsub.f32 %v778, %v779
    %v781 = vand.u32 %v780, 4294901760
    %782 = vmatmul.mubr.f32.gmra.mrb[0].mxu0 %v781
    %v783 = vpop.f32.mrb[0].mxu0
    %v784 = vadd.f32 %v642, %v783
    %v785 = vpop.f32.mrb[0].mxu0
    %786 = vmatprep.mubr.f32.mxu0 0.0
    %v787 = vand.u32 %v674, 4294901760
    %v788 = vsub.f32 %v674, %v787
    %v789 = vand.u32 %v788, 4294901760
    %v790 = vsub.f32 %v788, %v789
    %v791 = vand.u32 %v790, 4294901760
    %792 = vmatmul.mubr.f32.gmra.mrb[0].mxu0 %v791
    %v793 = vpop.f32.mrb[0].mxu0
    %v794 = vadd.f32 %v643, %v793
    %v795 = vpop.f32.mrb[0].mxu0
    %796 = vmatprep.mubr.f32.mxu0 0.0
    %v797 = vand.u32 %v676, 4294901760
    %v798 = vsub.f32 %v676, %v797
    %v799 = vand.u32 %v798, 4294901760
    %v800 = vsub.f32 %v798, %v799
    %v801 = vand.u32 %v800, 4294901760
    %802 = vmatmul.mubr.f32.gmra.mrb[0].mxu0 %v801
    %v803 = vpop.f32.mrb[0].mxu0
    %v804 = vadd.f32 %v644, %v803
    %v805 = vpop.f32.mrb[0].mxu0
    %806 = vmatprep.mubr.f32.mxu0 0.0
    %v807 = vand.u32 %v678, 4294901760
    %v808 = vsub.f32 %v678, %v807
    %v809 = vand.u32 %v808, 4294901760
    %v810 = vsub.f32 %v808, %v809
    %v811 = vand.u32 %v810, 4294901760
    %812 = vmatmul.mubr.f32.gmra.mrb[0].mxu0 %v811
    %v813 = vpop.f32.mrb[0].mxu0
    %v814 = vadd.f32 %v645, %v813
    %v815 = vpop.f32.mrb[0].mxu0
    %816 = vmatprep.mubr.f32.mxu0 0.0
    %v817 = vand.u32 %v680, 4294901760
    %v818 = vsub.f32 %v680, %v817
    %v819 = vand.u32 %v818, 4294901760
    %v820 = vsub.f32 %v818, %v819
    %v821 = vand.u32 %v820, 4294901760
    %822 = vmatmul.mubr.f32.gmra.mrb[0].mxu0 %v821
    %v823 = vpop.f32.mrb[0].mxu0
    %v824 = vadd.f32 %v646, %v823
    %v825 = vpop.f32.mrb[0].mxu0
    %826 = vmatprep.mubr.f32.mxu0 0.0
    %v827 = vand.u32 %v682, 4294901760
    %v828 = vsub.f32 %v682, %v827
    %v829 = vand.u32 %v828, 4294901760
    %v830 = vsub.f32 %v828, %v829
    %v831 = vand.u32 %v830, 4294901760
    %832 = vmatmul.mubr.f32.gmra.mrb[0].mxu0 %v831
    %v833 = vpop.f32.mrb[0].mxu0
    %v834 = vadd.f32 %v647, %v833
    %v835 = vpop.f32.mrb[0].mxu0
    %836 = vmatprep.mubr.f32.mxu0 0.0
    %v837 = vand.u32 %v684, 4294901760
    %v838 = vsub.f32 %v684, %v837
    %v839 = vand.u32 %v838, 4294901760
    %v840 = vsub.f32 %v838, %v839
    %v841 = vand.u32 %v840, 4294901760
    %842 = vmatmul.mubr.f32.gmra.mrb[0].mxu0 %v841
    %v843 = vpop.f32.mrb[0].mxu0
    %v844 = vadd.f32 %v648, %v843
    %v845 = vpop.f32.mrb[0].mxu0
    %846 = vmatprep.mubr.f32.mxu0 0.0
    %v847 = vand.u32 %v686, 4294901760
    %v848 = vsub.f32 %v686, %v847
    %v849 = vand.u32 %v848, 4294901760
    %v850 = vsub.f32 %v848, %v849
    %v851 = vand.u32 %v850, 4294901760
    %852 = vmatmul.mubr.f32.gmra.mrb[0].mxu0 %v851
    %v853 = vpop.f32.mrb[0].mxu0
    %v854 = vadd.f32 %v649, %v853
    %v855 = vpop.f32.mrb[0].mxu0
    %856 = vdwg.mxu0
    %857 = vmatprep.subr.mxu0 0.0
    %v858 = vand.u32 %v688, 4294901760
    %v859 = vsub.f32 %v688, %v858
    %v860 = vand.u32 %v859, 4294901760
    %v861 = vsub.f32 %v859, %v860
    %v862 = vand.u32 %v861, 4294901760
    %863 = vmatpush1.xpose.msra.mxu0 %v862
    %864 = vmatprep.subr.mxu0 0.0
    %v865 = vand.u32 %v690, 4294901760
    %v866 = vsub.f32 %v690, %v865
    %v867 = vand.u32 %v866, 4294901760
    %v868 = vsub.f32 %v866, %v867
    %v869 = vand.u32 %v868, 4294901760
    %870 = vmatpush1.xpose.msra.mxu0 %v869
    %871 = vmatprep.subr.mxu0 0.0
    %v872 = vand.u32 %v692, 4294901760
    %v873 = vsub.f32 %v692, %v872
    %v874 = vand.u32 %v873, 4294901760
    %v875 = vsub.f32 %v873, %v874
    %v876 = vand.u32 %v875, 4294901760
    %877 = vmatpush1.xpose.msra.mxu0 %v876
    %878 = vmatprep.subr.mxu0 0.0
    %v879 = vand.u32 %v694, 4294901760
    %v880 = vsub.f32 %v694, %v879
    %v881 = vand.u32 %v880, 4294901760
    %v882 = vsub.f32 %v880, %v881
    %v883 = vand.u32 %v882, 4294901760
    %884 = vmatpush1.xpose.msra.mxu0 %v883
    %885 = vmatprep.subr.mxu0 0.0
    %v886 = vand.u32 %v696, 4294901760
    %v887 = vsub.f32 %v696, %v886
    %v888 = vand.u32 %v887, 4294901760
    %v889 = vsub.f32 %v887, %v888
    %v890 = vand.u32 %v889, 4294901760
    %891 = vmatpush1.xpose.msra.mxu0 %v890
    %892 = vmatprep.subr.mxu0 0.0
    %v893 = vand.u32 %v698, 4294901760
    %v894 = vsub.f32 %v698, %v893
    %v895 = vand.u32 %v894, 4294901760
    %v896 = vsub.f32 %v894, %v895
    %v897 = vand.u32 %v896, 4294901760
    %898 = vmatpush1.xpose.msra.mxu0 %v897
    %899 = vmatprep.subr.mxu0 0.0
    %v900 = vand.u32 %v700, 4294901760
    %v901 = vsub.f32 %v700, %v900
    %v902 = vand.u32 %v901, 4294901760
    %v903 = vsub.f32 %v901, %v902
    %v904 = vand.u32 %v903, 4294901760
    %905 = vmatpush1.xpose.msra.mxu0 %v904
    %906 = vmatprep.subr.mxu0 0.0
    %v907 = vand.u32 %v702, 4294901760
    %v908 = vsub.f32 %v702, %v907
    %v909 = vand.u32 %v908, 4294901760
    %v910 = vsub.f32 %v908, %v909
    %v911 = vand.u32 %v910, 4294901760
    %912 = vmatpush1.xpose.msra.mxu0 %v911
    %913 = vmatprep.subr.mxu0 0.0
    %914 = vmatpush1.xpose.msra.mxu0 0.0
    %915 = vmatprep.subr.mxu0 0.0
    %916 = vmatpush1.xpose.msra.mxu0 0.0
    %917 = vmatprep.subr.mxu0 0.0
    %918 = vmatpush1.xpose.msra.mxu0 0.0
    %919 = vmatprep.subr.mxu0 0.0
    %920 = vmatpush1.xpose.msra.mxu0 0.0
    %921 = vmatprep.subr.mxu0 0.0
    %922 = vmatpush1.xpose.msra.mxu0 0.0
    %923 = vmatprep.subr.mxu0 0.0
    %924 = vmatpush1.xpose.msra.mxu0 0.0
    %925 = vmatprep.subr.mxu0 0.0
    %926 = vmatpush1.xpose.msra.mxu0 0.0
    %927 = vmatprep.subr.mxu0 0.0
    %928 = vmatpush1.xpose.msra.mxu0 0.0
    %929 = vmatprep.subr.mxu0 0.0
    %930 = vmatpush1.xpose.msra.mxu0 0.0
    %931 = vmatprep.subr.mxu0 0.0
    %932 = vmatpush1.xpose.msra.mxu0 0.0
    %933 = vmatprep.subr.mxu0 0.0
    %934 = vmatpush1.xpose.msra.mxu0 0.0
    %935 = vmatprep.subr.mxu0 0.0
    %936 = vmatpush1.xpose.msra.mxu0 0.0
    %937 = vmatprep.subr.mxu0 0.0
    %938 = vmatpush1.xpose.msra.mxu0 0.0
    %939 = vmatprep.subr.mxu0 0.0
    %940 = vmatpush1.xpose.msra.mxu0 0.0
    %941 = vmatprep.subr.mxu0 0.0
    %942 = vmatpush1.xpose.msra.mxu0 0.0
    %943 = vmatprep.subr.mxu0 0.0
    %944 = vmatpush1.xpose.msra.mxu0 0.0
    %945 = vmatprep.subr.mxu0 0.0
    %946 = vmatpush1.xpose.msra.mxu0 0.0
    %947 = vmatprep.subr.mxu0 0.0
    %948 = vmatpush1.xpose.msra.mxu0 0.0
    %949 = vmatprep.subr.mxu0 0.0
    %950 = vmatpush1.xpose.msra.mxu0 0.0
    %951 = vmatprep.subr.mxu0 0.0
    %952 = vmatpush1.xpose.msra.mxu0 0.0
    %953 = vmatprep.subr.mxu0 0.0
    %954 = vmatpush1.xpose.msra.mxu0 0.0
    %955 = vmatprep.subr.mxu0 0.0
    %956 = vmatpush1.xpose.msra.mxu0 0.0
    %957 = vmatprep.subr.mxu0 0.0
    %958 = vmatpush1.xpose.msra.mxu0 0.0
    %959 = vmatprep.subr.mxu0 0.0
    %960 = vmatpush1.xpose.msra.mxu0 0.0
    %961 = vmatprep.mubr.f32.mxu0 0.0
    %v962 = vand.u32 %v672, 4294901760
    %963 = vmatmul.mubr.f32.gmra.mrb[0].mxu0 %v962
    %v964 = vpop.f32.mrb[0].mxu0
    %v965 = vadd.f32 %v784, %v964
    %v966 = vpop.f32.mrb[0].mxu0
    %967 = vmatprep.mubr.f32.mxu0 0.0
    %v968 = vand.u32 %v674, 4294901760
    %969 = vmatmul.mubr.f32.gmra.mrb[0].mxu0 %v968
    %v970 = vpop.f32.mrb[0].mxu0
    %v971 = vadd.f32 %v794, %v970
    %v972 = vpop.f32.mrb[0].mxu0
    %973 = vmatprep.mubr.f32.mxu0 0.0
    %v974 = vand.u32 %v676, 4294901760
    %975 = vmatmul.mubr.f32.gmra.mrb[0].mxu0 %v974
    %v976 = vpop.f32.mrb[0].mxu0
    %v977 = vadd.f32 %v804, %v976
    %v978 = vpop.f32.mrb[0].mxu0
    %979 = vmatprep.mubr.f32.mxu0 0.0
    %v980 = vand.u32 %v678, 4294901760
    %981 = vmatmul.mubr.f32.gmra.mrb[0].mxu0 %v980
    %v982 = vpop.f32.mrb[0].mxu0
    %v983 = vadd.f32 %v814, %v982
    %v984 = vpop.f32.mrb[0].mxu0
    %985 = vmatprep.mubr.f32.mxu0 0.0
    %v986 = vand.u32 %v680, 4294901760
    %987 = vmatmul.mubr.f32.gmra.mrb[0].mxu0 %v986
    %v988 = vpop.f32.mrb[0].mxu0
    %v989 = vadd.f32 %v824, %v988
    %v990 = vpop.f32.mrb[0].mxu0
    %991 = vmatprep.mubr.f32.mxu0 0.0
    %v992 = vand.u32 %v682, 4294901760
    %993 = vmatmul.mubr.f32.gmra.mrb[0].mxu0 %v992
    %v994 = vpop.f32.mrb[0].mxu0
    %v995 = vadd.f32 %v834, %v994
    %v996 = vpop.f32.mrb[0].mxu0
    %997 = vmatprep.mubr.f32.mxu0 0.0
    %v998 = vand.u32 %v684, 4294901760
    %999 = vmatmul.mubr.f32.gmra.mrb[0].mxu0 %v998
    %v1000 = vpop.f32.mrb[0].mxu0
    %v1001 = vadd.f32 %v844, %v1000
    %v1002 = vpop.f32.mrb[0].mxu0
    %1003 = vmatprep.mubr.f32.mxu0 0.0
    %v1004 = vand.u32 %v686, 4294901760
    %1005 = vmatmul.mubr.f32.gmra.mrb[0].mxu0 %v1004
    %v1006 = vpop.f32.mrb[0].mxu0
    %v1007 = vadd.f32 %v854, %v1006
    %v1008 = vpop.f32.mrb[0].mxu0
    %1009 = vdwg.mxu0
    %1010 = vmatprep.subr.mxu0 0.0
    %v1011 = vand.u32 %v688, 4294901760
    %v1012 = vsub.f32 %v688, %v1011
    %1013 = vmatpush1.xpose.msra.mxu0 %v1012
    %1014 = vmatprep.subr.mxu0 0.0
    %v1015 = vand.u32 %v690, 4294901760
    %v1016 = vsub.f32 %v690, %v1015
    %1017 = vmatpush1.xpose.msra.mxu0 %v1016
    %1018 = vmatprep.subr.mxu0 0.0
    %v1019 = vand.u32 %v692, 4294901760
    %v1020 = vsub.f32 %v692, %v1019
    %1021 = vmatpush1.xpose.msra.mxu0 %v1020
    %1022 = vmatprep.subr.mxu0 0.0
    %v1023 = vand.u32 %v694, 4294901760
    %v1024 = vsub.f32 %v694, %v1023
    %1025 = vmatpush1.xpose.msra.mxu0 %v1024
    %1026 = vmatprep.subr.mxu0 0.0
    %v1027 = vand.u32 %v696, 4294901760
    %v1028 = vsub.f32 %v696, %v1027
    %1029 = vmatpush1.xpose.msra.mxu0 %v1028
    %1030 = vmatprep.subr.mxu0 0.0
    %v1031 = vand.u32 %v698, 4294901760
    %v1032 = vsub.f32 %v698, %v1031
    %1033 = vmatpush1.xpose.msra.mxu0 %v1032
    %1034 = vmatprep.subr.mxu0 0.0
    %v1035 = vand.u32 %v700, 4294901760
    %v1036 = vsub.f32 %v700, %v1035
    %1037 = vmatpush1.xpose.msra.mxu0 %v1036
    %1038 = vmatprep.subr.mxu0 0.0
    %v1039 = vand.u32 %v702, 4294901760
    %v1040 = vsub.f32 %v702, %v1039
    %1041 = vmatpush1.xpose.msra.mxu0 %v1040
    %1042 = vmatprep.subr.mxu0 0.0
    %1043 = vmatpush1.xpose.msra.mxu0 0.0
    %1044 = vmatprep.subr.mxu0 0.0
    %1045 = vmatpush1.xpose.msra.mxu0 0.0
    %1046 = vmatprep.subr.mxu0 0.0
    %1047 = vmatpush1.xpose.msra.mxu0 0.0
    %1048 = vmatprep.subr.mxu0 0.0
    %1049 = vmatpush1.xpose.msra.mxu0 0.0
    %1050 = vmatprep.subr.mxu0 0.0
    %1051 = vmatpush1.xpose.msra.mxu0 0.0
    %1052 = vmatprep.subr.mxu0 0.0
    %1053 = vmatpush1.xpose.msra.mxu0 0.0
    %1054 = vmatprep.subr.mxu0 0.0
    %1055 = vmatpush1.xpose.msra.mxu0 0.0
    %1056 = vmatprep.subr.mxu0 0.0
    %1057 = vmatpush1.xpose.msra.mxu0 0.0
    %1058 = vmatprep.subr.mxu0 0.0
    %1059 = vmatpush1.xpose.msra.mxu0 0.0
    %1060 = vmatprep.subr.mxu0 0.0
    %1061 = vmatpush1.xpose.msra.mxu0 0.0
    %1062 = vmatprep.subr.mxu0 0.0
    %1063 = vmatpush1.xpose.msra.mxu0 0.0
    %1064 = vmatprep.subr.mxu0 0.0
    %1065 = vmatpush1.xpose.msra.mxu0 0.0
    %1066 = vmatprep.subr.mxu0 0.0
    %1067 = vmatpush1.xpose.msra.mxu0 0.0
    %1068 = vmatprep.subr.mxu0 0.0
    %1069 = vmatpush1.xpose.msra.mxu0 0.0
    %1070 = vmatprep.subr.mxu0 0.0
    %1071 = vmatpush1.xpose.msra.mxu0 0.0
    %1072 = vmatprep.subr.mxu0 0.0
    %1073 = vmatpush1.xpose.msra.mxu0 0.0
    %1074 = vmatprep.subr.mxu0 0.0
    %1075 = vmatpush1.xpose.msra.mxu0 0.0
    %1076 = vmatprep.subr.mxu0 0.0
    %1077 = vmatpush1.xpose.msra.mxu0 0.0
    %1078 = vmatprep.subr.mxu0 0.0
    %1079 = vmatpush1.xpose.msra.mxu0 0.0
    %1080 = vmatprep.subr.mxu0 0.0
    %1081 = vmatpush1.xpose.msra.mxu0 0.0
    %1082 = vmatprep.subr.mxu0 0.0
    %1083 = vmatpush1.xpose.msra.mxu0 0.0
    %1084 = vmatprep.subr.mxu0 0.0
    %1085 = vmatpush1.xpose.msra.mxu0 0.0
    %1086 = vmatprep.subr.mxu0 0.0
    %1087 = vmatpush1.xpose.msra.mxu0 0.0
    %1088 = vmatprep.subr.mxu0 0.0
    %1089 = vmatpush1.xpose.msra.mxu0 0.0
    %1090 = vmatprep.mubr.f32.mxu0 0.0
    %v1091 = vand.u32 %v672, 4294901760
    %v1092 = vsub.f32 %v672, %v1091
    %1093 = vmatmul.mubr.f32.gmra.mrb[0].mxu0 %v1092
    %v1094 = vpop.f32.mrb[0].mxu0
    %v1095 = vadd.f32 %v965, %v1094
    %v1096 = vpop.f32.mrb[0].mxu0
    %1097 = vmatprep.mubr.f32.mxu0 0.0
    %v1098 = vand.u32 %v674, 4294901760
    %v1099 = vsub.f32 %v674, %v1098
    %1100 = vmatmul.mubr.f32.gmra.mrb[0].mxu0 %v1099
    %v1101 = vpop.f32.mrb[0].mxu0
    %v1102 = vadd.f32 %v971, %v1101
    %v1103 = vpop.f32.mrb[0].mxu0
    %1104 = vmatprep.mubr.f32.mxu0 0.0
    %v1105 = vand.u32 %v676, 4294901760
    %v1106 = vsub.f32 %v676, %v1105
    %1107 = vmatmul.mubr.f32.gmra.mrb[0].mxu0 %v1106
    %v1108 = vpop.f32.mrb[0].mxu0
    %v1109 = vadd.f32 %v977, %v1108
    %v1110 = vpop.f32.mrb[0].mxu0
    %1111 = vmatprep.mubr.f32.mxu0 0.0
    %v1112 = vand.u32 %v678, 4294901760
    %v1113 = vsub.f32 %v678, %v1112
    %1114 = vmatmul.mubr.f32.gmra.mrb[0].mxu0 %v1113
    %v1115 = vpop.f32.mrb[0].mxu0
    %v1116 = vadd.f32 %v983, %v1115
    %v1117 = vpop.f32.mrb[0].mxu0
    %1118 = vmatprep.mubr.f32.mxu0 0.0
    %v1119 = vand.u32 %v680, 4294901760
    %v1120 = vsub.f32 %v680, %v1119
    %1121 = vmatmul.mubr.f32.gmra.mrb[0].mxu0 %v1120
    %v1122 = vpop.f32.mrb[0].mxu0
    %v1123 = vadd.f32 %v989, %v1122
    %v1124 = vpop.f32.mrb[0].mxu0
    %1125 = vmatprep.mubr.f32.mxu0 0.0
    %v1126 = vand.u32 %v682, 4294901760
    %v1127 = vsub.f32 %v682, %v1126
    %1128 = vmatmul.mubr.f32.gmra.mrb[0].mxu0 %v1127
    %v1129 = vpop.f32.mrb[0].mxu0
    %v1130 = vadd.f32 %v995, %v1129
    %v1131 = vpop.f32.mrb[0].mxu0
    %1132 = vmatprep.mubr.f32.mxu0 0.0
    %v1133 = vand.u32 %v684, 4294901760
    %v1134 = vsub.f32 %v684, %v1133
    %1135 = vmatmul.mubr.f32.gmra.mrb[0].mxu0 %v1134
    %v1136 = vpop.f32.mrb[0].mxu0
    %v1137 = vadd.f32 %v1001, %v1136
    %v1138 = vpop.f32.mrb[0].mxu0
    %1139 = vmatprep.mubr.f32.mxu0 0.0
    %v1140 = vand.u32 %v686, 4294901760
    %v1141 = vsub.f32 %v686, %v1140
    %1142 = vmatmul.mubr.f32.gmra.mrb[0].mxu0 %v1141
    %v1143 = vpop.f32.mrb[0].mxu0
    %v1144 = vadd.f32 %v1007, %v1143
    %v1145 = vpop.f32.mrb[0].mxu0
    %1146 = vdwg.mxu0
    %1147 = vmatprep.subr.mxu0 0.0
    %v1148 = vand.u32 %v688, 4294901760
    %1149 = vmatpush1.xpose.msra.mxu0 %v1148
    %1150 = vmatprep.subr.mxu0 0.0
    %v1151 = vand.u32 %v690, 4294901760
    %1152 = vmatpush1.xpose.msra.mxu0 %v1151
    %1153 = vmatprep.subr.mxu0 0.0
    %v1154 = vand.u32 %v692, 4294901760
    %1155 = vmatpush1.xpose.msra.mxu0 %v1154
    %1156 = vmatprep.subr.mxu0 0.0
    %v1157 = vand.u32 %v694, 4294901760
    %1158 = vmatpush1.xpose.msra.mxu0 %v1157
    %1159 = vmatprep.subr.mxu0 0.0
    %v1160 = vand.u32 %v696, 4294901760
    %1161 = vmatpush1.xpose.msra.mxu0 %v1160
    %1162 = vmatprep.subr.mxu0 0.0
    %v1163 = vand.u32 %v698, 4294901760
    %1164 = vmatpush1.xpose.msra.mxu0 %v1163
    %1165 = vmatprep.subr.mxu0 0.0
    %v1166 = vand.u32 %v700, 4294901760
    %1167 = vmatpush1.xpose.msra.mxu0 %v1166
    %1168 = vmatprep.subr.mxu0 0.0
    %v1169 = vand.u32 %v702, 4294901760
    %1170 = vmatpush1.xpose.msra.mxu0 %v1169
    %1171 = vmatprep.subr.mxu0 0.0
    %1172 = vmatpush1.xpose.msra.mxu0 0.0
    %1173 = vmatprep.subr.mxu0 0.0
    %1174 = vmatpush1.xpose.msra.mxu0 0.0
    %1175 = vmatprep.subr.mxu0 0.0
    %1176 = vmatpush1.xpose.msra.mxu0 0.0
    %1177 = vmatprep.subr.mxu0 0.0
    %1178 = vmatpush1.xpose.msra.mxu0 0.0
    %1179 = vmatprep.subr.mxu0 0.0
    %1180 = vmatpush1.xpose.msra.mxu0 0.0
    %1181 = vmatprep.subr.mxu0 0.0
    %1182 = vmatpush1.xpose.msra.mxu0 0.0
    %1183 = vmatprep.subr.mxu0 0.0
    %1184 = vmatpush1.xpose.msra.mxu0 0.0
    %1185 = vmatprep.subr.mxu0 0.0
    %1186 = vmatpush1.xpose.msra.mxu0 0.0
    %1187 = vmatprep.subr.mxu0 0.0
    %1188 = vmatpush1.xpose.msra.mxu0 0.0
    %1189 = vmatprep.subr.mxu0 0.0
    %1190 = vmatpush1.xpose.msra.mxu0 0.0
    %1191 = vmatprep.subr.mxu0 0.0
    %1192 = vmatpush1.xpose.msra.mxu0 0.0
    %1193 = vmatprep.subr.mxu0 0.0
    %1194 = vmatpush1.xpose.msra.mxu0 0.0
    %1195 = vmatprep.subr.mxu0 0.0
    %1196 = vmatpush1.xpose.msra.mxu0 0.0
    %1197 = vmatprep.subr.mxu0 0.0
    %1198 = vmatpush1.xpose.msra.mxu0 0.0
    %1199 = vmatprep.subr.mxu0 0.0
    %1200 = vmatpush1.xpose.msra.mxu0 0.0
    %1201 = vmatprep.subr.mxu0 0.0
    %1202 = vmatpush1.xpose.msra.mxu0 0.0
    %1203 = vmatprep.subr.mxu0 0.0
    %1204 = vmatpush1.xpose.msra.mxu0 0.0
    %1205 = vmatprep.subr.mxu0 0.0
    %1206 = vmatpush1.xpose.msra.mxu0 0.0
    %1207 = vmatprep.subr.mxu0 0.0
    %1208 = vmatpush1.xpose.msra.mxu0 0.0
    %1209 = vmatprep.subr.mxu0 0.0
    %1210 = vmatpush1.xpose.msra.mxu0 0.0
    %1211 = vmatprep.subr.mxu0 0.0
    %1212 = vmatpush1.xpose.msra.mxu0 0.0
    %1213 = vmatprep.subr.mxu0 0.0
    %1214 = vmatpush1.xpose.msra.mxu0 0.0
    %1215 = vmatprep.subr.mxu0 0.0
    %1216 = vmatpush1.xpose.msra.mxu0 0.0
    %1217 = vmatprep.subr.mxu0 0.0
    %1218 = vmatpush1.xpose.msra.mxu0 0.0
    %1219 = vmatprep.mubr.f32.mxu0 0.0
    %v1220 = vand.u32 %v672, 4294901760
    %v1221 = vsub.f32 %v672, %v1220
    %v1222 = vand.u32 %v1221, 4294901760
    %1223 = vmatmul.mubr.f32.gmra.mrb[0].mxu0 %v1222
    %v1224 = vpop.f32.mrb[0].mxu0
    %v1225 = vadd.f32 %v1095, %v1224
    %v1226 = vpop.f32.mrb[0].mxu0
    %1227 = vmatprep.mubr.f32.mxu0 0.0
    %v1228 = vand.u32 %v674, 4294901760
    %v1229 = vsub.f32 %v674, %v1228
    %v1230 = vand.u32 %v1229, 4294901760
    %1231 = vmatmul.mubr.f32.gmra.mrb[0].mxu0 %v1230
    %v1232 = vpop.f32.mrb[0].mxu0
    %v1233 = vadd.f32 %v1102, %v1232
    %v1234 = vpop.f32.mrb[0].mxu0
    %1235 = vmatprep.mubr.f32.mxu0 0.0
    %v1236 = vand.u32 %v676, 4294901760
    %v1237 = vsub.f32 %v676, %v1236
    %v1238 = vand.u32 %v1237, 4294901760
    %1239 = vmatmul.mubr.f32.gmra.mrb[0].mxu0 %v1238
    %v1240 = vpop.f32.mrb[0].mxu0
    %v1241 = vadd.f32 %v1109, %v1240
    %v1242 = vpop.f32.mrb[0].mxu0
    %1243 = vmatprep.mubr.f32.mxu0 0.0
    %v1244 = vand.u32 %v678, 4294901760
    %v1245 = vsub.f32 %v678, %v1244
    %v1246 = vand.u32 %v1245, 4294901760
    %1247 = vmatmul.mubr.f32.gmra.mrb[0].mxu0 %v1246
    %v1248 = vpop.f32.mrb[0].mxu0
    %v1249 = vadd.f32 %v1116, %v1248
    %v1250 = vpop.f32.mrb[0].mxu0
    %1251 = vmatprep.mubr.f32.mxu0 0.0
    %v1252 = vand.u32 %v680, 4294901760
    %v1253 = vsub.f32 %v680, %v1252
    %v1254 = vand.u32 %v1253, 4294901760
    %1255 = vmatmul.mubr.f32.gmra.mrb[0].mxu0 %v1254
    %v1256 = vpop.f32.mrb[0].mxu0
    %v1257 = vadd.f32 %v1123, %v1256
    %v1258 = vpop.f32.mrb[0].mxu0
    %1259 = vmatprep.mubr.f32.mxu0 0.0
    %v1260 = vand.u32 %v682, 4294901760
    %v1261 = vsub.f32 %v682, %v1260
    %v1262 = vand.u32 %v1261, 4294901760
    %1263 = vmatmul.mubr.f32.gmra.mrb[0].mxu0 %v1262
    %v1264 = vpop.f32.mrb[0].mxu0
    %v1265 = vadd.f32 %v1130, %v1264
    %v1266 = vpop.f32.mrb[0].mxu0
    %1267 = vmatprep.mubr.f32.mxu0 0.0
    %v1268 = vand.u32 %v684, 4294901760
    %v1269 = vsub.f32 %v684, %v1268
    %v1270 = vand.u32 %v1269, 4294901760
    %1271 = vmatmul.mubr.f32.gmra.mrb[0].mxu0 %v1270
    %v1272 = vpop.f32.mrb[0].mxu0
    %v1273 = vadd.f32 %v1137, %v1272
    %v1274 = vpop.f32.mrb[0].mxu0
    %1275 = vmatprep.mubr.f32.mxu0 0.0
    %v1276 = vand.u32 %v686, 4294901760
    %v1277 = vsub.f32 %v686, %v1276
    %v1278 = vand.u32 %v1277, 4294901760
    %1279 = vmatmul.mubr.f32.gmra.mrb[0].mxu0 %v1278
    %v1280 = vpop.f32.mrb[0].mxu0
    %v1281 = vadd.f32 %v1144, %v1280
    %v1282 = vpop.f32.mrb[0].mxu0
    %1283 = vdwg.mxu0
    %1284 = vmatprep.subr.mxu0 0.0
    %v1285 = vand.u32 %v688, 4294901760
    %v1286 = vsub.f32 %v688, %v1285
    %v1287 = vand.u32 %v1286, 4294901760
    %1288 = vmatpush1.xpose.msra.mxu0 %v1287
    %1289 = vmatprep.subr.mxu0 0.0
    %v1290 = vand.u32 %v690, 4294901760
    %v1291 = vsub.f32 %v690, %v1290
    %v1292 = vand.u32 %v1291, 4294901760
    %1293 = vmatpush1.xpose.msra.mxu0 %v1292
    %1294 = vmatprep.subr.mxu0 0.0
    %v1295 = vand.u32 %v692, 4294901760
    %v1296 = vsub.f32 %v692, %v1295
    %v1297 = vand.u32 %v1296, 4294901760
    %1298 = vmatpush1.xpose.msra.mxu0 %v1297
    %1299 = vmatprep.subr.mxu0 0.0
    %v1300 = vand.u32 %v694, 4294901760
    %v1301 = vsub.f32 %v694, %v1300
    %v1302 = vand.u32 %v1301, 4294901760
    %1303 = vmatpush1.xpose.msra.mxu0 %v1302
    %1304 = vmatprep.subr.mxu0 0.0
    %v1305 = vand.u32 %v696, 4294901760
    %v1306 = vsub.f32 %v696, %v1305
    %v1307 = vand.u32 %v1306, 4294901760
    %1308 = vmatpush1.xpose.msra.mxu0 %v1307
    %1309 = vmatprep.subr.mxu0 0.0
    %v1310 = vand.u32 %v698, 4294901760
    %v1311 = vsub.f32 %v698, %v1310
    %v1312 = vand.u32 %v1311, 4294901760
    %1313 = vmatpush1.xpose.msra.mxu0 %v1312
    %1314 = vmatprep.subr.mxu0 0.0
    %v1315 = vand.u32 %v700, 4294901760
    %v1316 = vsub.f32 %v700, %v1315
    %v1317 = vand.u32 %v1316, 4294901760
    %1318 = vmatpush1.xpose.msra.mxu0 %v1317
    %1319 = vmatprep.subr.mxu0 0.0
    %v1320 = vand.u32 %v702, 4294901760
    %v1321 = vsub.f32 %v702, %v1320
    %v1322 = vand.u32 %v1321, 4294901760
    %1323 = vmatpush1.xpose.msra.mxu0 %v1322
    %1324 = vmatprep.subr.mxu0 0.0
    %1325 = vmatpush1.xpose.msra.mxu0 0.0
    %1326 = vmatprep.subr.mxu0 0.0
    %1327 = vmatpush1.xpose.msra.mxu0 0.0
    %1328 = vmatprep.subr.mxu0 0.0
    %1329 = vmatpush1.xpose.msra.mxu0 0.0
    %1330 = vmatprep.subr.mxu0 0.0
    %1331 = vmatpush1.xpose.msra.mxu0 0.0
    %1332 = vmatprep.subr.mxu0 0.0
    %1333 = vmatpush1.xpose.msra.mxu0 0.0
    %1334 = vmatprep.subr.mxu0 0.0
    %1335 = vmatpush1.xpose.msra.mxu0 0.0
    %1336 = vmatprep.subr.mxu0 0.0
    %1337 = vmatpush1.xpose.msra.mxu0 0.0
    %1338 = vmatprep.subr.mxu0 0.0
    %1339 = vmatpush1.xpose.msra.mxu0 0.0
    %1340 = vmatprep.subr.mxu0 0.0
    %1341 = vmatpush1.xpose.msra.mxu0 0.0
    %1342 = vmatprep.subr.mxu0 0.0
    %1343 = vmatpush1.xpose.msra.mxu0 0.0
    %1344 = vmatprep.subr.mxu0 0.0
    %1345 = vmatpush1.xpose.msra.mxu0 0.0
    %1346 = vmatprep.subr.mxu0 0.0
    %1347 = vmatpush1.xpose.msra.mxu0 0.0
    %1348 = vmatprep.subr.mxu0 0.0
    %1349 = vmatpush1.xpose.msra.mxu0 0.0
    %1350 = vmatprep.subr.mxu0 0.0
    %1351 = vmatpush1.xpose.msra.mxu0 0.0
    %1352 = vmatprep.subr.mxu0 0.0
    %1353 = vmatpush1.xpose.msra.mxu0 0.0
    %1354 = vmatprep.subr.mxu0 0.0
    %1355 = vmatpush1.xpose.msra.mxu0 0.0
    %1356 = vmatprep.subr.mxu0 0.0
    %1357 = vmatpush1.xpose.msra.mxu0 0.0
    %1358 = vmatprep.subr.mxu0 0.0
    %1359 = vmatpush1.xpose.msra.mxu0 0.0
    %1360 = vmatprep.subr.mxu0 0.0
    %1361 = vmatpush1.xpose.msra.mxu0 0.0
    %1362 = vmatprep.subr.mxu0 0.0
    %1363 = vmatpush1.xpose.msra.mxu0 0.0
    %1364 = vmatprep.subr.mxu0 0.0
    %1365 = vmatpush1.xpose.msra.mxu0 0.0
    %1366 = vmatprep.subr.mxu0 0.0
    %1367 = vmatpush1.xpose.msra.mxu0 0.0
    %1368 = vmatprep.subr.mxu0 0.0
    %1369 = vmatpush1.xpose.msra.mxu0 0.0
    %1370 = vmatprep.subr.mxu0 0.0
    %1371 = vmatpush1.xpose.msra.mxu0 0.0
    %1372 = vmatprep.mubr.f32.mxu0 0.0
    %v1373 = vand.u32 %v672, 4294901760
    %1374 = vmatmul.mubr.f32.gmra.mrb[0].mxu0 %v1373
    %v1375 = vpop.f32.mrb[0].mxu0
    %v1376 = vadd.f32 %v1225, %v1375
    %v1377 = vpop.f32.mrb[0].mxu0
    %1378 = vmatprep.mubr.f32.mxu0 0.0
    %v1379 = vand.u32 %v674, 4294901760
    %1380 = vmatmul.mubr.f32.gmra.mrb[0].mxu0 %v1379
    %v1381 = vpop.f32.mrb[0].mxu0
    %v1382 = vadd.f32 %v1233, %v1381
    %v1383 = vpop.f32.mrb[0].mxu0
    %1384 = vmatprep.mubr.f32.mxu0 0.0
    %v1385 = vand.u32 %v676, 4294901760
    %1386 = vmatmul.mubr.f32.gmra.mrb[0].mxu0 %v1385
    %v1387 = vpop.f32.mrb[0].mxu0
    %v1388 = vadd.f32 %v1241, %v1387
    %v1389 = vpop.f32.mrb[0].mxu0
    %1390 = vmatprep.mubr.f32.mxu0 0.0
    %v1391 = vand.u32 %v678, 4294901760
    %1392 = vmatmul.mubr.f32.gmra.mrb[0].mxu0 %v1391
    %v1393 = vpop.f32.mrb[0].mxu0
    %v1394 = vadd.f32 %v1249, %v1393
    %v1395 = vpop.f32.mrb[0].mxu0
    %1396 = vmatprep.mubr.f32.mxu0 0.0
    %v1397 = vand.u32 %v680, 4294901760
    %1398 = vmatmul.mubr.f32.gmra.mrb[0].mxu0 %v1397
    %v1399 = vpop.f32.mrb[0].mxu0
    %v1400 = vadd.f32 %v1257, %v1399
    %v1401 = vpop.f32.mrb[0].mxu0
    %1402 = vmatprep.mubr.f32.mxu0 0.0
    %v1403 = vand.u32 %v682, 4294901760
    %1404 = vmatmul.mubr.f32.gmra.mrb[0].mxu0 %v1403
    %v1405 = vpop.f32.mrb[0].mxu0
    %v1406 = vadd.f32 %v1265, %v1405
    %v1407 = vpop.f32.mrb[0].mxu0
    %1408 = vmatprep.mubr.f32.mxu0 0.0
    %v1409 = vand.u32 %v684, 4294901760
    %1410 = vmatmul.mubr.f32.gmra.mrb[0].mxu0 %v1409
    %v1411 = vpop.f32.mrb[0].mxu0
    %v1412 = vadd.f32 %v1273, %v1411
    %v1413 = vpop.f32.mrb[0].mxu0
    %1414 = vmatprep.mubr.f32.mxu0 0.0
    %v1415 = vand.u32 %v686, 4294901760
    %1416 = vmatmul.mubr.f32.gmra.mrb[0].mxu0 %v1415
    %v1417 = vpop.f32.mrb[0].mxu0
    %v1418 = vadd.f32 %v1281, %v1417
    %v1419 = vpop.f32.mrb[0].mxu0
    %1420 = vdwg.mxu0
    %1421 = vmatprep.subr.mxu0 0.0
    %v1422 = vand.u32 %v688, 4294901760
    %1423 = vmatpush1.xpose.msra.mxu0 %v1422
    %1424 = vmatprep.subr.mxu0 0.0
    %v1425 = vand.u32 %v690, 4294901760
    %1426 = vmatpush1.xpose.msra.mxu0 %v1425
    %1427 = vmatprep.subr.mxu0 0.0
    %v1428 = vand.u32 %v692, 4294901760
    %1429 = vmatpush1.xpose.msra.mxu0 %v1428
    %1430 = vmatprep.subr.mxu0 0.0
    %v1431 = vand.u32 %v694, 4294901760
    %1432 = vmatpush1.xpose.msra.mxu0 %v1431
    %1433 = vmatprep.subr.mxu0 0.0
    %v1434 = vand.u32 %v696, 4294901760
    %1435 = vmatpush1.xpose.msra.mxu0 %v1434
    %1436 = vmatprep.subr.mxu0 0.0
    %v1437 = vand.u32 %v698, 4294901760
    %1438 = vmatpush1.xpose.msra.mxu0 %v1437
    %1439 = vmatprep.subr.mxu0 0.0
    %v1440 = vand.u32 %v700, 4294901760
    %1441 = vmatpush1.xpose.msra.mxu0 %v1440
    %1442 = vmatprep.subr.mxu0 0.0
    %v1443 = vand.u32 %v702, 4294901760
    %1444 = vmatpush1.xpose.msra.mxu0 %v1443
    %1445 = vmatprep.subr.mxu0 0.0
    %1446 = vmatpush1.xpose.msra.mxu0 0.0
    %1447 = vmatprep.subr.mxu0 0.0
    %1448 = vmatpush1.xpose.msra.mxu0 0.0
    %1449 = vmatprep.subr.mxu0 0.0
    %1450 = vmatpush1.xpose.msra.mxu0 0.0
    %1451 = vmatprep.subr.mxu0 0.0
    %1452 = vmatpush1.xpose.msra.mxu0 0.0
    %1453 = vmatprep.subr.mxu0 0.0
    %1454 = vmatpush1.xpose.msra.mxu0 0.0
    %1455 = vmatprep.subr.mxu0 0.0
    %1456 = vmatpush1.xpose.msra.mxu0 0.0
    %1457 = vmatprep.subr.mxu0 0.0
    %1458 = vmatpush1.xpose.msra.mxu0 0.0
    %1459 = vmatprep.subr.mxu0 0.0
    %1460 = vmatpush1.xpose.msra.mxu0 0.0
    %1461 = vmatprep.subr.mxu0 0.0
    %1462 = vmatpush1.xpose.msra.mxu0 0.0
    %1463 = vmatprep.subr.mxu0 0.0
    %1464 = vmatpush1.xpose.msra.mxu0 0.0
    %1465 = vmatprep.subr.mxu0 0.0
    %1466 = vmatpush1.xpose.msra.mxu0 0.0
    %1467 = vmatprep.subr.mxu0 0.0
    %1468 = vmatpush1.xpose.msra.mxu0 0.0
    %1469 = vmatprep.subr.mxu0 0.0
    %1470 = vmatpush1.xpose.msra.mxu0 0.0
    %1471 = vmatprep.subr.mxu0 0.0
    %1472 = vmatpush1.xpose.msra.mxu0 0.0
    %1473 = vmatprep.subr.mxu0 0.0
    %1474 = vmatpush1.xpose.msra.mxu0 0.0
    %1475 = vmatprep.subr.mxu0 0.0
    %1476 = vmatpush1.xpose.msra.mxu0 0.0
    %1477 = vmatprep.subr.mxu0 0.0
    %1478 = vmatpush1.xpose.msra.mxu0 0.0
    %1479 = vmatprep.subr.mxu0 0.0
    %1480 = vmatpush1.xpose.msra.mxu0 0.0
    %1481 = vmatprep.subr.mxu0 0.0
    %1482 = vmatpush1.xpose.msra.mxu0 0.0
    %1483 = vmatprep.subr.mxu0 0.0
    %1484 = vmatpush1.xpose.msra.mxu0 0.0
    %1485 = vmatprep.subr.mxu0 0.0
    %1486 = vmatpush1.xpose.msra.mxu0 0.0
    %1487 = vmatprep.subr.mxu0 0.0
    %1488 = vmatpush1.xpose.msra.mxu0 0.0
    %1489 = vmatprep.subr.mxu0 0.0
    %1490 = vmatpush1.xpose.msra.mxu0 0.0
    %1491 = vmatprep.subr.mxu0 0.0
    %1492 = vmatpush1.xpose.msra.mxu0 0.0
    %1493 = vmatprep.mubr.f32.mxu0 0.0
    %v1494 = vand.u32 %v672, 4294901760
    %1495 = vmatmul.mubr.f32.gmra.mrb[0].mxu0 %v1494
    %v1496 = vpop.f32.mrb[0].mxu0
    %v1497 = vadd.f32 %v1376, %v1496
    %v1498 = vpop.f32.mrb[0].mxu0
    %1499 = vmatprep.mubr.f32.mxu0 0.0
    %v1500 = vand.u32 %v674, 4294901760
    %1501 = vmatmul.mubr.f32.gmra.mrb[0].mxu0 %v1500
    %v1502 = vpop.f32.mrb[0].mxu0
    %v1503 = vadd.f32 %v1382, %v1502
    %v1504 = vpop.f32.mrb[0].mxu0
    %1505 = vmatprep.mubr.f32.mxu0 0.0
    %v1506 = vand.u32 %v676, 4294901760
    %1507 = vmatmul.mubr.f32.gmra.mrb[0].mxu0 %v1506
    %v1508 = vpop.f32.mrb[0].mxu0
    %v1509 = vadd.f32 %v1388, %v1508
    %v1510 = vpop.f32.mrb[0].mxu0
    %1511 = vmatprep.mubr.f32.mxu0 0.0
    %v1512 = vand.u32 %v678, 4294901760
    %1513 = vmatmul.mubr.f32.gmra.mrb[0].mxu0 %v1512
    %v1514 = vpop.f32.mrb[0].mxu0
    %v1515 = vadd.f32 %v1394, %v1514
    %v1516 = vpop.f32.mrb[0].mxu0
    %1517 = vmatprep.mubr.f32.mxu0 0.0
    %v1518 = vand.u32 %v680, 4294901760
    %1519 = vmatmul.mubr.f32.gmra.mrb[0].mxu0 %v1518
    %v1520 = vpop.f32.mrb[0].mxu0
    %v1521 = vadd.f32 %v1400, %v1520
    %v1522 = vpop.f32.mrb[0].mxu0
    %1523 = vmatprep.mubr.f32.mxu0 0.0
    %v1524 = vand.u32 %v682, 4294901760
    %1525 = vmatmul.mubr.f32.gmra.mrb[0].mxu0 %v1524
    %v1526 = vpop.f32.mrb[0].mxu0
    %v1527 = vadd.f32 %v1406, %v1526
    %v1528 = vpop.f32.mrb[0].mxu0
    %1529 = vmatprep.mubr.f32.mxu0 0.0
    %v1530 = vand.u32 %v684, 4294901760
    %1531 = vmatmul.mubr.f32.gmra.mrb[0].mxu0 %v1530
    %v1532 = vpop.f32.mrb[0].mxu0
    %v1533 = vadd.f32 %v1412, %v1532
    %v1534 = vpop.f32.mrb[0].mxu0
    %1535 = vmatprep.mubr.f32.mxu0 0.0
    %v1536 = vand.u32 %v686, 4294901760
    %1537 = vmatmul.mubr.f32.gmra.mrb[0].mxu0 %v1536
    %v1538 = vpop.f32.mrb[0].mxu0
    %v1539 = vadd.f32 %v1418, %v1538
    %v1540 = vpop.f32.mrb[0].mxu0
    %1541 = vdwg.mxu0
    %vm1542 = vcmask 523264
    %v1543 = vsel %vm1542, %v1497, -inf
    %1544 = vmax.xlane.f32.xlu0 %v1543
    %v1545 = vpop.xlane.xlu0 %1544
    %v1546 = vsel %vm1542, %v1503, -inf
    %1547 = vmax.xlane.f32.xlu0 %v1546
    %v1548 = vpop.xlane.xlu0 %1547
    %v1549 = vsel %vm1542, %v1509, -inf
    %1550 = vmax.xlane.f32.xlu0 %v1549
    %v1551 = vpop.xlane.xlu0 %1550
    %v1552 = vsel %vm1542, %v1515, -inf
    %1553 = vmax.xlane.f32.xlu0 %v1552
    %v1554 = vpop.xlane.xlu0 %1553
    %v1555 = vsel %vm1542, %v1521, -inf
    %1556 = vmax.xlane.f32.xlu0 %v1555
    %v1557 = vpop.xlane.xlu0 %1556
    %v1558 = vsel %vm1542, %v1527, -inf
    %1559 = vmax.xlane.f32.xlu0 %v1558
    %v1560 = vpop.xlane.xlu0 %1559
    %v1561 = vsel %vm1542, %v1533, -inf
    %1562 = vmax.xlane.f32.xlu0 %v1561
    %v1563 = vpop.xlane.xlu0 %1562
    %v1564 = vsel %vm1542, %v1539, -inf
    %1565 = vmax.xlane.f32.xlu0 %v1564
    %v1566 = vpop.xlane.xlu0 %1565
    %v1567 = vsub.f32 %v1497, %v1545
    %v1568 = vsub.f32 %v1503, %v1548
    %v1569 = vsub.f32 %v1509, %v1551
    %v1570 = vsub.f32 %v1515, %v1554
    %v1571 = vsub.f32 %v1521, %v1557
    %v1572 = vsub.f32 %v1527, %v1560
    %v1573 = vsub.f32 %v1533, %v1563
    %v1574 = vsub.f32 %v1539, %v1566
    %v1575 = vmul.f32 %v1567, 1.442695
    %v1576 = vpow.pop %v1575
    %v1577 = vmul.f32 %v1568, 1.442695
    %v1578 = vpow.pop %v1577
    %v1579 = vmul.f32 %v1569, 1.442695
    %v1580 = vpow.pop %v1579
    %v1581 = vmul.f32 %v1570, 1.442695
    %v1582 = vpow.pop %v1581
    %v1583 = vmul.f32 %v1571, 1.442695
    %v1584 = vpow.pop %v1583
    %v1585 = vmul.f32 %v1572, 1.442695
    %v1586 = vpow.pop %v1585
    %v1587 = vmul.f32 %v1573, 1.442695
    %v1588 = vpow.pop %v1587
    %v1589 = vmul.f32 %v1574, 1.442695
    %v1590 = vpow.pop %v1589
    %v1591 = vsel %vm1542, %v1576, 0.0
    %1592 = vadd.xlane.f32.xlu0 %v1591
    %v1593 = vpop.xlane.xlu0 %1592
    %v1594 = vsel %vm1542, %v1578, 0.0
    %1595 = vadd.xlane.f32.xlu0 %v1594
    %v1596 = vpop.xlane.xlu0 %1595
    %v1597 = vsel %vm1542, %v1580, 0.0
    %1598 = vadd.xlane.f32.xlu0 %v1597
    %v1599 = vpop.xlane.xlu0 %1598
    %v1600 = vsel %vm1542, %v1582, 0.0
    %1601 = vadd.xlane.f32.xlu0 %v1600
    %v1602 = vpop.xlane.xlu0 %1601
    %v1603 = vsel %vm1542, %v1584, 0.0
    %1604 = vadd.xlane.f32.xlu0 %v1603
    %v1605 = vpop.xlane.xlu0 %1604
    %v1606 = vsel %vm1542, %v1586, 0.0
    %1607 = vadd.xlane.f32.xlu0 %v1606
    %v1608 = vpop.xlane.xlu0 %1607
    %v1609 = vsel %vm1542, %v1588, 0.0
    %1610 = vadd.xlane.f32.xlu0 %v1609
    %v1611 = vpop.xlane.xlu0 %1610
    %v1612 = vsel %vm1542, %v1590, 0.0
    %1613 = vadd.xlane.f32.xlu0 %v1612
    %v1614 = vpop.xlane.xlu0 %1613
    %v1615 = vrcp.pop %v1593
    %v1616 = vrcp.pop %v1596
    %v1617 = vrcp.pop %v1599
    %v1618 = vrcp.pop %v1602
    %v1619 = vrcp.pop %v1605
    %v1620 = vrcp.pop %v1608
    %v1621 = vrcp.pop %v1611
    %v1622 = vrcp.pop %v1614
    %v1623 = vmul.f32 %v1576, %v1615
    %v1624 = vmul.f32 %v1578, %v1616
    %v1625 = vmul.f32 %v1580, %v1617
    %v1626 = vmul.f32 %v1582, %v1618
    %v1627 = vmul.f32 %v1584, %v1619
    %v1628 = vmul.f32 %v1586, %v1620
    %v1629 = vmul.f32 %v1588, %v1621
    %v1630 = vmul.f32 %v1590, %v1622
    %1631 = vrot.lane.b32.xlu0 %v619, 64
    %v1632 = vpop.permute.xlu0 %1631
    %1633 = vrot.lane.b32.xlu0 %v625, 64
    %v1634 = vpop.permute.xlu0 %1633
    %1635 = vrot.lane.b32.xlu0 %v631, 64
    %v1636 = vpop.permute.xlu0 %1635
    %1637 = vrot.lane.b32.xlu0 %v633, 64
    %v1638 = vpop.permute.xlu0 %1637
    %1639 = vrot.lane.b32.xlu0 %v635, 64
    %v1640 = vpop.permute.xlu0 %1639
    %1641 = vrot.lane.b32.xlu0 %v637, 64
    %v1642 = vpop.permute.xlu0 %1641
    %1643 = vrot.lane.b32.xlu0 %v639, 64
    %v1644 = vpop.permute.xlu0 %1643
    %1645 = vrot.lane.b32.xlu0 %v641, 64
    %v1646 = vpop.permute.xlu0 %1645
    %v1656 = vsel %vm1542, %v1623, 0
    %v1659 = vsel %vm1542, %v1624, 0
    %v1662 = vsel %vm1542, %v1625, 0
    %v1665 = vsel %vm1542, %v1626, 0
    %v1668 = vsel %vm1542, %v1627, 0
    %v1671 = vsel %vm1542, %v1628, 0
    %v1674 = vsel %vm1542, %v1629, 0
    %v1677 = vsel %vm1542, %v1630, 0
    %1679 = vmatprep.subr.mxu0 0.0
    %v1680 = vand.u32 %v1632, 4294901760
    %1681 = vmatpush1.msra.mxu0 %v1680
    %1682 = vmatprep.subr.mxu0 0.0
    %v1683 = vand.u32 %v1634, 4294901760
    %1684 = vmatpush1.msra.mxu0 %v1683
    %1685 = vmatprep.subr.mxu0 0.0
    %v1686 = vand.u32 %v1636, 4294901760
    %1687 = vmatpush1.msra.mxu0 %v1686
    %1688 = vmatprep.subr.mxu0 0.0
    %v1689 = vand.u32 %v1638, 4294901760
    %1690 = vmatpush1.msra.mxu0 %v1689
    %1691 = vmatprep.subr.mxu0 0.0
    %v1692 = vand.u32 %v1640, 4294901760
    %1693 = vmatpush1.msra.mxu0 %v1692
    %1694 = vmatprep.subr.mxu0 0.0
    %v1695 = vand.u32 %v1642, 4294901760
    %1696 = vmatpush1.msra.mxu0 %v1695
    %1697 = vmatprep.subr.mxu0 0.0
    %v1698 = vand.u32 %v1644, 4294901760
    %1699 = vmatpush1.msra.mxu0 %v1698
    %1700 = vmatprep.subr.mxu0 0.0
    %v1701 = vand.u32 %v1646, 4294901760
    %1702 = vmatpush1.msra.mxu0 %v1701
    %1703 = vmatprep.subr.mxu0 0.0
    %1704 = vmatpush1.msra.mxu0 0.0
    %1705 = vmatprep.subr.mxu0 0.0
    %1706 = vmatpush1.msra.mxu0 0.0
    %1707 = vmatprep.subr.mxu0 0.0
    %1708 = vmatpush1.msra.mxu0 0.0
    %1709 = vmatprep.subr.mxu0 0.0
    %1710 = vmatpush1.msra.mxu0 0.0
    %1711 = vmatprep.subr.mxu0 0.0
    %1712 = vmatpush1.msra.mxu0 0.0
    %1713 = vmatprep.subr.mxu0 0.0
    %1714 = vmatpush1.msra.mxu0 0.0
    %1715 = vmatprep.subr.mxu0 0.0
    %1716 = vmatpush1.msra.mxu0 0.0
    %1717 = vmatprep.subr.mxu0 0.0
    %1718 = vmatpush1.msra.mxu0 0.0
    %1719 = vmatprep.subr.mxu0 0.0
    %1720 = vmatpush1.msra.mxu0 0.0
    %1721 = vmatprep.subr.mxu0 0.0
    %1722 = vmatpush1.msra.mxu0 0.0
    %1723 = vmatprep.subr.mxu0 0.0
    %1724 = vmatpush1.msra.mxu0 0.0
    %1725 = vmatprep.subr.mxu0 0.0
    %1726 = vmatpush1.msra.mxu0 0.0
    %1727 = vmatprep.subr.mxu0 0.0
    %1728 = vmatpush1.msra.mxu0 0.0
    %1729 = vmatprep.subr.mxu0 0.0
    %1730 = vmatpush1.msra.mxu0 0.0
    %1731 = vmatprep.subr.mxu0 0.0
    %1732 = vmatpush1.msra.mxu0 0.0
    %1733 = vmatprep.subr.mxu0 0.0
    %1734 = vmatpush1.msra.mxu0 0.0
    %1735 = vmatprep.subr.mxu0 0.0
    %1736 = vmatpush1.msra.mxu0 0.0
    %1737 = vmatprep.subr.mxu0 0.0
    %1738 = vmatpush1.msra.mxu0 0.0
    %1739 = vmatprep.subr.mxu0 0.0
    %1740 = vmatpush1.msra.mxu0 0.0
    %1741 = vmatprep.subr.mxu0 0.0
    %1742 = vmatpush1.msra.mxu0 0.0
    %1743 = vmatprep.subr.mxu0 0.0
    %1744 = vmatpush1.msra.mxu0 0.0
    %1745 = vmatprep.subr.mxu0 0.0
    %1746 = vmatpush1.msra.mxu0 0.0
    %1747 = vmatprep.subr.mxu0 0.0
    %1748 = vmatpush1.msra.mxu0 0.0
    %1749 = vmatprep.subr.mxu0 0.0
    %1750 = vmatpush1.msra.mxu0 0.0
    %1751 = vmatprep.mubr.f32.mxu0 0.0
    %v1752 = vand.u32 %v1656, 4294901760
    %v1753 = vsub.f32 %v1656, %v1752
    %v1754 = vand.u32 %v1753, 4294901760
    %v1755 = vsub.f32 %v1753, %v1754
    %v1756 = vand.u32 %v1755, 4294901760
    %1757 = vmatmul.mubr.f32.gmra.mrb[0].mxu0 %v1756
    %v1758 = vpop.f32.mrb[0].mxu0
    %v1759 = vadd.f32 0.0, %v1758
    %v1760 = vpop.f32.mrb[0].mxu0
    %1761 = vmatprep.mubr.f32.mxu0 0.0
    %v1762 = vand.u32 %v1659, 4294901760
    %v1763 = vsub.f32 %v1659, %v1762
    %v1764 = vand.u32 %v1763, 4294901760
    %v1765 = vsub.f32 %v1763, %v1764
    %v1766 = vand.u32 %v1765, 4294901760
    %1767 = vmatmul.mubr.f32.gmra.mrb[0].mxu0 %v1766
    %v1768 = vpop.f32.mrb[0].mxu0
    %v1769 = vadd.f32 0.0, %v1768
    %v1770 = vpop.f32.mrb[0].mxu0
    %1771 = vmatprep.mubr.f32.mxu0 0.0
    %v1772 = vand.u32 %v1662, 4294901760
    %v1773 = vsub.f32 %v1662, %v1772
    %v1774 = vand.u32 %v1773, 4294901760
    %v1775 = vsub.f32 %v1773, %v1774
    %v1776 = vand.u32 %v1775, 4294901760
    %1777 = vmatmul.mubr.f32.gmra.mrb[0].mxu0 %v1776
    %v1778 = vpop.f32.mrb[0].mxu0
    %v1779 = vadd.f32 0.0, %v1778
    %v1780 = vpop.f32.mrb[0].mxu0
    %1781 = vmatprep.mubr.f32.mxu0 0.0
    %v1782 = vand.u32 %v1665, 4294901760
    %v1783 = vsub.f32 %v1665, %v1782
    %v1784 = vand.u32 %v1783, 4294901760
    %v1785 = vsub.f32 %v1783, %v1784
    %v1786 = vand.u32 %v1785, 4294901760
    %1787 = vmatmul.mubr.f32.gmra.mrb[0].mxu0 %v1786
    %v1788 = vpop.f32.mrb[0].mxu0
    %v1789 = vadd.f32 0.0, %v1788
    %v1790 = vpop.f32.mrb[0].mxu0
    %1791 = vmatprep.mubr.f32.mxu0 0.0
    %v1792 = vand.u32 %v1668, 4294901760
    %v1793 = vsub.f32 %v1668, %v1792
    %v1794 = vand.u32 %v1793, 4294901760
    %v1795 = vsub.f32 %v1793, %v1794
    %v1796 = vand.u32 %v1795, 4294901760
    %1797 = vmatmul.mubr.f32.gmra.mrb[0].mxu0 %v1796
    %v1798 = vpop.f32.mrb[0].mxu0
    %v1799 = vadd.f32 0.0, %v1798
    %v1800 = vpop.f32.mrb[0].mxu0
    %1801 = vmatprep.mubr.f32.mxu0 0.0
    %v1802 = vand.u32 %v1671, 4294901760
    %v1803 = vsub.f32 %v1671, %v1802
    %v1804 = vand.u32 %v1803, 4294901760
    %v1805 = vsub.f32 %v1803, %v1804
    %v1806 = vand.u32 %v1805, 4294901760
    %1807 = vmatmul.mubr.f32.gmra.mrb[0].mxu0 %v1806
    %v1808 = vpop.f32.mrb[0].mxu0
    %v1809 = vadd.f32 0.0, %v1808
    %v1810 = vpop.f32.mrb[0].mxu0
    %1811 = vmatprep.mubr.f32.mxu0 0.0
    %v1812 = vand.u32 %v1674, 4294901760
    %v1813 = vsub.f32 %v1674, %v1812
    %v1814 = vand.u32 %v1813, 4294901760
    %v1815 = vsub.f32 %v1813, %v1814
    %v1816 = vand.u32 %v1815, 4294901760
    %1817 = vmatmul.mubr.f32.gmra.mrb[0].mxu0 %v1816
    %v1818 = vpop.f32.mrb[0].mxu0
    %v1819 = vadd.f32 0.0, %v1818
    %v1820 = vpop.f32.mrb[0].mxu0
    %1821 = vmatprep.mubr.f32.mxu0 0.0
    %v1822 = vand.u32 %v1677, 4294901760
    %v1823 = vsub.f32 %v1677, %v1822
    %v1824 = vand.u32 %v1823, 4294901760
    %v1825 = vsub.f32 %v1823, %v1824
    %v1826 = vand.u32 %v1825, 4294901760
    %1827 = vmatmul.mubr.f32.gmra.mrb[0].mxu0 %v1826
    %v1828 = vpop.f32.mrb[0].mxu0
    %v1829 = vadd.f32 0.0, %v1828
    %v1830 = vpop.f32.mrb[0].mxu0
    %1831 = vdwg.mxu0
    %1832 = vmatprep.subr.mxu0 0.0
    %v1833 = vand.u32 %v1632, 4294901760
    %v1834 = vsub.f32 %v1632, %v1833
    %v1835 = vand.u32 %v1834, 4294901760
    %v1836 = vsub.f32 %v1834, %v1835
    %v1837 = vand.u32 %v1836, 4294901760
    %1838 = vmatpush1.msra.mxu0 %v1837
    %1839 = vmatprep.subr.mxu0 0.0
    %v1840 = vand.u32 %v1634, 4294901760
    %v1841 = vsub.f32 %v1634, %v1840
    %v1842 = vand.u32 %v1841, 4294901760
    %v1843 = vsub.f32 %v1841, %v1842
    %v1844 = vand.u32 %v1843, 4294901760
    %1845 = vmatpush1.msra.mxu0 %v1844
    %1846 = vmatprep.subr.mxu0 0.0
    %v1847 = vand.u32 %v1636, 4294901760
    %v1848 = vsub.f32 %v1636, %v1847
    %v1849 = vand.u32 %v1848, 4294901760
    %v1850 = vsub.f32 %v1848, %v1849
    %v1851 = vand.u32 %v1850, 4294901760
    %1852 = vmatpush1.msra.mxu0 %v1851
    %1853 = vmatprep.subr.mxu0 0.0
    %v1854 = vand.u32 %v1638, 4294901760
    %v1855 = vsub.f32 %v1638, %v1854
    %v1856 = vand.u32 %v1855, 4294901760
    %v1857 = vsub.f32 %v1855, %v1856
    %v1858 = vand.u32 %v1857, 4294901760
    %1859 = vmatpush1.msra.mxu0 %v1858
    %1860 = vmatprep.subr.mxu0 0.0
    %v1861 = vand.u32 %v1640, 4294901760
    %v1862 = vsub.f32 %v1640, %v1861
    %v1863 = vand.u32 %v1862, 4294901760
    %v1864 = vsub.f32 %v1862, %v1863
    %v1865 = vand.u32 %v1864, 4294901760
    %1866 = vmatpush1.msra.mxu0 %v1865
    %1867 = vmatprep.subr.mxu0 0.0
    %v1868 = vand.u32 %v1642, 4294901760
    %v1869 = vsub.f32 %v1642, %v1868
    %v1870 = vand.u32 %v1869, 4294901760
    %v1871 = vsub.f32 %v1869, %v1870
    %v1872 = vand.u32 %v1871, 4294901760
    %1873 = vmatpush1.msra.mxu0 %v1872
    %1874 = vmatprep.subr.mxu0 0.0
    %v1875 = vand.u32 %v1644, 4294901760
    %v1876 = vsub.f32 %v1644, %v1875
    %v1877 = vand.u32 %v1876, 4294901760
    %v1878 = vsub.f32 %v1876, %v1877
    %v1879 = vand.u32 %v1878, 4294901760
    %1880 = vmatpush1.msra.mxu0 %v1879
    %1881 = vmatprep.subr.mxu0 0.0
    %v1882 = vand.u32 %v1646, 4294901760
    %v1883 = vsub.f32 %v1646, %v1882
    %v1884 = vand.u32 %v1883, 4294901760
    %v1885 = vsub.f32 %v1883, %v1884
    %v1886 = vand.u32 %v1885, 4294901760
    %1887 = vmatpush1.msra.mxu0 %v1886
    %1888 = vmatprep.subr.mxu0 0.0
    %1889 = vmatpush1.msra.mxu0 0.0
    %1890 = vmatprep.subr.mxu0 0.0
    %1891 = vmatpush1.msra.mxu0 0.0
    %1892 = vmatprep.subr.mxu0 0.0
    %1893 = vmatpush1.msra.mxu0 0.0
    %1894 = vmatprep.subr.mxu0 0.0
    %1895 = vmatpush1.msra.mxu0 0.0
    %1896 = vmatprep.subr.mxu0 0.0
    %1897 = vmatpush1.msra.mxu0 0.0
    %1898 = vmatprep.subr.mxu0 0.0
    %1899 = vmatpush1.msra.mxu0 0.0
    %1900 = vmatprep.subr.mxu0 0.0
    %1901 = vmatpush1.msra.mxu0 0.0
    %1902 = vmatprep.subr.mxu0 0.0
    %1903 = vmatpush1.msra.mxu0 0.0
    %1904 = vmatprep.subr.mxu0 0.0
    %1905 = vmatpush1.msra.mxu0 0.0
    %1906 = vmatprep.subr.mxu0 0.0
    %1907 = vmatpush1.msra.mxu0 0.0
    %1908 = vmatprep.subr.mxu0 0.0
    %1909 = vmatpush1.msra.mxu0 0.0
    %1910 = vmatprep.subr.mxu0 0.0
    %1911 = vmatpush1.msra.mxu0 0.0
    %1912 = vmatprep.subr.mxu0 0.0
    %1913 = vmatpush1.msra.mxu0 0.0
    %1914 = vmatprep.subr.mxu0 0.0
    %1915 = vmatpush1.msra.mxu0 0.0
    %1916 = vmatprep.subr.mxu0 0.0
    %1917 = vmatpush1.msra.mxu0 0.0
    %1918 = vmatprep.subr.mxu0 0.0
    %1919 = vmatpush1.msra.mxu0 0.0
    %1920 = vmatprep.subr.mxu0 0.0
    %1921 = vmatpush1.msra.mxu0 0.0
    %1922 = vmatprep.subr.mxu0 0.0
    %1923 = vmatpush1.msra.mxu0 0.0
    %1924 = vmatprep.subr.mxu0 0.0
    %1925 = vmatpush1.msra.mxu0 0.0
    %1926 = vmatprep.subr.mxu0 0.0
    %1927 = vmatpush1.msra.mxu0 0.0
    %1928 = vmatprep.subr.mxu0 0.0
    %1929 = vmatpush1.msra.mxu0 0.0
    %1930 = vmatprep.subr.mxu0 0.0
    %1931 = vmatpush1.msra.mxu0 0.0
    %1932 = vmatprep.subr.mxu0 0.0
    %1933 = vmatpush1.msra.mxu0 0.0
    %1934 = vmatprep.subr.mxu0 0.0
    %1935 = vmatpush1.msra.mxu0 0.0
    %1936 = vmatprep.mubr.f32.mxu0 0.0
    %v1937 = vand.u32 %v1656, 4294901760
    %1938 = vmatmul.mubr.f32.gmra.mrb[0].mxu0 %v1937
    %v1939 = vpop.f32.mrb[0].mxu0
    %v1940 = vadd.f32 %v1759, %v1939
    %v1941 = vpop.f32.mrb[0].mxu0
    %1942 = vmatprep.mubr.f32.mxu0 0.0
    %v1943 = vand.u32 %v1659, 4294901760
    %1944 = vmatmul.mubr.f32.gmra.mrb[0].mxu0 %v1943
    %v1945 = vpop.f32.mrb[0].mxu0
    %v1946 = vadd.f32 %v1769, %v1945
    %v1947 = vpop.f32.mrb[0].mxu0
    %1948 = vmatprep.mubr.f32.mxu0 0.0
    %v1949 = vand.u32 %v1662, 4294901760
    %1950 = vmatmul.mubr.f32.gmra.mrb[0].mxu0 %v1949
    %v1951 = vpop.f32.mrb[0].mxu0
    %v1952 = vadd.f32 %v1779, %v1951
    %v1953 = vpop.f32.mrb[0].mxu0
    %1954 = vmatprep.mubr.f32.mxu0 0.0
    %v1955 = vand.u32 %v1665, 4294901760
    %1956 = vmatmul.mubr.f32.gmra.mrb[0].mxu0 %v1955
    %v1957 = vpop.f32.mrb[0].mxu0
    %v1958 = vadd.f32 %v1789, %v1957
    %v1959 = vpop.f32.mrb[0].mxu0
    %1960 = vmatprep.mubr.f32.mxu0 0.0
    %v1961 = vand.u32 %v1668, 4294901760
    %1962 = vmatmul.mubr.f32.gmra.mrb[0].mxu0 %v1961
    %v1963 = vpop.f32.mrb[0].mxu0
    %v1964 = vadd.f32 %v1799, %v1963
    %v1965 = vpop.f32.mrb[0].mxu0
    %1966 = vmatprep.mubr.f32.mxu0 0.0
    %v1967 = vand.u32 %v1671, 4294901760
    %1968 = vmatmul.mubr.f32.gmra.mrb[0].mxu0 %v1967
    %v1969 = vpop.f32.mrb[0].mxu0
    %v1970 = vadd.f32 %v1809, %v1969
    %v1971 = vpop.f32.mrb[0].mxu0
    %1972 = vmatprep.mubr.f32.mxu0 0.0
    %v1973 = vand.u32 %v1674, 4294901760
    %1974 = vmatmul.mubr.f32.gmra.mrb[0].mxu0 %v1973
    %v1975 = vpop.f32.mrb[0].mxu0
    %v1976 = vadd.f32 %v1819, %v1975
    %v1977 = vpop.f32.mrb[0].mxu0
    %1978 = vmatprep.mubr.f32.mxu0 0.0
    %v1979 = vand.u32 %v1677, 4294901760
    %1980 = vmatmul.mubr.f32.gmra.mrb[0].mxu0 %v1979
    %v1981 = vpop.f32.mrb[0].mxu0
    %v1982 = vadd.f32 %v1829, %v1981
    %v1983 = vpop.f32.mrb[0].mxu0
    %1984 = vdwg.mxu0
    %1985 = vmatprep.subr.mxu0 0.0
    %v1986 = vand.u32 %v1632, 4294901760
    %v1987 = vsub.f32 %v1632, %v1986
    %1988 = vmatpush1.msra.mxu0 %v1987
    %1989 = vmatprep.subr.mxu0 0.0
    %v1990 = vand.u32 %v1634, 4294901760
    %v1991 = vsub.f32 %v1634, %v1990
    %1992 = vmatpush1.msra.mxu0 %v1991
    %1993 = vmatprep.subr.mxu0 0.0
    %v1994 = vand.u32 %v1636, 4294901760
    %v1995 = vsub.f32 %v1636, %v1994
    %1996 = vmatpush1.msra.mxu0 %v1995
    %1997 = vmatprep.subr.mxu0 0.0
    %v1998 = vand.u32 %v1638, 4294901760
    %v1999 = vsub.f32 %v1638, %v1998
    %2000 = vmatpush1.msra.mxu0 %v1999
    %2001 = vmatprep.subr.mxu0 0.0
    %v2002 = vand.u32 %v1640, 4294901760
    %v2003 = vsub.f32 %v1640, %v2002
    %2004 = vmatpush1.msra.mxu0 %v2003
    %2005 = vmatprep.subr.mxu0 0.0
    %v2006 = vand.u32 %v1642, 4294901760
    %v2007 = vsub.f32 %v1642, %v2006
    %2008 = vmatpush1.msra.mxu0 %v2007
    %2009 = vmatprep.subr.mxu0 0.0
    %v2010 = vand.u32 %v1644, 4294901760
    %v2011 = vsub.f32 %v1644, %v2010
    %2012 = vmatpush1.msra.mxu0 %v2011
    %2013 = vmatprep.subr.mxu0 0.0
    %v2014 = vand.u32 %v1646, 4294901760
    %v2015 = vsub.f32 %v1646, %v2014
    %2016 = vmatpush1.msra.mxu0 %v2015
    %2017 = vmatprep.subr.mxu0 0.0
    %2018 = vmatpush1.msra.mxu0 0.0
    %2019 = vmatprep.subr.mxu0 0.0
    %2020 = vmatpush1.msra.mxu0 0.0
    %2021 = vmatprep.subr.mxu0 0.0
    %2022 = vmatpush1.msra.mxu0 0.0
    %2023 = vmatprep.subr.mxu0 0.0
    %2024 = vmatpush1.msra.mxu0 0.0
    %2025 = vmatprep.subr.mxu0 0.0
    %2026 = vmatpush1.msra.mxu0 0.0
    %2027 = vmatprep.subr.mxu0 0.0
    %2028 = vmatpush1.msra.mxu0 0.0
    %2029 = vmatprep.subr.mxu0 0.0
    %2030 = vmatpush1.msra.mxu0 0.0
    %2031 = vmatprep.subr.mxu0 0.0
    %2032 = vmatpush1.msra.mxu0 0.0
    %2033 = vmatprep.subr.mxu0 0.0
    %2034 = vmatpush1.msra.mxu0 0.0
    %2035 = vmatprep.subr.mxu0 0.0
    %2036 = vmatpush1.msra.mxu0 0.0
    %2037 = vmatprep.subr.mxu0 0.0
    %2038 = vmatpush1.msra.mxu0 0.0
    %2039 = vmatprep.subr.mxu0 0.0
    %2040 = vmatpush1.msra.mxu0 0.0
    %2041 = vmatprep.subr.mxu0 0.0
    %2042 = vmatpush1.msra.mxu0 0.0
    %2043 = vmatprep.subr.mxu0 0.0
    %2044 = vmatpush1.msra.mxu0 0.0
    %2045 = vmatprep.subr.mxu0 0.0
    %2046 = vmatpush1.msra.mxu0 0.0
    %2047 = vmatprep.subr.mxu0 0.0
    %2048 = vmatpush1.msra.mxu0 0.0
    %2049 = vmatprep.subr.mxu0 0.0
    %2050 = vmatpush1.msra.mxu0 0.0
    %2051 = vmatprep.subr.mxu0 0.0
    %2052 = vmatpush1.msra.mxu0 0.0
    %2053 = vmatprep.subr.mxu0 0.0
    %2054 = vmatpush1.msra.mxu0 0.0
    %2055 = vmatprep.subr.mxu0 0.0
    %2056 = vmatpush1.msra.mxu0 0.0
    %2057 = vmatprep.subr.mxu0 0.0
    %2058 = vmatpush1.msra.mxu0 0.0
    %2059 = vmatprep.subr.mxu0 0.0
    %2060 = vmatpush1.msra.mxu0 0.0
    %2061 = vmatprep.subr.mxu0 0.0
    %2062 = vmatpush1.msra.mxu0 0.0
    %2063 = vmatprep.subr.mxu0 0.0
    %2064 = vmatpush1.msra.mxu0 0.0
    %2065 = vmatprep.mubr.f32.mxu0 0.0
    %v2066 = vand.u32 %v1656, 4294901760
    %v2067 = vsub.f32 %v1656, %v2066
    %2068 = vmatmul.mubr.f32.gmra.mrb[0].mxu0 %v2067
    %v2069 = vpop.f32.mrb[0].mxu0
    %v2070 = vadd.f32 %v1940, %v2069
    %v2071 = vpop.f32.mrb[0].mxu0
    %2072 = vmatprep.mubr.f32.mxu0 0.0
    %v2073 = vand.u32 %v1659, 4294901760
    %v2074 = vsub.f32 %v1659, %v2073
    %2075 = vmatmul.mubr.f32.gmra.mrb[0].mxu0 %v2074
    %v2076 = vpop.f32.mrb[0].mxu0
    %v2077 = vadd.f32 %v1946, %v2076
    %v2078 = vpop.f32.mrb[0].mxu0
    %2079 = vmatprep.mubr.f32.mxu0 0.0
    %v2080 = vand.u32 %v1662, 4294901760
    %v2081 = vsub.f32 %v1662, %v2080
    %2082 = vmatmul.mubr.f32.gmra.mrb[0].mxu0 %v2081
    %v2083 = vpop.f32.mrb[0].mxu0
    %v2084 = vadd.f32 %v1952, %v2083
    %v2085 = vpop.f32.mrb[0].mxu0
    %2086 = vmatprep.mubr.f32.mxu0 0.0
    %v2087 = vand.u32 %v1665, 4294901760
    %v2088 = vsub.f32 %v1665, %v2087
    %2089 = vmatmul.mubr.f32.gmra.mrb[0].mxu0 %v2088
    %v2090 = vpop.f32.mrb[0].mxu0
    %v2091 = vadd.f32 %v1958, %v2090
    %v2092 = vpop.f32.mrb[0].mxu0
    %2093 = vmatprep.mubr.f32.mxu0 0.0
    %v2094 = vand.u32 %v1668, 4294901760
    %v2095 = vsub.f32 %v1668, %v2094
    %2096 = vmatmul.mubr.f32.gmra.mrb[0].mxu0 %v2095
    %v2097 = vpop.f32.mrb[0].mxu0
    %v2098 = vadd.f32 %v1964, %v2097
    %v2099 = vpop.f32.mrb[0].mxu0
    %2100 = vmatprep.mubr.f32.mxu0 0.0
    %v2101 = vand.u32 %v1671, 4294901760
    %v2102 = vsub.f32 %v1671, %v2101
    %2103 = vmatmul.mubr.f32.gmra.mrb[0].mxu0 %v2102
    %v2104 = vpop.f32.mrb[0].mxu0
    %v2105 = vadd.f32 %v1970, %v2104
    %v2106 = vpop.f32.mrb[0].mxu0
    %2107 = vmatprep.mubr.f32.mxu0 0.0
    %v2108 = vand.u32 %v1674, 4294901760
    %v2109 = vsub.f32 %v1674, %v2108
    %2110 = vmatmul.mubr.f32.gmra.mrb[0].mxu0 %v2109
    %v2111 = vpop.f32.mrb[0].mxu0
    %v2112 = vadd.f32 %v1976, %v2111
    %v2113 = vpop.f32.mrb[0].mxu0
    %2114 = vmatprep.mubr.f32.mxu0 0.0
    %v2115 = vand.u32 %v1677, 4294901760
    %v2116 = vsub.f32 %v1677, %v2115
    %2117 = vmatmul.mubr.f32.gmra.mrb[0].mxu0 %v2116
    %v2118 = vpop.f32.mrb[0].mxu0
    %v2119 = vadd.f32 %v1982, %v2118
    %v2120 = vpop.f32.mrb[0].mxu0
    %2121 = vdwg.mxu0
    %2122 = vmatprep.subr.mxu0 0.0
    %v2123 = vand.u32 %v1632, 4294901760
    %2124 = vmatpush1.msra.mxu0 %v2123
    %2125 = vmatprep.subr.mxu0 0.0
    %v2126 = vand.u32 %v1634, 4294901760
    %2127 = vmatpush1.msra.mxu0 %v2126
    %2128 = vmatprep.subr.mxu0 0.0
    %v2129 = vand.u32 %v1636, 4294901760
    %2130 = vmatpush1.msra.mxu0 %v2129
    %2131 = vmatprep.subr.mxu0 0.0
    %v2132 = vand.u32 %v1638, 4294901760
    %2133 = vmatpush1.msra.mxu0 %v2132
    %2134 = vmatprep.subr.mxu0 0.0
    %v2135 = vand.u32 %v1640, 4294901760
    %2136 = vmatpush1.msra.mxu0 %v2135
    %2137 = vmatprep.subr.mxu0 0.0
    %v2138 = vand.u32 %v1642, 4294901760
    %2139 = vmatpush1.msra.mxu0 %v2138
    %2140 = vmatprep.subr.mxu0 0.0
    %v2141 = vand.u32 %v1644, 4294901760
    %2142 = vmatpush1.msra.mxu0 %v2141
    %2143 = vmatprep.subr.mxu0 0.0
    %v2144 = vand.u32 %v1646, 4294901760
    %2145 = vmatpush1.msra.mxu0 %v2144
    %2146 = vmatprep.subr.mxu0 0.0
    %2147 = vmatpush1.msra.mxu0 0.0
    %2148 = vmatprep.subr.mxu0 0.0
    %2149 = vmatpush1.msra.mxu0 0.0
    %2150 = vmatprep.subr.mxu0 0.0
    %2151 = vmatpush1.msra.mxu0 0.0
    %2152 = vmatprep.subr.mxu0 0.0
    %2153 = vmatpush1.msra.mxu0 0.0
    %2154 = vmatprep.subr.mxu0 0.0
    %2155 = vmatpush1.msra.mxu0 0.0
    %2156 = vmatprep.subr.mxu0 0.0
    %2157 = vmatpush1.msra.mxu0 0.0
    %2158 = vmatprep.subr.mxu0 0.0
    %2159 = vmatpush1.msra.mxu0 0.0
    %2160 = vmatprep.subr.mxu0 0.0
    %2161 = vmatpush1.msra.mxu0 0.0
    %2162 = vmatprep.subr.mxu0 0.0
    %2163 = vmatpush1.msra.mxu0 0.0
    %2164 = vmatprep.subr.mxu0 0.0
    %2165 = vmatpush1.msra.mxu0 0.0
    %2166 = vmatprep.subr.mxu0 0.0
    %2167 = vmatpush1.msra.mxu0 0.0
    %2168 = vmatprep.subr.mxu0 0.0
    %2169 = vmatpush1.msra.mxu0 0.0
    %2170 = vmatprep.subr.mxu0 0.0
    %2171 = vmatpush1.msra.mxu0 0.0
    %2172 = vmatprep.subr.mxu0 0.0
    %2173 = vmatpush1.msra.mxu0 0.0
    %2174 = vmatprep.subr.mxu0 0.0
    %2175 = vmatpush1.msra.mxu0 0.0
    %2176 = vmatprep.subr.mxu0 0.0
    %2177 = vmatpush1.msra.mxu0 0.0
    %2178 = vmatprep.subr.mxu0 0.0
    %2179 = vmatpush1.msra.mxu0 0.0
    %2180 = vmatprep.subr.mxu0 0.0
    %2181 = vmatpush1.msra.mxu0 0.0
    %2182 = vmatprep.subr.mxu0 0.0
    %2183 = vmatpush1.msra.mxu0 0.0
    %2184 = vmatprep.subr.mxu0 0.0
    %2185 = vmatpush1.msra.mxu0 0.0
    %2186 = vmatprep.subr.mxu0 0.0
    %2187 = vmatpush1.msra.mxu0 0.0
    %2188 = vmatprep.subr.mxu0 0.0
    %2189 = vmatpush1.msra.mxu0 0.0
    %2190 = vmatprep.subr.mxu0 0.0
    %2191 = vmatpush1.msra.mxu0 0.0
    %2192 = vmatprep.subr.mxu0 0.0
    %2193 = vmatpush1.msra.mxu0 0.0
    %2194 = vmatprep.mubr.f32.mxu0 0.0
    %v2195 = vand.u32 %v1656, 4294901760
    %v2196 = vsub.f32 %v1656, %v2195
    %v2197 = vand.u32 %v2196, 4294901760
    %2198 = vmatmul.mubr.f32.gmra.mrb[0].mxu0 %v2197
    %v2199 = vpop.f32.mrb[0].mxu0
    %v2200 = vadd.f32 %v2070, %v2199
    %v2201 = vpop.f32.mrb[0].mxu0
    %2202 = vmatprep.mubr.f32.mxu0 0.0
    %v2203 = vand.u32 %v1659, 4294901760
    %v2204 = vsub.f32 %v1659, %v2203
    %v2205 = vand.u32 %v2204, 4294901760
    %2206 = vmatmul.mubr.f32.gmra.mrb[0].mxu0 %v2205
    %v2207 = vpop.f32.mrb[0].mxu0
    %v2208 = vadd.f32 %v2077, %v2207
    %v2209 = vpop.f32.mrb[0].mxu0
    %2210 = vmatprep.mubr.f32.mxu0 0.0
    %v2211 = vand.u32 %v1662, 4294901760
    %v2212 = vsub.f32 %v1662, %v2211
    %v2213 = vand.u32 %v2212, 4294901760
    %2214 = vmatmul.mubr.f32.gmra.mrb[0].mxu0 %v2213
    %v2215 = vpop.f32.mrb[0].mxu0
    %v2216 = vadd.f32 %v2084, %v2215
    %v2217 = vpop.f32.mrb[0].mxu0
    %2218 = vmatprep.mubr.f32.mxu0 0.0
    %v2219 = vand.u32 %v1665, 4294901760
    %v2220 = vsub.f32 %v1665, %v2219
    %v2221 = vand.u32 %v2220, 4294901760
    %2222 = vmatmul.mubr.f32.gmra.mrb[0].mxu0 %v2221
    %v2223 = vpop.f32.mrb[0].mxu0
    %v2224 = vadd.f32 %v2091, %v2223
    %v2225 = vpop.f32.mrb[0].mxu0
    %2226 = vmatprep.mubr.f32.mxu0 0.0
    %v2227 = vand.u32 %v1668, 4294901760
    %v2228 = vsub.f32 %v1668, %v2227
    %v2229 = vand.u32 %v2228, 4294901760
    %2230 = vmatmul.mubr.f32.gmra.mrb[0].mxu0 %v2229
    %v2231 = vpop.f32.mrb[0].mxu0
    %v2232 = vadd.f32 %v2098, %v2231
    %v2233 = vpop.f32.mrb[0].mxu0
    %2234 = vmatprep.mubr.f32.mxu0 0.0
    %v2235 = vand.u32 %v1671, 4294901760
    %v2236 = vsub.f32 %v1671, %v2235
    %v2237 = vand.u32 %v2236, 4294901760
    %2238 = vmatmul.mubr.f32.gmra.mrb[0].mxu0 %v2237
    %v2239 = vpop.f32.mrb[0].mxu0
    %v2240 = vadd.f32 %v2105, %v2239
    %v2241 = vpop.f32.mrb[0].mxu0
    %2242 = vmatprep.mubr.f32.mxu0 0.0
    %v2243 = vand.u32 %v1674, 4294901760
    %v2244 = vsub.f32 %v1674, %v2243
    %v2245 = vand.u32 %v2244, 4294901760
    %2246 = vmatmul.mubr.f32.gmra.mrb[0].mxu0 %v2245
    %v2247 = vpop.f32.mrb[0].mxu0
    %v2248 = vadd.f32 %v2112, %v2247
    %v2249 = vpop.f32.mrb[0].mxu0
    %2250 = vmatprep.mubr.f32.mxu0 0.0
    %v2251 = vand.u32 %v1677, 4294901760
    %v2252 = vsub.f32 %v1677, %v2251
    %v2253 = vand.u32 %v2252, 4294901760
    %2254 = vmatmul.mubr.f32.gmra.mrb[0].mxu0 %v2253
    %v2255 = vpop.f32.mrb[0].mxu0
    %v2256 = vadd.f32 %v2119, %v2255
    %v2257 = vpop.f32.mrb[0].mxu0
    %2258 = vdwg.mxu0
    %2259 = vmatprep.subr.mxu0 0.0
    %v2260 = vand.u32 %v1632, 4294901760
    %v2261 = vsub.f32 %v1632, %v2260
    %v2262 = vand.u32 %v2261, 4294901760
    %2263 = vmatpush1.msra.mxu0 %v2262
    %2264 = vmatprep.subr.mxu0 0.0
    %v2265 = vand.u32 %v1634, 4294901760
    %v2266 = vsub.f32 %v1634, %v2265
    %v2267 = vand.u32 %v2266, 4294901760
    %2268 = vmatpush1.msra.mxu0 %v2267
    %2269 = vmatprep.subr.mxu0 0.0
    %v2270 = vand.u32 %v1636, 4294901760
    %v2271 = vsub.f32 %v1636, %v2270
    %v2272 = vand.u32 %v2271, 4294901760
    %2273 = vmatpush1.msra.mxu0 %v2272
    %2274 = vmatprep.subr.mxu0 0.0
    %v2275 = vand.u32 %v1638, 4294901760
    %v2276 = vsub.f32 %v1638, %v2275
    %v2277 = vand.u32 %v2276, 4294901760
    %2278 = vmatpush1.msra.mxu0 %v2277
    %2279 = vmatprep.subr.mxu0 0.0
    %v2280 = vand.u32 %v1640, 4294901760
    %v2281 = vsub.f32 %v1640, %v2280
    %v2282 = vand.u32 %v2281, 4294901760
    %2283 = vmatpush1.msra.mxu0 %v2282
    %2284 = vmatprep.subr.mxu0 0.0
    %v2285 = vand.u32 %v1642, 4294901760
    %v2286 = vsub.f32 %v1642, %v2285
    %v2287 = vand.u32 %v2286, 4294901760
    %2288 = vmatpush1.msra.mxu0 %v2287
    %2289 = vmatprep.subr.mxu0 0.0
    %v2290 = vand.u32 %v1644, 4294901760
    %v2291 = vsub.f32 %v1644, %v2290
    %v2292 = vand.u32 %v2291, 4294901760
    %2293 = vmatpush1.msra.mxu0 %v2292
    %2294 = vmatprep.subr.mxu0 0.0
    %v2295 = vand.u32 %v1646, 4294901760
    %v2296 = vsub.f32 %v1646, %v2295
    %v2297 = vand.u32 %v2296, 4294901760
    %2298 = vmatpush1.msra.mxu0 %v2297
    %2299 = vmatprep.subr.mxu0 0.0
    %2300 = vmatpush1.msra.mxu0 0.0
    %2301 = vmatprep.subr.mxu0 0.0
    %2302 = vmatpush1.msra.mxu0 0.0
    %2303 = vmatprep.subr.mxu0 0.0
    %2304 = vmatpush1.msra.mxu0 0.0
    %2305 = vmatprep.subr.mxu0 0.0
    %2306 = vmatpush1.msra.mxu0 0.0
    %2307 = vmatprep.subr.mxu0 0.0
    %2308 = vmatpush1.msra.mxu0 0.0
    %2309 = vmatprep.subr.mxu0 0.0
    %2310 = vmatpush1.msra.mxu0 0.0
    %2311 = vmatprep.subr.mxu0 0.0
    %2312 = vmatpush1.msra.mxu0 0.0
    %2313 = vmatprep.subr.mxu0 0.0
    %2314 = vmatpush1.msra.mxu0 0.0
    %2315 = vmatprep.subr.mxu0 0.0
    %2316 = vmatpush1.msra.mxu0 0.0
    %2317 = vmatprep.subr.mxu0 0.0
    %2318 = vmatpush1.msra.mxu0 0.0
    %2319 = vmatprep.subr.mxu0 0.0
    %2320 = vmatpush1.msra.mxu0 0.0
    %2321 = vmatprep.subr.mxu0 0.0
    %2322 = vmatpush1.msra.mxu0 0.0
    %2323 = vmatprep.subr.mxu0 0.0
    %2324 = vmatpush1.msra.mxu0 0.0
    %2325 = vmatprep.subr.mxu0 0.0
    %2326 = vmatpush1.msra.mxu0 0.0
    %2327 = vmatprep.subr.mxu0 0.0
    %2328 = vmatpush1.msra.mxu0 0.0
    %2329 = vmatprep.subr.mxu0 0.0
    %2330 = vmatpush1.msra.mxu0 0.0
    %2331 = vmatprep.subr.mxu0 0.0
    %2332 = vmatpush1.msra.mxu0 0.0
    %2333 = vmatprep.subr.mxu0 0.0
    %2334 = vmatpush1.msra.mxu0 0.0
    %2335 = vmatprep.subr.mxu0 0.0
    %2336 = vmatpush1.msra.mxu0 0.0
    %2337 = vmatprep.subr.mxu0 0.0
    %2338 = vmatpush1.msra.mxu0 0.0
    %2339 = vmatprep.subr.mxu0 0.0
    %2340 = vmatpush1.msra.mxu0 0.0
    %2341 = vmatprep.subr.mxu0 0.0
    %2342 = vmatpush1.msra.mxu0 0.0
    %2343 = vmatprep.subr.mxu0 0.0
    %2344 = vmatpush1.msra.mxu0 0.0
    %2345 = vmatprep.subr.mxu0 0.0
    %2346 = vmatpush1.msra.mxu0 0.0
    %2347 = vmatprep.mubr.f32.mxu0 0.0
    %v2348 = vand.u32 %v1656, 4294901760
    %2349 = vmatmul.mubr.f32.gmra.mrb[0].mxu0 %v2348
    %v2350 = vpop.f32.mrb[0].mxu0
    %v2351 = vadd.f32 %v2200, %v2350
    %v2352 = vpop.f32.mrb[0].mxu0
    %2353 = vmatprep.mubr.f32.mxu0 0.0
    %v2354 = vand.u32 %v1659, 4294901760
    %2355 = vmatmul.mubr.f32.gmra.mrb[0].mxu0 %v2354
    %v2356 = vpop.f32.mrb[0].mxu0
    %v2357 = vadd.f32 %v2208, %v2356
    %v2358 = vpop.f32.mrb[0].mxu0
    %2359 = vmatprep.mubr.f32.mxu0 0.0
    %v2360 = vand.u32 %v1662, 4294901760
    %2361 = vmatmul.mubr.f32.gmra.mrb[0].mxu0 %v2360
    %v2362 = vpop.f32.mrb[0].mxu0
    %v2363 = vadd.f32 %v2216, %v2362
    %v2364 = vpop.f32.mrb[0].mxu0
    %2365 = vmatprep.mubr.f32.mxu0 0.0
    %v2366 = vand.u32 %v1665, 4294901760
    %2367 = vmatmul.mubr.f32.gmra.mrb[0].mxu0 %v2366
    %v2368 = vpop.f32.mrb[0].mxu0
    %v2369 = vadd.f32 %v2224, %v2368
    %v2370 = vpop.f32.mrb[0].mxu0
    %2371 = vmatprep.mubr.f32.mxu0 0.0
    %v2372 = vand.u32 %v1668, 4294901760
    %2373 = vmatmul.mubr.f32.gmra.mrb[0].mxu0 %v2372
    %v2374 = vpop.f32.mrb[0].mxu0
    %v2375 = vadd.f32 %v2232, %v2374
    %v2376 = vpop.f32.mrb[0].mxu0
    %2377 = vmatprep.mubr.f32.mxu0 0.0
    %v2378 = vand.u32 %v1671, 4294901760
    %2379 = vmatmul.mubr.f32.gmra.mrb[0].mxu0 %v2378
    %v2380 = vpop.f32.mrb[0].mxu0
    %v2381 = vadd.f32 %v2240, %v2380
    %v2382 = vpop.f32.mrb[0].mxu0
    %2383 = vmatprep.mubr.f32.mxu0 0.0
    %v2384 = vand.u32 %v1674, 4294901760
    %2385 = vmatmul.mubr.f32.gmra.mrb[0].mxu0 %v2384
    %v2386 = vpop.f32.mrb[0].mxu0
    %v2387 = vadd.f32 %v2248, %v2386
    %v2388 = vpop.f32.mrb[0].mxu0
    %2389 = vmatprep.mubr.f32.mxu0 0.0
    %v2390 = vand.u32 %v1677, 4294901760
    %2391 = vmatmul.mubr.f32.gmra.mrb[0].mxu0 %v2390
    %v2392 = vpop.f32.mrb[0].mxu0
    %v2393 = vadd.f32 %v2256, %v2392
    %v2394 = vpop.f32.mrb[0].mxu0
    %2395 = vdwg.mxu0
    %2396 = vmatprep.subr.mxu0 0.0
    %v2397 = vand.u32 %v1632, 4294901760
    %2398 = vmatpush1.msra.mxu0 %v2397
    %2399 = vmatprep.subr.mxu0 0.0
    %v2400 = vand.u32 %v1634, 4294901760
    %2401 = vmatpush1.msra.mxu0 %v2400
    %2402 = vmatprep.subr.mxu0 0.0
    %v2403 = vand.u32 %v1636, 4294901760
    %2404 = vmatpush1.msra.mxu0 %v2403
    %2405 = vmatprep.subr.mxu0 0.0
    %v2406 = vand.u32 %v1638, 4294901760
    %2407 = vmatpush1.msra.mxu0 %v2406
    %2408 = vmatprep.subr.mxu0 0.0
    %v2409 = vand.u32 %v1640, 4294901760
    %2410 = vmatpush1.msra.mxu0 %v2409
    %2411 = vmatprep.subr.mxu0 0.0
    %v2412 = vand.u32 %v1642, 4294901760
    %2413 = vmatpush1.msra.mxu0 %v2412
    %2414 = vmatprep.subr.mxu0 0.0
    %v2415 = vand.u32 %v1644, 4294901760
    %2416 = vmatpush1.msra.mxu0 %v2415
    %2417 = vmatprep.subr.mxu0 0.0
    %v2418 = vand.u32 %v1646, 4294901760
    %2419 = vmatpush1.msra.mxu0 %v2418
    %2420 = vmatprep.subr.mxu0 0.0
    %2421 = vmatpush1.msra.mxu0 0.0
    %2422 = vmatprep.subr.mxu0 0.0
    %2423 = vmatpush1.msra.mxu0 0.0
    %2424 = vmatprep.subr.mxu0 0.0
    %2425 = vmatpush1.msra.mxu0 0.0
    %2426 = vmatprep.subr.mxu0 0.0
    %2427 = vmatpush1.msra.mxu0 0.0
    %2428 = vmatprep.subr.mxu0 0.0
    %2429 = vmatpush1.msra.mxu0 0.0
    %2430 = vmatprep.subr.mxu0 0.0
    %2431 = vmatpush1.msra.mxu0 0.0
    %2432 = vmatprep.subr.mxu0 0.0
    %2433 = vmatpush1.msra.mxu0 0.0
    %2434 = vmatprep.subr.mxu0 0.0
    %2435 = vmatpush1.msra.mxu0 0.0
    %2436 = vmatprep.subr.mxu0 0.0
    %2437 = vmatpush1.msra.mxu0 0.0
    %2438 = vmatprep.subr.mxu0 0.0
    %2439 = vmatpush1.msra.mxu0 0.0
    %2440 = vmatprep.subr.mxu0 0.0
    %2441 = vmatpush1.msra.mxu0 0.0
    %2442 = vmatprep.subr.mxu0 0.0
    %2443 = vmatpush1.msra.mxu0 0.0
    %2444 = vmatprep.subr.mxu0 0.0
    %2445 = vmatpush1.msra.mxu0 0.0
    %2446 = vmatprep.subr.mxu0 0.0
    %2447 = vmatpush1.msra.mxu0 0.0
    %2448 = vmatprep.subr.mxu0 0.0
    %2449 = vmatpush1.msra.mxu0 0.0
    %2450 = vmatprep.subr.mxu0 0.0
    %2451 = vmatpush1.msra.mxu0 0.0
    %2452 = vmatprep.subr.mxu0 0.0
    %2453 = vmatpush1.msra.mxu0 0.0
    %2454 = vmatprep.subr.mxu0 0.0
    %2455 = vmatpush1.msra.mxu0 0.0
    %2456 = vmatprep.subr.mxu0 0.0
    %2457 = vmatpush1.msra.mxu0 0.0
    %2458 = vmatprep.subr.mxu0 0.0
    %2459 = vmatpush1.msra.mxu0 0.0
    %2460 = vmatprep.subr.mxu0 0.0
    %2461 = vmatpush1.msra.mxu0 0.0
    %2462 = vmatprep.subr.mxu0 0.0
    %2463 = vmatpush1.msra.mxu0 0.0
    %2464 = vmatprep.subr.mxu0 0.0
    %2465 = vmatpush1.msra.mxu0 0.0
    %2466 = vmatprep.subr.mxu0 0.0
    %2467 = vmatpush1.msra.mxu0 0.0
    %2468 = vmatprep.mubr.f32.mxu0 0.0
    %v2469 = vand.u32 %v1656, 4294901760
    %2470 = vmatmul.mubr.f32.gmra.mrb[0].mxu0 %v2469
    %v2471 = vpop.f32.mrb[0].mxu0
    %v2472 = vadd.f32 %v2351, %v2471
    %v2473 = vpop.f32.mrb[0].mxu0
    %2474 = vmatprep.mubr.f32.mxu0 0.0
    %v2475 = vand.u32 %v1659, 4294901760
    %2476 = vmatmul.mubr.f32.gmra.mrb[0].mxu0 %v2475
    %v2477 = vpop.f32.mrb[0].mxu0
    %v2478 = vadd.f32 %v2357, %v2477
    %v2479 = vpop.f32.mrb[0].mxu0
    %2480 = vmatprep.mubr.f32.mxu0 0.0
    %v2481 = vand.u32 %v1662, 4294901760
    %2482 = vmatmul.mubr.f32.gmra.mrb[0].mxu0 %v2481
    %v2483 = vpop.f32.mrb[0].mxu0
    %v2484 = vadd.f32 %v2363, %v2483
    %v2485 = vpop.f32.mrb[0].mxu0
    %2486 = vmatprep.mubr.f32.mxu0 0.0
    %v2487 = vand.u32 %v1665, 4294901760
    %2488 = vmatmul.mubr.f32.gmra.mrb[0].mxu0 %v2487
    %v2489 = vpop.f32.mrb[0].mxu0
    %v2490 = vadd.f32 %v2369, %v2489
    %v2491 = vpop.f32.mrb[0].mxu0
    %2492 = vmatprep.mubr.f32.mxu0 0.0
    %v2493 = vand.u32 %v1668, 4294901760
    %2494 = vmatmul.mubr.f32.gmra.mrb[0].mxu0 %v2493
    %v2495 = vpop.f32.mrb[0].mxu0
    %v2496 = vadd.f32 %v2375, %v2495
    %v2497 = vpop.f32.mrb[0].mxu0
    %2498 = vmatprep.mubr.f32.mxu0 0.0
    %v2499 = vand.u32 %v1671, 4294901760
    %2500 = vmatmul.mubr.f32.gmra.mrb[0].mxu0 %v2499
    %v2501 = vpop.f32.mrb[0].mxu0
    %v2502 = vadd.f32 %v2381, %v2501
    %v2503 = vpop.f32.mrb[0].mxu0
    %2504 = vmatprep.mubr.f32.mxu0 0.0
    %v2505 = vand.u32 %v1674, 4294901760
    %2506 = vmatmul.mubr.f32.gmra.mrb[0].mxu0 %v2505
    %v2507 = vpop.f32.mrb[0].mxu0
    %v2508 = vadd.f32 %v2387, %v2507
    %v2509 = vpop.f32.mrb[0].mxu0
    %2510 = vmatprep.mubr.f32.mxu0 0.0
    %v2511 = vand.u32 %v1677, 4294901760
    %2512 = vmatmul.mubr.f32.gmra.mrb[0].mxu0 %v2511
    %v2513 = vpop.f32.mrb[0].mxu0
    %v2514 = vadd.f32 %v2393, %v2513
    %v2515 = vpop.f32.mrb[0].mxu0
    %2516 = vdwg.mxu0
    %2519 = vrot.lane.b32.xlu0 %v2484, 8
    %v2520 = vpop.permute.xlu0 %2519
    %2521 = vrot.lane.b32.xlu0 %v2490, 8
    %v2522 = vpop.permute.xlu0 %2521
    %2527 = vrot.lane.b32.xlu0 %v2496, 16
    %v2528 = vpop.permute.xlu0 %2527
    %2529 = vrot.lane.b32.xlu0 %v2502, 16
    %v2530 = vpop.permute.xlu0 %2529
    %2535 = vrot.lane.b32.xlu0 %v2508, 24
    %v2536 = vpop.permute.xlu0 %2535
    %2537 = vrot.lane.b32.xlu0 %v2514, 24
    %v2538 = vpop.permute.xlu0 %2537
    %v2541 = vsel %vm671, %v2472, %v2520
    %v2542 = vsel %vm671, %v2478, %v2522
    %vm2543 = vcmask 130048
    %v2544 = vsel %vm2543, %v2541, %v2528
    %v2545 = vsel %vm2543, %v2542, %v2530
    %vm2546 = vcmask 195584
    %v2547 = vsel %vm2546, %v2544, %v2536
    %v2548 = vsel %vm2546, %v2545, %v2538
    %v2550 = vlaneseq
    %v2551 = vshrl.u32 %v2550, 7
    %v2552 = vsub.s32 0, %v2551
    %v2553 = vrot.slane %v654, %v2552
    %v2556 = vsel %vm93, %v2547, 0
    %v2559 = vsel %vm93, %v2548, 0
    %2561 = vmatprep.subr.mxu0 0.0
    %v2562 = vand.u32 %v650, 4294901760
    %2563 = vmatpush1.msra.mxu0 %v2562
    %2564 = vmatprep.subr.mxu0 0.0
    %v2565 = vand.u32 %v651, 4294901760
    %2566 = vmatpush1.msra.mxu0 %v2565
    %2567 = vmatprep.subr.mxu0 0.0
    %v2568 = vand.u32 %v652, 4294901760
    %2569 = vmatpush1.msra.mxu0 %v2568
    %2570 = vmatprep.subr.mxu0 0.0
    %v2571 = vand.u32 %v653, 4294901760
    %2572 = vmatpush1.msra.mxu0 %v2571
    %2573 = vmatprep.subr.mxu0 0.0
    %2574 = vmatpush1.msra.mxu0 0.0
    %2575 = vmatprep.subr.mxu0 0.0
    %2576 = vmatpush1.msra.mxu0 0.0
    %2577 = vmatprep.subr.mxu0 0.0
    %2578 = vmatpush1.msra.mxu0 0.0
    %2579 = vmatprep.subr.mxu0 0.0
    %2580 = vmatpush1.msra.mxu0 0.0
    %2581 = vmatprep.subr.mxu0 0.0
    %2582 = vmatpush1.msra.mxu0 0.0
    %2583 = vmatprep.subr.mxu0 0.0
    %2584 = vmatpush1.msra.mxu0 0.0
    %2585 = vmatprep.subr.mxu0 0.0
    %2586 = vmatpush1.msra.mxu0 0.0
    %2587 = vmatprep.subr.mxu0 0.0
    %2588 = vmatpush1.msra.mxu0 0.0
    %2589 = vmatprep.subr.mxu0 0.0
    %2590 = vmatpush1.msra.mxu0 0.0
    %2591 = vmatprep.subr.mxu0 0.0
    %2592 = vmatpush1.msra.mxu0 0.0
    %2593 = vmatprep.subr.mxu0 0.0
    %2594 = vmatpush1.msra.mxu0 0.0
    %2595 = vmatprep.subr.mxu0 0.0
    %2596 = vmatpush1.msra.mxu0 0.0
    %2597 = vmatprep.subr.mxu0 0.0
    %2598 = vmatpush1.msra.mxu0 0.0
    %2599 = vmatprep.subr.mxu0 0.0
    %2600 = vmatpush1.msra.mxu0 0.0
    %2601 = vmatprep.subr.mxu0 0.0
    %2602 = vmatpush1.msra.mxu0 0.0
    %2603 = vmatprep.subr.mxu0 0.0
    %2604 = vmatpush1.msra.mxu0 0.0
    %2605 = vmatprep.subr.mxu0 0.0
    %2606 = vmatpush1.msra.mxu0 0.0
    %2607 = vmatprep.subr.mxu0 0.0
    %2608 = vmatpush1.msra.mxu0 0.0
    %2609 = vmatprep.subr.mxu0 0.0
    %2610 = vmatpush1.msra.mxu0 0.0
    %2611 = vmatprep.subr.mxu0 0.0
    %2612 = vmatpush1.msra.mxu0 0.0
    %2613 = vmatprep.subr.mxu0 0.0
    %2614 = vmatpush1.msra.mxu0 0.0
    %2615 = vmatprep.subr.mxu0 0.0
    %2616 = vmatpush1.msra.mxu0 0.0
    %2617 = vmatprep.subr.mxu0 0.0
    %2618 = vmatpush1.msra.mxu0 0.0
    %2619 = vmatprep.subr.mxu0 0.0
    %2620 = vmatpush1.msra.mxu0 0.0
    %2621 = vmatprep.subr.mxu0 0.0
    %2622 = vmatpush1.msra.mxu0 0.0
    %2623 = vmatprep.subr.mxu0 0.0
    %2624 = vmatpush1.msra.mxu0 0.0
    %2625 = vmatprep.subr.mxu0 0.0
    %2626 = vmatpush1.msra.mxu0 0.0
    %2627 = vmatprep.subr.mxu0 0.0
    %2628 = vmatpush1.msra.mxu0 0.0
    %2629 = vmatprep.mubr.f32.mxu0 0.0
    %v2630 = vand.u32 %v2556, 4294901760
    %v2631 = vsub.f32 %v2556, %v2630
    %v2632 = vand.u32 %v2631, 4294901760
    %v2633 = vsub.f32 %v2631, %v2632
    %v2634 = vand.u32 %v2633, 4294901760
    %2635 = vmatmul.mubr.f32.gmra.mrb[0].mxu0 %v2634
    %v2636 = vpop.f32.mrb[0].mxu0
    %v2637 = vadd.f32 %v2553, %v2636
    %v2638 = vpop.f32.mrb[0].mxu0
    %2639 = vmatprep.mubr.f32.mxu0 0.0
    %v2640 = vand.u32 %v2559, 4294901760
    %v2641 = vsub.f32 %v2559, %v2640
    %v2642 = vand.u32 %v2641, 4294901760
    %v2643 = vsub.f32 %v2641, %v2642
    %v2644 = vand.u32 %v2643, 4294901760
    %2645 = vmatmul.mubr.f32.gmra.mrb[0].mxu0 %v2644
    %v2646 = vpop.f32.mrb[0].mxu0
    %v2647 = vadd.f32 %v2553, %v2646
    %v2648 = vpop.f32.mrb[0].mxu0
    %2649 = vdwg.mxu0
    %2650 = vmatprep.subr.mxu0 0.0
    %v2651 = vand.u32 %v650, 4294901760
    %v2652 = vsub.f32 %v650, %v2651
    %v2653 = vand.u32 %v2652, 4294901760
    %v2654 = vsub.f32 %v2652, %v2653
    %v2655 = vand.u32 %v2654, 4294901760
    %2656 = vmatpush1.msra.mxu0 %v2655
    %2657 = vmatprep.subr.mxu0 0.0
    %v2658 = vand.u32 %v651, 4294901760
    %v2659 = vsub.f32 %v651, %v2658
    %v2660 = vand.u32 %v2659, 4294901760
    %v2661 = vsub.f32 %v2659, %v2660
    %v2662 = vand.u32 %v2661, 4294901760
    %2663 = vmatpush1.msra.mxu0 %v2662
    %2664 = vmatprep.subr.mxu0 0.0
    %v2665 = vand.u32 %v652, 4294901760
    %v2666 = vsub.f32 %v652, %v2665
    %v2667 = vand.u32 %v2666, 4294901760
    %v2668 = vsub.f32 %v2666, %v2667
    %v2669 = vand.u32 %v2668, 4294901760
    %2670 = vmatpush1.msra.mxu0 %v2669
    %2671 = vmatprep.subr.mxu0 0.0
    %v2672 = vand.u32 %v653, 4294901760
    %v2673 = vsub.f32 %v653, %v2672
    %v2674 = vand.u32 %v2673, 4294901760
    %v2675 = vsub.f32 %v2673, %v2674
    %v2676 = vand.u32 %v2675, 4294901760
    %2677 = vmatpush1.msra.mxu0 %v2676
    %2678 = vmatprep.subr.mxu0 0.0
    %2679 = vmatpush1.msra.mxu0 0.0
    %2680 = vmatprep.subr.mxu0 0.0
    %2681 = vmatpush1.msra.mxu0 0.0
    %2682 = vmatprep.subr.mxu0 0.0
    %2683 = vmatpush1.msra.mxu0 0.0
    %2684 = vmatprep.subr.mxu0 0.0
    %2685 = vmatpush1.msra.mxu0 0.0
    %2686 = vmatprep.subr.mxu0 0.0
    %2687 = vmatpush1.msra.mxu0 0.0
    %2688 = vmatprep.subr.mxu0 0.0
    %2689 = vmatpush1.msra.mxu0 0.0
    %2690 = vmatprep.subr.mxu0 0.0
    %2691 = vmatpush1.msra.mxu0 0.0
    %2692 = vmatprep.subr.mxu0 0.0
    %2693 = vmatpush1.msra.mxu0 0.0
    %2694 = vmatprep.subr.mxu0 0.0
    %2695 = vmatpush1.msra.mxu0 0.0
    %2696 = vmatprep.subr.mxu0 0.0
    %2697 = vmatpush1.msra.mxu0 0.0
    %2698 = vmatprep.subr.mxu0 0.0
    %2699 = vmatpush1.msra.mxu0 0.0
    %2700 = vmatprep.subr.mxu0 0.0
    %2701 = vmatpush1.msra.mxu0 0.0
    %2702 = vmatprep.subr.mxu0 0.0
    %2703 = vmatpush1.msra.mxu0 0.0
    %2704 = vmatprep.subr.mxu0 0.0
    %2705 = vmatpush1.msra.mxu0 0.0
    %2706 = vmatprep.subr.mxu0 0.0
    %2707 = vmatpush1.msra.mxu0 0.0
    %2708 = vmatprep.subr.mxu0 0.0
    %2709 = vmatpush1.msra.mxu0 0.0
    %2710 = vmatprep.subr.mxu0 0.0
    %2711 = vmatpush1.msra.mxu0 0.0
    %2712 = vmatprep.subr.mxu0 0.0
    %2713 = vmatpush1.msra.mxu0 0.0
    %2714 = vmatprep.subr.mxu0 0.0
    %2715 = vmatpush1.msra.mxu0 0.0
    %2716 = vmatprep.subr.mxu0 0.0
    %2717 = vmatpush1.msra.mxu0 0.0
    %2718 = vmatprep.subr.mxu0 0.0
    %2719 = vmatpush1.msra.mxu0 0.0
    %2720 = vmatprep.subr.mxu0 0.0
    %2721 = vmatpush1.msra.mxu0 0.0
    %2722 = vmatprep.subr.mxu0 0.0
    %2723 = vmatpush1.msra.mxu0 0.0
    %2724 = vmatprep.subr.mxu0 0.0
    %2725 = vmatpush1.msra.mxu0 0.0
    %2726 = vmatprep.subr.mxu0 0.0
    %2727 = vmatpush1.msra.mxu0 0.0
    %2728 = vmatprep.subr.mxu0 0.0
    %2729 = vmatpush1.msra.mxu0 0.0
    %2730 = vmatprep.subr.mxu0 0.0
    %2731 = vmatpush1.msra.mxu0 0.0
    %2732 = vmatprep.subr.mxu0 0.0
    %2733 = vmatpush1.msra.mxu0 0.0
    %2734 = vmatprep.mubr.f32.mxu0 0.0
    %v2735 = vand.u32 %v2556, 4294901760
    %2736 = vmatmul.mubr.f32.gmra.mrb[0].mxu0 %v2735
    %v2737 = vpop.f32.mrb[0].mxu0
    %v2738 = vadd.f32 %v2637, %v2737
    %v2739 = vpop.f32.mrb[0].mxu0
    %2740 = vmatprep.mubr.f32.mxu0 0.0
    %v2741 = vand.u32 %v2559, 4294901760
    %2742 = vmatmul.mubr.f32.gmra.mrb[0].mxu0 %v2741
    %v2743 = vpop.f32.mrb[0].mxu0
    %v2744 = vadd.f32 %v2647, %v2743
    %v2745 = vpop.f32.mrb[0].mxu0
    %2746 = vdwg.mxu0
    %2747 = vmatprep.subr.mxu0 0.0
    %v2748 = vand.u32 %v650, 4294901760
    %v2749 = vsub.f32 %v650, %v2748
    %2750 = vmatpush1.msra.mxu0 %v2749
    %2751 = vmatprep.subr.mxu0 0.0
    %v2752 = vand.u32 %v651, 4294901760
    %v2753 = vsub.f32 %v651, %v2752
    %2754 = vmatpush1.msra.mxu0 %v2753
    %2755 = vmatprep.subr.mxu0 0.0
    %v2756 = vand.u32 %v652, 4294901760
    %v2757 = vsub.f32 %v652, %v2756
    %2758 = vmatpush1.msra.mxu0 %v2757
    %2759 = vmatprep.subr.mxu0 0.0
    %v2760 = vand.u32 %v653, 4294901760
    %v2761 = vsub.f32 %v653, %v2760
    %2762 = vmatpush1.msra.mxu0 %v2761
    %2763 = vmatprep.subr.mxu0 0.0
    %2764 = vmatpush1.msra.mxu0 0.0
    %2765 = vmatprep.subr.mxu0 0.0
    %2766 = vmatpush1.msra.mxu0 0.0
    %2767 = vmatprep.subr.mxu0 0.0
    %2768 = vmatpush1.msra.mxu0 0.0
    %2769 = vmatprep.subr.mxu0 0.0
    %2770 = vmatpush1.msra.mxu0 0.0
    %2771 = vmatprep.subr.mxu0 0.0
    %2772 = vmatpush1.msra.mxu0 0.0
    %2773 = vmatprep.subr.mxu0 0.0
    %2774 = vmatpush1.msra.mxu0 0.0
    %2775 = vmatprep.subr.mxu0 0.0
    %2776 = vmatpush1.msra.mxu0 0.0
    %2777 = vmatprep.subr.mxu0 0.0
    %2778 = vmatpush1.msra.mxu0 0.0
    %2779 = vmatprep.subr.mxu0 0.0
    %2780 = vmatpush1.msra.mxu0 0.0
    %2781 = vmatprep.subr.mxu0 0.0
    %2782 = vmatpush1.msra.mxu0 0.0
    %2783 = vmatprep.subr.mxu0 0.0
    %2784 = vmatpush1.msra.mxu0 0.0
    %2785 = vmatprep.subr.mxu0 0.0
    %2786 = vmatpush1.msra.mxu0 0.0
    %2787 = vmatprep.subr.mxu0 0.0
    %2788 = vmatpush1.msra.mxu0 0.0
    %2789 = vmatprep.subr.mxu0 0.0
    %2790 = vmatpush1.msra.mxu0 0.0
    %2791 = vmatprep.subr.mxu0 0.0
    %2792 = vmatpush1.msra.mxu0 0.0
    %2793 = vmatprep.subr.mxu0 0.0
    %2794 = vmatpush1.msra.mxu0 0.0
    %2795 = vmatprep.subr.mxu0 0.0
    %2796 = vmatpush1.msra.mxu0 0.0
    %2797 = vmatprep.subr.mxu0 0.0
    %2798 = vmatpush1.msra.mxu0 0.0
    %2799 = vmatprep.subr.mxu0 0.0
    %2800 = vmatpush1.msra.mxu0 0.0
    %2801 = vmatprep.subr.mxu0 0.0
    %2802 = vmatpush1.msra.mxu0 0.0
    %2803 = vmatprep.subr.mxu0 0.0
    %2804 = vmatpush1.msra.mxu0 0.0
    %2805 = vmatprep.subr.mxu0 0.0
    %2806 = vmatpush1.msra.mxu0 0.0
    %2807 = vmatprep.subr.mxu0 0.0
    %2808 = vmatpush1.msra.mxu0 0.0
    %2809 = vmatprep.subr.mxu0 0.0
    %2810 = vmatpush1.msra.mxu0 0.0
    %2811 = vmatprep.subr.mxu0 0.0
    %2812 = vmatpush1.msra.mxu0 0.0
    %2813 = vmatprep.subr.mxu0 0.0
    %2814 = vmatpush1.msra.mxu0 0.0
    %2815 = vmatprep.subr.mxu0 0.0
    %2816 = vmatpush1.msra.mxu0 0.0
    %2817 = vmatprep.subr.mxu0 0.0
    %2818 = vmatpush1.msra.mxu0 0.0
    %2819 = vmatprep.mubr.f32.mxu0 0.0
    %v2820 = vand.u32 %v2556, 4294901760
    %v2821 = vsub.f32 %v2556, %v2820
    %2822 = vmatmul.mubr.f32.gmra.mrb[0].mxu0 %v2821
    %v2823 = vpop.f32.mrb[0].mxu0
    %v2824 = vadd.f32 %v2738, %v2823
    %v2825 = vpop.f32.mrb[0].mxu0
    %2826 = vmatprep.mubr.f32.mxu0 0.0
    %v2827 = vand.u32 %v2559, 4294901760
    %v2828 = vsub.f32 %v2559, %v2827
    %2829 = vmatmul.mubr.f32.gmra.mrb[0].mxu0 %v2828
    %v2830 = vpop.f32.mrb[0].mxu0
    %v2831 = vadd.f32 %v2744, %v2830
    %v2832 = vpop.f32.mrb[0].mxu0
    %2833 = vdwg.mxu0
    %2834 = vmatprep.subr.mxu0 0.0
    %v2835 = vand.u32 %v650, 4294901760
    %2836 = vmatpush1.msra.mxu0 %v2835
    %2837 = vmatprep.subr.mxu0 0.0
    %v2838 = vand.u32 %v651, 4294901760
    %2839 = vmatpush1.msra.mxu0 %v2838
    %2840 = vmatprep.subr.mxu0 0.0
    %v2841 = vand.u32 %v652, 4294901760
    %2842 = vmatpush1.msra.mxu0 %v2841
    %2843 = vmatprep.subr.mxu0 0.0
    %v2844 = vand.u32 %v653, 4294901760
    %2845 = vmatpush1.msra.mxu0 %v2844
    %2846 = vmatprep.subr.mxu0 0.0
    %2847 = vmatpush1.msra.mxu0 0.0
    %2848 = vmatprep.subr.mxu0 0.0
    %2849 = vmatpush1.msra.mxu0 0.0
    %2850 = vmatprep.subr.mxu0 0.0
    %2851 = vmatpush1.msra.mxu0 0.0
    %2852 = vmatprep.subr.mxu0 0.0
    %2853 = vmatpush1.msra.mxu0 0.0
    %2854 = vmatprep.subr.mxu0 0.0
    %2855 = vmatpush1.msra.mxu0 0.0
    %2856 = vmatprep.subr.mxu0 0.0
    %2857 = vmatpush1.msra.mxu0 0.0
    %2858 = vmatprep.subr.mxu0 0.0
    %2859 = vmatpush1.msra.mxu0 0.0
    %2860 = vmatprep.subr.mxu0 0.0
    %2861 = vmatpush1.msra.mxu0 0.0
    %2862 = vmatprep.subr.mxu0 0.0
    %2863 = vmatpush1.msra.mxu0 0.0
    %2864 = vmatprep.subr.mxu0 0.0
    %2865 = vmatpush1.msra.mxu0 0.0
    %2866 = vmatprep.subr.mxu0 0.0
    %2867 = vmatpush1.msra.mxu0 0.0
    %2868 = vmatprep.subr.mxu0 0.0
    %2869 = vmatpush1.msra.mxu0 0.0
    %2870 = vmatprep.subr.mxu0 0.0
    %2871 = vmatpush1.msra.mxu0 0.0
    %2872 = vmatprep.subr.mxu0 0.0
    %2873 = vmatpush1.msra.mxu0 0.0
    %2874 = vmatprep.subr.mxu0 0.0
    %2875 = vmatpush1.msra.mxu0 0.0
    %2876 = vmatprep.subr.mxu0 0.0
    %2877 = vmatpush1.msra.mxu0 0.0
    %2878 = vmatprep.subr.mxu0 0.0
    %2879 = vmatpush1.msra.mxu0 0.0
    %2880 = vmatprep.subr.mxu0 0.0
    %2881 = vmatpush1.msra.mxu0 0.0
    %2882 = vmatprep.subr.mxu0 0.0
    %2883 = vmatpush1.msra.mxu0 0.0
    %2884 = vmatprep.subr.mxu0 0.0
    %2885 = vmatpush1.msra.mxu0 0.0
    %2886 = vmatprep.subr.mxu0 0.0
    %2887 = vmatpush1.msra.mxu0 0.0
    %2888 = vmatprep.subr.mxu0 0.0
    %2889 = vmatpush1.msra.mxu0 0.0
    %2890 = vmatprep.subr.mxu0 0.0
    %2891 = vmatpush1.msra.mxu0 0.0
    %2892 = vmatprep.subr.mxu0 0.0
    %2893 = vmatpush1.msra.mxu0 0.0
    %2894 = vmatprep.subr.mxu0 0.0
    %2895 = vmatpush1.msra.mxu0 0.0
    %2896 = vmatprep.subr.mxu0 0.0
    %2897 = vmatpush1.msra.mxu0 0.0
    %2898 = vmatprep.subr.mxu0 0.0
    %2899 = vmatpush1.msra.mxu0 0.0
    %2900 = vmatprep.subr.mxu0 0.0
    %2901 = vmatpush1.msra.mxu0 0.0
    %2902 = vmatprep.mubr.f32.mxu0 0.0
    %v2903 = vand.u32 %v2556, 4294901760
    %v2904 = vsub.f32 %v2556, %v2903
    %v2905 = vand.u32 %v2904, 4294901760
    %2906 = vmatmul.mubr.f32.gmra.mrb[0].mxu0 %v2905
    %v2907 = vpop.f32.mrb[0].mxu0
    %v2908 = vadd.f32 %v2824, %v2907
    %v2909 = vpop.f32.mrb[0].mxu0
    %2910 = vmatprep.mubr.f32.mxu0 0.0
    %v2911 = vand.u32 %v2559, 4294901760
    %v2912 = vsub.f32 %v2559, %v2911
    %v2913 = vand.u32 %v2912, 4294901760
    %2914 = vmatmul.mubr.f32.gmra.mrb[0].mxu0 %v2913
    %v2915 = vpop.f32.mrb[0].mxu0
    %v2916 = vadd.f32 %v2831, %v2915
    %v2917 = vpop.f32.mrb[0].mxu0
    %2918 = vdwg.mxu0
    %2919 = vmatprep.subr.mxu0 0.0
    %v2920 = vand.u32 %v650, 4294901760
    %v2921 = vsub.f32 %v650, %v2920
    %v2922 = vand.u32 %v2921, 4294901760
    %2923 = vmatpush1.msra.mxu0 %v2922
    %2924 = vmatprep.subr.mxu0 0.0
    %v2925 = vand.u32 %v651, 4294901760
    %v2926 = vsub.f32 %v651, %v2925
    %v2927 = vand.u32 %v2926, 4294901760
    %2928 = vmatpush1.msra.mxu0 %v2927
    %2929 = vmatprep.subr.mxu0 0.0
    %v2930 = vand.u32 %v652, 4294901760
    %v2931 = vsub.f32 %v652, %v2930
    %v2932 = vand.u32 %v2931, 4294901760
    %2933 = vmatpush1.msra.mxu0 %v2932
    %2934 = vmatprep.subr.mxu0 0.0
    %v2935 = vand.u32 %v653, 4294901760
    %v2936 = vsub.f32 %v653, %v2935
    %v2937 = vand.u32 %v2936, 4294901760
    %2938 = vmatpush1.msra.mxu0 %v2937
    %2939 = vmatprep.subr.mxu0 0.0
    %2940 = vmatpush1.msra.mxu0 0.0
    %2941 = vmatprep.subr.mxu0 0.0
    %2942 = vmatpush1.msra.mxu0 0.0
    %2943 = vmatprep.subr.mxu0 0.0
    %2944 = vmatpush1.msra.mxu0 0.0
    %2945 = vmatprep.subr.mxu0 0.0
    %2946 = vmatpush1.msra.mxu0 0.0
    %2947 = vmatprep.subr.mxu0 0.0
    %2948 = vmatpush1.msra.mxu0 0.0
    %2949 = vmatprep.subr.mxu0 0.0
    %2950 = vmatpush1.msra.mxu0 0.0
    %2951 = vmatprep.subr.mxu0 0.0
    %2952 = vmatpush1.msra.mxu0 0.0
    %2953 = vmatprep.subr.mxu0 0.0
    %2954 = vmatpush1.msra.mxu0 0.0
    %2955 = vmatprep.subr.mxu0 0.0
    %2956 = vmatpush1.msra.mxu0 0.0
    %2957 = vmatprep.subr.mxu0 0.0
    %2958 = vmatpush1.msra.mxu0 0.0
    %2959 = vmatprep.subr.mxu0 0.0
    %2960 = vmatpush1.msra.mxu0 0.0
    %2961 = vmatprep.subr.mxu0 0.0
    %2962 = vmatpush1.msra.mxu0 0.0
    %2963 = vmatprep.subr.mxu0 0.0
    %2964 = vmatpush1.msra.mxu0 0.0
    %2965 = vmatprep.subr.mxu0 0.0
    %2966 = vmatpush1.msra.mxu0 0.0
    %2967 = vmatprep.subr.mxu0 0.0
    %2968 = vmatpush1.msra.mxu0 0.0
    %2969 = vmatprep.subr.mxu0 0.0
    %2970 = vmatpush1.msra.mxu0 0.0
    %2971 = vmatprep.subr.mxu0 0.0
    %2972 = vmatpush1.msra.mxu0 0.0
    %2973 = vmatprep.subr.mxu0 0.0
    %2974 = vmatpush1.msra.mxu0 0.0
    %2975 = vmatprep.subr.mxu0 0.0
    %2976 = vmatpush1.msra.mxu0 0.0
    %2977 = vmatprep.subr.mxu0 0.0
    %2978 = vmatpush1.msra.mxu0 0.0
    %2979 = vmatprep.subr.mxu0 0.0
    %2980 = vmatpush1.msra.mxu0 0.0
    %2981 = vmatprep.subr.mxu0 0.0
    %2982 = vmatpush1.msra.mxu0 0.0
    %2983 = vmatprep.subr.mxu0 0.0
    %2984 = vmatpush1.msra.mxu0 0.0
    %2985 = vmatprep.subr.mxu0 0.0
    %2986 = vmatpush1.msra.mxu0 0.0
    %2987 = vmatprep.subr.mxu0 0.0
    %2988 = vmatpush1.msra.mxu0 0.0
    %2989 = vmatprep.subr.mxu0 0.0
    %2990 = vmatpush1.msra.mxu0 0.0
    %2991 = vmatprep.subr.mxu0 0.0
    %2992 = vmatpush1.msra.mxu0 0.0
    %2993 = vmatprep.subr.mxu0 0.0
    %2994 = vmatpush1.msra.mxu0 0.0
    %2995 = vmatprep.mubr.f32.mxu0 0.0
    %v2996 = vand.u32 %v2556, 4294901760
    %2997 = vmatmul.mubr.f32.gmra.mrb[0].mxu0 %v2996
    %v2998 = vpop.f32.mrb[0].mxu0
    %v2999 = vadd.f32 %v2908, %v2998
    %v3000 = vpop.f32.mrb[0].mxu0
    %3001 = vmatprep.mubr.f32.mxu0 0.0
    %v3002 = vand.u32 %v2559, 4294901760
    %3003 = vmatmul.mubr.f32.gmra.mrb[0].mxu0 %v3002
    %v3004 = vpop.f32.mrb[0].mxu0
    %v3005 = vadd.f32 %v2916, %v3004
    %v3006 = vpop.f32.mrb[0].mxu0
    %3007 = vdwg.mxu0
    %3008 = vmatprep.subr.mxu0 0.0
    %v3009 = vand.u32 %v650, 4294901760
    %3010 = vmatpush1.msra.mxu0 %v3009
    %3011 = vmatprep.subr.mxu0 0.0
    %v3012 = vand.u32 %v651, 4294901760
    %3013 = vmatpush1.msra.mxu0 %v3012
    %3014 = vmatprep.subr.mxu0 0.0
    %v3015 = vand.u32 %v652, 4294901760
    %3016 = vmatpush1.msra.mxu0 %v3015
    %3017 = vmatprep.subr.mxu0 0.0
    %v3018 = vand.u32 %v653, 4294901760
    %3019 = vmatpush1.msra.mxu0 %v3018
    %3020 = vmatprep.subr.mxu0 0.0
    %3021 = vmatpush1.msra.mxu0 0.0
    %3022 = vmatprep.subr.mxu0 0.0
    %3023 = vmatpush1.msra.mxu0 0.0
    %3024 = vmatprep.subr.mxu0 0.0
    %3025 = vmatpush1.msra.mxu0 0.0
    %3026 = vmatprep.subr.mxu0 0.0
    %3027 = vmatpush1.msra.mxu0 0.0
    %3028 = vmatprep.subr.mxu0 0.0
    %3029 = vmatpush1.msra.mxu0 0.0
    %3030 = vmatprep.subr.mxu0 0.0
    %3031 = vmatpush1.msra.mxu0 0.0
    %3032 = vmatprep.subr.mxu0 0.0
    %3033 = vmatpush1.msra.mxu0 0.0
    %3034 = vmatprep.subr.mxu0 0.0
    %3035 = vmatpush1.msra.mxu0 0.0
    %3036 = vmatprep.subr.mxu0 0.0
    %3037 = vmatpush1.msra.mxu0 0.0
    %3038 = vmatprep.subr.mxu0 0.0
    %3039 = vmatpush1.msra.mxu0 0.0
    %3040 = vmatprep.subr.mxu0 0.0
    %3041 = vmatpush1.msra.mxu0 0.0
    %3042 = vmatprep.subr.mxu0 0.0
    %3043 = vmatpush1.msra.mxu0 0.0
    %3044 = vmatprep.subr.mxu0 0.0
    %3045 = vmatpush1.msra.mxu0 0.0
    %3046 = vmatprep.subr.mxu0 0.0
    %3047 = vmatpush1.msra.mxu0 0.0
    %3048 = vmatprep.subr.mxu0 0.0
    %3049 = vmatpush1.msra.mxu0 0.0
    %3050 = vmatprep.subr.mxu0 0.0
    %3051 = vmatpush1.msra.mxu0 0.0
    %3052 = vmatprep.subr.mxu0 0.0
    %3053 = vmatpush1.msra.mxu0 0.0
    %3054 = vmatprep.subr.mxu0 0.0
    %3055 = vmatpush1.msra.mxu0 0.0
    %3056 = vmatprep.subr.mxu0 0.0
    %3057 = vmatpush1.msra.mxu0 0.0
    %3058 = vmatprep.subr.mxu0 0.0
    %3059 = vmatpush1.msra.mxu0 0.0
    %3060 = vmatprep.subr.mxu0 0.0
    %3061 = vmatpush1.msra.mxu0 0.0
    %3062 = vmatprep.subr.mxu0 0.0
    %3063 = vmatpush1.msra.mxu0 0.0
    %3064 = vmatprep.subr.mxu0 0.0
    %3065 = vmatpush1.msra.mxu0 0.0
    %3066 = vmatprep.subr.mxu0 0.0
    %3067 = vmatpush1.msra.mxu0 0.0
    %3068 = vmatprep.subr.mxu0 0.0
    %3069 = vmatpush1.msra.mxu0 0.0
    %3070 = vmatprep.subr.mxu0 0.0
    %3071 = vmatpush1.msra.mxu0 0.0
    %3072 = vmatprep.subr.mxu0 0.0
    %3073 = vmatpush1.msra.mxu0 0.0
    %3074 = vmatprep.subr.mxu0 0.0
    %3075 = vmatpush1.msra.mxu0 0.0
    %3076 = vmatprep.mubr.f32.mxu0 0.0
    %v3077 = vand.u32 %v2556, 4294901760
    %3078 = vmatmul.mubr.f32.gmra.mrb[0].mxu0 %v3077
    %v3079 = vpop.f32.mrb[0].mxu0
    %v3080 = vadd.f32 %v2999, %v3079
    %v3081 = vpop.f32.mrb[0].mxu0
    %3082 = vmatprep.mubr.f32.mxu0 0.0
    %v3083 = vand.u32 %v2559, 4294901760
    %3084 = vmatmul.mubr.f32.gmra.mrb[0].mxu0 %v3083
    %v3085 = vpop.f32.mrb[0].mxu0
    %v3086 = vadd.f32 %v3005, %v3085
    %v3087 = vpop.f32.mrb[0].mxu0
    %3088 = vdwg.mxu0
    %v3089 = vadd.f32 %v3080, %v78
    %v3090 = vadd.f32 %v3086, %v79
    %v3091 = vld [vmem:[%s8] sm:$0x1]
    %v3092 = vld [vmem:[%s9] sm:$0x1]
    %v3093 = vsel %vm93, %v3089, 0.0
    %3094 = vadd.xlane.f32.xlu0 %v3093
    %v3095 = vpop.xlane.xlu0 %3094
    %v3096 = vsel %vm93, %v3090, 0.0
    %3097 = vadd.xlane.f32.xlu0 %v3096
    %v3098 = vpop.xlane.xlu0 %3097
    %v3099 = vrcp.pop 32.0
    %v3100 = vmul.f32 %v3095, %v3099
    %v3101 = vmul.f32 %v3098, %v3099
    %v3102 = vsub.f32 %v3089, %v3100
    %v3103 = vsub.f32 %v3090, %v3101
    %v3104 = vmul.f32 %v3102, %v3102
    %v3105 = vmul.f32 %v3103, %v3103
    %v3106 = vsel %vm93, %v3104, 0.0
    %3107 = vadd.xlane.f32.xlu0 %v3106
    %v3108 = vpop.xlane.xlu0 %3107
    %v3109 = vsel %vm93, %v3105, 0.0
    %3110 = vadd.xlane.f32.xlu0 %v3109
    %v3111 = vpop.xlane.xlu0 %3110
    %v3112 = vmul.f32 %v3108, %v3099
    %v3113 = vmul.f32 %v3111, %v3099
    %v3114 = vadd.f32 %v3112, 1e-05
    %v3115 = vadd.f32 %v3113, 1e-05
    %v3116 = vrsqrt.pop %v3114
    %v3117 = vrsqrt.pop %v3115
    %v3118 = vmul.f32 %v3102, %v3116
    %v3119 = vmul.f32 %v3103, %v3117
    %v3121 = vlaneseq
    %v3122 = vshrl.u32 %v3121, 7
    %v3123 = vsub.s32 0, %v3122
    %v3124 = vrot.slane %v3091, %v3123
    %v3126 = vmul.f32 %v3118, %v3124
    %v3127 = vmul.f32 %v3119, %v3124
    %v3129 = vlaneseq
    %v3130 = vshrl.u32 %v3129, 7
    %v3131 = vsub.s32 0, %v3130
    %v3132 = vrot.slane %v3092, %v3131
    %v3134 = vadd.f32 %v3126, %v3132
    %v3135 = vadd.f32 %v3127, %v3132
    %v3136 = vld [vmem:[%s10] sm:$0xff]
    %v3137 = vld [vmem:[%s10 + $0x8] sm:$0xff]
    %v3138 = vld [vmem:[%s10 + $0x10] sm:$0xff]
    %v3139 = vld [vmem:[%s10 + $0x18] sm:$0xff]
    %v3140 = vld [vmem:[%s11] sm:$0x1]
    %v3142 = vlaneseq
    %v3143 = vshrl.u32 %v3142, 7
    %v3144 = vsub.s32 0, %v3143
    %v3145 = vrot.slane %v3140, %v3144
    %v3148 = vsel %vm93, %v3134, 0
    %v3151 = vsel %vm93, %v3135, 0
    %3153 = vmatprep.subr.mxu0 0.0
    %v3154 = vand.u32 %v3136, 4294901760
    %3155 = vmatpush1.msra.mxu0 %v3154
    %3156 = vmatprep.subr.mxu0 0.0
    %v3157 = vand.u32 %v3137, 4294901760
    %3158 = vmatpush1.msra.mxu0 %v3157
    %3159 = vmatprep.subr.mxu0 0.0
    %v3160 = vand.u32 %v3138, 4294901760
    %3161 = vmatpush1.msra.mxu0 %v3160
    %3162 = vmatprep.subr.mxu0 0.0
    %v3163 = vand.u32 %v3139, 4294901760
    %3164 = vmatpush1.msra.mxu0 %v3163
    %3165 = vmatprep.subr.mxu0 0.0
    %3166 = vmatpush1.msra.mxu0 0.0
    %3167 = vmatprep.subr.mxu0 0.0
    %3168 = vmatpush1.msra.mxu0 0.0
    %3169 = vmatprep.subr.mxu0 0.0
    %3170 = vmatpush1.msra.mxu0 0.0
    %3171 = vmatprep.subr.mxu0 0.0
    %3172 = vmatpush1.msra.mxu0 0.0
    %3173 = vmatprep.subr.mxu0 0.0
    %3174 = vmatpush1.msra.mxu0 0.0
    %3175 = vmatprep.subr.mxu0 0.0
    %3176 = vmatpush1.msra.mxu0 0.0
    %3177 = vmatprep.subr.mxu0 0.0
    %3178 = vmatpush1.msra.mxu0 0.0
    %3179 = vmatprep.subr.mxu0 0.0
    %3180 = vmatpush1.msra.mxu0 0.0
    %3181 = vmatprep.subr.mxu0 0.0
    %3182 = vmatpush1.msra.mxu0 0.0
    %3183 = vmatprep.subr.mxu0 0.0
    %3184 = vmatpush1.msra.mxu0 0.0
    %3185 = vmatprep.subr.mxu0 0.0
    %3186 = vmatpush1.msra.mxu0 0.0
    %3187 = vmatprep.subr.mxu0 0.0
    %3188 = vmatpush1.msra.mxu0 0.0
    %3189 = vmatprep.subr.mxu0 0.0
    %3190 = vmatpush1.msra.mxu0 0.0
    %3191 = vmatprep.subr.mxu0 0.0
    %3192 = vmatpush1.msra.mxu0 0.0
    %3193 = vmatprep.subr.mxu0 0.0
    %3194 = vmatpush1.msra.mxu0 0.0
    %3195 = vmatprep.subr.mxu0 0.0
    %3196 = vmatpush1.msra.mxu0 0.0
    %3197 = vmatprep.subr.mxu0 0.0
    %3198 = vmatpush1.msra.mxu0 0.0
    %3199 = vmatprep.subr.mxu0 0.0
    %3200 = vmatpush1.msra.mxu0 0.0
    %3201 = vmatprep.subr.mxu0 0.0
    %3202 = vmatpush1.msra.mxu0 0.0
    %3203 = vmatprep.subr.mxu0 0.0
    %3204 = vmatpush1.msra.mxu0 0.0
    %3205 = vmatprep.subr.mxu0 0.0
    %3206 = vmatpush1.msra.mxu0 0.0
    %3207 = vmatprep.subr.mxu0 0.0
    %3208 = vmatpush1.msra.mxu0 0.0
    %3209 = vmatprep.subr.mxu0 0.0
    %3210 = vmatpush1.msra.mxu0 0.0
    %3211 = vmatprep.subr.mxu0 0.0
    %3212 = vmatpush1.msra.mxu0 0.0
    %3213 = vmatprep.subr.mxu0 0.0
    %3214 = vmatpush1.msra.mxu0 0.0
    %3215 = vmatprep.subr.mxu0 0.0
    %3216 = vmatpush1.msra.mxu0 0.0
    %3217 = vmatprep.subr.mxu0 0.0
    %3218 = vmatpush1.msra.mxu0 0.0
    %3219 = vmatprep.subr.mxu0 0.0
    %3220 = vmatpush1.msra.mxu0 0.0
    %3221 = vmatprep.mubr.f32.mxu0 0.0
    %v3222 = vand.u32 %v3148, 4294901760
    %v3223 = vsub.f32 %v3148, %v3222
    %v3224 = vand.u32 %v3223, 4294901760
    %v3225 = vsub.f32 %v3223, %v3224
    %v3226 = vand.u32 %v3225, 4294901760
    %3227 = vmatmul.mubr.f32.gmra.mrb[0].mxu0 %v3226
    %v3228 = vpop.f32.mrb[0].mxu0
    %v3229 = vadd.f32 %v3145, %v3228
    %v3230 = vpop.f32.mrb[0].mxu0
    %3231 = vmatprep.mubr.f32.mxu0 0.0
    %v3232 = vand.u32 %v3151, 4294901760
    %v3233 = vsub.f32 %v3151, %v3232
    %v3234 = vand.u32 %v3233, 4294901760
    %v3235 = vsub.f32 %v3233, %v3234
    %v3236 = vand.u32 %v3235, 4294901760
    %3237 = vmatmul.mubr.f32.gmra.mrb[0].mxu0 %v3236
    %v3238 = vpop.f32.mrb[0].mxu0
    %v3239 = vadd.f32 %v3145, %v3238
    %v3240 = vpop.f32.mrb[0].mxu0
    %3241 = vdwg.mxu0
    %3242 = vmatprep.subr.mxu0 0.0
    %v3243 = vand.u32 %v3136, 4294901760
    %v3244 = vsub.f32 %v3136, %v3243
    %v3245 = vand.u32 %v3244, 4294901760
    %v3246 = vsub.f32 %v3244, %v3245
    %v3247 = vand.u32 %v3246, 4294901760
    %3248 = vmatpush1.msra.mxu0 %v3247
    %3249 = vmatprep.subr.mxu0 0.0
    %v3250 = vand.u32 %v3137, 4294901760
    %v3251 = vsub.f32 %v3137, %v3250
    %v3252 = vand.u32 %v3251, 4294901760
    %v3253 = vsub.f32 %v3251, %v3252
    %v3254 = vand.u32 %v3253, 4294901760
    %3255 = vmatpush1.msra.mxu0 %v3254
    %3256 = vmatprep.subr.mxu0 0.0
    %v3257 = vand.u32 %v3138, 4294901760
    %v3258 = vsub.f32 %v3138, %v3257
    %v3259 = vand.u32 %v3258, 4294901760
    %v3260 = vsub.f32 %v3258, %v3259
    %v3261 = vand.u32 %v3260, 4294901760
    %3262 = vmatpush1.msra.mxu0 %v3261
    %3263 = vmatprep.subr.mxu0 0.0
    %v3264 = vand.u32 %v3139, 4294901760
    %v3265 = vsub.f32 %v3139, %v3264
    %v3266 = vand.u32 %v3265, 4294901760
    %v3267 = vsub.f32 %v3265, %v3266
    %v3268 = vand.u32 %v3267, 4294901760
    %3269 = vmatpush1.msra.mxu0 %v3268
    %3270 = vmatprep.subr.mxu0 0.0
    %3271 = vmatpush1.msra.mxu0 0.0
    %3272 = vmatprep.subr.mxu0 0.0
    %3273 = vmatpush1.msra.mxu0 0.0
    %3274 = vmatprep.subr.mxu0 0.0
    %3275 = vmatpush1.msra.mxu0 0.0
    %3276 = vmatprep.subr.mxu0 0.0
    %3277 = vmatpush1.msra.mxu0 0.0
    %3278 = vmatprep.subr.mxu0 0.0
    %3279 = vmatpush1.msra.mxu0 0.0
    %3280 = vmatprep.subr.mxu0 0.0
    %3281 = vmatpush1.msra.mxu0 0.0
    %3282 = vmatprep.subr.mxu0 0.0
    %3283 = vmatpush1.msra.mxu0 0.0
    %3284 = vmatprep.subr.mxu0 0.0
    %3285 = vmatpush1.msra.mxu0 0.0
    %3286 = vmatprep.subr.mxu0 0.0
    %3287 = vmatpush1.msra.mxu0 0.0
    %3288 = vmatprep.subr.mxu0 0.0
    %3289 = vmatpush1.msra.mxu0 0.0
    %3290 = vmatprep.subr.mxu0 0.0
    %3291 = vmatpush1.msra.mxu0 0.0
    %3292 = vmatprep.subr.mxu0 0.0
    %3293 = vmatpush1.msra.mxu0 0.0
    %3294 = vmatprep.subr.mxu0 0.0
    %3295 = vmatpush1.msra.mxu0 0.0
    %3296 = vmatprep.subr.mxu0 0.0
    %3297 = vmatpush1.msra.mxu0 0.0
    %3298 = vmatprep.subr.mxu0 0.0
    %3299 = vmatpush1.msra.mxu0 0.0
    %3300 = vmatprep.subr.mxu0 0.0
    %3301 = vmatpush1.msra.mxu0 0.0
    %3302 = vmatprep.subr.mxu0 0.0
    %3303 = vmatpush1.msra.mxu0 0.0
    %3304 = vmatprep.subr.mxu0 0.0
    %3305 = vmatpush1.msra.mxu0 0.0
    %3306 = vmatprep.subr.mxu0 0.0
    %3307 = vmatpush1.msra.mxu0 0.0
    %3308 = vmatprep.subr.mxu0 0.0
    %3309 = vmatpush1.msra.mxu0 0.0
    %3310 = vmatprep.subr.mxu0 0.0
    %3311 = vmatpush1.msra.mxu0 0.0
    %3312 = vmatprep.subr.mxu0 0.0
    %3313 = vmatpush1.msra.mxu0 0.0
    %3314 = vmatprep.subr.mxu0 0.0
    %3315 = vmatpush1.msra.mxu0 0.0
    %3316 = vmatprep.subr.mxu0 0.0
    %3317 = vmatpush1.msra.mxu0 0.0
    %3318 = vmatprep.subr.mxu0 0.0
    %3319 = vmatpush1.msra.mxu0 0.0
    %3320 = vmatprep.subr.mxu0 0.0
    %3321 = vmatpush1.msra.mxu0 0.0
    %3322 = vmatprep.subr.mxu0 0.0
    %3323 = vmatpush1.msra.mxu0 0.0
    %3324 = vmatprep.subr.mxu0 0.0
    %3325 = vmatpush1.msra.mxu0 0.0
    %3326 = vmatprep.mubr.f32.mxu0 0.0
    %v3327 = vand.u32 %v3148, 4294901760
    %3328 = vmatmul.mubr.f32.gmra.mrb[0].mxu0 %v3327
    %v3329 = vpop.f32.mrb[0].mxu0
    %v3330 = vadd.f32 %v3229, %v3329
    %v3331 = vpop.f32.mrb[0].mxu0
    %3332 = vmatprep.mubr.f32.mxu0 0.0
    %v3333 = vand.u32 %v3151, 4294901760
    %3334 = vmatmul.mubr.f32.gmra.mrb[0].mxu0 %v3333
    %v3335 = vpop.f32.mrb[0].mxu0
    %v3336 = vadd.f32 %v3239, %v3335
    %v3337 = vpop.f32.mrb[0].mxu0
    %3338 = vdwg.mxu0
    %3339 = vmatprep.subr.mxu0 0.0
    %v3340 = vand.u32 %v3136, 4294901760
    %v3341 = vsub.f32 %v3136, %v3340
    %3342 = vmatpush1.msra.mxu0 %v3341
    %3343 = vmatprep.subr.mxu0 0.0
    %v3344 = vand.u32 %v3137, 4294901760
    %v3345 = vsub.f32 %v3137, %v3344
    %3346 = vmatpush1.msra.mxu0 %v3345
    %3347 = vmatprep.subr.mxu0 0.0
    %v3348 = vand.u32 %v3138, 4294901760
    %v3349 = vsub.f32 %v3138, %v3348
    %3350 = vmatpush1.msra.mxu0 %v3349
    %3351 = vmatprep.subr.mxu0 0.0
    %v3352 = vand.u32 %v3139, 4294901760
    %v3353 = vsub.f32 %v3139, %v3352
    %3354 = vmatpush1.msra.mxu0 %v3353
    %3355 = vmatprep.subr.mxu0 0.0
    %3356 = vmatpush1.msra.mxu0 0.0
    %3357 = vmatprep.subr.mxu0 0.0
    %3358 = vmatpush1.msra.mxu0 0.0
    %3359 = vmatprep.subr.mxu0 0.0
    %3360 = vmatpush1.msra.mxu0 0.0
    %3361 = vmatprep.subr.mxu0 0.0
    %3362 = vmatpush1.msra.mxu0 0.0
    %3363 = vmatprep.subr.mxu0 0.0
    %3364 = vmatpush1.msra.mxu0 0.0
    %3365 = vmatprep.subr.mxu0 0.0
    %3366 = vmatpush1.msra.mxu0 0.0
    %3367 = vmatprep.subr.mxu0 0.0
    %3368 = vmatpush1.msra.mxu0 0.0
    %3369 = vmatprep.subr.mxu0 0.0
    %3370 = vmatpush1.msra.mxu0 0.0
    %3371 = vmatprep.subr.mxu0 0.0
    %3372 = vmatpush1.msra.mxu0 0.0
    %3373 = vmatprep.subr.mxu0 0.0
    %3374 = vmatpush1.msra.mxu0 0.0
    %3375 = vmatprep.subr.mxu0 0.0
    %3376 = vmatpush1.msra.mxu0 0.0
    %3377 = vmatprep.subr.mxu0 0.0
    %3378 = vmatpush1.msra.mxu0 0.0
    %3379 = vmatprep.subr.mxu0 0.0
    %3380 = vmatpush1.msra.mxu0 0.0
    %3381 = vmatprep.subr.mxu0 0.0
    %3382 = vmatpush1.msra.mxu0 0.0
    %3383 = vmatprep.subr.mxu0 0.0
    %3384 = vmatpush1.msra.mxu0 0.0
    %3385 = vmatprep.subr.mxu0 0.0
    %3386 = vmatpush1.msra.mxu0 0.0
    %3387 = vmatprep.subr.mxu0 0.0
    %3388 = vmatpush1.msra.mxu0 0.0
    %3389 = vmatprep.subr.mxu0 0.0
    %3390 = vmatpush1.msra.mxu0 0.0
    %3391 = vmatprep.subr.mxu0 0.0
    %3392 = vmatpush1.msra.mxu0 0.0
    %3393 = vmatprep.subr.mxu0 0.0
    %3394 = vmatpush1.msra.mxu0 0.0
    %3395 = vmatprep.subr.mxu0 0.0
    %3396 = vmatpush1.msra.mxu0 0.0
    %3397 = vmatprep.subr.mxu0 0.0
    %3398 = vmatpush1.msra.mxu0 0.0
    %3399 = vmatprep.subr.mxu0 0.0
    %3400 = vmatpush1.msra.mxu0 0.0
    %3401 = vmatprep.subr.mxu0 0.0
    %3402 = vmatpush1.msra.mxu0 0.0
    %3403 = vmatprep.subr.mxu0 0.0
    %3404 = vmatpush1.msra.mxu0 0.0
    %3405 = vmatprep.subr.mxu0 0.0
    %3406 = vmatpush1.msra.mxu0 0.0
    %3407 = vmatprep.subr.mxu0 0.0
    %3408 = vmatpush1.msra.mxu0 0.0
    %3409 = vmatprep.subr.mxu0 0.0
    %3410 = vmatpush1.msra.mxu0 0.0
    %3411 = vmatprep.mubr.f32.mxu0 0.0
    %v3412 = vand.u32 %v3148, 4294901760
    %v3413 = vsub.f32 %v3148, %v3412
    %3414 = vmatmul.mubr.f32.gmra.mrb[0].mxu0 %v3413
    %v3415 = vpop.f32.mrb[0].mxu0
    %v3416 = vadd.f32 %v3330, %v3415
    %v3417 = vpop.f32.mrb[0].mxu0
    %3418 = vmatprep.mubr.f32.mxu0 0.0
    %v3419 = vand.u32 %v3151, 4294901760
    %v3420 = vsub.f32 %v3151, %v3419
    %3421 = vmatmul.mubr.f32.gmra.mrb[0].mxu0 %v3420
    %v3422 = vpop.f32.mrb[0].mxu0
    %v3423 = vadd.f32 %v3336, %v3422
    %v3424 = vpop.f32.mrb[0].mxu0
    %3425 = vdwg.mxu0
    %3426 = vmatprep.subr.mxu0 0.0
    %v3427 = vand.u32 %v3136, 4294901760
    %3428 = vmatpush1.msra.mxu0 %v3427
    %3429 = vmatprep.subr.mxu0 0.0
    %v3430 = vand.u32 %v3137, 4294901760
    %3431 = vmatpush1.msra.mxu0 %v3430
    %3432 = vmatprep.subr.mxu0 0.0
    %v3433 = vand.u32 %v3138, 4294901760
    %3434 = vmatpush1.msra.mxu0 %v3433
    %3435 = vmatprep.subr.mxu0 0.0
    %v3436 = vand.u32 %v3139, 4294901760
    %3437 = vmatpush1.msra.mxu0 %v3436
    %3438 = vmatprep.subr.mxu0 0.0
    %3439 = vmatpush1.msra.mxu0 0.0
    %3440 = vmatprep.subr.mxu0 0.0
    %3441 = vmatpush1.msra.mxu0 0.0
    %3442 = vmatprep.subr.mxu0 0.0
    %3443 = vmatpush1.msra.mxu0 0.0
    %3444 = vmatprep.subr.mxu0 0.0
    %3445 = vmatpush1.msra.mxu0 0.0
    %3446 = vmatprep.subr.mxu0 0.0
    %3447 = vmatpush1.msra.mxu0 0.0
    %3448 = vmatprep.subr.mxu0 0.0
    %3449 = vmatpush1.msra.mxu0 0.0
    %3450 = vmatprep.subr.mxu0 0.0
    %3451 = vmatpush1.msra.mxu0 0.0
    %3452 = vmatprep.subr.mxu0 0.0
    %3453 = vmatpush1.msra.mxu0 0.0
    %3454 = vmatprep.subr.mxu0 0.0
    %3455 = vmatpush1.msra.mxu0 0.0
    %3456 = vmatprep.subr.mxu0 0.0
    %3457 = vmatpush1.msra.mxu0 0.0
    %3458 = vmatprep.subr.mxu0 0.0
    %3459 = vmatpush1.msra.mxu0 0.0
    %3460 = vmatprep.subr.mxu0 0.0
    %3461 = vmatpush1.msra.mxu0 0.0
    %3462 = vmatprep.subr.mxu0 0.0
    %3463 = vmatpush1.msra.mxu0 0.0
    %3464 = vmatprep.subr.mxu0 0.0
    %3465 = vmatpush1.msra.mxu0 0.0
    %3466 = vmatprep.subr.mxu0 0.0
    %3467 = vmatpush1.msra.mxu0 0.0
    %3468 = vmatprep.subr.mxu0 0.0
    %3469 = vmatpush1.msra.mxu0 0.0
    %3470 = vmatprep.subr.mxu0 0.0
    %3471 = vmatpush1.msra.mxu0 0.0
    %3472 = vmatprep.subr.mxu0 0.0
    %3473 = vmatpush1.msra.mxu0 0.0
    %3474 = vmatprep.subr.mxu0 0.0
    %3475 = vmatpush1.msra.mxu0 0.0
    %3476 = vmatprep.subr.mxu0 0.0
    %3477 = vmatpush1.msra.mxu0 0.0
    %3478 = vmatprep.subr.mxu0 0.0
    %3479 = vmatpush1.msra.mxu0 0.0
    %3480 = vmatprep.subr.mxu0 0.0
    %3481 = vmatpush1.msra.mxu0 0.0
    %3482 = vmatprep.subr.mxu0 0.0
    %3483 = vmatpush1.msra.mxu0 0.0
    %3484 = vmatprep.subr.mxu0 0.0
    %3485 = vmatpush1.msra.mxu0 0.0
    %3486 = vmatprep.subr.mxu0 0.0
    %3487 = vmatpush1.msra.mxu0 0.0
    %3488 = vmatprep.subr.mxu0 0.0
    %3489 = vmatpush1.msra.mxu0 0.0
    %3490 = vmatprep.subr.mxu0 0.0
    %3491 = vmatpush1.msra.mxu0 0.0
    %3492 = vmatprep.subr.mxu0 0.0
    %3493 = vmatpush1.msra.mxu0 0.0
    %3494 = vmatprep.mubr.f32.mxu0 0.0
    %v3495 = vand.u32 %v3148, 4294901760
    %v3496 = vsub.f32 %v3148, %v3495
    %v3497 = vand.u32 %v3496, 4294901760
    %3498 = vmatmul.mubr.f32.gmra.mrb[0].mxu0 %v3497
    %v3499 = vpop.f32.mrb[0].mxu0
    %v3500 = vadd.f32 %v3416, %v3499
    %v3501 = vpop.f32.mrb[0].mxu0
    %3502 = vmatprep.mubr.f32.mxu0 0.0
    %v3503 = vand.u32 %v3151, 4294901760
    %v3504 = vsub.f32 %v3151, %v3503
    %v3505 = vand.u32 %v3504, 4294901760
    %3506 = vmatmul.mubr.f32.gmra.mrb[0].mxu0 %v3505
    %v3507 = vpop.f32.mrb[0].mxu0
    %v3508 = vadd.f32 %v3423, %v3507
    %v3509 = vpop.f32.mrb[0].mxu0
    %3510 = vdwg.mxu0
    %3511 = vmatprep.subr.mxu0 0.0
    %v3512 = vand.u32 %v3136, 4294901760
    %v3513 = vsub.f32 %v3136, %v3512
    %v3514 = vand.u32 %v3513, 4294901760
    %3515 = vmatpush1.msra.mxu0 %v3514
    %3516 = vmatprep.subr.mxu0 0.0
    %v3517 = vand.u32 %v3137, 4294901760
    %v3518 = vsub.f32 %v3137, %v3517
    %v3519 = vand.u32 %v3518, 4294901760
    %3520 = vmatpush1.msra.mxu0 %v3519
    %3521 = vmatprep.subr.mxu0 0.0
    %v3522 = vand.u32 %v3138, 4294901760
    %v3523 = vsub.f32 %v3138, %v3522
    %v3524 = vand.u32 %v3523, 4294901760
    %3525 = vmatpush1.msra.mxu0 %v3524
    %3526 = vmatprep.subr.mxu0 0.0
    %v3527 = vand.u32 %v3139, 4294901760
    %v3528 = vsub.f32 %v3139, %v3527
    %v3529 = vand.u32 %v3528, 4294901760
    %3530 = vmatpush1.msra.mxu0 %v3529
    %3531 = vmatprep.subr.mxu0 0.0
    %3532 = vmatpush1.msra.mxu0 0.0
    %3533 = vmatprep.subr.mxu0 0.0
    %3534 = vmatpush1.msra.mxu0 0.0
    %3535 = vmatprep.subr.mxu0 0.0
    %3536 = vmatpush1.msra.mxu0 0.0
    %3537 = vmatprep.subr.mxu0 0.0
    %3538 = vmatpush1.msra.mxu0 0.0
    %3539 = vmatprep.subr.mxu0 0.0
    %3540 = vmatpush1.msra.mxu0 0.0
    %3541 = vmatprep.subr.mxu0 0.0
    %3542 = vmatpush1.msra.mxu0 0.0
    %3543 = vmatprep.subr.mxu0 0.0
    %3544 = vmatpush1.msra.mxu0 0.0
    %3545 = vmatprep.subr.mxu0 0.0
    %3546 = vmatpush1.msra.mxu0 0.0
    %3547 = vmatprep.subr.mxu0 0.0
    %3548 = vmatpush1.msra.mxu0 0.0
    %3549 = vmatprep.subr.mxu0 0.0
    %3550 = vmatpush1.msra.mxu0 0.0
    %3551 = vmatprep.subr.mxu0 0.0
    %3552 = vmatpush1.msra.mxu0 0.0
    %3553 = vmatprep.subr.mxu0 0.0
    %3554 = vmatpush1.msra.mxu0 0.0
    %3555 = vmatprep.subr.mxu0 0.0
    %3556 = vmatpush1.msra.mxu0 0.0
    %3557 = vmatprep.subr.mxu0 0.0
    %3558 = vmatpush1.msra.mxu0 0.0
    %3559 = vmatprep.subr.mxu0 0.0
    %3560 = vmatpush1.msra.mxu0 0.0
    %3561 = vmatprep.subr.mxu0 0.0
    %3562 = vmatpush1.msra.mxu0 0.0
    %3563 = vmatprep.subr.mxu0 0.0
    %3564 = vmatpush1.msra.mxu0 0.0
    %3565 = vmatprep.subr.mxu0 0.0
    %3566 = vmatpush1.msra.mxu0 0.0
    %3567 = vmatprep.subr.mxu0 0.0
    %3568 = vmatpush1.msra.mxu0 0.0
    %3569 = vmatprep.subr.mxu0 0.0
    %3570 = vmatpush1.msra.mxu0 0.0
    %3571 = vmatprep.subr.mxu0 0.0
    %3572 = vmatpush1.msra.mxu0 0.0
    %3573 = vmatprep.subr.mxu0 0.0
    %3574 = vmatpush1.msra.mxu0 0.0
    %3575 = vmatprep.subr.mxu0 0.0
    %3576 = vmatpush1.msra.mxu0 0.0
    %3577 = vmatprep.subr.mxu0 0.0
    %3578 = vmatpush1.msra.mxu0 0.0
    %3579 = vmatprep.subr.mxu0 0.0
    %3580 = vmatpush1.msra.mxu0 0.0
    %3581 = vmatprep.subr.mxu0 0.0
    %3582 = vmatpush1.msra.mxu0 0.0
    %3583 = vmatprep.subr.mxu0 0.0
    %3584 = vmatpush1.msra.mxu0 0.0
    %3585 = vmatprep.subr.mxu0 0.0
    %3586 = vmatpush1.msra.mxu0 0.0
    %3587 = vmatprep.mubr.f32.mxu0 0.0
    %v3588 = vand.u32 %v3148, 4294901760
    %3589 = vmatmul.mubr.f32.gmra.mrb[0].mxu0 %v3588
    %v3590 = vpop.f32.mrb[0].mxu0
    %v3591 = vadd.f32 %v3500, %v3590
    %v3592 = vpop.f32.mrb[0].mxu0
    %3593 = vmatprep.mubr.f32.mxu0 0.0
    %v3594 = vand.u32 %v3151, 4294901760
    %3595 = vmatmul.mubr.f32.gmra.mrb[0].mxu0 %v3594
    %v3596 = vpop.f32.mrb[0].mxu0
    %v3597 = vadd.f32 %v3508, %v3596
    %v3598 = vpop.f32.mrb[0].mxu0
    %3599 = vdwg.mxu0
    %3600 = vmatprep.subr.mxu0 0.0
    %v3601 = vand.u32 %v3136, 4294901760
    %3602 = vmatpush1.msra.mxu0 %v3601
    %3603 = vmatprep.subr.mxu0 0.0
    %v3604 = vand.u32 %v3137, 4294901760
    %3605 = vmatpush1.msra.mxu0 %v3604
    %3606 = vmatprep.subr.mxu0 0.0
    %v3607 = vand.u32 %v3138, 4294901760
    %3608 = vmatpush1.msra.mxu0 %v3607
    %3609 = vmatprep.subr.mxu0 0.0
    %v3610 = vand.u32 %v3139, 4294901760
    %3611 = vmatpush1.msra.mxu0 %v3610
    %3612 = vmatprep.subr.mxu0 0.0
    %3613 = vmatpush1.msra.mxu0 0.0
    %3614 = vmatprep.subr.mxu0 0.0
    %3615 = vmatpush1.msra.mxu0 0.0
    %3616 = vmatprep.subr.mxu0 0.0
    %3617 = vmatpush1.msra.mxu0 0.0
    %3618 = vmatprep.subr.mxu0 0.0
    %3619 = vmatpush1.msra.mxu0 0.0
    %3620 = vmatprep.subr.mxu0 0.0
    %3621 = vmatpush1.msra.mxu0 0.0
    %3622 = vmatprep.subr.mxu0 0.0
    %3623 = vmatpush1.msra.mxu0 0.0
    %3624 = vmatprep.subr.mxu0 0.0
    %3625 = vmatpush1.msra.mxu0 0.0
    %3626 = vmatprep.subr.mxu0 0.0
    %3627 = vmatpush1.msra.mxu0 0.0
    %3628 = vmatprep.subr.mxu0 0.0
    %3629 = vmatpush1.msra.mxu0 0.0
    %3630 = vmatprep.subr.mxu0 0.0
    %3631 = vmatpush1.msra.mxu0 0.0
    %3632 = vmatprep.subr.mxu0 0.0
    %3633 = vmatpush1.msra.mxu0 0.0
    %3634 = vmatprep.subr.mxu0 0.0
    %3635 = vmatpush1.msra.mxu0 0.0
    %3636 = vmatprep.subr.mxu0 0.0
    %3637 = vmatpush1.msra.mxu0 0.0
    %3638 = vmatprep.subr.mxu0 0.0
    %3639 = vmatpush1.msra.mxu0 0.0
    %3640 = vmatprep.subr.mxu0 0.0
    %3641 = vmatpush1.msra.mxu0 0.0
    %3642 = vmatprep.subr.mxu0 0.0
    %3643 = vmatpush1.msra.mxu0 0.0
    %3644 = vmatprep.subr.mxu0 0.0
    %3645 = vmatpush1.msra.mxu0 0.0
    %3646 = vmatprep.subr.mxu0 0.0
    %3647 = vmatpush1.msra.mxu0 0.0
    %3648 = vmatprep.subr.mxu0 0.0
    %3649 = vmatpush1.msra.mxu0 0.0
    %3650 = vmatprep.subr.mxu0 0.0
    %3651 = vmatpush1.msra.mxu0 0.0
    %3652 = vmatprep.subr.mxu0 0.0
    %3653 = vmatpush1.msra.mxu0 0.0
    %3654 = vmatprep.subr.mxu0 0.0
    %3655 = vmatpush1.msra.mxu0 0.0
    %3656 = vmatprep.subr.mxu0 0.0
    %3657 = vmatpush1.msra.mxu0 0.0
    %3658 = vmatprep.subr.mxu0 0.0
    %3659 = vmatpush1.msra.mxu0 0.0
    %3660 = vmatprep.subr.mxu0 0.0
    %3661 = vmatpush1.msra.mxu0 0.0
    %3662 = vmatprep.subr.mxu0 0.0
    %3663 = vmatpush1.msra.mxu0 0.0
    %3664 = vmatprep.subr.mxu0 0.0
    %3665 = vmatpush1.msra.mxu0 0.0
    %3666 = vmatprep.subr.mxu0 0.0
    %3667 = vmatpush1.msra.mxu0 0.0
    %3668 = vmatprep.mubr.f32.mxu0 0.0
    %v3669 = vand.u32 %v3148, 4294901760
    %3670 = vmatmul.mubr.f32.gmra.mrb[0].mxu0 %v3669
    %v3671 = vpop.f32.mrb[0].mxu0
    %v3672 = vadd.f32 %v3591, %v3671
    %v3673 = vpop.f32.mrb[0].mxu0
    %3674 = vmatprep.mubr.f32.mxu0 0.0
    %v3675 = vand.u32 %v3151, 4294901760
    %3676 = vmatmul.mubr.f32.gmra.mrb[0].mxu0 %v3675
    %v3677 = vpop.f32.mrb[0].mxu0
    %v3678 = vadd.f32 %v3597, %v3677
    %v3679 = vpop.f32.mrb[0].mxu0
    %3680 = vdwg.mxu0
    %v3681 = vld [vmem:[%s12] sm:$0xff]
    %v3682 = vld [vmem:[%s12 + $0x8] sm:$0xff]
    %v3683 = vld [vmem:[%s12 + $0x10] sm:$0xff]
    %v3684 = vld [vmem:[%s12 + $0x18] sm:$0xff]
    %v3685 = vld [vmem:[%s13] sm:$0x1]
    %v3687 = vlaneseq
    %v3688 = vshrl.u32 %v3687, 7
    %v3689 = vsub.s32 0, %v3688
    %v3690 = vrot.slane %v3685, %v3689
    %v3693 = vsel %vm93, %v80, 0
    %v3696 = vsel %vm93, %v81, 0
    %3698 = vmatprep.subr.mxu0 0.0
    %v3699 = vand.u32 %v3681, 4294901760
    %3700 = vmatpush1.msra.mxu0 %v3699
    %3701 = vmatprep.subr.mxu0 0.0
    %v3702 = vand.u32 %v3682, 4294901760
    %3703 = vmatpush1.msra.mxu0 %v3702
    %3704 = vmatprep.subr.mxu0 0.0
    %v3705 = vand.u32 %v3683, 4294901760
    %3706 = vmatpush1.msra.mxu0 %v3705
    %3707 = vmatprep.subr.mxu0 0.0
    %v3708 = vand.u32 %v3684, 4294901760
    %3709 = vmatpush1.msra.mxu0 %v3708
    %3710 = vmatprep.subr.mxu0 0.0
    %3711 = vmatpush1.msra.mxu0 0.0
    %3712 = vmatprep.subr.mxu0 0.0
    %3713 = vmatpush1.msra.mxu0 0.0
    %3714 = vmatprep.subr.mxu0 0.0
    %3715 = vmatpush1.msra.mxu0 0.0
    %3716 = vmatprep.subr.mxu0 0.0
    %3717 = vmatpush1.msra.mxu0 0.0
    %3718 = vmatprep.subr.mxu0 0.0
    %3719 = vmatpush1.msra.mxu0 0.0
    %3720 = vmatprep.subr.mxu0 0.0
    %3721 = vmatpush1.msra.mxu0 0.0
    %3722 = vmatprep.subr.mxu0 0.0
    %3723 = vmatpush1.msra.mxu0 0.0
    %3724 = vmatprep.subr.mxu0 0.0
    %3725 = vmatpush1.msra.mxu0 0.0
    %3726 = vmatprep.subr.mxu0 0.0
    %3727 = vmatpush1.msra.mxu0 0.0
    %3728 = vmatprep.subr.mxu0 0.0
    %3729 = vmatpush1.msra.mxu0 0.0
    %3730 = vmatprep.subr.mxu0 0.0
    %3731 = vmatpush1.msra.mxu0 0.0
    %3732 = vmatprep.subr.mxu0 0.0
    %3733 = vmatpush1.msra.mxu0 0.0
    %3734 = vmatprep.subr.mxu0 0.0
    %3735 = vmatpush1.msra.mxu0 0.0
    %3736 = vmatprep.subr.mxu0 0.0
    %3737 = vmatpush1.msra.mxu0 0.0
    %3738 = vmatprep.subr.mxu0 0.0
    %3739 = vmatpush1.msra.mxu0 0.0
    %3740 = vmatprep.subr.mxu0 0.0
    %3741 = vmatpush1.msra.mxu0 0.0
    %3742 = vmatprep.subr.mxu0 0.0
    %3743 = vmatpush1.msra.mxu0 0.0
    %3744 = vmatprep.subr.mxu0 0.0
    %3745 = vmatpush1.msra.mxu0 0.0
    %3746 = vmatprep.subr.mxu0 0.0
    %3747 = vmatpush1.msra.mxu0 0.0
    %3748 = vmatprep.subr.mxu0 0.0
    %3749 = vmatpush1.msra.mxu0 0.0
    %3750 = vmatprep.subr.mxu0 0.0
    %3751 = vmatpush1.msra.mxu0 0.0
    %3752 = vmatprep.subr.mxu0 0.0
    %3753 = vmatpush1.msra.mxu0 0.0
    %3754 = vmatprep.subr.mxu0 0.0
    %3755 = vmatpush1.msra.mxu0 0.0
    %3756 = vmatprep.subr.mxu0 0.0
    %3757 = vmatpush1.msra.mxu0 0.0
    %3758 = vmatprep.subr.mxu0 0.0
    %3759 = vmatpush1.msra.mxu0 0.0
    %3760 = vmatprep.subr.mxu0 0.0
    %3761 = vmatpush1.msra.mxu0 0.0
    %3762 = vmatprep.subr.mxu0 0.0
    %3763 = vmatpush1.msra.mxu0 0.0
    %3764 = vmatprep.subr.mxu0 0.0
    %3765 = vmatpush1.msra.mxu0 0.0
    %3766 = vmatprep.mubr.f32.mxu0 0.0
    %v3767 = vand.u32 %v3693, 4294901760
    %v3768 = vsub.f32 %v3693, %v3767
    %v3769 = vand.u32 %v3768, 4294901760
    %v3770 = vsub.f32 %v3768, %v3769
    %v3771 = vand.u32 %v3770, 4294901760
    %3772 = vmatmul.mubr.f32.gmra.mrb[0].mxu0 %v3771
    %v3773 = vpop.f32.mrb[0].mxu0
    %v3774 = vadd.f32 %v3690, %v3773
    %v3775 = vpop.f32.mrb[0].mxu0
    %3776 = vmatprep.mubr.f32.mxu0 0.0
    %v3777 = vand.u32 %v3696, 4294901760
    %v3778 = vsub.f32 %v3696, %v3777
    %v3779 = vand.u32 %v3778, 4294901760
    %v3780 = vsub.f32 %v3778, %v3779
    %v3781 = vand.u32 %v3780, 4294901760
    %3782 = vmatmul.mubr.f32.gmra.mrb[0].mxu0 %v3781
    %v3783 = vpop.f32.mrb[0].mxu0
    %v3784 = vadd.f32 %v3690, %v3783
    %v3785 = vpop.f32.mrb[0].mxu0
    %3786 = vdwg.mxu0
    %3787 = vmatprep.subr.mxu0 0.0
    %v3788 = vand.u32 %v3681, 4294901760
    %v3789 = vsub.f32 %v3681, %v3788
    %v3790 = vand.u32 %v3789, 4294901760
    %v3791 = vsub.f32 %v3789, %v3790
    %v3792 = vand.u32 %v3791, 4294901760
    %3793 = vmatpush1.msra.mxu0 %v3792
    %3794 = vmatprep.subr.mxu0 0.0
    %v3795 = vand.u32 %v3682, 4294901760
    %v3796 = vsub.f32 %v3682, %v3795
    %v3797 = vand.u32 %v3796, 4294901760
    %v3798 = vsub.f32 %v3796, %v3797
    %v3799 = vand.u32 %v3798, 4294901760
    %3800 = vmatpush1.msra.mxu0 %v3799
    %3801 = vmatprep.subr.mxu0 0.0
    %v3802 = vand.u32 %v3683, 4294901760
    %v3803 = vsub.f32 %v3683, %v3802
    %v3804 = vand.u32 %v3803, 4294901760
    %v3805 = vsub.f32 %v3803, %v3804
    %v3806 = vand.u32 %v3805, 4294901760
    %3807 = vmatpush1.msra.mxu0 %v3806
    %3808 = vmatprep.subr.mxu0 0.0
    %v3809 = vand.u32 %v3684, 4294901760
    %v3810 = vsub.f32 %v3684, %v3809
    %v3811 = vand.u32 %v3810, 4294901760
    %v3812 = vsub.f32 %v3810, %v3811
    %v3813 = vand.u32 %v3812, 4294901760
    %3814 = vmatpush1.msra.mxu0 %v3813
    %3815 = vmatprep.subr.mxu0 0.0
    %3816 = vmatpush1.msra.mxu0 0.0
    %3817 = vmatprep.subr.mxu0 0.0
    %3818 = vmatpush1.msra.mxu0 0.0
    %3819 = vmatprep.subr.mxu0 0.0
    %3820 = vmatpush1.msra.mxu0 0.0
    %3821 = vmatprep.subr.mxu0 0.0
    %3822 = vmatpush1.msra.mxu0 0.0
    %3823 = vmatprep.subr.mxu0 0.0
    %3824 = vmatpush1.msra.mxu0 0.0
    %3825 = vmatprep.subr.mxu0 0.0
    %3826 = vmatpush1.msra.mxu0 0.0
    %3827 = vmatprep.subr.mxu0 0.0
    %3828 = vmatpush1.msra.mxu0 0.0
    %3829 = vmatprep.subr.mxu0 0.0
    %3830 = vmatpush1.msra.mxu0 0.0
    %3831 = vmatprep.subr.mxu0 0.0
    %3832 = vmatpush1.msra.mxu0 0.0
    %3833 = vmatprep.subr.mxu0 0.0
    %3834 = vmatpush1.msra.mxu0 0.0
    %3835 = vmatprep.subr.mxu0 0.0
    %3836 = vmatpush1.msra.mxu0 0.0
    %3837 = vmatprep.subr.mxu0 0.0
    %3838 = vmatpush1.msra.mxu0 0.0
    %3839 = vmatprep.subr.mxu0 0.0
    %3840 = vmatpush1.msra.mxu0 0.0
    %3841 = vmatprep.subr.mxu0 0.0
    %3842 = vmatpush1.msra.mxu0 0.0
    %3843 = vmatprep.subr.mxu0 0.0
    %3844 = vmatpush1.msra.mxu0 0.0
    %3845 = vmatprep.subr.mxu0 0.0
    %3846 = vmatpush1.msra.mxu0 0.0
    %3847 = vmatprep.subr.mxu0 0.0
    %3848 = vmatpush1.msra.mxu0 0.0
    %3849 = vmatprep.subr.mxu0 0.0
    %3850 = vmatpush1.msra.mxu0 0.0
    %3851 = vmatprep.subr.mxu0 0.0
    %3852 = vmatpush1.msra.mxu0 0.0
    %3853 = vmatprep.subr.mxu0 0.0
    %3854 = vmatpush1.msra.mxu0 0.0
    %3855 = vmatprep.subr.mxu0 0.0
    %3856 = vmatpush1.msra.mxu0 0.0
    %3857 = vmatprep.subr.mxu0 0.0
    %3858 = vmatpush1.msra.mxu0 0.0
    %3859 = vmatprep.subr.mxu0 0.0
    %3860 = vmatpush1.msra.mxu0 0.0
    %3861 = vmatprep.subr.mxu0 0.0
    %3862 = vmatpush1.msra.mxu0 0.0
    %3863 = vmatprep.subr.mxu0 0.0
    %3864 = vmatpush1.msra.mxu0 0.0
    %3865 = vmatprep.subr.mxu0 0.0
    %3866 = vmatpush1.msra.mxu0 0.0
    %3867 = vmatprep.subr.mxu0 0.0
    %3868 = vmatpush1.msra.mxu0 0.0
    %3869 = vmatprep.subr.mxu0 0.0
    %3870 = vmatpush1.msra.mxu0 0.0
    %3871 = vmatprep.mubr.f32.mxu0 0.0
    %v3872 = vand.u32 %v3693, 4294901760
    %3873 = vmatmul.mubr.f32.gmra.mrb[0].mxu0 %v3872
    %v3874 = vpop.f32.mrb[0].mxu0
    %v3875 = vadd.f32 %v3774, %v3874
    %v3876 = vpop.f32.mrb[0].mxu0
    %3877 = vmatprep.mubr.f32.mxu0 0.0
    %v3878 = vand.u32 %v3696, 4294901760
    %3879 = vmatmul.mubr.f32.gmra.mrb[0].mxu0 %v3878
    %v3880 = vpop.f32.mrb[0].mxu0
    %v3881 = vadd.f32 %v3784, %v3880
    %v3882 = vpop.f32.mrb[0].mxu0
    %3883 = vdwg.mxu0
    %3884 = vmatprep.subr.mxu0 0.0
    %v3885 = vand.u32 %v3681, 4294901760
    %v3886 = vsub.f32 %v3681, %v3885
    %3887 = vmatpush1.msra.mxu0 %v3886
    %3888 = vmatprep.subr.mxu0 0.0
    %v3889 = vand.u32 %v3682, 4294901760
    %v3890 = vsub.f32 %v3682, %v3889
    %3891 = vmatpush1.msra.mxu0 %v3890
    %3892 = vmatprep.subr.mxu0 0.0
    %v3893 = vand.u32 %v3683, 4294901760
    %v3894 = vsub.f32 %v3683, %v3893
    %3895 = vmatpush1.msra.mxu0 %v3894
    %3896 = vmatprep.subr.mxu0 0.0
    %v3897 = vand.u32 %v3684, 4294901760
    %v3898 = vsub.f32 %v3684, %v3897
    %3899 = vmatpush1.msra.mxu0 %v3898
    %3900 = vmatprep.subr.mxu0 0.0
    %3901 = vmatpush1.msra.mxu0 0.0
    %3902 = vmatprep.subr.mxu0 0.0
    %3903 = vmatpush1.msra.mxu0 0.0
    %3904 = vmatprep.subr.mxu0 0.0
    %3905 = vmatpush1.msra.mxu0 0.0
    %3906 = vmatprep.subr.mxu0 0.0
    %3907 = vmatpush1.msra.mxu0 0.0
    %3908 = vmatprep.subr.mxu0 0.0
    %3909 = vmatpush1.msra.mxu0 0.0
    %3910 = vmatprep.subr.mxu0 0.0
    %3911 = vmatpush1.msra.mxu0 0.0
    %3912 = vmatprep.subr.mxu0 0.0
    %3913 = vmatpush1.msra.mxu0 0.0
    %3914 = vmatprep.subr.mxu0 0.0
    %3915 = vmatpush1.msra.mxu0 0.0
    %3916 = vmatprep.subr.mxu0 0.0
    %3917 = vmatpush1.msra.mxu0 0.0
    %3918 = vmatprep.subr.mxu0 0.0
    %3919 = vmatpush1.msra.mxu0 0.0
    %3920 = vmatprep.subr.mxu0 0.0
    %3921 = vmatpush1.msra.mxu0 0.0
    %3922 = vmatprep.subr.mxu0 0.0
    %3923 = vmatpush1.msra.mxu0 0.0
    %3924 = vmatprep.subr.mxu0 0.0
    %3925 = vmatpush1.msra.mxu0 0.0
    %3926 = vmatprep.subr.mxu0 0.0
    %3927 = vmatpush1.msra.mxu0 0.0
    %3928 = vmatprep.subr.mxu0 0.0
    %3929 = vmatpush1.msra.mxu0 0.0
    %3930 = vmatprep.subr.mxu0 0.0
    %3931 = vmatpush1.msra.mxu0 0.0
    %3932 = vmatprep.subr.mxu0 0.0
    %3933 = vmatpush1.msra.mxu0 0.0
    %3934 = vmatprep.subr.mxu0 0.0
    %3935 = vmatpush1.msra.mxu0 0.0
    %3936 = vmatprep.subr.mxu0 0.0
    %3937 = vmatpush1.msra.mxu0 0.0
    %3938 = vmatprep.subr.mxu0 0.0
    %3939 = vmatpush1.msra.mxu0 0.0
    %3940 = vmatprep.subr.mxu0 0.0
    %3941 = vmatpush1.msra.mxu0 0.0
    %3942 = vmatprep.subr.mxu0 0.0
    %3943 = vmatpush1.msra.mxu0 0.0
    %3944 = vmatprep.subr.mxu0 0.0
    %3945 = vmatpush1.msra.mxu0 0.0
    %3946 = vmatprep.subr.mxu0 0.0
    %3947 = vmatpush1.msra.mxu0 0.0
    %3948 = vmatprep.subr.mxu0 0.0
    %3949 = vmatpush1.msra.mxu0 0.0
    %3950 = vmatprep.subr.mxu0 0.0
    %3951 = vmatpush1.msra.mxu0 0.0
    %3952 = vmatprep.subr.mxu0 0.0
    %3953 = vmatpush1.msra.mxu0 0.0
    %3954 = vmatprep.subr.mxu0 0.0
    %3955 = vmatpush1.msra.mxu0 0.0
    %3956 = vmatprep.mubr.f32.mxu0 0.0
    %v3957 = vand.u32 %v3693, 4294901760
    %v3958 = vsub.f32 %v3693, %v3957
    %3959 = vmatmul.mubr.f32.gmra.mrb[0].mxu0 %v3958
    %v3960 = vpop.f32.mrb[0].mxu0
    %v3961 = vadd.f32 %v3875, %v3960
    %v3962 = vpop.f32.mrb[0].mxu0
    %3963 = vmatprep.mubr.f32.mxu0 0.0
    %v3964 = vand.u32 %v3696, 4294901760
    %v3965 = vsub.f32 %v3696, %v3964
    %3966 = vmatmul.mubr.f32.gmra.mrb[0].mxu0 %v3965
    %v3967 = vpop.f32.mrb[0].mxu0
    %v3968 = vadd.f32 %v3881, %v3967
    %v3969 = vpop.f32.mrb[0].mxu0
    %3970 = vdwg.mxu0
    %3971 = vmatprep.subr.mxu0 0.0
    %v3972 = vand.u32 %v3681, 4294901760
    %3973 = vmatpush1.msra.mxu0 %v3972
    %3974 = vmatprep.subr.mxu0 0.0
    %v3975 = vand.u32 %v3682, 4294901760
    %3976 = vmatpush1.msra.mxu0 %v3975
    %3977 = vmatprep.subr.mxu0 0.0
    %v3978 = vand.u32 %v3683, 4294901760
    %3979 = vmatpush1.msra.mxu0 %v3978
    %3980 = vmatprep.subr.mxu0 0.0
    %v3981 = vand.u32 %v3684, 4294901760
    %3982 = vmatpush1.msra.mxu0 %v3981
    %3983 = vmatprep.subr.mxu0 0.0
    %3984 = vmatpush1.msra.mxu0 0.0
    %3985 = vmatprep.subr.mxu0 0.0
    %3986 = vmatpush1.msra.mxu0 0.0
    %3987 = vmatprep.subr.mxu0 0.0
    %3988 = vmatpush1.msra.mxu0 0.0
    %3989 = vmatprep.subr.mxu0 0.0
    %3990 = vmatpush1.msra.mxu0 0.0
    %3991 = vmatprep.subr.mxu0 0.0
    %3992 = vmatpush1.msra.mxu0 0.0
    %3993 = vmatprep.subr.mxu0 0.0
    %3994 = vmatpush1.msra.mxu0 0.0
    %3995 = vmatprep.subr.mxu0 0.0
    %3996 = vmatpush1.msra.mxu0 0.0
    %3997 = vmatprep.subr.mxu0 0.0
    %3998 = vmatpush1.msra.mxu0 0.0
    %3999 = vmatprep.subr.mxu0 0.0
    %4000 = vmatpush1.msra.mxu0 0.0
    %4001 = vmatprep.subr.mxu0 0.0
    %4002 = vmatpush1.msra.mxu0 0.0
    %4003 = vmatprep.subr.mxu0 0.0
    %4004 = vmatpush1.msra.mxu0 0.0
    %4005 = vmatprep.subr.mxu0 0.0
    %4006 = vmatpush1.msra.mxu0 0.0
    %4007 = vmatprep.subr.mxu0 0.0
    %4008 = vmatpush1.msra.mxu0 0.0
    %4009 = vmatprep.subr.mxu0 0.0
    %4010 = vmatpush1.msra.mxu0 0.0
    %4011 = vmatprep.subr.mxu0 0.0
    %4012 = vmatpush1.msra.mxu0 0.0
    %4013 = vmatprep.subr.mxu0 0.0
    %4014 = vmatpush1.msra.mxu0 0.0
    %4015 = vmatprep.subr.mxu0 0.0
    %4016 = vmatpush1.msra.mxu0 0.0
    %4017 = vmatprep.subr.mxu0 0.0
    %4018 = vmatpush1.msra.mxu0 0.0
    %4019 = vmatprep.subr.mxu0 0.0
    %4020 = vmatpush1.msra.mxu0 0.0
    %4021 = vmatprep.subr.mxu0 0.0
    %4022 = vmatpush1.msra.mxu0 0.0
    %4023 = vmatprep.subr.mxu0 0.0
    %4024 = vmatpush1.msra.mxu0 0.0
    %4025 = vmatprep.subr.mxu0 0.0
    %4026 = vmatpush1.msra.mxu0 0.0
    %4027 = vmatprep.subr.mxu0 0.0
    %4028 = vmatpush1.msra.mxu0 0.0
    %4029 = vmatprep.subr.mxu0 0.0
    %4030 = vmatpush1.msra.mxu0 0.0
    %4031 = vmatprep.subr.mxu0 0.0
    %4032 = vmatpush1.msra.mxu0 0.0
    %4033 = vmatprep.subr.mxu0 0.0
    %4034 = vmatpush1.msra.mxu0 0.0
    %4035 = vmatprep.subr.mxu0 0.0
    %4036 = vmatpush1.msra.mxu0 0.0
    %4037 = vmatprep.subr.mxu0 0.0
    %4038 = vmatpush1.msra.mxu0 0.0
    %4039 = vmatprep.mubr.f32.mxu0 0.0
    %v4040 = vand.u32 %v3693, 4294901760
    %v4041 = vsub.f32 %v3693, %v4040
    %v4042 = vand.u32 %v4041, 4294901760
    %4043 = vmatmul.mubr.f32.gmra.mrb[0].mxu0 %v4042
    %v4044 = vpop.f32.mrb[0].mxu0
    %v4045 = vadd.f32 %v3961, %v4044
    %v4046 = vpop.f32.mrb[0].mxu0
    %4047 = vmatprep.mubr.f32.mxu0 0.0
    %v4048 = vand.u32 %v3696, 4294901760
    %v4049 = vsub.f32 %v3696, %v4048
    %v4050 = vand.u32 %v4049, 4294901760
    %4051 = vmatmul.mubr.f32.gmra.mrb[0].mxu0 %v4050
    %v4052 = vpop.f32.mrb[0].mxu0
    %v4053 = vadd.f32 %v3968, %v4052
    %v4054 = vpop.f32.mrb[0].mxu0
    %4055 = vdwg.mxu0
    %4056 = vmatprep.subr.mxu0 0.0
    %v4057 = vand.u32 %v3681, 4294901760
    %v4058 = vsub.f32 %v3681, %v4057
    %v4059 = vand.u32 %v4058, 4294901760
    %4060 = vmatpush1.msra.mxu0 %v4059
    %4061 = vmatprep.subr.mxu0 0.0
    %v4062 = vand.u32 %v3682, 4294901760
    %v4063 = vsub.f32 %v3682, %v4062
    %v4064 = vand.u32 %v4063, 4294901760
    %4065 = vmatpush1.msra.mxu0 %v4064
    %4066 = vmatprep.subr.mxu0 0.0
    %v4067 = vand.u32 %v3683, 4294901760
    %v4068 = vsub.f32 %v3683, %v4067
    %v4069 = vand.u32 %v4068, 4294901760
    %4070 = vmatpush1.msra.mxu0 %v4069
    %4071 = vmatprep.subr.mxu0 0.0
    %v4072 = vand.u32 %v3684, 4294901760
    %v4073 = vsub.f32 %v3684, %v4072
    %v4074 = vand.u32 %v4073, 4294901760
    %4075 = vmatpush1.msra.mxu0 %v4074
    %4076 = vmatprep.subr.mxu0 0.0
    %4077 = vmatpush1.msra.mxu0 0.0
    %4078 = vmatprep.subr.mxu0 0.0
    %4079 = vmatpush1.msra.mxu0 0.0
    %4080 = vmatprep.subr.mxu0 0.0
    %4081 = vmatpush1.msra.mxu0 0.0
    %4082 = vmatprep.subr.mxu0 0.0
    %4083 = vmatpush1.msra.mxu0 0.0
    %4084 = vmatprep.subr.mxu0 0.0
    %4085 = vmatpush1.msra.mxu0 0.0
    %4086 = vmatprep.subr.mxu0 0.0
    %4087 = vmatpush1.msra.mxu0 0.0
    %4088 = vmatprep.subr.mxu0 0.0
    %4089 = vmatpush1.msra.mxu0 0.0
    %4090 = vmatprep.subr.mxu0 0.0
    %4091 = vmatpush1.msra.mxu0 0.0
    %4092 = vmatprep.subr.mxu0 0.0
    %4093 = vmatpush1.msra.mxu0 0.0
    %4094 = vmatprep.subr.mxu0 0.0
    %4095 = vmatpush1.msra.mxu0 0.0
    %4096 = vmatprep.subr.mxu0 0.0
    %4097 = vmatpush1.msra.mxu0 0.0
    %4098 = vmatprep.subr.mxu0 0.0
    %4099 = vmatpush1.msra.mxu0 0.0
    %4100 = vmatprep.subr.mxu0 0.0
    %4101 = vmatpush1.msra.mxu0 0.0
    %4102 = vmatprep.subr.mxu0 0.0
    %4103 = vmatpush1.msra.mxu0 0.0
    %4104 = vmatprep.subr.mxu0 0.0
    %4105 = vmatpush1.msra.mxu0 0.0
    %4106 = vmatprep.subr.mxu0 0.0
    %4107 = vmatpush1.msra.mxu0 0.0
    %4108 = vmatprep.subr.mxu0 0.0
    %4109 = vmatpush1.msra.mxu0 0.0
    %4110 = vmatprep.subr.mxu0 0.0
    %4111 = vmatpush1.msra.mxu0 0.0
    %4112 = vmatprep.subr.mxu0 0.0
    %4113 = vmatpush1.msra.mxu0 0.0
    %4114 = vmatprep.subr.mxu0 0.0
    %4115 = vmatpush1.msra.mxu0 0.0
    %4116 = vmatprep.subr.mxu0 0.0
    %4117 = vmatpush1.msra.mxu0 0.0
    %4118 = vmatprep.subr.mxu0 0.0
    %4119 = vmatpush1.msra.mxu0 0.0
    %4120 = vmatprep.subr.mxu0 0.0
    %4121 = vmatpush1.msra.mxu0 0.0
    %4122 = vmatprep.subr.mxu0 0.0
    %4123 = vmatpush1.msra.mxu0 0.0
    %4124 = vmatprep.subr.mxu0 0.0
    %4125 = vmatpush1.msra.mxu0 0.0
    %4126 = vmatprep.subr.mxu0 0.0
    %4127 = vmatpush1.msra.mxu0 0.0
    %4128 = vmatprep.subr.mxu0 0.0
    %4129 = vmatpush1.msra.mxu0 0.0
    %4130 = vmatprep.subr.mxu0 0.0
    %4131 = vmatpush1.msra.mxu0 0.0
    %4132 = vmatprep.mubr.f32.mxu0 0.0
    %v4133 = vand.u32 %v3693, 4294901760
    %4134 = vmatmul.mubr.f32.gmra.mrb[0].mxu0 %v4133
    %v4135 = vpop.f32.mrb[0].mxu0
    %v4136 = vadd.f32 %v4045, %v4135
    %v4137 = vpop.f32.mrb[0].mxu0
    %4138 = vmatprep.mubr.f32.mxu0 0.0
    %v4139 = vand.u32 %v3696, 4294901760
    %4140 = vmatmul.mubr.f32.gmra.mrb[0].mxu0 %v4139
    %v4141 = vpop.f32.mrb[0].mxu0
    %v4142 = vadd.f32 %v4053, %v4141
    %v4143 = vpop.f32.mrb[0].mxu0
    %4144 = vdwg.mxu0
    %4145 = vmatprep.subr.mxu0 0.0
    %v4146 = vand.u32 %v3681, 4294901760
    %4147 = vmatpush1.msra.mxu0 %v4146
    %4148 = vmatprep.subr.mxu0 0.0
    %v4149 = vand.u32 %v3682, 4294901760
    %4150 = vmatpush1.msra.mxu0 %v4149
    %4151 = vmatprep.subr.mxu0 0.0
    %v4152 = vand.u32 %v3683, 4294901760
    %4153 = vmatpush1.msra.mxu0 %v4152
    %4154 = vmatprep.subr.mxu0 0.0
    %v4155 = vand.u32 %v3684, 4294901760
    %4156 = vmatpush1.msra.mxu0 %v4155
    %4157 = vmatprep.subr.mxu0 0.0
    %4158 = vmatpush1.msra.mxu0 0.0
    %4159 = vmatprep.subr.mxu0 0.0
    %4160 = vmatpush1.msra.mxu0 0.0
    %4161 = vmatprep.subr.mxu0 0.0
    %4162 = vmatpush1.msra.mxu0 0.0
    %4163 = vmatprep.subr.mxu0 0.0
    %4164 = vmatpush1.msra.mxu0 0.0
    %4165 = vmatprep.subr.mxu0 0.0
    %4166 = vmatpush1.msra.mxu0 0.0
    %4167 = vmatprep.subr.mxu0 0.0
    %4168 = vmatpush1.msra.mxu0 0.0
    %4169 = vmatprep.subr.mxu0 0.0
    %4170 = vmatpush1.msra.mxu0 0.0
    %4171 = vmatprep.subr.mxu0 0.0
    %4172 = vmatpush1.msra.mxu0 0.0
    %4173 = vmatprep.subr.mxu0 0.0
    %4174 = vmatpush1.msra.mxu0 0.0
    %4175 = vmatprep.subr.mxu0 0.0
    %4176 = vmatpush1.msra.mxu0 0.0
    %4177 = vmatprep.subr.mxu0 0.0
    %4178 = vmatpush1.msra.mxu0 0.0
    %4179 = vmatprep.subr.mxu0 0.0
    %4180 = vmatpush1.msra.mxu0 0.0
    %4181 = vmatprep.subr.mxu0 0.0
    %4182 = vmatpush1.msra.mxu0 0.0
    %4183 = vmatprep.subr.mxu0 0.0
    %4184 = vmatpush1.msra.mxu0 0.0
    %4185 = vmatprep.subr.mxu0 0.0
    %4186 = vmatpush1.msra.mxu0 0.0
    %4187 = vmatprep.subr.mxu0 0.0
    %4188 = vmatpush1.msra.mxu0 0.0
    %4189 = vmatprep.subr.mxu0 0.0
    %4190 = vmatpush1.msra.mxu0 0.0
    %4191 = vmatprep.subr.mxu0 0.0
    %4192 = vmatpush1.msra.mxu0 0.0
    %4193 = vmatprep.subr.mxu0 0.0
    %4194 = vmatpush1.msra.mxu0 0.0
    %4195 = vmatprep.subr.mxu0 0.0
    %4196 = vmatpush1.msra.mxu0 0.0
    %4197 = vmatprep.subr.mxu0 0.0
    %4198 = vmatpush1.msra.mxu0 0.0
    %4199 = vmatprep.subr.mxu0 0.0
    %4200 = vmatpush1.msra.mxu0 0.0
    %4201 = vmatprep.subr.mxu0 0.0
    %4202 = vmatpush1.msra.mxu0 0.0
    %4203 = vmatprep.subr.mxu0 0.0
    %4204 = vmatpush1.msra.mxu0 0.0
    %4205 = vmatprep.subr.mxu0 0.0
    %4206 = vmatpush1.msra.mxu0 0.0
    %4207 = vmatprep.subr.mxu0 0.0
    %4208 = vmatpush1.msra.mxu0 0.0
    %4209 = vmatprep.subr.mxu0 0.0
    %4210 = vmatpush1.msra.mxu0 0.0
    %4211 = vmatprep.subr.mxu0 0.0
    %4212 = vmatpush1.msra.mxu0 0.0
    %4213 = vmatprep.mubr.f32.mxu0 0.0
    %v4214 = vand.u32 %v3693, 4294901760
    %4215 = vmatmul.mubr.f32.gmra.mrb[0].mxu0 %v4214
    %v4216 = vpop.f32.mrb[0].mxu0
    %v4217 = vadd.f32 %v4136, %v4216
    %v4218 = vpop.f32.mrb[0].mxu0
    %4219 = vmatprep.mubr.f32.mxu0 0.0
    %v4220 = vand.u32 %v3696, 4294901760
    %4221 = vmatmul.mubr.f32.gmra.mrb[0].mxu0 %v4220
    %v4222 = vpop.f32.mrb[0].mxu0
    %v4223 = vadd.f32 %v4142, %v4222
    %v4224 = vpop.f32.mrb[0].mxu0
    %4225 = vdwg.mxu0
    %4228 = vrot.lane.b32.xlu0 %v3672, 120
    %v4229 = vpop.permute.xlu0 %4228
    %4230 = vrot.lane.b32.xlu0 %v3678, 120
    %v4231 = vpop.permute.xlu0 %4230
    %4232 = vrot.lane.b32.xlu0 %v3672, 112
    %v4233 = vpop.permute.xlu0 %4232
    %4234 = vrot.lane.b32.xlu0 %v3678, 112
    %v4235 = vpop.permute.xlu0 %4234
    %4236 = vrot.lane.b32.xlu0 %v3672, 104
    %v4237 = vpop.permute.xlu0 %4236
    %4238 = vrot.lane.b32.xlu0 %v3678, 104
    %v4239 = vpop.permute.xlu0 %4238
    %4242 = vrot.lane.b32.xlu0 %v4217, 120
    %v4243 = vpop.permute.xlu0 %4242
    %4244 = vrot.lane.b32.xlu0 %v4223, 120
    %v4245 = vpop.permute.xlu0 %4244
    %4246 = vrot.lane.b32.xlu0 %v4217, 112
    %v4247 = vpop.permute.xlu0 %4246
    %4248 = vrot.lane.b32.xlu0 %v4223, 112
    %v4249 = vpop.permute.xlu0 %4248
    %4250 = vrot.lane.b32.xlu0 %v4217, 104
    %v4251 = vpop.permute.xlu0 %4250
    %4252 = vrot.lane.b32.xlu0 %v4223, 104
    %v4253 = vpop.permute.xlu0 %4252
    %v4254 = vld [vmem:[%s3] sm:$0xff]
    %v4255 = vld [vmem:[%s3 + $0x8] sm:$0xff]
    %v4256 = vld [vmem:[%s3 + $0x10] sm:$0xff]
    %v4257 = vld [vmem:[%s3 + $0x18] sm:$0xff]
    %v4258 = vld [vmem:[%s3 + $0x20] sm:$0xff]
    %v4259 = vld [vmem:[%s3 + $0x28] sm:$0xff]
    %v4260 = vld [vmem:[%s3 + $0x30] sm:$0xff]
    %v4261 = vld [vmem:[%s3 + $0x38] sm:$0xff]
    %v4262 = vld [vmem:[%s14] sm:$0xff]
    %v4263 = vld [vmem:[%s14 + $0x8] sm:$0xff]
    %v4264 = vld [vmem:[%s14 + $0x10] sm:$0xff]
    %v4265 = vld [vmem:[%s14 + $0x18] sm:$0xff]
    %v4266 = vld [vmem:[%s15] sm:$0x1]
    %v4267 = vsel %vm671, %v3672, 0
    %v4269 = vsel %vm671, %v3678, 0
    %v4271 = vsel %vm671, %v4229, 0
    %v4273 = vsel %vm671, %v4231, 0
    %v4275 = vsel %vm671, %v4233, 0
    %v4277 = vsel %vm671, %v4235, 0
    %v4279 = vsel %vm671, %v4237, 0
    %v4281 = vsel %vm671, %v4239, 0
    %v4283 = vsel %vm671, %v4217, 0
    %v4285 = vsel %vm671, %v4223, 0
    %v4287 = vsel %vm671, %v4243, 0
    %v4289 = vsel %vm671, %v4245, 0
    %v4291 = vsel %vm671, %v4247, 0
    %v4293 = vsel %vm671, %v4249, 0
    %v4295 = vsel %vm671, %v4251, 0
    %v4297 = vsel %vm671, %v4253, 0
    %4299 = vmatprep.subr.mxu0 0.0
    %v4300 = vand.u32 %v4283, 4294901760
    %4301 = vmatpush1.xpose.msra.mxu0 %v4300
    %4302 = vmatprep.subr.mxu0 0.0
    %v4303 = vand.u32 %v4285, 4294901760
    %4304 = vmatpush1.xpose.msra.mxu0 %v4303
    %4305 = vmatprep.subr.mxu0 0.0
    %v4306 = vand.u32 %v4287, 4294901760
    %4307 = vmatpush1.xpose.msra.mxu0 %v4306
    %4308 = vmatprep.subr.mxu0 0.0
    %v4309 = vand.u32 %v4289, 4294901760
    %4310 = vmatpush1.xpose.msra.mxu0 %v4309
    %4311 = vmatprep.subr.mxu0 0.0
    %v4312 = vand.u32 %v4291, 4294901760
    %4313 = vmatpush1.xpose.msra.mxu0 %v4312
    %4314 = vmatprep.subr.mxu0 0.0
    %v4315 = vand.u32 %v4293, 4294901760
    %4316 = vmatpush1.xpose.msra.mxu0 %v4315
    %4317 = vmatprep.subr.mxu0 0.0
    %v4318 = vand.u32 %v4295, 4294901760
    %4319 = vmatpush1.xpose.msra.mxu0 %v4318
    %4320 = vmatprep.subr.mxu0 0.0
    %v4321 = vand.u32 %v4297, 4294901760
    %4322 = vmatpush1.xpose.msra.mxu0 %v4321
    %4323 = vmatprep.subr.mxu0 0.0
    %4324 = vmatpush1.xpose.msra.mxu0 0.0
    %4325 = vmatprep.subr.mxu0 0.0
    %4326 = vmatpush1.xpose.msra.mxu0 0.0
    %4327 = vmatprep.subr.mxu0 0.0
    %4328 = vmatpush1.xpose.msra.mxu0 0.0
    %4329 = vmatprep.subr.mxu0 0.0
    %4330 = vmatpush1.xpose.msra.mxu0 0.0
    %4331 = vmatprep.subr.mxu0 0.0
    %4332 = vmatpush1.xpose.msra.mxu0 0.0
    %4333 = vmatprep.subr.mxu0 0.0
    %4334 = vmatpush1.xpose.msra.mxu0 0.0
    %4335 = vmatprep.subr.mxu0 0.0
    %4336 = vmatpush1.xpose.msra.mxu0 0.0
    %4337 = vmatprep.subr.mxu0 0.0
    %4338 = vmatpush1.xpose.msra.mxu0 0.0
    %4339 = vmatprep.subr.mxu0 0.0
    %4340 = vmatpush1.xpose.msra.mxu0 0.0
    %4341 = vmatprep.subr.mxu0 0.0
    %4342 = vmatpush1.xpose.msra.mxu0 0.0
    %4343 = vmatprep.subr.mxu0 0.0
    %4344 = vmatpush1.xpose.msra.mxu0 0.0
    %4345 = vmatprep.subr.mxu0 0.0
    %4346 = vmatpush1.xpose.msra.mxu0 0.0
    %4347 = vmatprep.subr.mxu0 0.0
    %4348 = vmatpush1.xpose.msra.mxu0 0.0
    %4349 = vmatprep.subr.mxu0 0.0
    %4350 = vmatpush1.xpose.msra.mxu0 0.0
    %4351 = vmatprep.subr.mxu0 0.0
    %4352 = vmatpush1.xpose.msra.mxu0 0.0
    %4353 = vmatprep.subr.mxu0 0.0
    %4354 = vmatpush1.xpose.msra.mxu0 0.0
    %4355 = vmatprep.subr.mxu0 0.0
    %4356 = vmatpush1.xpose.msra.mxu0 0.0
    %4357 = vmatprep.subr.mxu0 0.0
    %4358 = vmatpush1.xpose.msra.mxu0 0.0
    %4359 = vmatprep.subr.mxu0 0.0
    %4360 = vmatpush1.xpose.msra.mxu0 0.0
    %4361 = vmatprep.subr.mxu0 0.0
    %4362 = vmatpush1.xpose.msra.mxu0 0.0
    %4363 = vmatprep.subr.mxu0 0.0
    %4364 = vmatpush1.xpose.msra.mxu0 0.0
    %4365 = vmatprep.subr.mxu0 0.0
    %4366 = vmatpush1.xpose.msra.mxu0 0.0
    %4367 = vmatprep.subr.mxu0 0.0
    %4368 = vmatpush1.xpose.msra.mxu0 0.0
    %4369 = vmatprep.subr.mxu0 0.0
    %4370 = vmatpush1.xpose.msra.mxu0 0.0
    %4371 = vmatprep.mubr.f32.mxu0 0.0
    %v4372 = vand.u32 %v4267, 4294901760
    %v4373 = vsub.f32 %v4267, %v4372
    %v4374 = vand.u32 %v4373, 4294901760
    %v4375 = vsub.f32 %v4373, %v4374
    %v4376 = vand.u32 %v4375, 4294901760
    %4377 = vmatmul.mubr.f32.gmra.mrb[0].mxu0 %v4376
    %v4378 = vpop.f32.mrb[0].mxu0
    %v4379 = vadd.f32 %v4254, %v4378
    %v4380 = vpop.f32.mrb[0].mxu0
    %4381 = vmatprep.mubr.f32.mxu0 0.0
    %v4382 = vand.u32 %v4269, 4294901760
    %v4383 = vsub.f32 %v4269, %v4382
    %v4384 = vand.u32 %v4383, 4294901760
    %v4385 = vsub.f32 %v4383, %v4384
    %v4386 = vand.u32 %v4385, 4294901760
    %4387 = vmatmul.mubr.f32.gmra.mrb[0].mxu0 %v4386
    %v4388 = vpop.f32.mrb[0].mxu0
    %v4389 = vadd.f32 %v4255, %v4388
    %v4390 = vpop.f32.mrb[0].mxu0
    %4391 = vmatprep.mubr.f32.mxu0 0.0
    %v4392 = vand.u32 %v4271, 4294901760
    %v4393 = vsub.f32 %v4271, %v4392
    %v4394 = vand.u32 %v4393, 4294901760
    %v4395 = vsub.f32 %v4393, %v4394
    %v4396 = vand.u32 %v4395, 4294901760
    %4397 = vmatmul.mubr.f32.gmra.mrb[0].mxu0 %v4396
    %v4398 = vpop.f32.mrb[0].mxu0
    %v4399 = vadd.f32 %v4256, %v4398
    %v4400 = vpop.f32.mrb[0].mxu0
    %4401 = vmatprep.mubr.f32.mxu0 0.0
    %v4402 = vand.u32 %v4273, 4294901760
    %v4403 = vsub.f32 %v4273, %v4402
    %v4404 = vand.u32 %v4403, 4294901760
    %v4405 = vsub.f32 %v4403, %v4404
    %v4406 = vand.u32 %v4405, 4294901760
    %4407 = vmatmul.mubr.f32.gmra.mrb[0].mxu0 %v4406
    %v4408 = vpop.f32.mrb[0].mxu0
    %v4409 = vadd.f32 %v4257, %v4408
    %v4410 = vpop.f32.mrb[0].mxu0
    %4411 = vmatprep.mubr.f32.mxu0 0.0
    %v4412 = vand.u32 %v4275, 4294901760
    %v4413 = vsub.f32 %v4275, %v4412
    %v4414 = vand.u32 %v4413, 4294901760
    %v4415 = vsub.f32 %v4413, %v4414
    %v4416 = vand.u32 %v4415, 4294901760
    %4417 = vmatmul.mubr.f32.gmra.mrb[0].mxu0 %v4416
    %v4418 = vpop.f32.mrb[0].mxu0
    %v4419 = vadd.f32 %v4258, %v4418
    %v4420 = vpop.f32.mrb[0].mxu0
    %4421 = vmatprep.mubr.f32.mxu0 0.0
    %v4422 = vand.u32 %v4277, 4294901760
    %v4423 = vsub.f32 %v4277, %v4422
    %v4424 = vand.u32 %v4423, 4294901760
    %v4425 = vsub.f32 %v4423, %v4424
    %v4426 = vand.u32 %v4425, 4294901760
    %4427 = vmatmul.mubr.f32.gmra.mrb[0].mxu0 %v4426
    %v4428 = vpop.f32.mrb[0].mxu0
    %v4429 = vadd.f32 %v4259, %v4428
    %v4430 = vpop.f32.mrb[0].mxu0
    %4431 = vmatprep.mubr.f32.mxu0 0.0
    %v4432 = vand.u32 %v4279, 4294901760
    %v4433 = vsub.f32 %v4279, %v4432
    %v4434 = vand.u32 %v4433, 4294901760
    %v4435 = vsub.f32 %v4433, %v4434
    %v4436 = vand.u32 %v4435, 4294901760
    %4437 = vmatmul.mubr.f32.gmra.mrb[0].mxu0 %v4436
    %v4438 = vpop.f32.mrb[0].mxu0
    %v4439 = vadd.f32 %v4260, %v4438
    %v4440 = vpop.f32.mrb[0].mxu0
    %4441 = vmatprep.mubr.f32.mxu0 0.0
    %v4442 = vand.u32 %v4281, 4294901760
    %v4443 = vsub.f32 %v4281, %v4442
    %v4444 = vand.u32 %v4443, 4294901760
    %v4445 = vsub.f32 %v4443, %v4444
    %v4446 = vand.u32 %v4445, 4294901760
    %4447 = vmatmul.mubr.f32.gmra.mrb[0].mxu0 %v4446
    %v4448 = vpop.f32.mrb[0].mxu0
    %v4449 = vadd.f32 %v4261, %v4448
    %v4450 = vpop.f32.mrb[0].mxu0
    %4451 = vdwg.mxu0
    %4452 = vmatprep.subr.mxu0 0.0
    %v4453 = vand.u32 %v4283, 4294901760
    %v4454 = vsub.f32 %v4283, %v4453
    %v4455 = vand.u32 %v4454, 4294901760
    %v4456 = vsub.f32 %v4454, %v4455
    %v4457 = vand.u32 %v4456, 4294901760
    %4458 = vmatpush1.xpose.msra.mxu0 %v4457
    %4459 = vmatprep.subr.mxu0 0.0
    %v4460 = vand.u32 %v4285, 4294901760
    %v4461 = vsub.f32 %v4285, %v4460
    %v4462 = vand.u32 %v4461, 4294901760
    %v4463 = vsub.f32 %v4461, %v4462
    %v4464 = vand.u32 %v4463, 4294901760
    %4465 = vmatpush1.xpose.msra.mxu0 %v4464
    %4466 = vmatprep.subr.mxu0 0.0
    %v4467 = vand.u32 %v4287, 4294901760
    %v4468 = vsub.f32 %v4287, %v4467
    %v4469 = vand.u32 %v4468, 4294901760
    %v4470 = vsub.f32 %v4468, %v4469
    %v4471 = vand.u32 %v4470, 4294901760
    %4472 = vmatpush1.xpose.msra.mxu0 %v4471
    %4473 = vmatprep.subr.mxu0 0.0
    %v4474 = vand.u32 %v4289, 4294901760
    %v4475 = vsub.f32 %v4289, %v4474
    %v4476 = vand.u32 %v4475, 4294901760
    %v4477 = vsub.f32 %v4475, %v4476
    %v4478 = vand.u32 %v4477, 4294901760
    %4479 = vmatpush1.xpose.msra.mxu0 %v4478
    %4480 = vmatprep.subr.mxu0 0.0
    %v4481 = vand.u32 %v4291, 4294901760
    %v4482 = vsub.f32 %v4291, %v4481
    %v4483 = vand.u32 %v4482, 4294901760
    %v4484 = vsub.f32 %v4482, %v4483
    %v4485 = vand.u32 %v4484, 4294901760
    %4486 = vmatpush1.xpose.msra.mxu0 %v4485
    %4487 = vmatprep.subr.mxu0 0.0
    %v4488 = vand.u32 %v4293, 4294901760
    %v4489 = vsub.f32 %v4293, %v4488
    %v4490 = vand.u32 %v4489, 4294901760
    %v4491 = vsub.f32 %v4489, %v4490
    %v4492 = vand.u32 %v4491, 4294901760
    %4493 = vmatpush1.xpose.msra.mxu0 %v4492
    %4494 = vmatprep.subr.mxu0 0.0
    %v4495 = vand.u32 %v4295, 4294901760
    %v4496 = vsub.f32 %v4295, %v4495
    %v4497 = vand.u32 %v4496, 4294901760
    %v4498 = vsub.f32 %v4496, %v4497
    %v4499 = vand.u32 %v4498, 4294901760
    %4500 = vmatpush1.xpose.msra.mxu0 %v4499
    %4501 = vmatprep.subr.mxu0 0.0
    %v4502 = vand.u32 %v4297, 4294901760
    %v4503 = vsub.f32 %v4297, %v4502
    %v4504 = vand.u32 %v4503, 4294901760
    %v4505 = vsub.f32 %v4503, %v4504
    %v4506 = vand.u32 %v4505, 4294901760
    %4507 = vmatpush1.xpose.msra.mxu0 %v4506
    %4508 = vmatprep.subr.mxu0 0.0
    %4509 = vmatpush1.xpose.msra.mxu0 0.0
    %4510 = vmatprep.subr.mxu0 0.0
    %4511 = vmatpush1.xpose.msra.mxu0 0.0
    %4512 = vmatprep.subr.mxu0 0.0
    %4513 = vmatpush1.xpose.msra.mxu0 0.0
    %4514 = vmatprep.subr.mxu0 0.0
    %4515 = vmatpush1.xpose.msra.mxu0 0.0
    %4516 = vmatprep.subr.mxu0 0.0
    %4517 = vmatpush1.xpose.msra.mxu0 0.0
    %4518 = vmatprep.subr.mxu0 0.0
    %4519 = vmatpush1.xpose.msra.mxu0 0.0
    %4520 = vmatprep.subr.mxu0 0.0
    %4521 = vmatpush1.xpose.msra.mxu0 0.0
    %4522 = vmatprep.subr.mxu0 0.0
    %4523 = vmatpush1.xpose.msra.mxu0 0.0
    %4524 = vmatprep.subr.mxu0 0.0
    %4525 = vmatpush1.xpose.msra.mxu0 0.0
    %4526 = vmatprep.subr.mxu0 0.0
    %4527 = vmatpush1.xpose.msra.mxu0 0.0
    %4528 = vmatprep.subr.mxu0 0.0
    %4529 = vmatpush1.xpose.msra.mxu0 0.0
    %4530 = vmatprep.subr.mxu0 0.0
    %4531 = vmatpush1.xpose.msra.mxu0 0.0
    %4532 = vmatprep.subr.mxu0 0.0
    %4533 = vmatpush1.xpose.msra.mxu0 0.0
    %4534 = vmatprep.subr.mxu0 0.0
    %4535 = vmatpush1.xpose.msra.mxu0 0.0
    %4536 = vmatprep.subr.mxu0 0.0
    %4537 = vmatpush1.xpose.msra.mxu0 0.0
    %4538 = vmatprep.subr.mxu0 0.0
    %4539 = vmatpush1.xpose.msra.mxu0 0.0
    %4540 = vmatprep.subr.mxu0 0.0
    %4541 = vmatpush1.xpose.msra.mxu0 0.0
    %4542 = vmatprep.subr.mxu0 0.0
    %4543 = vmatpush1.xpose.msra.mxu0 0.0
    %4544 = vmatprep.subr.mxu0 0.0
    %4545 = vmatpush1.xpose.msra.mxu0 0.0
    %4546 = vmatprep.subr.mxu0 0.0
    %4547 = vmatpush1.xpose.msra.mxu0 0.0
    %4548 = vmatprep.subr.mxu0 0.0
    %4549 = vmatpush1.xpose.msra.mxu0 0.0
    %4550 = vmatprep.subr.mxu0 0.0
    %4551 = vmatpush1.xpose.msra.mxu0 0.0
    %4552 = vmatprep.subr.mxu0 0.0
    %4553 = vmatpush1.xpose.msra.mxu0 0.0
    %4554 = vmatprep.subr.mxu0 0.0
    %4555 = vmatpush1.xpose.msra.mxu0 0.0
    %4556 = vmatprep.mubr.f32.mxu0 0.0
    %v4557 = vand.u32 %v4267, 4294901760
    %4558 = vmatmul.mubr.f32.gmra.mrb[0].mxu0 %v4557
    %v4559 = vpop.f32.mrb[0].mxu0
    %v4560 = vadd.f32 %v4379, %v4559
    %v4561 = vpop.f32.mrb[0].mxu0
    %4562 = vmatprep.mubr.f32.mxu0 0.0
    %v4563 = vand.u32 %v4269, 4294901760
    %4564 = vmatmul.mubr.f32.gmra.mrb[0].mxu0 %v4563
    %v4565 = vpop.f32.mrb[0].mxu0
    %v4566 = vadd.f32 %v4389, %v4565
    %v4567 = vpop.f32.mrb[0].mxu0
    %4568 = vmatprep.mubr.f32.mxu0 0.0
    %v4569 = vand.u32 %v4271, 4294901760
    %4570 = vmatmul.mubr.f32.gmra.mrb[0].mxu0 %v4569
    %v4571 = vpop.f32.mrb[0].mxu0
    %v4572 = vadd.f32 %v4399, %v4571
    %v4573 = vpop.f32.mrb[0].mxu0
    %4574 = vmatprep.mubr.f32.mxu0 0.0
    %v4575 = vand.u32 %v4273, 4294901760
    %4576 = vmatmul.mubr.f32.gmra.mrb[0].mxu0 %v4575
    %v4577 = vpop.f32.mrb[0].mxu0
    %v4578 = vadd.f32 %v4409, %v4577
    %v4579 = vpop.f32.mrb[0].mxu0
    %4580 = vmatprep.mubr.f32.mxu0 0.0
    %v4581 = vand.u32 %v4275, 4294901760
    %4582 = vmatmul.mubr.f32.gmra.mrb[0].mxu0 %v4581
    %v4583 = vpop.f32.mrb[0].mxu0
    %v4584 = vadd.f32 %v4419, %v4583
    %v4585 = vpop.f32.mrb[0].mxu0
    %4586 = vmatprep.mubr.f32.mxu0 0.0
    %v4587 = vand.u32 %v4277, 4294901760
    %4588 = vmatmul.mubr.f32.gmra.mrb[0].mxu0 %v4587
    %v4589 = vpop.f32.mrb[0].mxu0
    %v4590 = vadd.f32 %v4429, %v4589
    %v4591 = vpop.f32.mrb[0].mxu0
    %4592 = vmatprep.mubr.f32.mxu0 0.0
    %v4593 = vand.u32 %v4279, 4294901760
    %4594 = vmatmul.mubr.f32.gmra.mrb[0].mxu0 %v4593
    %v4595 = vpop.f32.mrb[0].mxu0
    %v4596 = vadd.f32 %v4439, %v4595
    %v4597 = vpop.f32.mrb[0].mxu0
    %4598 = vmatprep.mubr.f32.mxu0 0.0
    %v4599 = vand.u32 %v4281, 4294901760
    %4600 = vmatmul.mubr.f32.gmra.mrb[0].mxu0 %v4599
    %v4601 = vpop.f32.mrb[0].mxu0
    %v4602 = vadd.f32 %v4449, %v4601
    %v4603 = vpop.f32.mrb[0].mxu0
    %4604 = vdwg.mxu0
    %4605 = vmatprep.subr.mxu0 0.0
    %v4606 = vand.u32 %v4283, 4294901760
    %v4607 = vsub.f32 %v4283, %v4606
    %4608 = vmatpush1.xpose.msra.mxu0 %v4607
    %4609 = vmatprep.subr.mxu0 0.0
    %v4610 = vand.u32 %v4285, 4294901760
    %v4611 = vsub.f32 %v4285, %v4610
    %4612 = vmatpush1.xpose.msra.mxu0 %v4611
    %4613 = vmatprep.subr.mxu0 0.0
    %v4614 = vand.u32 %v4287, 4294901760
    %v4615 = vsub.f32 %v4287, %v4614
    %4616 = vmatpush1.xpose.msra.mxu0 %v4615
    %4617 = vmatprep.subr.mxu0 0.0
    %v4618 = vand.u32 %v4289, 4294901760
    %v4619 = vsub.f32 %v4289, %v4618
    %4620 = vmatpush1.xpose.msra.mxu0 %v4619
    %4621 = vmatprep.subr.mxu0 0.0
    %v4622 = vand.u32 %v4291, 4294901760
    %v4623 = vsub.f32 %v4291, %v4622
    %4624 = vmatpush1.xpose.msra.mxu0 %v4623
    %4625 = vmatprep.subr.mxu0 0.0
    %v4626 = vand.u32 %v4293, 4294901760
    %v4627 = vsub.f32 %v4293, %v4626
    %4628 = vmatpush1.xpose.msra.mxu0 %v4627
    %4629 = vmatprep.subr.mxu0 0.0
    %v4630 = vand.u32 %v4295, 4294901760
    %v4631 = vsub.f32 %v4295, %v4630
    %4632 = vmatpush1.xpose.msra.mxu0 %v4631
    %4633 = vmatprep.subr.mxu0 0.0
    %v4634 = vand.u32 %v4297, 4294901760
    %v4635 = vsub.f32 %v4297, %v4634
    %4636 = vmatpush1.xpose.msra.mxu0 %v4635
    %4637 = vmatprep.subr.mxu0 0.0
    %4638 = vmatpush1.xpose.msra.mxu0 0.0
    %4639 = vmatprep.subr.mxu0 0.0
    %4640 = vmatpush1.xpose.msra.mxu0 0.0
    %4641 = vmatprep.subr.mxu0 0.0
    %4642 = vmatpush1.xpose.msra.mxu0 0.0
    %4643 = vmatprep.subr.mxu0 0.0
    %4644 = vmatpush1.xpose.msra.mxu0 0.0
    %4645 = vmatprep.subr.mxu0 0.0
    %4646 = vmatpush1.xpose.msra.mxu0 0.0
    %4647 = vmatprep.subr.mxu0 0.0
    %4648 = vmatpush1.xpose.msra.mxu0 0.0
    %4649 = vmatprep.subr.mxu0 0.0
    %4650 = vmatpush1.xpose.msra.mxu0 0.0
    %4651 = vmatprep.subr.mxu0 0.0
    %4652 = vmatpush1.xpose.msra.mxu0 0.0
    %4653 = vmatprep.subr.mxu0 0.0
    %4654 = vmatpush1.xpose.msra.mxu0 0.0
    %4655 = vmatprep.subr.mxu0 0.0
    %4656 = vmatpush1.xpose.msra.mxu0 0.0
    %4657 = vmatprep.subr.mxu0 0.0
    %4658 = vmatpush1.xpose.msra.mxu0 0.0
    %4659 = vmatprep.subr.mxu0 0.0
    %4660 = vmatpush1.xpose.msra.mxu0 0.0
    %4661 = vmatprep.subr.mxu0 0.0
    %4662 = vmatpush1.xpose.msra.mxu0 0.0
    %4663 = vmatprep.subr.mxu0 0.0
    %4664 = vmatpush1.xpose.msra.mxu0 0.0
    %4665 = vmatprep.subr.mxu0 0.0
    %4666 = vmatpush1.xpose.msra.mxu0 0.0
    %4667 = vmatprep.subr.mxu0 0.0
    %4668 = vmatpush1.xpose.msra.mxu0 0.0
    %4669 = vmatprep.subr.mxu0 0.0
    %4670 = vmatpush1.xpose.msra.mxu0 0.0
    %4671 = vmatprep.subr.mxu0 0.0
    %4672 = vmatpush1.xpose.msra.mxu0 0.0
    %4673 = vmatprep.subr.mxu0 0.0
    %4674 = vmatpush1.xpose.msra.mxu0 0.0
    %4675 = vmatprep.subr.mxu0 0.0
    %4676 = vmatpush1.xpose.msra.mxu0 0.0
    %4677 = vmatprep.subr.mxu0 0.0
    %4678 = vmatpush1.xpose.msra.mxu0 0.0
    %4679 = vmatprep.subr.mxu0 0.0
    %4680 = vmatpush1.xpose.msra.mxu0 0.0
    %4681 = vmatprep.subr.mxu0 0.0
    %4682 = vmatpush1.xpose.msra.mxu0 0.0
    %4683 = vmatprep.subr.mxu0 0.0
    %4684 = vmatpush1.xpose.msra.mxu0 0.0
    %4685 = vmatprep.mubr.f32.mxu0 0.0
    %v4686 = vand.u32 %v4267, 4294901760
    %v4687 = vsub.f32 %v4267, %v4686
    %4688 = vmatmul.mubr.f32.gmra.mrb[0].mxu0 %v4687
    %v4689 = vpop.f32.mrb[0].mxu0
    %v4690 = vadd.f32 %v4560, %v4689
    %v4691 = vpop.f32.mrb[0].mxu0
    %4692 = vmatprep.mubr.f32.mxu0 0.0
    %v4693 = vand.u32 %v4269, 4294901760
    %v4694 = vsub.f32 %v4269, %v4693
    %4695 = vmatmul.mubr.f32.gmra.mrb[0].mxu0 %v4694
    %v4696 = vpop.f32.mrb[0].mxu0
    %v4697 = vadd.f32 %v4566, %v4696
    %v4698 = vpop.f32.mrb[0].mxu0
    %4699 = vmatprep.mubr.f32.mxu0 0.0
    %v4700 = vand.u32 %v4271, 4294901760
    %v4701 = vsub.f32 %v4271, %v4700
    %4702 = vmatmul.mubr.f32.gmra.mrb[0].mxu0 %v4701
    %v4703 = vpop.f32.mrb[0].mxu0
    %v4704 = vadd.f32 %v4572, %v4703
    %v4705 = vpop.f32.mrb[0].mxu0
    %4706 = vmatprep.mubr.f32.mxu0 0.0
    %v4707 = vand.u32 %v4273, 4294901760
    %v4708 = vsub.f32 %v4273, %v4707
    %4709 = vmatmul.mubr.f32.gmra.mrb[0].mxu0 %v4708
    %v4710 = vpop.f32.mrb[0].mxu0
    %v4711 = vadd.f32 %v4578, %v4710
    %v4712 = vpop.f32.mrb[0].mxu0
    %4713 = vmatprep.mubr.f32.mxu0 0.0
    %v4714 = vand.u32 %v4275, 4294901760
    %v4715 = vsub.f32 %v4275, %v4714
    %4716 = vmatmul.mubr.f32.gmra.mrb[0].mxu0 %v4715
    %v4717 = vpop.f32.mrb[0].mxu0
    %v4718 = vadd.f32 %v4584, %v4717
    %v4719 = vpop.f32.mrb[0].mxu0
    %4720 = vmatprep.mubr.f32.mxu0 0.0
    %v4721 = vand.u32 %v4277, 4294901760
    %v4722 = vsub.f32 %v4277, %v4721
    %4723 = vmatmul.mubr.f32.gmra.mrb[0].mxu0 %v4722
    %v4724 = vpop.f32.mrb[0].mxu0
    %v4725 = vadd.f32 %v4590, %v4724
    %v4726 = vpop.f32.mrb[0].mxu0
    %4727 = vmatprep.mubr.f32.mxu0 0.0
    %v4728 = vand.u32 %v4279, 4294901760
    %v4729 = vsub.f32 %v4279, %v4728
    %4730 = vmatmul.mubr.f32.gmra.mrb[0].mxu0 %v4729
    %v4731 = vpop.f32.mrb[0].mxu0
    %v4732 = vadd.f32 %v4596, %v4731
    %v4733 = vpop.f32.mrb[0].mxu0
    %4734 = vmatprep.mubr.f32.mxu0 0.0
    %v4735 = vand.u32 %v4281, 4294901760
    %v4736 = vsub.f32 %v4281, %v4735
    %4737 = vmatmul.mubr.f32.gmra.mrb[0].mxu0 %v4736
    %v4738 = vpop.f32.mrb[0].mxu0
    %v4739 = vadd.f32 %v4602, %v4738
    %v4740 = vpop.f32.mrb[0].mxu0
    %4741 = vdwg.mxu0
    %4742 = vmatprep.subr.mxu0 0.0
    %v4743 = vand.u32 %v4283, 4294901760
    %4744 = vmatpush1.xpose.msra.mxu0 %v4743
    %4745 = vmatprep.subr.mxu0 0.0
    %v4746 = vand.u32 %v4285, 4294901760
    %4747 = vmatpush1.xpose.msra.mxu0 %v4746
    %4748 = vmatprep.subr.mxu0 0.0
    %v4749 = vand.u32 %v4287, 4294901760
    %4750 = vmatpush1.xpose.msra.mxu0 %v4749
    %4751 = vmatprep.subr.mxu0 0.0
    %v4752 = vand.u32 %v4289, 4294901760
    %4753 = vmatpush1.xpose.msra.mxu0 %v4752
    %4754 = vmatprep.subr.mxu0 0.0
    %v4755 = vand.u32 %v4291, 4294901760
    %4756 = vmatpush1.xpose.msra.mxu0 %v4755
    %4757 = vmatprep.subr.mxu0 0.0
    %v4758 = vand.u32 %v4293, 4294901760
    %4759 = vmatpush1.xpose.msra.mxu0 %v4758
    %4760 = vmatprep.subr.mxu0 0.0
    %v4761 = vand.u32 %v4295, 4294901760
    %4762 = vmatpush1.xpose.msra.mxu0 %v4761
    %4763 = vmatprep.subr.mxu0 0.0
    %v4764 = vand.u32 %v4297, 4294901760
    %4765 = vmatpush1.xpose.msra.mxu0 %v4764
    %4766 = vmatprep.subr.mxu0 0.0
    %4767 = vmatpush1.xpose.msra.mxu0 0.0
    %4768 = vmatprep.subr.mxu0 0.0
    %4769 = vmatpush1.xpose.msra.mxu0 0.0
    %4770 = vmatprep.subr.mxu0 0.0
    %4771 = vmatpush1.xpose.msra.mxu0 0.0
    %4772 = vmatprep.subr.mxu0 0.0
    %4773 = vmatpush1.xpose.msra.mxu0 0.0
    %4774 = vmatprep.subr.mxu0 0.0
    %4775 = vmatpush1.xpose.msra.mxu0 0.0
    %4776 = vmatprep.subr.mxu0 0.0
    %4777 = vmatpush1.xpose.msra.mxu0 0.0
    %4778 = vmatprep.subr.mxu0 0.0
    %4779 = vmatpush1.xpose.msra.mxu0 0.0
    %4780 = vmatprep.subr.mxu0 0.0
    %4781 = vmatpush1.xpose.msra.mxu0 0.0
    %4782 = vmatprep.subr.mxu0 0.0
    %4783 = vmatpush1.xpose.msra.mxu0 0.0
    %4784 = vmatprep.subr.mxu0 0.0
    %4785 = vmatpush1.xpose.msra.mxu0 0.0
    %4786 = vmatprep.subr.mxu0 0.0
    %4787 = vmatpush1.xpose.msra.mxu0 0.0
    %4788 = vmatprep.subr.mxu0 0.0
    %4789 = vmatpush1.xpose.msra.mxu0 0.0
    %4790 = vmatprep.subr.mxu0 0.0
    %4791 = vmatpush1.xpose.msra.mxu0 0.0
    %4792 = vmatprep.subr.mxu0 0.0
    %4793 = vmatpush1.xpose.msra.mxu0 0.0
    %4794 = vmatprep.subr.mxu0 0.0
    %4795 = vmatpush1.xpose.msra.mxu0 0.0
    %4796 = vmatprep.subr.mxu0 0.0
    %4797 = vmatpush1.xpose.msra.mxu0 0.0
    %4798 = vmatprep.subr.mxu0 0.0
    %4799 = vmatpush1.xpose.msra.mxu0 0.0
    %4800 = vmatprep.subr.mxu0 0.0
    %4801 = vmatpush1.xpose.msra.mxu0 0.0
    %4802 = vmatprep.subr.mxu0 0.0
    %4803 = vmatpush1.xpose.msra.mxu0 0.0
    %4804 = vmatprep.subr.mxu0 0.0
    %4805 = vmatpush1.xpose.msra.mxu0 0.0
    %4806 = vmatprep.subr.mxu0 0.0
    %4807 = vmatpush1.xpose.msra.mxu0 0.0
    %4808 = vmatprep.subr.mxu0 0.0
    %4809 = vmatpush1.xpose.msra.mxu0 0.0
    %4810 = vmatprep.subr.mxu0 0.0
    %4811 = vmatpush1.xpose.msra.mxu0 0.0
    %4812 = vmatprep.subr.mxu0 0.0
    %4813 = vmatpush1.xpose.msra.mxu0 0.0
    %4814 = vmatprep.mubr.f32.mxu0 0.0
    %v4815 = vand.u32 %v4267, 4294901760
    %v4816 = vsub.f32 %v4267, %v4815
    %v4817 = vand.u32 %v4816, 4294901760
    %4818 = vmatmul.mubr.f32.gmra.mrb[0].mxu0 %v4817
    %v4819 = vpop.f32.mrb[0].mxu0
    %v4820 = vadd.f32 %v4690, %v4819
    %v4821 = vpop.f32.mrb[0].mxu0
    %4822 = vmatprep.mubr.f32.mxu0 0.0
    %v4823 = vand.u32 %v4269, 4294901760
    %v4824 = vsub.f32 %v4269, %v4823
    %v4825 = vand.u32 %v4824, 4294901760
    %4826 = vmatmul.mubr.f32.gmra.mrb[0].mxu0 %v4825
    %v4827 = vpop.f32.mrb[0].mxu0
    %v4828 = vadd.f32 %v4697, %v4827
    %v4829 = vpop.f32.mrb[0].mxu0
    %4830 = vmatprep.mubr.f32.mxu0 0.0
    %v4831 = vand.u32 %v4271, 4294901760
    %v4832 = vsub.f32 %v4271, %v4831
    %v4833 = vand.u32 %v4832, 4294901760
    %4834 = vmatmul.mubr.f32.gmra.mrb[0].mxu0 %v4833
    %v4835 = vpop.f32.mrb[0].mxu0
    %v4836 = vadd.f32 %v4704, %v4835
    %v4837 = vpop.f32.mrb[0].mxu0
    %4838 = vmatprep.mubr.f32.mxu0 0.0
    %v4839 = vand.u32 %v4273, 4294901760
    %v4840 = vsub.f32 %v4273, %v4839
    %v4841 = vand.u32 %v4840, 4294901760
    %4842 = vmatmul.mubr.f32.gmra.mrb[0].mxu0 %v4841
    %v4843 = vpop.f32.mrb[0].mxu0
    %v4844 = vadd.f32 %v4711, %v4843
    %v4845 = vpop.f32.mrb[0].mxu0
    %4846 = vmatprep.mubr.f32.mxu0 0.0
    %v4847 = vand.u32 %v4275, 4294901760
    %v4848 = vsub.f32 %v4275, %v4847
    %v4849 = vand.u32 %v4848, 4294901760
    %4850 = vmatmul.mubr.f32.gmra.mrb[0].mxu0 %v4849
    %v4851 = vpop.f32.mrb[0].mxu0
    %v4852 = vadd.f32 %v4718, %v4851
    %v4853 = vpop.f32.mrb[0].mxu0
    %4854 = vmatprep.mubr.f32.mxu0 0.0
    %v4855 = vand.u32 %v4277, 4294901760
    %v4856 = vsub.f32 %v4277, %v4855
    %v4857 = vand.u32 %v4856, 4294901760
    %4858 = vmatmul.mubr.f32.gmra.mrb[0].mxu0 %v4857
    %v4859 = vpop.f32.mrb[0].mxu0
    %v4860 = vadd.f32 %v4725, %v4859
    %v4861 = vpop.f32.mrb[0].mxu0
    %4862 = vmatprep.mubr.f32.mxu0 0.0
    %v4863 = vand.u32 %v4279, 4294901760
    %v4864 = vsub.f32 %v4279, %v4863
    %v4865 = vand.u32 %v4864, 4294901760
    %4866 = vmatmul.mubr.f32.gmra.mrb[0].mxu0 %v4865
    %v4867 = vpop.f32.mrb[0].mxu0
    %v4868 = vadd.f32 %v4732, %v4867
    %v4869 = vpop.f32.mrb[0].mxu0
    %4870 = vmatprep.mubr.f32.mxu0 0.0
    %v4871 = vand.u32 %v4281, 4294901760
    %v4872 = vsub.f32 %v4281, %v4871
    %v4873 = vand.u32 %v4872, 4294901760
    %4874 = vmatmul.mubr.f32.gmra.mrb[0].mxu0 %v4873
    %v4875 = vpop.f32.mrb[0].mxu0
    %v4876 = vadd.f32 %v4739, %v4875
    %v4877 = vpop.f32.mrb[0].mxu0
    %4878 = vdwg.mxu0
    %4879 = vmatprep.subr.mxu0 0.0
    %v4880 = vand.u32 %v4283, 4294901760
    %v4881 = vsub.f32 %v4283, %v4880
    %v4882 = vand.u32 %v4881, 4294901760
    %4883 = vmatpush1.xpose.msra.mxu0 %v4882
    %4884 = vmatprep.subr.mxu0 0.0
    %v4885 = vand.u32 %v4285, 4294901760
    %v4886 = vsub.f32 %v4285, %v4885
    %v4887 = vand.u32 %v4886, 4294901760
    %4888 = vmatpush1.xpose.msra.mxu0 %v4887
    %4889 = vmatprep.subr.mxu0 0.0
    %v4890 = vand.u32 %v4287, 4294901760
    %v4891 = vsub.f32 %v4287, %v4890
    %v4892 = vand.u32 %v4891, 4294901760
    %4893 = vmatpush1.xpose.msra.mxu0 %v4892
    %4894 = vmatprep.subr.mxu0 0.0
    %v4895 = vand.u32 %v4289, 4294901760
    %v4896 = vsub.f32 %v4289, %v4895
    %v4897 = vand.u32 %v4896, 4294901760
    %4898 = vmatpush1.xpose.msra.mxu0 %v4897
    %4899 = vmatprep.subr.mxu0 0.0
    %v4900 = vand.u32 %v4291, 4294901760
    %v4901 = vsub.f32 %v4291, %v4900
    %v4902 = vand.u32 %v4901, 4294901760
    %4903 = vmatpush1.xpose.msra.mxu0 %v4902
    %4904 = vmatprep.subr.mxu0 0.0
    %v4905 = vand.u32 %v4293, 4294901760
    %v4906 = vsub.f32 %v4293, %v4905
    %v4907 = vand.u32 %v4906, 4294901760
    %4908 = vmatpush1.xpose.msra.mxu0 %v4907
    %4909 = vmatprep.subr.mxu0 0.0
    %v4910 = vand.u32 %v4295, 4294901760
    %v4911 = vsub.f32 %v4295, %v4910
    %v4912 = vand.u32 %v4911, 4294901760
    %4913 = vmatpush1.xpose.msra.mxu0 %v4912
    %4914 = vmatprep.subr.mxu0 0.0
    %v4915 = vand.u32 %v4297, 4294901760
    %v4916 = vsub.f32 %v4297, %v4915
    %v4917 = vand.u32 %v4916, 4294901760
    %4918 = vmatpush1.xpose.msra.mxu0 %v4917
    %4919 = vmatprep.subr.mxu0 0.0
    %4920 = vmatpush1.xpose.msra.mxu0 0.0
    %4921 = vmatprep.subr.mxu0 0.0
    %4922 = vmatpush1.xpose.msra.mxu0 0.0
    %4923 = vmatprep.subr.mxu0 0.0
    %4924 = vmatpush1.xpose.msra.mxu0 0.0
    %4925 = vmatprep.subr.mxu0 0.0
    %4926 = vmatpush1.xpose.msra.mxu0 0.0
    %4927 = vmatprep.subr.mxu0 0.0
    %4928 = vmatpush1.xpose.msra.mxu0 0.0
    %4929 = vmatprep.subr.mxu0 0.0
    %4930 = vmatpush1.xpose.msra.mxu0 0.0
    %4931 = vmatprep.subr.mxu0 0.0
    %4932 = vmatpush1.xpose.msra.mxu0 0.0
    %4933 = vmatprep.subr.mxu0 0.0
    %4934 = vmatpush1.xpose.msra.mxu0 0.0
    %4935 = vmatprep.subr.mxu0 0.0
    %4936 = vmatpush1.xpose.msra.mxu0 0.0
    %4937 = vmatprep.subr.mxu0 0.0
    %4938 = vmatpush1.xpose.msra.mxu0 0.0
    %4939 = vmatprep.subr.mxu0 0.0
    %4940 = vmatpush1.xpose.msra.mxu0 0.0
    %4941 = vmatprep.subr.mxu0 0.0
    %4942 = vmatpush1.xpose.msra.mxu0 0.0
    %4943 = vmatprep.subr.mxu0 0.0
    %4944 = vmatpush1.xpose.msra.mxu0 0.0
    %4945 = vmatprep.subr.mxu0 0.0
    %4946 = vmatpush1.xpose.msra.mxu0 0.0
    %4947 = vmatprep.subr.mxu0 0.0
    %4948 = vmatpush1.xpose.msra.mxu0 0.0
    %4949 = vmatprep.subr.mxu0 0.0
    %4950 = vmatpush1.xpose.msra.mxu0 0.0
    %4951 = vmatprep.subr.mxu0 0.0
    %4952 = vmatpush1.xpose.msra.mxu0 0.0
    %4953 = vmatprep.subr.mxu0 0.0
    %4954 = vmatpush1.xpose.msra.mxu0 0.0
    %4955 = vmatprep.subr.mxu0 0.0
    %4956 = vmatpush1.xpose.msra.mxu0 0.0
    %4957 = vmatprep.subr.mxu0 0.0
    %4958 = vmatpush1.xpose.msra.mxu0 0.0
    %4959 = vmatprep.subr.mxu0 0.0
    %4960 = vmatpush1.xpose.msra.mxu0 0.0
    %4961 = vmatprep.subr.mxu0 0.0
    %4962 = vmatpush1.xpose.msra.mxu0 0.0
    %4963 = vmatprep.subr.mxu0 0.0
    %4964 = vmatpush1.xpose.msra.mxu0 0.0
    %4965 = vmatprep.subr.mxu0 0.0
    %4966 = vmatpush1.xpose.msra.mxu0 0.0
    %4967 = vmatprep.mubr.f32.mxu0 0.0
    %v4968 = vand.u32 %v4267, 4294901760
    %4969 = vmatmul.mubr.f32.gmra.mrb[0].mxu0 %v4968
    %v4970 = vpop.f32.mrb[0].mxu0
    %v4971 = vadd.f32 %v4820, %v4970
    %v4972 = vpop.f32.mrb[0].mxu0
    %4973 = vmatprep.mubr.f32.mxu0 0.0
    %v4974 = vand.u32 %v4269, 4294901760
    %4975 = vmatmul.mubr.f32.gmra.mrb[0].mxu0 %v4974
    %v4976 = vpop.f32.mrb[0].mxu0
    %v4977 = vadd.f32 %v4828, %v4976
    %v4978 = vpop.f32.mrb[0].mxu0
    %4979 = vmatprep.mubr.f32.mxu0 0.0
    %v4980 = vand.u32 %v4271, 4294901760
    %4981 = vmatmul.mubr.f32.gmra.mrb[0].mxu0 %v4980
    %v4982 = vpop.f32.mrb[0].mxu0
    %v4983 = vadd.f32 %v4836, %v4982
    %v4984 = vpop.f32.mrb[0].mxu0
    %4985 = vmatprep.mubr.f32.mxu0 0.0
    %v4986 = vand.u32 %v4273, 4294901760
    %4987 = vmatmul.mubr.f32.gmra.mrb[0].mxu0 %v4986
    %v4988 = vpop.f32.mrb[0].mxu0
    %v4989 = vadd.f32 %v4844, %v4988
    %v4990 = vpop.f32.mrb[0].mxu0
    %4991 = vmatprep.mubr.f32.mxu0 0.0
    %v4992 = vand.u32 %v4275, 4294901760
    %4993 = vmatmul.mubr.f32.gmra.mrb[0].mxu0 %v4992
    %v4994 = vpop.f32.mrb[0].mxu0
    %v4995 = vadd.f32 %v4852, %v4994
    %v4996 = vpop.f32.mrb[0].mxu0
    %4997 = vmatprep.mubr.f32.mxu0 0.0
    %v4998 = vand.u32 %v4277, 4294901760
    %4999 = vmatmul.mubr.f32.gmra.mrb[0].mxu0 %v4998
    %v5000 = vpop.f32.mrb[0].mxu0
    %v5001 = vadd.f32 %v4860, %v5000
    %v5002 = vpop.f32.mrb[0].mxu0
    %5003 = vmatprep.mubr.f32.mxu0 0.0
    %v5004 = vand.u32 %v4279, 4294901760
    %5005 = vmatmul.mubr.f32.gmra.mrb[0].mxu0 %v5004
    %v5006 = vpop.f32.mrb[0].mxu0
    %v5007 = vadd.f32 %v4868, %v5006
    %v5008 = vpop.f32.mrb[0].mxu0
    %5009 = vmatprep.mubr.f32.mxu0 0.0
    %v5010 = vand.u32 %v4281, 4294901760
    %5011 = vmatmul.mubr.f32.gmra.mrb[0].mxu0 %v5010
    %v5012 = vpop.f32.mrb[0].mxu0
    %v5013 = vadd.f32 %v4876, %v5012
    %v5014 = vpop.f32.mrb[0].mxu0
    %5015 = vdwg.mxu0
    %5016 = vmatprep.subr.mxu0 0.0
    %v5017 = vand.u32 %v4283, 4294901760
    %5018 = vmatpush1.xpose.msra.mxu0 %v5017
    %5019 = vmatprep.subr.mxu0 0.0
    %v5020 = vand.u32 %v4285, 4294901760
    %5021 = vmatpush1.xpose.msra.mxu0 %v5020
    %5022 = vmatprep.subr.mxu0 0.0
    %v5023 = vand.u32 %v4287, 4294901760
    %5024 = vmatpush1.xpose.msra.mxu0 %v5023
    %5025 = vmatprep.subr.mxu0 0.0
    %v5026 = vand.u32 %v4289, 4294901760
    %5027 = vmatpush1.xpose.msra.mxu0 %v5026
    %5028 = vmatprep.subr.mxu0 0.0
    %v5029 = vand.u32 %v4291, 4294901760
    %5030 = vmatpush1.xpose.msra.mxu0 %v5029
    %5031 = vmatprep.subr.mxu0 0.0
    %v5032 = vand.u32 %v4293, 4294901760
    %5033 = vmatpush1.xpose.msra.mxu0 %v5032
    %5034 = vmatprep.subr.mxu0 0.0
    %v5035 = vand.u32 %v4295, 4294901760
    %5036 = vmatpush1.xpose.msra.mxu0 %v5035
    %5037 = vmatprep.subr.mxu0 0.0
    %v5038 = vand.u32 %v4297, 4294901760
    %5039 = vmatpush1.xpose.msra.mxu0 %v5038
    %5040 = vmatprep.subr.mxu0 0.0
    %5041 = vmatpush1.xpose.msra.mxu0 0.0
    %5042 = vmatprep.subr.mxu0 0.0
    %5043 = vmatpush1.xpose.msra.mxu0 0.0
    %5044 = vmatprep.subr.mxu0 0.0
    %5045 = vmatpush1.xpose.msra.mxu0 0.0
    %5046 = vmatprep.subr.mxu0 0.0
    %5047 = vmatpush1.xpose.msra.mxu0 0.0
    %5048 = vmatprep.subr.mxu0 0.0
    %5049 = vmatpush1.xpose.msra.mxu0 0.0
    %5050 = vmatprep.subr.mxu0 0.0
    %5051 = vmatpush1.xpose.msra.mxu0 0.0
    %5052 = vmatprep.subr.mxu0 0.0
    %5053 = vmatpush1.xpose.msra.mxu0 0.0
    %5054 = vmatprep.subr.mxu0 0.0
    %5055 = vmatpush1.xpose.msra.mxu0 0.0
    %5056 = vmatprep.subr.mxu0 0.0
    %5057 = vmatpush1.xpose.msra.mxu0 0.0
    %5058 = vmatprep.subr.mxu0 0.0
    %5059 = vmatpush1.xpose.msra.mxu0 0.0
    %5060 = vmatprep.subr.mxu0 0.0
    %5061 = vmatpush1.xpose.msra.mxu0 0.0
    %5062 = vmatprep.subr.mxu0 0.0
    %5063 = vmatpush1.xpose.msra.mxu0 0.0
    %5064 = vmatprep.subr.mxu0 0.0
    %5065 = vmatpush1.xpose.msra.mxu0 0.0
    %5066 = vmatprep.subr.mxu0 0.0
    %5067 = vmatpush1.xpose.msra.mxu0 0.0
    %5068 = vmatprep.subr.mxu0 0.0
    %5069 = vmatpush1.xpose.msra.mxu0 0.0
    %5070 = vmatprep.subr.mxu0 0.0
    %5071 = vmatpush1.xpose.msra.mxu0 0.0
    %5072 = vmatprep.subr.mxu0 0.0
    %5073 = vmatpush1.xpose.msra.mxu0 0.0
    %5074 = vmatprep.subr.mxu0 0.0
    %5075 = vmatpush1.xpose.msra.mxu0 0.0
    %5076 = vmatprep.subr.mxu0 0.0
    %5077 = vmatpush1.xpose.msra.mxu0 0.0
    %5078 = vmatprep.subr.mxu0 0.0
    %5079 = vmatpush1.xpose.msra.mxu0 0.0
    %5080 = vmatprep.subr.mxu0 0.0
    %5081 = vmatpush1.xpose.msra.mxu0 0.0
    %5082 = vmatprep.subr.mxu0 0.0
    %5083 = vmatpush1.xpose.msra.mxu0 0.0
    %5084 = vmatprep.subr.mxu0 0.0
    %5085 = vmatpush1.xpose.msra.mxu0 0.0
    %5086 = vmatprep.subr.mxu0 0.0
    %5087 = vmatpush1.xpose.msra.mxu0 0.0
    %5088 = vmatprep.mubr.f32.mxu0 0.0
    %v5089 = vand.u32 %v4267, 4294901760
    %5090 = vmatmul.mubr.f32.gmra.mrb[0].mxu0 %v5089
    %v5091 = vpop.f32.mrb[0].mxu0
    %v5092 = vadd.f32 %v4971, %v5091
    %v5093 = vpop.f32.mrb[0].mxu0
    %5094 = vmatprep.mubr.f32.mxu0 0.0
    %v5095 = vand.u32 %v4269, 4294901760
    %5096 = vmatmul.mubr.f32.gmra.mrb[0].mxu0 %v5095
    %v5097 = vpop.f32.mrb[0].mxu0
    %v5098 = vadd.f32 %v4977, %v5097
    %v5099 = vpop.f32.mrb[0].mxu0
    %5100 = vmatprep.mubr.f32.mxu0 0.0
    %v5101 = vand.u32 %v4271, 4294901760
    %5102 = vmatmul.mubr.f32.gmra.mrb[0].mxu0 %v5101
    %v5103 = vpop.f32.mrb[0].mxu0
    %v5104 = vadd.f32 %v4983, %v5103
    %v5105 = vpop.f32.mrb[0].mxu0
    %5106 = vmatprep.mubr.f32.mxu0 0.0
    %v5107 = vand.u32 %v4273, 4294901760
    %5108 = vmatmul.mubr.f32.gmra.mrb[0].mxu0 %v5107
    %v5109 = vpop.f32.mrb[0].mxu0
    %v5110 = vadd.f32 %v4989, %v5109
    %v5111 = vpop.f32.mrb[0].mxu0
    %5112 = vmatprep.mubr.f32.mxu0 0.0
    %v5113 = vand.u32 %v4275, 4294901760
    %5114 = vmatmul.mubr.f32.gmra.mrb[0].mxu0 %v5113
    %v5115 = vpop.f32.mrb[0].mxu0
    %v5116 = vadd.f32 %v4995, %v5115
    %v5117 = vpop.f32.mrb[0].mxu0
    %5118 = vmatprep.mubr.f32.mxu0 0.0
    %v5119 = vand.u32 %v4277, 4294901760
    %5120 = vmatmul.mubr.f32.gmra.mrb[0].mxu0 %v5119
    %v5121 = vpop.f32.mrb[0].mxu0
    %v5122 = vadd.f32 %v5001, %v5121
    %v5123 = vpop.f32.mrb[0].mxu0
    %5124 = vmatprep.mubr.f32.mxu0 0.0
    %v5125 = vand.u32 %v4279, 4294901760
    %5126 = vmatmul.mubr.f32.gmra.mrb[0].mxu0 %v5125
    %v5127 = vpop.f32.mrb[0].mxu0
    %v5128 = vadd.f32 %v5007, %v5127
    %v5129 = vpop.f32.mrb[0].mxu0
    %5130 = vmatprep.mubr.f32.mxu0 0.0
    %v5131 = vand.u32 %v4281, 4294901760
    %5132 = vmatmul.mubr.f32.gmra.mrb[0].mxu0 %v5131
    %v5133 = vpop.f32.mrb[0].mxu0
    %v5134 = vadd.f32 %v5013, %v5133
    %v5135 = vpop.f32.mrb[0].mxu0
    %5136 = vdwg.mxu0
    %v5137 = vsel %vm1542, %v5092, -inf
    %5138 = vmax.xlane.f32.xlu0 %v5137
    %v5139 = vpop.xlane.xlu0 %5138
    %v5140 = vsel %vm1542, %v5098, -inf
    %5141 = vmax.xlane.f32.xlu0 %v5140
    %v5142 = vpop.xlane.xlu0 %5141
    %v5143 = vsel %vm1542, %v5104, -inf
    %5144 = vmax.xlane.f32.xlu0 %v5143
    %v5145 = vpop.xlane.xlu0 %5144
    %v5146 = vsel %vm1542, %v5110, -inf
    %5147 = vmax.xlane.f32.xlu0 %v5146
    %v5148 = vpop.xlane.xlu0 %5147
    %v5149 = vsel %vm1542, %v5116, -inf
    %5150 = vmax.xlane.f32.xlu0 %v5149
    %v5151 = vpop.xlane.xlu0 %5150
    %v5152 = vsel %vm1542, %v5122, -inf
    %5153 = vmax.xlane.f32.xlu0 %v5152
    %v5154 = vpop.xlane.xlu0 %5153
    %v5155 = vsel %vm1542, %v5128, -inf
    %5156 = vmax.xlane.f32.xlu0 %v5155
    %v5157 = vpop.xlane.xlu0 %5156
    %v5158 = vsel %vm1542, %v5134, -inf
    %5159 = vmax.xlane.f32.xlu0 %v5158
    %v5160 = vpop.xlane.xlu0 %5159
    %v5161 = vsub.f32 %v5092, %v5139
    %v5162 = vsub.f32 %v5098, %v5142
    %v5163 = vsub.f32 %v5104, %v5145
    %v5164 = vsub.f32 %v5110, %v5148
    %v5165 = vsub.f32 %v5116, %v5151
    %v5166 = vsub.f32 %v5122, %v5154
    %v5167 = vsub.f32 %v5128, %v5157
    %v5168 = vsub.f32 %v5134, %v5160
    %v5169 = vmul.f32 %v5161, 1.442695
    %v5170 = vpow.pop %v5169
    %v5171 = vmul.f32 %v5162, 1.442695
    %v5172 = vpow.pop %v5171
    %v5173 = vmul.f32 %v5163, 1.442695
    %v5174 = vpow.pop %v5173
    %v5175 = vmul.f32 %v5164, 1.442695
    %v5176 = vpow.pop %v5175
    %v5177 = vmul.f32 %v5165, 1.442695
    %v5178 = vpow.pop %v5177
    %v5179 = vmul.f32 %v5166, 1.442695
    %v5180 = vpow.pop %v5179
    %v5181 = vmul.f32 %v5167, 1.442695
    %v5182 = vpow.pop %v5181
    %v5183 = vmul.f32 %v5168, 1.442695
    %v5184 = vpow.pop %v5183
    %v5185 = vsel %vm1542, %v5170, 0.0
    %5186 = vadd.xlane.f32.xlu0 %v5185
    %v5187 = vpop.xlane.xlu0 %5186
    %v5188 = vsel %vm1542, %v5172, 0.0
    %5189 = vadd.xlane.f32.xlu0 %v5188
    %v5190 = vpop.xlane.xlu0 %5189
    %v5191 = vsel %vm1542, %v5174, 0.0
    %5192 = vadd.xlane.f32.xlu0 %v5191
    %v5193 = vpop.xlane.xlu0 %5192
    %v5194 = vsel %vm1542, %v5176, 0.0
    %5195 = vadd.xlane.f32.xlu0 %v5194
    %v5196 = vpop.xlane.xlu0 %5195
    %v5197 = vsel %vm1542, %v5178, 0.0
    %5198 = vadd.xlane.f32.xlu0 %v5197
    %v5199 = vpop.xlane.xlu0 %5198
    %v5200 = vsel %vm1542, %v5180, 0.0
    %5201 = vadd.xlane.f32.xlu0 %v5200
    %v5202 = vpop.xlane.xlu0 %5201
    %v5203 = vsel %vm1542, %v5182, 0.0
    %5204 = vadd.xlane.f32.xlu0 %v5203
    %v5205 = vpop.xlane.xlu0 %5204
    %v5206 = vsel %vm1542, %v5184, 0.0
    %5207 = vadd.xlane.f32.xlu0 %v5206
    %v5208 = vpop.xlane.xlu0 %5207
    %v5209 = vrcp.pop %v5187
    %v5210 = vrcp.pop %v5190
    %v5211 = vrcp.pop %v5193
    %v5212 = vrcp.pop %v5196
    %v5213 = vrcp.pop %v5199
    %v5214 = vrcp.pop %v5202
    %v5215 = vrcp.pop %v5205
    %v5216 = vrcp.pop %v5208
    %v5217 = vmul.f32 %v5170, %v5209
    %v5218 = vmul.f32 %v5172, %v5210
    %v5219 = vmul.f32 %v5174, %v5211
    %v5220 = vmul.f32 %v5176, %v5212
    %v5221 = vmul.f32 %v5178, %v5213
    %v5222 = vmul.f32 %v5180, %v5214
    %v5223 = vmul.f32 %v5182, %v5215
    %v5224 = vmul.f32 %v5184, %v5216
    %5225 = vrot.lane.b32.xlu0 %v4217, 96
    %v5226 = vpop.permute.xlu0 %5225
    %5227 = vrot.lane.b32.xlu0 %v4223, 96
    %v5228 = vpop.permute.xlu0 %5227
    %5229 = vrot.lane.b32.xlu0 %v4243, 96
    %v5230 = vpop.permute.xlu0 %5229
    %5231 = vrot.lane.b32.xlu0 %v4245, 96
    %v5232 = vpop.permute.xlu0 %5231
    %5233 = vrot.lane.b32.xlu0 %v4247, 96
    %v5234 = vpop.permute.xlu0 %5233
    %5235 = vrot.lane.b32.xlu0 %v4249, 96
    %v5236 = vpop.permute.xlu0 %5235
    %5237 = vrot.lane.b32.xlu0 %v4251, 96
    %v5238 = vpop.permute.xlu0 %5237
    %5239 = vrot.lane.b32.xlu0 %v4253, 96
    %v5240 = vpop.permute.xlu0 %5239
    %v5250 = vsel %vm1542, %v5217, 0
    %v5253 = vsel %vm1542, %v5218, 0
    %v5256 = vsel %vm1542, %v5219, 0
    %v5259 = vsel %vm1542, %v5220, 0
    %v5262 = vsel %vm1542, %v5221, 0
    %v5265 = vsel %vm1542, %v5222, 0
    %v5268 = vsel %vm1542, %v5223, 0
    %v5271 = vsel %vm1542, %v5224, 0
    %5273 = vmatprep.subr.mxu0 0.0
    %v5274 = vand.u32 %v5226, 4294901760
    %5275 = vmatpush1.msra.mxu0 %v5274
    %5276 = vmatprep.subr.mxu0 0.0
    %v5277 = vand.u32 %v5228, 4294901760
    %5278 = vmatpush1.msra.mxu0 %v5277
    %5279 = vmatprep.subr.mxu0 0.0
    %v5280 = vand.u32 %v5230, 4294901760
    %5281 = vmatpush1.msra.mxu0 %v5280
    %5282 = vmatprep.subr.mxu0 0.0
    %v5283 = vand.u32 %v5232, 4294901760
    %5284 = vmatpush1.msra.mxu0 %v5283
    %5285 = vmatprep.subr.mxu0 0.0
    %v5286 = vand.u32 %v5234, 4294901760
    %5287 = vmatpush1.msra.mxu0 %v5286
    %5288 = vmatprep.subr.mxu0 0.0
    %v5289 = vand.u32 %v5236, 4294901760
    %5290 = vmatpush1.msra.mxu0 %v5289
    %5291 = vmatprep.subr.mxu0 0.0
    %v5292 = vand.u32 %v5238, 4294901760
    %5293 = vmatpush1.msra.mxu0 %v5292
    %5294 = vmatprep.subr.mxu0 0.0
    %v5295 = vand.u32 %v5240, 4294901760
    %5296 = vmatpush1.msra.mxu0 %v5295
    %5297 = vmatprep.subr.mxu0 0.0
    %5298 = vmatpush1.msra.mxu0 0.0
    %5299 = vmatprep.subr.mxu0 0.0
    %5300 = vmatpush1.msra.mxu0 0.0
    %5301 = vmatprep.subr.mxu0 0.0
    %5302 = vmatpush1.msra.mxu0 0.0
    %5303 = vmatprep.subr.mxu0 0.0
    %5304 = vmatpush1.msra.mxu0 0.0
    %5305 = vmatprep.subr.mxu0 0.0
    %5306 = vmatpush1.msra.mxu0 0.0
    %5307 = vmatprep.subr.mxu0 0.0
    %5308 = vmatpush1.msra.mxu0 0.0
    %5309 = vmatprep.subr.mxu0 0.0
    %5310 = vmatpush1.msra.mxu0 0.0
    %5311 = vmatprep.subr.mxu0 0.0
    %5312 = vmatpush1.msra.mxu0 0.0
    %5313 = vmatprep.subr.mxu0 0.0
    %5314 = vmatpush1.msra.mxu0 0.0
    %5315 = vmatprep.subr.mxu0 0.0
    %5316 = vmatpush1.msra.mxu0 0.0
    %5317 = vmatprep.subr.mxu0 0.0
    %5318 = vmatpush1.msra.mxu0 0.0
    %5319 = vmatprep.subr.mxu0 0.0
    %5320 = vmatpush1.msra.mxu0 0.0
    %5321 = vmatprep.subr.mxu0 0.0
    %5322 = vmatpush1.msra.mxu0 0.0
    %5323 = vmatprep.subr.mxu0 0.0
    %5324 = vmatpush1.msra.mxu0 0.0
    %5325 = vmatprep.subr.mxu0 0.0
    %5326 = vmatpush1.msra.mxu0 0.0
    %5327 = vmatprep.subr.mxu0 0.0
    %5328 = vmatpush1.msra.mxu0 0.0
    %5329 = vmatprep.subr.mxu0 0.0
    %5330 = vmatpush1.msra.mxu0 0.0
    %5331 = vmatprep.subr.mxu0 0.0
    %5332 = vmatpush1.msra.mxu0 0.0
    %5333 = vmatprep.subr.mxu0 0.0
    %5334 = vmatpush1.msra.mxu0 0.0
    %5335 = vmatprep.subr.mxu0 0.0
    %5336 = vmatpush1.msra.mxu0 0.0
    %5337 = vmatprep.subr.mxu0 0.0
    %5338 = vmatpush1.msra.mxu0 0.0
    %5339 = vmatprep.subr.mxu0 0.0
    %5340 = vmatpush1.msra.mxu0 0.0
    %5341 = vmatprep.subr.mxu0 0.0
    %5342 = vmatpush1.msra.mxu0 0.0
    %5343 = vmatprep.subr.mxu0 0.0
    %5344 = vmatpush1.msra.mxu0 0.0
    %5345 = vmatprep.mubr.f32.mxu0 0.0
    %v5346 = vand.u32 %v5250, 4294901760
    %v5347 = vsub.f32 %v5250, %v5346
    %v5348 = vand.u32 %v5347, 4294901760
    %v5349 = vsub.f32 %v5347, %v5348
    %v5350 = vand.u32 %v5349, 4294901760
    %5351 = vmatmul.mubr.f32.gmra.mrb[0].mxu0 %v5350
    %v5352 = vpop.f32.mrb[0].mxu0
    %v5353 = vadd.f32 0.0, %v5352
    %v5354 = vpop.f32.mrb[0].mxu0
    %5355 = vmatprep.mubr.f32.mxu0 0.0
    %v5356 = vand.u32 %v5253, 4294901760
    %v5357 = vsub.f32 %v5253, %v5356
    %v5358 = vand.u32 %v5357, 4294901760
    %v5359 = vsub.f32 %v5357, %v5358
    %v5360 = vand.u32 %v5359, 4294901760
    %5361 = vmatmul.mubr.f32.gmra.mrb[0].mxu0 %v5360
    %v5362 = vpop.f32.mrb[0].mxu0
    %v5363 = vadd.f32 0.0, %v5362
    %v5364 = vpop.f32.mrb[0].mxu0
    %5365 = vmatprep.mubr.f32.mxu0 0.0
    %v5366 = vand.u32 %v5256, 4294901760
    %v5367 = vsub.f32 %v5256, %v5366
    %v5368 = vand.u32 %v5367, 4294901760
    %v5369 = vsub.f32 %v5367, %v5368
    %v5370 = vand.u32 %v5369, 4294901760
    %5371 = vmatmul.mubr.f32.gmra.mrb[0].mxu0 %v5370
    %v5372 = vpop.f32.mrb[0].mxu0
    %v5373 = vadd.f32 0.0, %v5372
    %v5374 = vpop.f32.mrb[0].mxu0
    %5375 = vmatprep.mubr.f32.mxu0 0.0
    %v5376 = vand.u32 %v5259, 4294901760
    %v5377 = vsub.f32 %v5259, %v5376
    %v5378 = vand.u32 %v5377, 4294901760
    %v5379 = vsub.f32 %v5377, %v5378
    %v5380 = vand.u32 %v5379, 4294901760
    %5381 = vmatmul.mubr.f32.gmra.mrb[0].mxu0 %v5380
    %v5382 = vpop.f32.mrb[0].mxu0
    %v5383 = vadd.f32 0.0, %v5382
    %v5384 = vpop.f32.mrb[0].mxu0
    %5385 = vmatprep.mubr.f32.mxu0 0.0
    %v5386 = vand.u32 %v5262, 4294901760
    %v5387 = vsub.f32 %v5262, %v5386
    %v5388 = vand.u32 %v5387, 4294901760
    %v5389 = vsub.f32 %v5387, %v5388
    %v5390 = vand.u32 %v5389, 4294901760
    %5391 = vmatmul.mubr.f32.gmra.mrb[0].mxu0 %v5390
    %v5392 = vpop.f32.mrb[0].mxu0
    %v5393 = vadd.f32 0.0, %v5392
    %v5394 = vpop.f32.mrb[0].mxu0
    %5395 = vmatprep.mubr.f32.mxu0 0.0
    %v5396 = vand.u32 %v5265, 4294901760
    %v5397 = vsub.f32 %v5265, %v5396
    %v5398 = vand.u32 %v5397, 4294901760
    %v5399 = vsub.f32 %v5397, %v5398
    %v5400 = vand.u32 %v5399, 4294901760
    %5401 = vmatmul.mubr.f32.gmra.mrb[0].mxu0 %v5400
    %v5402 = vpop.f32.mrb[0].mxu0
    %v5403 = vadd.f32 0.0, %v5402
    %v5404 = vpop.f32.mrb[0].mxu0
    %5405 = vmatprep.mubr.f32.mxu0 0.0
    %v5406 = vand.u32 %v5268, 4294901760
    %v5407 = vsub.f32 %v5268, %v5406
    %v5408 = vand.u32 %v5407, 4294901760
    %v5409 = vsub.f32 %v5407, %v5408
    %v5410 = vand.u32 %v5409, 4294901760
    %5411 = vmatmul.mubr.f32.gmra.mrb[0].mxu0 %v5410
    %v5412 = vpop.f32.mrb[0].mxu0
    %v5413 = vadd.f32 0.0, %v5412
    %v5414 = vpop.f32.mrb[0].mxu0
    %5415 = vmatprep.mubr.f32.mxu0 0.0
    %v5416 = vand.u32 %v5271, 4294901760
    %v5417 = vsub.f32 %v5271, %v5416
    %v5418 = vand.u32 %v5417, 4294901760
    %v5419 = vsub.f32 %v5417, %v5418
    %v5420 = vand.u32 %v5419, 4294901760
    %5421 = vmatmul.mubr.f32.gmra.mrb[0].mxu0 %v5420
    %v5422 = vpop.f32.mrb[0].mxu0
    %v5423 = vadd.f32 0.0, %v5422
    %v5424 = vpop.f32.mrb[0].mxu0
    %5425 = vdwg.mxu0
    %5426 = vmatprep.subr.mxu0 0.0
    %v5427 = vand.u32 %v5226, 4294901760
    %v5428 = vsub.f32 %v5226, %v5427
    %v5429 = vand.u32 %v5428, 4294901760
    %v5430 = vsub.f32 %v5428, %v5429
    %v5431 = vand.u32 %v5430, 4294901760
    %5432 = vmatpush1.msra.mxu0 %v5431
    %5433 = vmatprep.subr.mxu0 0.0
    %v5434 = vand.u32 %v5228, 4294901760
    %v5435 = vsub.f32 %v5228, %v5434
    %v5436 = vand.u32 %v5435, 4294901760
    %v5437 = vsub.f32 %v5435, %v5436
    %v5438 = vand.u32 %v5437, 4294901760
    %5439 = vmatpush1.msra.mxu0 %v5438
    %5440 = vmatprep.subr.mxu0 0.0
    %v5441 = vand.u32 %v5230, 4294901760
    %v5442 = vsub.f32 %v5230, %v5441
    %v5443 = vand.u32 %v5442, 4294901760
    %v5444 = vsub.f32 %v5442, %v5443
    %v5445 = vand.u32 %v5444, 4294901760
    %5446 = vmatpush1.msra.mxu0 %v5445
    %5447 = vmatprep.subr.mxu0 0.0
    %v5448 = vand.u32 %v5232, 4294901760
    %v5449 = vsub.f32 %v5232, %v5448
    %v5450 = vand.u32 %v5449, 4294901760
    %v5451 = vsub.f32 %v5449, %v5450
    %v5452 = vand.u32 %v5451, 4294901760
    %5453 = vmatpush1.msra.mxu0 %v5452
    %5454 = vmatprep.subr.mxu0 0.0
    %v5455 = vand.u32 %v5234, 4294901760
    %v5456 = vsub.f32 %v5234, %v5455
    %v5457 = vand.u32 %v5456, 4294901760
    %v5458 = vsub.f32 %v5456, %v5457
    %v5459 = vand.u32 %v5458, 4294901760
    %5460 = vmatpush1.msra.mxu0 %v5459
    %5461 = vmatprep.subr.mxu0 0.0
    %v5462 = vand.u32 %v5236, 4294901760
    %v5463 = vsub.f32 %v5236, %v5462
    %v5464 = vand.u32 %v5463, 4294901760
    %v5465 = vsub.f32 %v5463, %v5464
    %v5466 = vand.u32 %v5465, 4294901760
    %5467 = vmatpush1.msra.mxu0 %v5466
    %5468 = vmatprep.subr.mxu0 0.0
    %v5469 = vand.u32 %v5238, 4294901760
    %v5470 = vsub.f32 %v5238, %v5469
    %v5471 = vand.u32 %v5470, 4294901760
    %v5472 = vsub.f32 %v5470, %v5471
    %v5473 = vand.u32 %v5472, 4294901760
    %5474 = vmatpush1.msra.mxu0 %v5473
    %5475 = vmatprep.subr.mxu0 0.0
    %v5476 = vand.u32 %v5240, 4294901760
    %v5477 = vsub.f32 %v5240, %v5476
    %v5478 = vand.u32 %v5477, 4294901760
    %v5479 = vsub.f32 %v5477, %v5478
    %v5480 = vand.u32 %v5479, 4294901760
    %5481 = vmatpush1.msra.mxu0 %v5480
    %5482 = vmatprep.subr.mxu0 0.0
    %5483 = vmatpush1.msra.mxu0 0.0
    %5484 = vmatprep.subr.mxu0 0.0
    %5485 = vmatpush1.msra.mxu0 0.0
    %5486 = vmatprep.subr.mxu0 0.0
    %5487 = vmatpush1.msra.mxu0 0.0
    %5488 = vmatprep.subr.mxu0 0.0
    %5489 = vmatpush1.msra.mxu0 0.0
    %5490 = vmatprep.subr.mxu0 0.0
    %5491 = vmatpush1.msra.mxu0 0.0
    %5492 = vmatprep.subr.mxu0 0.0
    %5493 = vmatpush1.msra.mxu0 0.0
    %5494 = vmatprep.subr.mxu0 0.0
    %5495 = vmatpush1.msra.mxu0 0.0
    %5496 = vmatprep.subr.mxu0 0.0
    %5497 = vmatpush1.msra.mxu0 0.0
    %5498 = vmatprep.subr.mxu0 0.0
    %5499 = vmatpush1.msra.mxu0 0.0
    %5500 = vmatprep.subr.mxu0 0.0
    %5501 = vmatpush1.msra.mxu0 0.0
    %5502 = vmatprep.subr.mxu0 0.0
    %5503 = vmatpush1.msra.mxu0 0.0
    %5504 = vmatprep.subr.mxu0 0.0
    %5505 = vmatpush1.msra.mxu0 0.0
    %5506 = vmatprep.subr.mxu0 0.0
    %5507 = vmatpush1.msra.mxu0 0.0
    %5508 = vmatprep.subr.mxu0 0.0
    %5509 = vmatpush1.msra.mxu0 0.0
    %5510 = vmatprep.subr.mxu0 0.0
    %5511 = vmatpush1.msra.mxu0 0.0
    %5512 = vmatprep.subr.mxu0 0.0
    %5513 = vmatpush1.msra.mxu0 0.0
    %5514 = vmatprep.subr.mxu0 0.0
    %5515 = vmatpush1.msra.mxu0 0.0
    %5516 = vmatprep.subr.mxu0 0.0
    %5517 = vmatpush1.msra.mxu0 0.0
    %5518 = vmatprep.subr.mxu0 0.0
    %5519 = vmatpush1.msra.mxu0 0.0
    %5520 = vmatprep.subr.mxu0 0.0
    %5521 = vmatpush1.msra.mxu0 0.0
    %5522 = vmatprep.subr.mxu0 0.0
    %5523 = vmatpush1.msra.mxu0 0.0
    %5524 = vmatprep.subr.mxu0 0.0
    %5525 = vmatpush1.msra.mxu0 0.0
    %5526 = vmatprep.subr.mxu0 0.0
    %5527 = vmatpush1.msra.mxu0 0.0
    %5528 = vmatprep.subr.mxu0 0.0
    %5529 = vmatpush1.msra.mxu0 0.0
    %5530 = vmatprep.mubr.f32.mxu0 0.0
    %v5531 = vand.u32 %v5250, 4294901760
    %5532 = vmatmul.mubr.f32.gmra.mrb[0].mxu0 %v5531
    %v5533 = vpop.f32.mrb[0].mxu0
    %v5534 = vadd.f32 %v5353, %v5533
    %v5535 = vpop.f32.mrb[0].mxu0
    %5536 = vmatprep.mubr.f32.mxu0 0.0
    %v5537 = vand.u32 %v5253, 4294901760
    %5538 = vmatmul.mubr.f32.gmra.mrb[0].mxu0 %v5537
    %v5539 = vpop.f32.mrb[0].mxu0
    %v5540 = vadd.f32 %v5363, %v5539
    %v5541 = vpop.f32.mrb[0].mxu0
    %5542 = vmatprep.mubr.f32.mxu0 0.0
    %v5543 = vand.u32 %v5256, 4294901760
    %5544 = vmatmul.mubr.f32.gmra.mrb[0].mxu0 %v5543
    %v5545 = vpop.f32.mrb[0].mxu0
    %v5546 = vadd.f32 %v5373, %v5545
    %v5547 = vpop.f32.mrb[0].mxu0
    %5548 = vmatprep.mubr.f32.mxu0 0.0
    %v5549 = vand.u32 %v5259, 4294901760
    %5550 = vmatmul.mubr.f32.gmra.mrb[0].mxu0 %v5549
    %v5551 = vpop.f32.mrb[0].mxu0
    %v5552 = vadd.f32 %v5383, %v5551
    %v5553 = vpop.f32.mrb[0].mxu0
    %5554 = vmatprep.mubr.f32.mxu0 0.0
    %v5555 = vand.u32 %v5262, 4294901760
    %5556 = vmatmul.mubr.f32.gmra.mrb[0].mxu0 %v5555
    %v5557 = vpop.f32.mrb[0].mxu0
    %v5558 = vadd.f32 %v5393, %v5557
    %v5559 = vpop.f32.mrb[0].mxu0
    %5560 = vmatprep.mubr.f32.mxu0 0.0
    %v5561 = vand.u32 %v5265, 4294901760
    %5562 = vmatmul.mubr.f32.gmra.mrb[0].mxu0 %v5561
    %v5563 = vpop.f32.mrb[0].mxu0
    %v5564 = vadd.f32 %v5403, %v5563
    %v5565 = vpop.f32.mrb[0].mxu0
    %5566 = vmatprep.mubr.f32.mxu0 0.0
    %v5567 = vand.u32 %v5268, 4294901760
    %5568 = vmatmul.mubr.f32.gmra.mrb[0].mxu0 %v5567
    %v5569 = vpop.f32.mrb[0].mxu0
    %v5570 = vadd.f32 %v5413, %v5569
    %v5571 = vpop.f32.mrb[0].mxu0
    %5572 = vmatprep.mubr.f32.mxu0 0.0
    %v5573 = vand.u32 %v5271, 4294901760
    %5574 = vmatmul.mubr.f32.gmra.mrb[0].mxu0 %v5573
    %v5575 = vpop.f32.mrb[0].mxu0
    %v5576 = vadd.f32 %v5423, %v5575
    %v5577 = vpop.f32.mrb[0].mxu0
    %5578 = vdwg.mxu0
    %5579 = vmatprep.subr.mxu0 0.0
    %v5580 = vand.u32 %v5226, 4294901760
    %v5581 = vsub.f32 %v5226, %v5580
    %5582 = vmatpush1.msra.mxu0 %v5581
    %5583 = vmatprep.subr.mxu0 0.0
    %v5584 = vand.u32 %v5228, 4294901760
    %v5585 = vsub.f32 %v5228, %v5584
    %5586 = vmatpush1.msra.mxu0 %v5585
    %5587 = vmatprep.subr.mxu0 0.0
    %v5588 = vand.u32 %v5230, 4294901760
    %v5589 = vsub.f32 %v5230, %v5588
    %5590 = vmatpush1.msra.mxu0 %v5589
    %5591 = vmatprep.subr.mxu0 0.0
    %v5592 = vand.u32 %v5232, 4294901760
    %v5593 = vsub.f32 %v5232, %v5592
    %5594 = vmatpush1.msra.mxu0 %v5593
    %5595 = vmatprep.subr.mxu0 0.0
    %v5596 = vand.u32 %v5234, 4294901760
    %v5597 = vsub.f32 %v5234, %v5596
    %5598 = vmatpush1.msra.mxu0 %v5597
    %5599 = vmatprep.subr.mxu0 0.0
    %v5600 = vand.u32 %v5236, 4294901760
    %v5601 = vsub.f32 %v5236, %v5600
    %5602 = vmatpush1.msra.mxu0 %v5601
    %5603 = vmatprep.subr.mxu0 0.0
    %v5604 = vand.u32 %v5238, 4294901760
    %v5605 = vsub.f32 %v5238, %v5604
    %5606 = vmatpush1.msra.mxu0 %v5605
    %5607 = vmatprep.subr.mxu0 0.0
    %v5608 = vand.u32 %v5240, 4294901760
    %v5609 = vsub.f32 %v5240, %v5608
    %5610 = vmatpush1.msra.mxu0 %v5609
    %5611 = vmatprep.subr.mxu0 0.0
    %5612 = vmatpush1.msra.mxu0 0.0
    %5613 = vmatprep.subr.mxu0 0.0
    %5614 = vmatpush1.msra.mxu0 0.0
    %5615 = vmatprep.subr.mxu0 0.0
    %5616 = vmatpush1.msra.mxu0 0.0
    %5617 = vmatprep.subr.mxu0 0.0
    %5618 = vmatpush1.msra.mxu0 0.0
    %5619 = vmatprep.subr.mxu0 0.0
    %5620 = vmatpush1.msra.mxu0 0.0
    %5621 = vmatprep.subr.mxu0 0.0
    %5622 = vmatpush1.msra.mxu0 0.0
    %5623 = vmatprep.subr.mxu0 0.0
    %5624 = vmatpush1.msra.mxu0 0.0
    %5625 = vmatprep.subr.mxu0 0.0
    %5626 = vmatpush1.msra.mxu0 0.0
    %5627 = vmatprep.subr.mxu0 0.0
    %5628 = vmatpush1.msra.mxu0 0.0
    %5629 = vmatprep.subr.mxu0 0.0
    %5630 = vmatpush1.msra.mxu0 0.0
    %5631 = vmatprep.subr.mxu0 0.0
    %5632 = vmatpush1.msra.mxu0 0.0
    %5633 = vmatprep.subr.mxu0 0.0
    %5634 = vmatpush1.msra.mxu0 0.0
    %5635 = vmatprep.subr.mxu0 0.0
    %5636 = vmatpush1.msra.mxu0 0.0
    %5637 = vmatprep.subr.mxu0 0.0
    %5638 = vmatpush1.msra.mxu0 0.0
    %5639 = vmatprep.subr.mxu0 0.0
    %5640 = vmatpush1.msra.mxu0 0.0
    %5641 = vmatprep.subr.mxu0 0.0
    %5642 = vmatpush1.msra.mxu0 0.0
    %5643 = vmatprep.subr.mxu0 0.0
    %5644 = vmatpush1.msra.mxu0 0.0
    %5645 = vmatprep.subr.mxu0 0.0
    %5646 = vmatpush1.msra.mxu0 0.0
    %5647 = vmatprep.subr.mxu0 0.0
    %5648 = vmatpush1.msra.mxu0 0.0
    %5649 = vmatprep.subr.mxu0 0.0
    %5650 = vmatpush1.msra.mxu0 0.0
    %5651 = vmatprep.subr.mxu0 0.0
    %5652 = vmatpush1.msra.mxu0 0.0
    %5653 = vmatprep.subr.mxu0 0.0
    %5654 = vmatpush1.msra.mxu0 0.0
    %5655 = vmatprep.subr.mxu0 0.0
    %5656 = vmatpush1.msra.mxu0 0.0
    %5657 = vmatprep.subr.mxu0 0.0
    %5658 = vmatpush1.msra.mxu0 0.0
    %5659 = vmatprep.mubr.f32.mxu0 0.0
    %v5660 = vand.u32 %v5250, 4294901760
    %v5661 = vsub.f32 %v5250, %v5660
    %5662 = vmatmul.mubr.f32.gmra.mrb[0].mxu0 %v5661
    %v5663 = vpop.f32.mrb[0].mxu0
    %v5664 = vadd.f32 %v5534, %v5663
    %v5665 = vpop.f32.mrb[0].mxu0
    %5666 = vmatprep.mubr.f32.mxu0 0.0
    %v5667 = vand.u32 %v5253, 4294901760
    %v5668 = vsub.f32 %v5253, %v5667
    %5669 = vmatmul.mubr.f32.gmra.mrb[0].mxu0 %v5668
    %v5670 = vpop.f32.mrb[0].mxu0
    %v5671 = vadd.f32 %v5540, %v5670
    %v5672 = vpop.f32.mrb[0].mxu0
    %5673 = vmatprep.mubr.f32.mxu0 0.0
    %v5674 = vand.u32 %v5256, 4294901760
    %v5675 = vsub.f32 %v5256, %v5674
    %5676 = vmatmul.mubr.f32.gmra.mrb[0].mxu0 %v5675
    %v5677 = vpop.f32.mrb[0].mxu0
    %v5678 = vadd.f32 %v5546, %v5677
    %v5679 = vpop.f32.mrb[0].mxu0
    %5680 = vmatprep.mubr.f32.mxu0 0.0
    %v5681 = vand.u32 %v5259, 4294901760
    %v5682 = vsub.f32 %v5259, %v5681
    %5683 = vmatmul.mubr.f32.gmra.mrb[0].mxu0 %v5682
    %v5684 = vpop.f32.mrb[0].mxu0
    %v5685 = vadd.f32 %v5552, %v5684
    %v5686 = vpop.f32.mrb[0].mxu0
    %5687 = vmatprep.mubr.f32.mxu0 0.0
    %v5688 = vand.u32 %v5262, 4294901760
    %v5689 = vsub.f32 %v5262, %v5688
    %5690 = vmatmul.mubr.f32.gmra.mrb[0].mxu0 %v5689
    %v5691 = vpop.f32.mrb[0].mxu0
    %v5692 = vadd.f32 %v5558, %v5691
    %v5693 = vpop.f32.mrb[0].mxu0
    %5694 = vmatprep.mubr.f32.mxu0 0.0
    %v5695 = vand.u32 %v5265, 4294901760
    %v5696 = vsub.f32 %v5265, %v5695
    %5697 = vmatmul.mubr.f32.gmra.mrb[0].mxu0 %v5696
    %v5698 = vpop.f32.mrb[0].mxu0
    %v5699 = vadd.f32 %v5564, %v5698
    %v5700 = vpop.f32.mrb[0].mxu0
    %5701 = vmatprep.mubr.f32.mxu0 0.0
    %v5702 = vand.u32 %v5268, 4294901760
    %v5703 = vsub.f32 %v5268, %v5702
    %5704 = vmatmul.mubr.f32.gmra.mrb[0].mxu0 %v5703
    %v5705 = vpop.f32.mrb[0].mxu0
    %v5706 = vadd.f32 %v5570, %v5705
    %v5707 = vpop.f32.mrb[0].mxu0
    %5708 = vmatprep.mubr.f32.mxu0 0.0
    %v5709 = vand.u32 %v5271, 4294901760
    %v5710 = vsub.f32 %v5271, %v5709
    %5711 = vmatmul.mubr.f32.gmra.mrb[0].mxu0 %v5710
    %v5712 = vpop.f32.mrb[0].mxu0
    %v5713 = vadd.f32 %v5576, %v5712
    %v5714 = vpop.f32.mrb[0].mxu0
    %5715 = vdwg.mxu0
    %5716 = vmatprep.subr.mxu0 0.0
    %v5717 = vand.u32 %v5226, 4294901760
    %5718 = vmatpush1.msra.mxu0 %v5717
    %5719 = vmatprep.subr.mxu0 0.0
    %v5720 = vand.u32 %v5228, 4294901760
    %5721 = vmatpush1.msra.mxu0 %v5720
    %5722 = vmatprep.subr.mxu0 0.0
    %v5723 = vand.u32 %v5230, 4294901760
    %5724 = vmatpush1.msra.mxu0 %v5723
    %5725 = vmatprep.subr.mxu0 0.0
    %v5726 = vand.u32 %v5232, 4294901760
    %5727 = vmatpush1.msra.mxu0 %v5726
    %5728 = vmatprep.subr.mxu0 0.0
    %v5729 = vand.u32 %v5234, 4294901760
    %5730 = vmatpush1.msra.mxu0 %v5729
    %5731 = vmatprep.subr.mxu0 0.0
    %v5732 = vand.u32 %v5236, 4294901760
    %5733 = vmatpush1.msra.mxu0 %v5732
    %5734 = vmatprep.subr.mxu0 0.0
    %v5735 = vand.u32 %v5238, 4294901760
    %5736 = vmatpush1.msra.mxu0 %v5735
    %5737 = vmatprep.subr.mxu0 0.0
    %v5738 = vand.u32 %v5240, 4294901760
    %5739 = vmatpush1.msra.mxu0 %v5738
    %5740 = vmatprep.subr.mxu0 0.0
    %5741 = vmatpush1.msra.mxu0 0.0
    %5742 = vmatprep.subr.mxu0 0.0
    %5743 = vmatpush1.msra.mxu0 0.0
    %5744 = vmatprep.subr.mxu0 0.0
    %5745 = vmatpush1.msra.mxu0 0.0
    %5746 = vmatprep.subr.mxu0 0.0
    %5747 = vmatpush1.msra.mxu0 0.0
    %5748 = vmatprep.subr.mxu0 0.0
    %5749 = vmatpush1.msra.mxu0 0.0
    %5750 = vmatprep.subr.mxu0 0.0
    %5751 = vmatpush1.msra.mxu0 0.0
    %5752 = vmatprep.subr.mxu0 0.0
    %5753 = vmatpush1.msra.mxu0 0.0
    %5754 = vmatprep.subr.mxu0 0.0
    %5755 = vmatpush1.msra.mxu0 0.0
    %5756 = vmatprep.subr.mxu0 0.0
    %5757 = vmatpush1.msra.mxu0 0.0
    %5758 = vmatprep.subr.mxu0 0.0
    %5759 = vmatpush1.msra.mxu0 0.0
    %5760 = vmatprep.subr.mxu0 0.0
    %5761 = vmatpush1.msra.mxu0 0.0
    %5762 = vmatprep.subr.mxu0 0.0
    %5763 = vmatpush1.msra.mxu0 0.0
    %5764 = vmatprep.subr.mxu0 0.0
    %5765 = vmatpush1.msra.mxu0 0.0
    %5766 = vmatprep.subr.mxu0 0.0
    %5767 = vmatpush1.msra.mxu0 0.0
    %5768 = vmatprep.subr.mxu0 0.0
    %5769 = vmatpush1.msra.mxu0 0.0
    %5770 = vmatprep.subr.mxu0 0.0
    %5771 = vmatpush1.msra.mxu0 0.0
    %5772 = vmatprep.subr.mxu0 0.0
    %5773 = vmatpush1.msra.mxu0 0.0
    %5774 = vmatprep.subr.mxu0 0.0
    %5775 = vmatpush1.msra.mxu0 0.0
    %5776 = vmatprep.subr.mxu0 0.0
    %5777 = vmatpush1.msra.mxu0 0.0
    %5778 = vmatprep.subr.mxu0 0.0
    %5779 = vmatpush1.msra.mxu0 0.0
    %5780 = vmatprep.subr.mxu0 0.0
    %5781 = vmatpush1.msra.mxu0 0.0
    %5782 = vmatprep.subr.mxu0 0.0
    %5783 = vmatpush1.msra.mxu0 0.0
    %5784 = vmatprep.subr.mxu0 0.0
    %5785 = vmatpush1.msra.mxu0 0.0
    %5786 = vmatprep.subr.mxu0 0.0
    %5787 = vmatpush1.msra.mxu0 0.0
    %5788 = vmatprep.mubr.f32.mxu0 0.0
    %v5789 = vand.u32 %v5250, 4294901760
    %v5790 = vsub.f32 %v5250, %v5789
    %v5791 = vand.u32 %v5790, 4294901760
    %5792 = vmatmul.mubr.f32.gmra.mrb[0].mxu0 %v5791
    %v5793 = vpop.f32.mrb[0].mxu0
    %v5794 = vadd.f32 %v5664, %v5793
    %v5795 = vpop.f32.mrb[0].mxu0
    %5796 = vmatprep.mubr.f32.mxu0 0.0
    %v5797 = vand.u32 %v5253, 4294901760
    %v5798 = vsub.f32 %v5253, %v5797
    %v5799 = vand.u32 %v5798, 4294901760
    %5800 = vmatmul.mubr.f32.gmra.mrb[0].mxu0 %v5799
    %v5801 = vpop.f32.mrb[0].mxu0
    %v5802 = vadd.f32 %v5671, %v5801
    %v5803 = vpop.f32.mrb[0].mxu0
    %5804 = vmatprep.mubr.f32.mxu0 0.0
    %v5805 = vand.u32 %v5256, 4294901760
    %v5806 = vsub.f32 %v5256, %v5805
    %v5807 = vand.u32 %v5806, 4294901760
    %5808 = vmatmul.mubr.f32.gmra.mrb[0].mxu0 %v5807
    %v5809 = vpop.f32.mrb[0].mxu0
    %v5810 = vadd.f32 %v5678, %v5809
    %v5811 = vpop.f32.mrb[0].mxu0
    %5812 = vmatprep.mubr.f32.mxu0 0.0
    %v5813 = vand.u32 %v5259, 4294901760
    %v5814 = vsub.f32 %v5259, %v5813
    %v5815 = vand.u32 %v5814, 4294901760
    %5816 = vmatmul.mubr.f32.gmra.mrb[0].mxu0 %v5815
    %v5817 = vpop.f32.mrb[0].mxu0
    %v5818 = vadd.f32 %v5685, %v5817
    %v5819 = vpop.f32.mrb[0].mxu0
    %5820 = vmatprep.mubr.f32.mxu0 0.0
    %v5821 = vand.u32 %v5262, 4294901760
    %v5822 = vsub.f32 %v5262, %v5821
    %v5823 = vand.u32 %v5822, 4294901760
    %5824 = vmatmul.mubr.f32.gmra.mrb[0].mxu0 %v5823
    %v5825 = vpop.f32.mrb[0].mxu0
    %v5826 = vadd.f32 %v5692, %v5825
    %v5827 = vpop.f32.mrb[0].mxu0
    %5828 = vmatprep.mubr.f32.mxu0 0.0
    %v5829 = vand.u32 %v5265, 4294901760
    %v5830 = vsub.f32 %v5265, %v5829
    %v5831 = vand.u32 %v5830, 4294901760
    %5832 = vmatmul.mubr.f32.gmra.mrb[0].mxu0 %v5831
    %v5833 = vpop.f32.mrb[0].mxu0
    %v5834 = vadd.f32 %v5699, %v5833
    %v5835 = vpop.f32.mrb[0].mxu0
    %5836 = vmatprep.mubr.f32.mxu0 0.0
    %v5837 = vand.u32 %v5268, 4294901760
    %v5838 = vsub.f32 %v5268, %v5837
    %v5839 = vand.u32 %v5838, 4294901760
    %5840 = vmatmul.mubr.f32.gmra.mrb[0].mxu0 %v5839
    %v5841 = vpop.f32.mrb[0].mxu0
    %v5842 = vadd.f32 %v5706, %v5841
    %v5843 = vpop.f32.mrb[0].mxu0
    %5844 = vmatprep.mubr.f32.mxu0 0.0
    %v5845 = vand.u32 %v5271, 4294901760
    %v5846 = vsub.f32 %v5271, %v5845
    %v5847 = vand.u32 %v5846, 4294901760
    %5848 = vmatmul.mubr.f32.gmra.mrb[0].mxu0 %v5847
    %v5849 = vpop.f32.mrb[0].mxu0
    %v5850 = vadd.f32 %v5713, %v5849
    %v5851 = vpop.f32.mrb[0].mxu0
    %5852 = vdwg.mxu0
    %5853 = vmatprep.subr.mxu0 0.0
    %v5854 = vand.u32 %v5226, 4294901760
    %v5855 = vsub.f32 %v5226, %v5854
    %v5856 = vand.u32 %v5855, 4294901760
    %5857 = vmatpush1.msra.mxu0 %v5856
    %5858 = vmatprep.subr.mxu0 0.0
    %v5859 = vand.u32 %v5228, 4294901760
    %v5860 = vsub.f32 %v5228, %v5859
    %v5861 = vand.u32 %v5860, 4294901760
    %5862 = vmatpush1.msra.mxu0 %v5861
    %5863 = vmatprep.subr.mxu0 0.0
    %v5864 = vand.u32 %v5230, 4294901760
    %v5865 = vsub.f32 %v5230, %v5864
    %v5866 = vand.u32 %v5865, 4294901760
    %5867 = vmatpush1.msra.mxu0 %v5866
    %5868 = vmatprep.subr.mxu0 0.0
    %v5869 = vand.u32 %v5232, 4294901760
    %v5870 = vsub.f32 %v5232, %v5869
    %v5871 = vand.u32 %v5870, 4294901760
    %5872 = vmatpush1.msra.mxu0 %v5871
    %5873 = vmatprep.subr.mxu0 0.0
    %v5874 = vand.u32 %v5234, 4294901760
    %v5875 = vsub.f32 %v5234, %v5874
    %v5876 = vand.u32 %v5875, 4294901760
    %5877 = vmatpush1.msra.mxu0 %v5876
    %5878 = vmatprep.subr.mxu0 0.0
    %v5879 = vand.u32 %v5236, 4294901760
    %v5880 = vsub.f32 %v5236, %v5879
    %v5881 = vand.u32 %v5880, 4294901760
    %5882 = vmatpush1.msra.mxu0 %v5881
    %5883 = vmatprep.subr.mxu0 0.0
    %v5884 = vand.u32 %v5238, 4294901760
    %v5885 = vsub.f32 %v5238, %v5884
    %v5886 = vand.u32 %v5885, 4294901760
    %5887 = vmatpush1.msra.mxu0 %v5886
    %5888 = vmatprep.subr.mxu0 0.0
    %v5889 = vand.u32 %v5240, 4294901760
    %v5890 = vsub.f32 %v5240, %v5889
    %v5891 = vand.u32 %v5890, 4294901760
    %5892 = vmatpush1.msra.mxu0 %v5891
    %5893 = vmatprep.subr.mxu0 0.0
    %5894 = vmatpush1.msra.mxu0 0.0
    %5895 = vmatprep.subr.mxu0 0.0
    %5896 = vmatpush1.msra.mxu0 0.0
    %5897 = vmatprep.subr.mxu0 0.0
    %5898 = vmatpush1.msra.mxu0 0.0
    %5899 = vmatprep.subr.mxu0 0.0
    %5900 = vmatpush1.msra.mxu0 0.0
    %5901 = vmatprep.subr.mxu0 0.0
    %5902 = vmatpush1.msra.mxu0 0.0
    %5903 = vmatprep.subr.mxu0 0.0
    %5904 = vmatpush1.msra.mxu0 0.0
    %5905 = vmatprep.subr.mxu0 0.0
    %5906 = vmatpush1.msra.mxu0 0.0
    %5907 = vmatprep.subr.mxu0 0.0
    %5908 = vmatpush1.msra.mxu0 0.0
    %5909 = vmatprep.subr.mxu0 0.0
    %5910 = vmatpush1.msra.mxu0 0.0
    %5911 = vmatprep.subr.mxu0 0.0
    %5912 = vmatpush1.msra.mxu0 0.0
    %5913 = vmatprep.subr.mxu0 0.0
    %5914 = vmatpush1.msra.mxu0 0.0
    %5915 = vmatprep.subr.mxu0 0.0
    %5916 = vmatpush1.msra.mxu0 0.0
    %5917 = vmatprep.subr.mxu0 0.0
    %5918 = vmatpush1.msra.mxu0 0.0
    %5919 = vmatprep.subr.mxu0 0.0
    %5920 = vmatpush1.msra.mxu0 0.0
    %5921 = vmatprep.subr.mxu0 0.0
    %5922 = vmatpush1.msra.mxu0 0.0
    %5923 = vmatprep.subr.mxu0 0.0
    %5924 = vmatpush1.msra.mxu0 0.0
    %5925 = vmatprep.subr.mxu0 0.0
    %5926 = vmatpush1.msra.mxu0 0.0
    %5927 = vmatprep.subr.mxu0 0.0
    %5928 = vmatpush1.msra.mxu0 0.0
    %5929 = vmatprep.subr.mxu0 0.0
    %5930 = vmatpush1.msra.mxu0 0.0
    %5931 = vmatprep.subr.mxu0 0.0
    %5932 = vmatpush1.msra.mxu0 0.0
    %5933 = vmatprep.subr.mxu0 0.0
    %5934 = vmatpush1.msra.mxu0 0.0
    %5935 = vmatprep.subr.mxu0 0.0
    %5936 = vmatpush1.msra.mxu0 0.0
    %5937 = vmatprep.subr.mxu0 0.0
    %5938 = vmatpush1.msra.mxu0 0.0
    %5939 = vmatprep.subr.mxu0 0.0
    %5940 = vmatpush1.msra.mxu0 0.0
    %5941 = vmatprep.mubr.f32.mxu0 0.0
    %v5942 = vand.u32 %v5250, 4294901760
    %5943 = vmatmul.mubr.f32.gmra.mrb[0].mxu0 %v5942
    %v5944 = vpop.f32.mrb[0].mxu0
    %v5945 = vadd.f32 %v5794, %v5944
    %v5946 = vpop.f32.mrb[0].mxu0
    %5947 = vmatprep.mubr.f32.mxu0 0.0
    %v5948 = vand.u32 %v5253, 4294901760
    %5949 = vmatmul.mubr.f32.gmra.mrb[0].mxu0 %v5948
    %v5950 = vpop.f32.mrb[0].mxu0
    %v5951 = vadd.f32 %v5802, %v5950
    %v5952 = vpop.f32.mrb[0].mxu0
    %5953 = vmatprep.mubr.f32.mxu0 0.0
    %v5954 = vand.u32 %v5256, 4294901760
    %5955 = vmatmul.mubr.f32.gmra.mrb[0].mxu0 %v5954
    %v5956 = vpop.f32.mrb[0].mxu0
    %v5957 = vadd.f32 %v5810, %v5956
    %v5958 = vpop.f32.mrb[0].mxu0
    %5959 = vmatprep.mubr.f32.mxu0 0.0
    %v5960 = vand.u32 %v5259, 4294901760
    %5961 = vmatmul.mubr.f32.gmra.mrb[0].mxu0 %v5960
    %v5962 = vpop.f32.mrb[0].mxu0
    %v5963 = vadd.f32 %v5818, %v5962
    %v5964 = vpop.f32.mrb[0].mxu0
    %5965 = vmatprep.mubr.f32.mxu0 0.0
    %v5966 = vand.u32 %v5262, 4294901760
    %5967 = vmatmul.mubr.f32.gmra.mrb[0].mxu0 %v5966
    %v5968 = vpop.f32.mrb[0].mxu0
    %v5969 = vadd.f32 %v5826, %v5968
    %v5970 = vpop.f32.mrb[0].mxu0
    %5971 = vmatprep.mubr.f32.mxu0 0.0
    %v5972 = vand.u32 %v5265, 4294901760
    %5973 = vmatmul.mubr.f32.gmra.mrb[0].mxu0 %v5972
    %v5974 = vpop.f32.mrb[0].mxu0
    %v5975 = vadd.f32 %v5834, %v5974
    %v5976 = vpop.f32.mrb[0].mxu0
    %5977 = vmatprep.mubr.f32.mxu0 0.0
    %v5978 = vand.u32 %v5268, 4294901760
    %5979 = vmatmul.mubr.f32.gmra.mrb[0].mxu0 %v5978
    %v5980 = vpop.f32.mrb[0].mxu0
    %v5981 = vadd.f32 %v5842, %v5980
    %v5982 = vpop.f32.mrb[0].mxu0
    %5983 = vmatprep.mubr.f32.mxu0 0.0
    %v5984 = vand.u32 %v5271, 4294901760
    %5985 = vmatmul.mubr.f32.gmra.mrb[0].mxu0 %v5984
    %v5986 = vpop.f32.mrb[0].mxu0
    %v5987 = vadd.f32 %v5850, %v5986
    %v5988 = vpop.f32.mrb[0].mxu0
    %5989 = vdwg.mxu0
    %5990 = vmatprep.subr.mxu0 0.0
    %v5991 = vand.u32 %v5226, 4294901760
    %5992 = vmatpush1.msra.mxu0 %v5991
    %5993 = vmatprep.subr.mxu0 0.0
    %v5994 = vand.u32 %v5228, 4294901760
    %5995 = vmatpush1.msra.mxu0 %v5994
    %5996 = vmatprep.subr.mxu0 0.0
    %v5997 = vand.u32 %v5230, 4294901760
    %5998 = vmatpush1.msra.mxu0 %v5997
    %5999 = vmatprep.subr.mxu0 0.0
    %v6000 = vand.u32 %v5232, 4294901760
    %6001 = vmatpush1.msra.mxu0 %v6000
    %6002 = vmatprep.subr.mxu0 0.0
    %v6003 = vand.u32 %v5234, 4294901760
    %6004 = vmatpush1.msra.mxu0 %v6003
    %6005 = vmatprep.subr.mxu0 0.0
    %v6006 = vand.u32 %v5236, 4294901760
    %6007 = vmatpush1.msra.mxu0 %v6006
    %6008 = vmatprep.subr.mxu0 0.0
    %v6009 = vand.u32 %v5238, 4294901760
    %6010 = vmatpush1.msra.mxu0 %v6009
    %6011 = vmatprep.subr.mxu0 0.0
    %v6012 = vand.u32 %v5240, 4294901760
    %6013 = vmatpush1.msra.mxu0 %v6012
    %6014 = vmatprep.subr.mxu0 0.0
    %6015 = vmatpush1.msra.mxu0 0.0
    %6016 = vmatprep.subr.mxu0 0.0
    %6017 = vmatpush1.msra.mxu0 0.0
    %6018 = vmatprep.subr.mxu0 0.0
    %6019 = vmatpush1.msra.mxu0 0.0
    %6020 = vmatprep.subr.mxu0 0.0
    %6021 = vmatpush1.msra.mxu0 0.0
    %6022 = vmatprep.subr.mxu0 0.0
    %6023 = vmatpush1.msra.mxu0 0.0
    %6024 = vmatprep.subr.mxu0 0.0
    %6025 = vmatpush1.msra.mxu0 0.0
    %6026 = vmatprep.subr.mxu0 0.0
    %6027 = vmatpush1.msra.mxu0 0.0
    %6028 = vmatprep.subr.mxu0 0.0
    %6029 = vmatpush1.msra.mxu0 0.0
    %6030 = vmatprep.subr.mxu0 0.0
    %6031 = vmatpush1.msra.mxu0 0.0
    %6032 = vmatprep.subr.mxu0 0.0
    %6033 = vmatpush1.msra.mxu0 0.0
    %6034 = vmatprep.subr.mxu0 0.0
    %6035 = vmatpush1.msra.mxu0 0.0
    %6036 = vmatprep.subr.mxu0 0.0
    %6037 = vmatpush1.msra.mxu0 0.0
    %6038 = vmatprep.subr.mxu0 0.0
    %6039 = vmatpush1.msra.mxu0 0.0
    %6040 = vmatprep.subr.mxu0 0.0
    %6041 = vmatpush1.msra.mxu0 0.0
    %6042 = vmatprep.subr.mxu0 0.0
    %6043 = vmatpush1.msra.mxu0 0.0
    %6044 = vmatprep.subr.mxu0 0.0
    %6045 = vmatpush1.msra.mxu0 0.0
    %6046 = vmatprep.subr.mxu0 0.0
    %6047 = vmatpush1.msra.mxu0 0.0
    %6048 = vmatprep.subr.mxu0 0.0
    %6049 = vmatpush1.msra.mxu0 0.0
    %6050 = vmatprep.subr.mxu0 0.0
    %6051 = vmatpush1.msra.mxu0 0.0
    %6052 = vmatprep.subr.mxu0 0.0
    %6053 = vmatpush1.msra.mxu0 0.0
    %6054 = vmatprep.subr.mxu0 0.0
    %6055 = vmatpush1.msra.mxu0 0.0
    %6056 = vmatprep.subr.mxu0 0.0
    %6057 = vmatpush1.msra.mxu0 0.0
    %6058 = vmatprep.subr.mxu0 0.0
    %6059 = vmatpush1.msra.mxu0 0.0
    %6060 = vmatprep.subr.mxu0 0.0
    %6061 = vmatpush1.msra.mxu0 0.0
    %6062 = vmatprep.mubr.f32.mxu0 0.0
    %v6063 = vand.u32 %v5250, 4294901760
    %6064 = vmatmul.mubr.f32.gmra.mrb[0].mxu0 %v6063
    %v6065 = vpop.f32.mrb[0].mxu0
    %v6066 = vadd.f32 %v5945, %v6065
    %v6067 = vpop.f32.mrb[0].mxu0
    %6068 = vmatprep.mubr.f32.mxu0 0.0
    %v6069 = vand.u32 %v5253, 4294901760
    %6070 = vmatmul.mubr.f32.gmra.mrb[0].mxu0 %v6069
    %v6071 = vpop.f32.mrb[0].mxu0
    %v6072 = vadd.f32 %v5951, %v6071
    %v6073 = vpop.f32.mrb[0].mxu0
    %6074 = vmatprep.mubr.f32.mxu0 0.0
    %v6075 = vand.u32 %v5256, 4294901760
    %6076 = vmatmul.mubr.f32.gmra.mrb[0].mxu0 %v6075
    %v6077 = vpop.f32.mrb[0].mxu0
    %v6078 = vadd.f32 %v5957, %v6077
    %v6079 = vpop.f32.mrb[0].mxu0
    %6080 = vmatprep.mubr.f32.mxu0 0.0
    %v6081 = vand.u32 %v5259, 4294901760
    %6082 = vmatmul.mubr.f32.gmra.mrb[0].mxu0 %v6081
    %v6083 = vpop.f32.mrb[0].mxu0
    %v6084 = vadd.f32 %v5963, %v6083
    %v6085 = vpop.f32.mrb[0].mxu0
    %6086 = vmatprep.mubr.f32.mxu0 0.0
    %v6087 = vand.u32 %v5262, 4294901760
    %6088 = vmatmul.mubr.f32.gmra.mrb[0].mxu0 %v6087
    %v6089 = vpop.f32.mrb[0].mxu0
    %v6090 = vadd.f32 %v5969, %v6089
    %v6091 = vpop.f32.mrb[0].mxu0
    %6092 = vmatprep.mubr.f32.mxu0 0.0
    %v6093 = vand.u32 %v5265, 4294901760
    %6094 = vmatmul.mubr.f32.gmra.mrb[0].mxu0 %v6093
    %v6095 = vpop.f32.mrb[0].mxu0
    %v6096 = vadd.f32 %v5975, %v6095
    %v6097 = vpop.f32.mrb[0].mxu0
    %6098 = vmatprep.mubr.f32.mxu0 0.0
    %v6099 = vand.u32 %v5268, 4294901760
    %6100 = vmatmul.mubr.f32.gmra.mrb[0].mxu0 %v6099
    %v6101 = vpop.f32.mrb[0].mxu0
    %v6102 = vadd.f32 %v5981, %v6101
    %v6103 = vpop.f32.mrb[0].mxu0
    %6104 = vmatprep.mubr.f32.mxu0 0.0
    %v6105 = vand.u32 %v5271, 4294901760
    %6106 = vmatmul.mubr.f32.gmra.mrb[0].mxu0 %v6105
    %v6107 = vpop.f32.mrb[0].mxu0
    %v6108 = vadd.f32 %v5987, %v6107
    %v6109 = vpop.f32.mrb[0].mxu0
    %6110 = vdwg.mxu0
    %6113 = vrot.lane.b32.xlu0 %v6078, 8
    %v6114 = vpop.permute.xlu0 %6113
    %6115 = vrot.lane.b32.xlu0 %v6084, 8
    %v6116 = vpop.permute.xlu0 %6115
    %6121 = vrot.lane.b32.xlu0 %v6090, 16
    %v6122 = vpop.permute.xlu0 %6121
    %6123 = vrot.lane.b32.xlu0 %v6096, 16
    %v6124 = vpop.permute.xlu0 %6123
    %6129 = vrot.lane.b32.xlu0 %v6102, 24
    %v6130 = vpop.permute.xlu0 %6129
    %6131 = vrot.lane.b32.xlu0 %v6108, 24
    %v6132 = vpop.permute.xlu0 %6131
    %v6135 = vsel %vm671, %v6066, %v6114
    %v6136 = vsel %vm671, %v6072, %v6116
    %v6137 = vsel %vm2543, %v6135, %v6122
    %v6138 = vsel %vm2543, %v6136, %v6124
    %v6139 = vsel %vm2546, %v6137, %v6130
    %v6140 = vsel %vm2546, %v6138, %v6132
    %v6142 = vlaneseq
    %v6143 = vshrl.u32 %v6142, 7
    %v6144 = vsub.s32 0, %v6143
    %v6145 = vrot.slane %v4266, %v6144
    %v6148 = vsel %vm93, %v6139, 0
    %v6151 = vsel %vm93, %v6140, 0
    %6153 = vmatprep.subr.mxu0 0.0
    %v6154 = vand.u32 %v4262, 4294901760
    %6155 = vmatpush1.msra.mxu0 %v6154
    %6156 = vmatprep.subr.mxu0 0.0
    %v6157 = vand.u32 %v4263, 4294901760
    %6158 = vmatpush1.msra.mxu0 %v6157
    %6159 = vmatprep.subr.mxu0 0.0
    %v6160 = vand.u32 %v4264, 4294901760
    %6161 = vmatpush1.msra.mxu0 %v6160
    %6162 = vmatprep.subr.mxu0 0.0
    %v6163 = vand.u32 %v4265, 4294901760
    %6164 = vmatpush1.msra.mxu0 %v6163
    %6165 = vmatprep.subr.mxu0 0.0
    %6166 = vmatpush1.msra.mxu0 0.0
    %6167 = vmatprep.subr.mxu0 0.0
    %6168 = vmatpush1.msra.mxu0 0.0
    %6169 = vmatprep.subr.mxu0 0.0
    %6170 = vmatpush1.msra.mxu0 0.0
    %6171 = vmatprep.subr.mxu0 0.0
    %6172 = vmatpush1.msra.mxu0 0.0
    %6173 = vmatprep.subr.mxu0 0.0
    %6174 = vmatpush1.msra.mxu0 0.0
    %6175 = vmatprep.subr.mxu0 0.0
    %6176 = vmatpush1.msra.mxu0 0.0
    %6177 = vmatprep.subr.mxu0 0.0
    %6178 = vmatpush1.msra.mxu0 0.0
    %6179 = vmatprep.subr.mxu0 0.0
    %6180 = vmatpush1.msra.mxu0 0.0
    %6181 = vmatprep.subr.mxu0 0.0
    %6182 = vmatpush1.msra.mxu0 0.0
    %6183 = vmatprep.subr.mxu0 0.0
    %6184 = vmatpush1.msra.mxu0 0.0
    %6185 = vmatprep.subr.mxu0 0.0
    %6186 = vmatpush1.msra.mxu0 0.0
    %6187 = vmatprep.subr.mxu0 0.0
    %6188 = vmatpush1.msra.mxu0 0.0
    %6189 = vmatprep.subr.mxu0 0.0
    %6190 = vmatpush1.msra.mxu0 0.0
    %6191 = vmatprep.subr.mxu0 0.0
    %6192 = vmatpush1.msra.mxu0 0.0
    %6193 = vmatprep.subr.mxu0 0.0
    %6194 = vmatpush1.msra.mxu0 0.0
    %6195 = vmatprep.subr.mxu0 0.0
    %6196 = vmatpush1.msra.mxu0 0.0
    %6197 = vmatprep.subr.mxu0 0.0
    %6198 = vmatpush1.msra.mxu0 0.0
    %6199 = vmatprep.subr.mxu0 0.0
    %6200 = vmatpush1.msra.mxu0 0.0
    %6201 = vmatprep.subr.mxu0 0.0
    %6202 = vmatpush1.msra.mxu0 0.0
    %6203 = vmatprep.subr.mxu0 0.0
    %6204 = vmatpush1.msra.mxu0 0.0
    %6205 = vmatprep.subr.mxu0 0.0
    %6206 = vmatpush1.msra.mxu0 0.0
    %6207 = vmatprep.subr.mxu0 0.0
    %6208 = vmatpush1.msra.mxu0 0.0
    %6209 = vmatprep.subr.mxu0 0.0
    %6210 = vmatpush1.msra.mxu0 0.0
    %6211 = vmatprep.subr.mxu0 0.0
    %6212 = vmatpush1.msra.mxu0 0.0
    %6213 = vmatprep.subr.mxu0 0.0
    %6214 = vmatpush1.msra.mxu0 0.0
    %6215 = vmatprep.subr.mxu0 0.0
    %6216 = vmatpush1.msra.mxu0 0.0
    %6217 = vmatprep.subr.mxu0 0.0
    %6218 = vmatpush1.msra.mxu0 0.0
    %6219 = vmatprep.subr.mxu0 0.0
    %6220 = vmatpush1.msra.mxu0 0.0
    %6221 = vmatprep.mubr.f32.mxu0 0.0
    %v6222 = vand.u32 %v6148, 4294901760
    %v6223 = vsub.f32 %v6148, %v6222
    %v6224 = vand.u32 %v6223, 4294901760
    %v6225 = vsub.f32 %v6223, %v6224
    %v6226 = vand.u32 %v6225, 4294901760
    %6227 = vmatmul.mubr.f32.gmra.mrb[0].mxu0 %v6226
    %v6228 = vpop.f32.mrb[0].mxu0
    %v6229 = vadd.f32 %v6145, %v6228
    %v6230 = vpop.f32.mrb[0].mxu0
    %6231 = vmatprep.mubr.f32.mxu0 0.0
    %v6232 = vand.u32 %v6151, 4294901760
    %v6233 = vsub.f32 %v6151, %v6232
    %v6234 = vand.u32 %v6233, 4294901760
    %v6235 = vsub.f32 %v6233, %v6234
    %v6236 = vand.u32 %v6235, 4294901760
    %6237 = vmatmul.mubr.f32.gmra.mrb[0].mxu0 %v6236
    %v6238 = vpop.f32.mrb[0].mxu0
    %v6239 = vadd.f32 %v6145, %v6238
    %v6240 = vpop.f32.mrb[0].mxu0
    %6241 = vdwg.mxu0
    %6242 = vmatprep.subr.mxu0 0.0
    %v6243 = vand.u32 %v4262, 4294901760
    %v6244 = vsub.f32 %v4262, %v6243
    %v6245 = vand.u32 %v6244, 4294901760
    %v6246 = vsub.f32 %v6244, %v6245
    %v6247 = vand.u32 %v6246, 4294901760
    %6248 = vmatpush1.msra.mxu0 %v6247
    %6249 = vmatprep.subr.mxu0 0.0
    %v6250 = vand.u32 %v4263, 4294901760
    %v6251 = vsub.f32 %v4263, %v6250
    %v6252 = vand.u32 %v6251, 4294901760
    %v6253 = vsub.f32 %v6251, %v6252
    %v6254 = vand.u32 %v6253, 4294901760
    %6255 = vmatpush1.msra.mxu0 %v6254
    %6256 = vmatprep.subr.mxu0 0.0
    %v6257 = vand.u32 %v4264, 4294901760
    %v6258 = vsub.f32 %v4264, %v6257
    %v6259 = vand.u32 %v6258, 4294901760
    %v6260 = vsub.f32 %v6258, %v6259
    %v6261 = vand.u32 %v6260, 4294901760
    %6262 = vmatpush1.msra.mxu0 %v6261
    %6263 = vmatprep.subr.mxu0 0.0
    %v6264 = vand.u32 %v4265, 4294901760
    %v6265 = vsub.f32 %v4265, %v6264
    %v6266 = vand.u32 %v6265, 4294901760
    %v6267 = vsub.f32 %v6265, %v6266
    %v6268 = vand.u32 %v6267, 4294901760
    %6269 = vmatpush1.msra.mxu0 %v6268
    %6270 = vmatprep.subr.mxu0 0.0
    %6271 = vmatpush1.msra.mxu0 0.0
    %6272 = vmatprep.subr.mxu0 0.0
    %6273 = vmatpush1.msra.mxu0 0.0
    %6274 = vmatprep.subr.mxu0 0.0
    %6275 = vmatpush1.msra.mxu0 0.0
    %6276 = vmatprep.subr.mxu0 0.0
    %6277 = vmatpush1.msra.mxu0 0.0
    %6278 = vmatprep.subr.mxu0 0.0
    %6279 = vmatpush1.msra.mxu0 0.0
    %6280 = vmatprep.subr.mxu0 0.0
    %6281 = vmatpush1.msra.mxu0 0.0
    %6282 = vmatprep.subr.mxu0 0.0
    %6283 = vmatpush1.msra.mxu0 0.0
    %6284 = vmatprep.subr.mxu0 0.0
    %6285 = vmatpush1.msra.mxu0 0.0
    %6286 = vmatprep.subr.mxu0 0.0
    %6287 = vmatpush1.msra.mxu0 0.0
    %6288 = vmatprep.subr.mxu0 0.0
    %6289 = vmatpush1.msra.mxu0 0.0
    %6290 = vmatprep.subr.mxu0 0.0
    %6291 = vmatpush1.msra.mxu0 0.0
    %6292 = vmatprep.subr.mxu0 0.0
    %6293 = vmatpush1.msra.mxu0 0.0
    %6294 = vmatprep.subr.mxu0 0.0
    %6295 = vmatpush1.msra.mxu0 0.0
    %6296 = vmatprep.subr.mxu0 0.0
    %6297 = vmatpush1.msra.mxu0 0.0
    %6298 = vmatprep.subr.mxu0 0.0
    %6299 = vmatpush1.msra.mxu0 0.0
    %6300 = vmatprep.subr.mxu0 0.0
    %6301 = vmatpush1.msra.mxu0 0.0
    %6302 = vmatprep.subr.mxu0 0.0
    %6303 = vmatpush1.msra.mxu0 0.0
    %6304 = vmatprep.subr.mxu0 0.0
    %6305 = vmatpush1.msra.mxu0 0.0
    %6306 = vmatprep.subr.mxu0 0.0
    %6307 = vmatpush1.msra.mxu0 0.0
    %6308 = vmatprep.subr.mxu0 0.0
    %6309 = vmatpush1.msra.mxu0 0.0
    %6310 = vmatprep.subr.mxu0 0.0
    %6311 = vmatpush1.msra.mxu0 0.0
    %6312 = vmatprep.subr.mxu0 0.0
    %6313 = vmatpush1.msra.mxu0 0.0
    %6314 = vmatprep.subr.mxu0 0.0
    %6315 = vmatpush1.msra.mxu0 0.0
    %6316 = vmatprep.subr.mxu0 0.0
    %6317 = vmatpush1.msra.mxu0 0.0
    %6318 = vmatprep.subr.mxu0 0.0
    %6319 = vmatpush1.msra.mxu0 0.0
    %6320 = vmatprep.subr.mxu0 0.0
    %6321 = vmatpush1.msra.mxu0 0.0
    %6322 = vmatprep.subr.mxu0 0.0
    %6323 = vmatpush1.msra.mxu0 0.0
    %6324 = vmatprep.subr.mxu0 0.0
    %6325 = vmatpush1.msra.mxu0 0.0
    %6326 = vmatprep.mubr.f32.mxu0 0.0
    %v6327 = vand.u32 %v6148, 4294901760
    %6328 = vmatmul.mubr.f32.gmra.mrb[0].mxu0 %v6327
    %v6329 = vpop.f32.mrb[0].mxu0
    %v6330 = vadd.f32 %v6229, %v6329
    %v6331 = vpop.f32.mrb[0].mxu0
    %6332 = vmatprep.mubr.f32.mxu0 0.0
    %v6333 = vand.u32 %v6151, 4294901760
    %6334 = vmatmul.mubr.f32.gmra.mrb[0].mxu0 %v6333
    %v6335 = vpop.f32.mrb[0].mxu0
    %v6336 = vadd.f32 %v6239, %v6335
    %v6337 = vpop.f32.mrb[0].mxu0
    %6338 = vdwg.mxu0
    %6339 = vmatprep.subr.mxu0 0.0
    %v6340 = vand.u32 %v4262, 4294901760
    %v6341 = vsub.f32 %v4262, %v6340
    %6342 = vmatpush1.msra.mxu0 %v6341
    %6343 = vmatprep.subr.mxu0 0.0
    %v6344 = vand.u32 %v4263, 4294901760
    %v6345 = vsub.f32 %v4263, %v6344
    %6346 = vmatpush1.msra.mxu0 %v6345
    %6347 = vmatprep.subr.mxu0 0.0
    %v6348 = vand.u32 %v4264, 4294901760
    %v6349 = vsub.f32 %v4264, %v6348
    %6350 = vmatpush1.msra.mxu0 %v6349
    %6351 = vmatprep.subr.mxu0 0.0
    %v6352 = vand.u32 %v4265, 4294901760
    %v6353 = vsub.f32 %v4265, %v6352
    %6354 = vmatpush1.msra.mxu0 %v6353
    %6355 = vmatprep.subr.mxu0 0.0
    %6356 = vmatpush1.msra.mxu0 0.0
    %6357 = vmatprep.subr.mxu0 0.0
    %6358 = vmatpush1.msra.mxu0 0.0
    %6359 = vmatprep.subr.mxu0 0.0
    %6360 = vmatpush1.msra.mxu0 0.0
    %6361 = vmatprep.subr.mxu0 0.0
    %6362 = vmatpush1.msra.mxu0 0.0
    %6363 = vmatprep.subr.mxu0 0.0
    %6364 = vmatpush1.msra.mxu0 0.0
    %6365 = vmatprep.subr.mxu0 0.0
    %6366 = vmatpush1.msra.mxu0 0.0
    %6367 = vmatprep.subr.mxu0 0.0
    %6368 = vmatpush1.msra.mxu0 0.0
    %6369 = vmatprep.subr.mxu0 0.0
    %6370 = vmatpush1.msra.mxu0 0.0
    %6371 = vmatprep.subr.mxu0 0.0
    %6372 = vmatpush1.msra.mxu0 0.0
    %6373 = vmatprep.subr.mxu0 0.0
    %6374 = vmatpush1.msra.mxu0 0.0
    %6375 = vmatprep.subr.mxu0 0.0
    %6376 = vmatpush1.msra.mxu0 0.0
    %6377 = vmatprep.subr.mxu0 0.0
    %6378 = vmatpush1.msra.mxu0 0.0
    %6379 = vmatprep.subr.mxu0 0.0
    %6380 = vmatpush1.msra.mxu0 0.0
    %6381 = vmatprep.subr.mxu0 0.0
    %6382 = vmatpush1.msra.mxu0 0.0
    %6383 = vmatprep.subr.mxu0 0.0
    %6384 = vmatpush1.msra.mxu0 0.0
    %6385 = vmatprep.subr.mxu0 0.0
    %6386 = vmatpush1.msra.mxu0 0.0
    %6387 = vmatprep.subr.mxu0 0.0
    %6388 = vmatpush1.msra.mxu0 0.0
    %6389 = vmatprep.subr.mxu0 0.0
    %6390 = vmatpush1.msra.mxu0 0.0
    %6391 = vmatprep.subr.mxu0 0.0
    %6392 = vmatpush1.msra.mxu0 0.0
    %6393 = vmatprep.subr.mxu0 0.0
    %6394 = vmatpush1.msra.mxu0 0.0
    %6395 = vmatprep.subr.mxu0 0.0
    %6396 = vmatpush1.msra.mxu0 0.0
    %6397 = vmatprep.subr.mxu0 0.0
    %6398 = vmatpush1.msra.mxu0 0.0
    %6399 = vmatprep.subr.mxu0 0.0
    %6400 = vmatpush1.msra.mxu0 0.0
    %6401 = vmatprep.subr.mxu0 0.0
    %6402 = vmatpush1.msra.mxu0 0.0
    %6403 = vmatprep.subr.mxu0 0.0
    %6404 = vmatpush1.msra.mxu0 0.0
    %6405 = vmatprep.subr.mxu0 0.0
    %6406 = vmatpush1.msra.mxu0 0.0
    %6407 = vmatprep.subr.mxu0 0.0
    %6408 = vmatpush1.msra.mxu0 0.0
    %6409 = vmatprep.subr.mxu0 0.0
    %6410 = vmatpush1.msra.mxu0 0.0
    %6411 = vmatprep.mubr.f32.mxu0 0.0
    %v6412 = vand.u32 %v6148, 4294901760
    %v6413 = vsub.f32 %v6148, %v6412
    %6414 = vmatmul.mubr.f32.gmra.mrb[0].mxu0 %v6413
    %v6415 = vpop.f32.mrb[0].mxu0
    %v6416 = vadd.f32 %v6330, %v6415
    %v6417 = vpop.f32.mrb[0].mxu0
    %6418 = vmatprep.mubr.f32.mxu0 0.0
    %v6419 = vand.u32 %v6151, 4294901760
    %v6420 = vsub.f32 %v6151, %v6419
    %6421 = vmatmul.mubr.f32.gmra.mrb[0].mxu0 %v6420
    %v6422 = vpop.f32.mrb[0].mxu0
    %v6423 = vadd.f32 %v6336, %v6422
    %v6424 = vpop.f32.mrb[0].mxu0
    %6425 = vdwg.mxu0
    %6426 = vmatprep.subr.mxu0 0.0
    %v6427 = vand.u32 %v4262, 4294901760
    %6428 = vmatpush1.msra.mxu0 %v6427
    %6429 = vmatprep.subr.mxu0 0.0
    %v6430 = vand.u32 %v4263, 4294901760
    %6431 = vmatpush1.msra.mxu0 %v6430
    %6432 = vmatprep.subr.mxu0 0.0
    %v6433 = vand.u32 %v4264, 4294901760
    %6434 = vmatpush1.msra.mxu0 %v6433
    %6435 = vmatprep.subr.mxu0 0.0
    %v6436 = vand.u32 %v4265, 4294901760
    %6437 = vmatpush1.msra.mxu0 %v6436
    %6438 = vmatprep.subr.mxu0 0.0
    %6439 = vmatpush1.msra.mxu0 0.0
    %6440 = vmatprep.subr.mxu0 0.0
    %6441 = vmatpush1.msra.mxu0 0.0
    %6442 = vmatprep.subr.mxu0 0.0
    %6443 = vmatpush1.msra.mxu0 0.0
    %6444 = vmatprep.subr.mxu0 0.0
    %6445 = vmatpush1.msra.mxu0 0.0
    %6446 = vmatprep.subr.mxu0 0.0
    %6447 = vmatpush1.msra.mxu0 0.0
    %6448 = vmatprep.subr.mxu0 0.0
    %6449 = vmatpush1.msra.mxu0 0.0
    %6450 = vmatprep.subr.mxu0 0.0
    %6451 = vmatpush1.msra.mxu0 0.0
    %6452 = vmatprep.subr.mxu0 0.0
    %6453 = vmatpush1.msra.mxu0 0.0
    %6454 = vmatprep.subr.mxu0 0.0
    %6455 = vmatpush1.msra.mxu0 0.0
    %6456 = vmatprep.subr.mxu0 0.0
    %6457 = vmatpush1.msra.mxu0 0.0
    %6458 = vmatprep.subr.mxu0 0.0
    %6459 = vmatpush1.msra.mxu0 0.0
    %6460 = vmatprep.subr.mxu0 0.0
    %6461 = vmatpush1.msra.mxu0 0.0
    %6462 = vmatprep.subr.mxu0 0.0
    %6463 = vmatpush1.msra.mxu0 0.0
    %6464 = vmatprep.subr.mxu0 0.0
    %6465 = vmatpush1.msra.mxu0 0.0
    %6466 = vmatprep.subr.mxu0 0.0
    %6467 = vmatpush1.msra.mxu0 0.0
    %6468 = vmatprep.subr.mxu0 0.0
    %6469 = vmatpush1.msra.mxu0 0.0
    %6470 = vmatprep.subr.mxu0 0.0
    %6471 = vmatpush1.msra.mxu0 0.0
    %6472 = vmatprep.subr.mxu0 0.0
    %6473 = vmatpush1.msra.mxu0 0.0
    %6474 = vmatprep.subr.mxu0 0.0
    %6475 = vmatpush1.msra.mxu0 0.0
    %6476 = vmatprep.subr.mxu0 0.0
    %6477 = vmatpush1.msra.mxu0 0.0
    %6478 = vmatprep.subr.mxu0 0.0
    %6479 = vmatpush1.msra.mxu0 0.0
    %6480 = vmatprep.subr.mxu0 0.0
    %6481 = vmatpush1.msra.mxu0 0.0
    %6482 = vmatprep.subr.mxu0 0.0
    %6483 = vmatpush1.msra.mxu0 0.0
    %6484 = vmatprep.subr.mxu0 0.0
    %6485 = vmatpush1.msra.mxu0 0.0
    %6486 = vmatprep.subr.mxu0 0.0
    %6487 = vmatpush1.msra.mxu0 0.0
    %6488 = vmatprep.subr.mxu0 0.0
    %6489 = vmatpush1.msra.mxu0 0.0
    %6490 = vmatprep.subr.mxu0 0.0
    %6491 = vmatpush1.msra.mxu0 0.0
    %6492 = vmatprep.subr.mxu0 0.0
    %6493 = vmatpush1.msra.mxu0 0.0
    %6494 = vmatprep.mubr.f32.mxu0 0.0
    %v6495 = vand.u32 %v6148, 4294901760
    %v6496 = vsub.f32 %v6148, %v6495
    %v6497 = vand.u32 %v6496, 4294901760
    %6498 = vmatmul.mubr.f32.gmra.mrb[0].mxu0 %v6497
    %v6499 = vpop.f32.mrb[0].mxu0
    %v6500 = vadd.f32 %v6416, %v6499
    %v6501 = vpop.f32.mrb[0].mxu0
    %6502 = vmatprep.mubr.f32.mxu0 0.0
    %v6503 = vand.u32 %v6151, 4294901760
    %v6504 = vsub.f32 %v6151, %v6503
    %v6505 = vand.u32 %v6504, 4294901760
    %6506 = vmatmul.mubr.f32.gmra.mrb[0].mxu0 %v6505
    %v6507 = vpop.f32.mrb[0].mxu0
    %v6508 = vadd.f32 %v6423, %v6507
    %v6509 = vpop.f32.mrb[0].mxu0
    %6510 = vdwg.mxu0
    %6511 = vmatprep.subr.mxu0 0.0
    %v6512 = vand.u32 %v4262, 4294901760
    %v6513 = vsub.f32 %v4262, %v6512
    %v6514 = vand.u32 %v6513, 4294901760
    %6515 = vmatpush1.msra.mxu0 %v6514
    %6516 = vmatprep.subr.mxu0 0.0
    %v6517 = vand.u32 %v4263, 4294901760
    %v6518 = vsub.f32 %v4263, %v6517
    %v6519 = vand.u32 %v6518, 4294901760
    %6520 = vmatpush1.msra.mxu0 %v6519
    %6521 = vmatprep.subr.mxu0 0.0
    %v6522 = vand.u32 %v4264, 4294901760
    %v6523 = vsub.f32 %v4264, %v6522
    %v6524 = vand.u32 %v6523, 4294901760
    %6525 = vmatpush1.msra.mxu0 %v6524
    %6526 = vmatprep.subr.mxu0 0.0
    %v6527 = vand.u32 %v4265, 4294901760
    %v6528 = vsub.f32 %v4265, %v6527
    %v6529 = vand.u32 %v6528, 4294901760
    %6530 = vmatpush1.msra.mxu0 %v6529
    %6531 = vmatprep.subr.mxu0 0.0
    %6532 = vmatpush1.msra.mxu0 0.0
    %6533 = vmatprep.subr.mxu0 0.0
    %6534 = vmatpush1.msra.mxu0 0.0
    %6535 = vmatprep.subr.mxu0 0.0
    %6536 = vmatpush1.msra.mxu0 0.0
    %6537 = vmatprep.subr.mxu0 0.0
    %6538 = vmatpush1.msra.mxu0 0.0
    %6539 = vmatprep.subr.mxu0 0.0
    %6540 = vmatpush1.msra.mxu0 0.0
    %6541 = vmatprep.subr.mxu0 0.0
    %6542 = vmatpush1.msra.mxu0 0.0
    %6543 = vmatprep.subr.mxu0 0.0
    %6544 = vmatpush1.msra.mxu0 0.0
    %6545 = vmatprep.subr.mxu0 0.0
    %6546 = vmatpush1.msra.mxu0 0.0
    %6547 = vmatprep.subr.mxu0 0.0
    %6548 = vmatpush1.msra.mxu0 0.0
    %6549 = vmatprep.subr.mxu0 0.0
    %6550 = vmatpush1.msra.mxu0 0.0
    %6551 = vmatprep.subr.mxu0 0.0
    %6552 = vmatpush1.msra.mxu0 0.0
    %6553 = vmatprep.subr.mxu0 0.0
    %6554 = vmatpush1.msra.mxu0 0.0
    %6555 = vmatprep.subr.mxu0 0.0
    %6556 = vmatpush1.msra.mxu0 0.0
    %6557 = vmatprep.subr.mxu0 0.0
    %6558 = vmatpush1.msra.mxu0 0.0
    %6559 = vmatprep.subr.mxu0 0.0
    %6560 = vmatpush1.msra.mxu0 0.0
    %6561 = vmatprep.subr.mxu0 0.0
    %6562 = vmatpush1.msra.mxu0 0.0
    %6563 = vmatprep.subr.mxu0 0.0
    %6564 = vmatpush1.msra.mxu0 0.0
    %6565 = vmatprep.subr.mxu0 0.0
    %6566 = vmatpush1.msra.mxu0 0.0
    %6567 = vmatprep.subr.mxu0 0.0
    %6568 = vmatpush1.msra.mxu0 0.0
    %6569 = vmatprep.subr.mxu0 0.0
    %6570 = vmatpush1.msra.mxu0 0.0
    %6571 = vmatprep.subr.mxu0 0.0
    %6572 = vmatpush1.msra.mxu0 0.0
    %6573 = vmatprep.subr.mxu0 0.0
    %6574 = vmatpush1.msra.mxu0 0.0
    %6575 = vmatprep.subr.mxu0 0.0
    %6576 = vmatpush1.msra.mxu0 0.0
    %6577 = vmatprep.subr.mxu0 0.0
    %6578 = vmatpush1.msra.mxu0 0.0
    %6579 = vmatprep.subr.mxu0 0.0
    %6580 = vmatpush1.msra.mxu0 0.0
    %6581 = vmatprep.subr.mxu0 0.0
    %6582 = vmatpush1.msra.mxu0 0.0
    %6583 = vmatprep.subr.mxu0 0.0
    %6584 = vmatpush1.msra.mxu0 0.0
    %6585 = vmatprep.subr.mxu0 0.0
    %6586 = vmatpush1.msra.mxu0 0.0
    %6587 = vmatprep.mubr.f32.mxu0 0.0
    %v6588 = vand.u32 %v6148, 4294901760
    %6589 = vmatmul.mubr.f32.gmra.mrb[0].mxu0 %v6588
    %v6590 = vpop.f32.mrb[0].mxu0
    %v6591 = vadd.f32 %v6500, %v6590
    %v6592 = vpop.f32.mrb[0].mxu0
    %6593 = vmatprep.mubr.f32.mxu0 0.0
    %v6594 = vand.u32 %v6151, 4294901760
    %6595 = vmatmul.mubr.f32.gmra.mrb[0].mxu0 %v6594
    %v6596 = vpop.f32.mrb[0].mxu0
    %v6597 = vadd.f32 %v6508, %v6596
    %v6598 = vpop.f32.mrb[0].mxu0
    %6599 = vdwg.mxu0
    %6600 = vmatprep.subr.mxu0 0.0
    %v6601 = vand.u32 %v4262, 4294901760
    %6602 = vmatpush1.msra.mxu0 %v6601
    %6603 = vmatprep.subr.mxu0 0.0
    %v6604 = vand.u32 %v4263, 4294901760
    %6605 = vmatpush1.msra.mxu0 %v6604
    %6606 = vmatprep.subr.mxu0 0.0
    %v6607 = vand.u32 %v4264, 4294901760
    %6608 = vmatpush1.msra.mxu0 %v6607
    %6609 = vmatprep.subr.mxu0 0.0
    %v6610 = vand.u32 %v4265, 4294901760
    %6611 = vmatpush1.msra.mxu0 %v6610
    %6612 = vmatprep.subr.mxu0 0.0
    %6613 = vmatpush1.msra.mxu0 0.0
    %6614 = vmatprep.subr.mxu0 0.0
    %6615 = vmatpush1.msra.mxu0 0.0
    %6616 = vmatprep.subr.mxu0 0.0
    %6617 = vmatpush1.msra.mxu0 0.0
    %6618 = vmatprep.subr.mxu0 0.0
    %6619 = vmatpush1.msra.mxu0 0.0
    %6620 = vmatprep.subr.mxu0 0.0
    %6621 = vmatpush1.msra.mxu0 0.0
    %6622 = vmatprep.subr.mxu0 0.0
    %6623 = vmatpush1.msra.mxu0 0.0
    %6624 = vmatprep.subr.mxu0 0.0
    %6625 = vmatpush1.msra.mxu0 0.0
    %6626 = vmatprep.subr.mxu0 0.0
    %6627 = vmatpush1.msra.mxu0 0.0
    %6628 = vmatprep.subr.mxu0 0.0
    %6629 = vmatpush1.msra.mxu0 0.0
    %6630 = vmatprep.subr.mxu0 0.0
    %6631 = vmatpush1.msra.mxu0 0.0
    %6632 = vmatprep.subr.mxu0 0.0
    %6633 = vmatpush1.msra.mxu0 0.0
    %6634 = vmatprep.subr.mxu0 0.0
    %6635 = vmatpush1.msra.mxu0 0.0
    %6636 = vmatprep.subr.mxu0 0.0
    %6637 = vmatpush1.msra.mxu0 0.0
    %6638 = vmatprep.subr.mxu0 0.0
    %6639 = vmatpush1.msra.mxu0 0.0
    %6640 = vmatprep.subr.mxu0 0.0
    %6641 = vmatpush1.msra.mxu0 0.0
    %6642 = vmatprep.subr.mxu0 0.0
    %6643 = vmatpush1.msra.mxu0 0.0
    %6644 = vmatprep.subr.mxu0 0.0
    %6645 = vmatpush1.msra.mxu0 0.0
    %6646 = vmatprep.subr.mxu0 0.0
    %6647 = vmatpush1.msra.mxu0 0.0
    %6648 = vmatprep.subr.mxu0 0.0
    %6649 = vmatpush1.msra.mxu0 0.0
    %6650 = vmatprep.subr.mxu0 0.0
    %6651 = vmatpush1.msra.mxu0 0.0
    %6652 = vmatprep.subr.mxu0 0.0
    %6653 = vmatpush1.msra.mxu0 0.0
    %6654 = vmatprep.subr.mxu0 0.0
    %6655 = vmatpush1.msra.mxu0 0.0
    %6656 = vmatprep.subr.mxu0 0.0
    %6657 = vmatpush1.msra.mxu0 0.0
    %6658 = vmatprep.subr.mxu0 0.0
    %6659 = vmatpush1.msra.mxu0 0.0
    %6660 = vmatprep.subr.mxu0 0.0
    %6661 = vmatpush1.msra.mxu0 0.0
    %6662 = vmatprep.subr.mxu0 0.0
    %6663 = vmatpush1.msra.mxu0 0.0
    %6664 = vmatprep.subr.mxu0 0.0
    %6665 = vmatpush1.msra.mxu0 0.0
    %6666 = vmatprep.subr.mxu0 0.0
    %6667 = vmatpush1.msra.mxu0 0.0
    %6668 = vmatprep.mubr.f32.mxu0 0.0
    %v6669 = vand.u32 %v6148, 4294901760
    %6670 = vmatmul.mubr.f32.gmra.mrb[0].mxu0 %v6669
    %v6671 = vpop.f32.mrb[0].mxu0
    %v6672 = vadd.f32 %v6591, %v6671
    %v6673 = vpop.f32.mrb[0].mxu0
    %6674 = vmatprep.mubr.f32.mxu0 0.0
    %v6675 = vand.u32 %v6151, 4294901760
    %6676 = vmatmul.mubr.f32.gmra.mrb[0].mxu0 %v6675
    %v6677 = vpop.f32.mrb[0].mxu0
    %v6678 = vadd.f32 %v6597, %v6677
    %v6679 = vpop.f32.mrb[0].mxu0
    %6680 = vdwg.mxu0
    %v6681 = vadd.f32 %v6672, %v3134
    %v6682 = vadd.f32 %v6678, %v3135
    %v6683 = vld [vmem:[%s16] sm:$0x1]
    %v6684 = vld [vmem:[%s17] sm:$0x1]
    %v6685 = vsel %vm93, %v6681, 0.0
    %6686 = vadd.xlane.f32.xlu0 %v6685
    %v6687 = vpop.xlane.xlu0 %6686
    %v6688 = vsel %vm93, %v6682, 0.0
    %6689 = vadd.xlane.f32.xlu0 %v6688
    %v6690 = vpop.xlane.xlu0 %6689
    %v6691 = vmul.f32 %v6687, %v3099
    %v6692 = vmul.f32 %v6690, %v3099
    %v6693 = vsub.f32 %v6681, %v6691
    %v6694 = vsub.f32 %v6682, %v6692
    %v6695 = vmul.f32 %v6693, %v6693
    %v6696 = vmul.f32 %v6694, %v6694
    %v6697 = vsel %vm93, %v6695, 0.0
    %6698 = vadd.xlane.f32.xlu0 %v6697
    %v6699 = vpop.xlane.xlu0 %6698
    %v6700 = vsel %vm93, %v6696, 0.0
    %6701 = vadd.xlane.f32.xlu0 %v6700
    %v6702 = vpop.xlane.xlu0 %6701
    %v6703 = vmul.f32 %v6699, %v3099
    %v6704 = vmul.f32 %v6702, %v3099
    %v6705 = vadd.f32 %v6703, 1e-05
    %v6706 = vadd.f32 %v6704, 1e-05
    %v6707 = vrsqrt.pop %v6705
    %v6708 = vrsqrt.pop %v6706
    %v6709 = vmul.f32 %v6693, %v6707
    %v6710 = vmul.f32 %v6694, %v6708
    %v6712 = vlaneseq
    %v6713 = vshrl.u32 %v6712, 7
    %v6714 = vsub.s32 0, %v6713
    %v6715 = vrot.slane %v6683, %v6714
    %v6717 = vmul.f32 %v6709, %v6715
    %v6718 = vmul.f32 %v6710, %v6715
    %v6720 = vlaneseq
    %v6721 = vshrl.u32 %v6720, 7
    %v6722 = vsub.s32 0, %v6721
    %v6723 = vrot.slane %v6684, %v6722
    %v6725 = vadd.f32 %v6717, %v6723
    %v6726 = vadd.f32 %v6718, %v6723
    %v6727 = vld [vmem:[%s18] sm:$0xff]
    %v6728 = vld [vmem:[%s18 + $0x8] sm:$0xff]
    %v6729 = vld [vmem:[%s18 + $0x10] sm:$0xff]
    %v6730 = vld [vmem:[%s18 + $0x18] sm:$0xff]
    %v6731 = vld [vmem:[%s19] sm:$0x1]
    %v6733 = vlaneseq
    %v6734 = vshrl.u32 %v6733, 7
    %v6735 = vsub.s32 0, %v6734
    %v6736 = vrot.slane %v6731, %v6735
    %v6739 = vsel %vm93, %v6725, 0
    %v6742 = vsel %vm93, %v6726, 0
    %6744 = vmatprep.subr.mxu0 0.0
    %v6745 = vand.u32 %v6727, 4294901760
    %6746 = vmatpush1.msra.mxu0 %v6745
    %6747 = vmatprep.subr.mxu0 0.0
    %v6748 = vand.u32 %v6728, 4294901760
    %6749 = vmatpush1.msra.mxu0 %v6748
    %6750 = vmatprep.subr.mxu0 0.0
    %v6751 = vand.u32 %v6729, 4294901760
    %6752 = vmatpush1.msra.mxu0 %v6751
    %6753 = vmatprep.subr.mxu0 0.0
    %v6754 = vand.u32 %v6730, 4294901760
    %6755 = vmatpush1.msra.mxu0 %v6754
    %6756 = vmatprep.subr.mxu0 0.0
    %6757 = vmatpush1.msra.mxu0 0.0
    %6758 = vmatprep.subr.mxu0 0.0
    %6759 = vmatpush1.msra.mxu0 0.0
    %6760 = vmatprep.subr.mxu0 0.0
    %6761 = vmatpush1.msra.mxu0 0.0
    %6762 = vmatprep.subr.mxu0 0.0
    %6763 = vmatpush1.msra.mxu0 0.0
    %6764 = vmatprep.subr.mxu0 0.0
    %6765 = vmatpush1.msra.mxu0 0.0
    %6766 = vmatprep.subr.mxu0 0.0
    %6767 = vmatpush1.msra.mxu0 0.0
    %6768 = vmatprep.subr.mxu0 0.0
    %6769 = vmatpush1.msra.mxu0 0.0
    %6770 = vmatprep.subr.mxu0 0.0
    %6771 = vmatpush1.msra.mxu0 0.0
    %6772 = vmatprep.subr.mxu0 0.0
    %6773 = vmatpush1.msra.mxu0 0.0
    %6774 = vmatprep.subr.mxu0 0.0
    %6775 = vmatpush1.msra.mxu0 0.0
    %6776 = vmatprep.subr.mxu0 0.0
    %6777 = vmatpush1.msra.mxu0 0.0
    %6778 = vmatprep.subr.mxu0 0.0
    %6779 = vmatpush1.msra.mxu0 0.0
    %6780 = vmatprep.subr.mxu0 0.0
    %6781 = vmatpush1.msra.mxu0 0.0
    %6782 = vmatprep.subr.mxu0 0.0
    %6783 = vmatpush1.msra.mxu0 0.0
    %6784 = vmatprep.subr.mxu0 0.0
    %6785 = vmatpush1.msra.mxu0 0.0
    %6786 = vmatprep.subr.mxu0 0.0
    %6787 = vmatpush1.msra.mxu0 0.0
    %6788 = vmatprep.subr.mxu0 0.0
    %6789 = vmatpush1.msra.mxu0 0.0
    %6790 = vmatprep.subr.mxu0 0.0
    %6791 = vmatpush1.msra.mxu0 0.0
    %6792 = vmatprep.subr.mxu0 0.0
    %6793 = vmatpush1.msra.mxu0 0.0
    %6794 = vmatprep.subr.mxu0 0.0
    %6795 = vmatpush1.msra.mxu0 0.0
    %6796 = vmatprep.subr.mxu0 0.0
    %6797 = vmatpush1.msra.mxu0 0.0
    %6798 = vmatprep.subr.mxu0 0.0
    %6799 = vmatpush1.msra.mxu0 0.0
    %6800 = vmatprep.subr.mxu0 0.0
    %6801 = vmatpush1.msra.mxu0 0.0
    %6802 = vmatprep.subr.mxu0 0.0
    %6803 = vmatpush1.msra.mxu0 0.0
    %6804 = vmatprep.subr.mxu0 0.0
    %6805 = vmatpush1.msra.mxu0 0.0
    %6806 = vmatprep.subr.mxu0 0.0
    %6807 = vmatpush1.msra.mxu0 0.0
    %6808 = vmatprep.subr.mxu0 0.0
    %6809 = vmatpush1.msra.mxu0 0.0
    %6810 = vmatprep.subr.mxu0 0.0
    %6811 = vmatpush1.msra.mxu0 0.0
    %6812 = vmatprep.mubr.f32.mxu0 0.0
    %v6813 = vand.u32 %v6739, 4294901760
    %v6814 = vsub.f32 %v6739, %v6813
    %v6815 = vand.u32 %v6814, 4294901760
    %v6816 = vsub.f32 %v6814, %v6815
    %v6817 = vand.u32 %v6816, 4294901760
    %6818 = vmatmul.mubr.f32.gmra.mrb[0].mxu0 %v6817
    %v6819 = vpop.f32.mrb[0].mxu0
    %v6820 = vadd.f32 %v6736, %v6819
    %v6821 = vpop.f32.mrb[0].mxu0
    %6822 = vmatprep.mubr.f32.mxu0 0.0
    %v6823 = vand.u32 %v6742, 4294901760
    %v6824 = vsub.f32 %v6742, %v6823
    %v6825 = vand.u32 %v6824, 4294901760
    %v6826 = vsub.f32 %v6824, %v6825
    %v6827 = vand.u32 %v6826, 4294901760
    %6828 = vmatmul.mubr.f32.gmra.mrb[0].mxu0 %v6827
    %v6829 = vpop.f32.mrb[0].mxu0
    %v6830 = vadd.f32 %v6736, %v6829
    %v6831 = vpop.f32.mrb[0].mxu0
    %6832 = vdwg.mxu0
    %6833 = vmatprep.subr.mxu0 0.0
    %v6834 = vand.u32 %v6727, 4294901760
    %v6835 = vsub.f32 %v6727, %v6834
    %v6836 = vand.u32 %v6835, 4294901760
    %v6837 = vsub.f32 %v6835, %v6836
    %v6838 = vand.u32 %v6837, 4294901760
    %6839 = vmatpush1.msra.mxu0 %v6838
    %6840 = vmatprep.subr.mxu0 0.0
    %v6841 = vand.u32 %v6728, 4294901760
    %v6842 = vsub.f32 %v6728, %v6841
    %v6843 = vand.u32 %v6842, 4294901760
    %v6844 = vsub.f32 %v6842, %v6843
    %v6845 = vand.u32 %v6844, 4294901760
    %6846 = vmatpush1.msra.mxu0 %v6845
    %6847 = vmatprep.subr.mxu0 0.0
    %v6848 = vand.u32 %v6729, 4294901760
    %v6849 = vsub.f32 %v6729, %v6848
    %v6850 = vand.u32 %v6849, 4294901760
    %v6851 = vsub.f32 %v6849, %v6850
    %v6852 = vand.u32 %v6851, 4294901760
    %6853 = vmatpush1.msra.mxu0 %v6852
    %6854 = vmatprep.subr.mxu0 0.0
    %v6855 = vand.u32 %v6730, 4294901760
    %v6856 = vsub.f32 %v6730, %v6855
    %v6857 = vand.u32 %v6856, 4294901760
    %v6858 = vsub.f32 %v6856, %v6857
    %v6859 = vand.u32 %v6858, 4294901760
    %6860 = vmatpush1.msra.mxu0 %v6859
    %6861 = vmatprep.subr.mxu0 0.0
    %6862 = vmatpush1.msra.mxu0 0.0
    %6863 = vmatprep.subr.mxu0 0.0
    %6864 = vmatpush1.msra.mxu0 0.0
    %6865 = vmatprep.subr.mxu0 0.0
    %6866 = vmatpush1.msra.mxu0 0.0
    %6867 = vmatprep.subr.mxu0 0.0
    %6868 = vmatpush1.msra.mxu0 0.0
    %6869 = vmatprep.subr.mxu0 0.0
    %6870 = vmatpush1.msra.mxu0 0.0
    %6871 = vmatprep.subr.mxu0 0.0
    %6872 = vmatpush1.msra.mxu0 0.0
    %6873 = vmatprep.subr.mxu0 0.0
    %6874 = vmatpush1.msra.mxu0 0.0
    %6875 = vmatprep.subr.mxu0 0.0
    %6876 = vmatpush1.msra.mxu0 0.0
    %6877 = vmatprep.subr.mxu0 0.0
    %6878 = vmatpush1.msra.mxu0 0.0
    %6879 = vmatprep.subr.mxu0 0.0
    %6880 = vmatpush1.msra.mxu0 0.0
    %6881 = vmatprep.subr.mxu0 0.0
    %6882 = vmatpush1.msra.mxu0 0.0
    %6883 = vmatprep.subr.mxu0 0.0
    %6884 = vmatpush1.msra.mxu0 0.0
    %6885 = vmatprep.subr.mxu0 0.0
    %6886 = vmatpush1.msra.mxu0 0.0
    %6887 = vmatprep.subr.mxu0 0.0
    %6888 = vmatpush1.msra.mxu0 0.0
    %6889 = vmatprep.subr.mxu0 0.0
    %6890 = vmatpush1.msra.mxu0 0.0
    %6891 = vmatprep.subr.mxu0 0.0
    %6892 = vmatpush1.msra.mxu0 0.0
    %6893 = vmatprep.subr.mxu0 0.0
    %6894 = vmatpush1.msra.mxu0 0.0
    %6895 = vmatprep.subr.mxu0 0.0
    %6896 = vmatpush1.msra.mxu0 0.0
    %6897 = vmatprep.subr.mxu0 0.0
    %6898 = vmatpush1.msra.mxu0 0.0
    %6899 = vmatprep.subr.mxu0 0.0
    %6900 = vmatpush1.msra.mxu0 0.0
    %6901 = vmatprep.subr.mxu0 0.0
    %6902 = vmatpush1.msra.mxu0 0.0
    %6903 = vmatprep.subr.mxu0 0.0
    %6904 = vmatpush1.msra.mxu0 0.0
    %6905 = vmatprep.subr.mxu0 0.0
    %6906 = vmatpush1.msra.mxu0 0.0
    %6907 = vmatprep.subr.mxu0 0.0
    %6908 = vmatpush1.msra.mxu0 0.0
    %6909 = vmatprep.subr.mxu0 0.0
    %6910 = vmatpush1.msra.mxu0 0.0
    %6911 = vmatprep.subr.mxu0 0.0
    %6912 = vmatpush1.msra.mxu0 0.0
    %6913 = vmatprep.subr.mxu0 0.0
    %6914 = vmatpush1.msra.mxu0 0.0
    %6915 = vmatprep.subr.mxu0 0.0
    %6916 = vmatpush1.msra.mxu0 0.0
    %6917 = vmatprep.mubr.f32.mxu0 0.0
    %v6918 = vand.u32 %v6739, 4294901760
    %6919 = vmatmul.mubr.f32.gmra.mrb[0].mxu0 %v6918
    %v6920 = vpop.f32.mrb[0].mxu0
    %v6921 = vadd.f32 %v6820, %v6920
    %v6922 = vpop.f32.mrb[0].mxu0
    %6923 = vmatprep.mubr.f32.mxu0 0.0
    %v6924 = vand.u32 %v6742, 4294901760
    %6925 = vmatmul.mubr.f32.gmra.mrb[0].mxu0 %v6924
    %v6926 = vpop.f32.mrb[0].mxu0
    %v6927 = vadd.f32 %v6830, %v6926
    %v6928 = vpop.f32.mrb[0].mxu0
    %6929 = vdwg.mxu0
    %6930 = vmatprep.subr.mxu0 0.0
    %v6931 = vand.u32 %v6727, 4294901760
    %v6932 = vsub.f32 %v6727, %v6931
    %6933 = vmatpush1.msra.mxu0 %v6932
    %6934 = vmatprep.subr.mxu0 0.0
    %v6935 = vand.u32 %v6728, 4294901760
    %v6936 = vsub.f32 %v6728, %v6935
    %6937 = vmatpush1.msra.mxu0 %v6936
    %6938 = vmatprep.subr.mxu0 0.0
    %v6939 = vand.u32 %v6729, 4294901760
    %v6940 = vsub.f32 %v6729, %v6939
    %6941 = vmatpush1.msra.mxu0 %v6940
    %6942 = vmatprep.subr.mxu0 0.0
    %v6943 = vand.u32 %v6730, 4294901760
    %v6944 = vsub.f32 %v6730, %v6943
    %6945 = vmatpush1.msra.mxu0 %v6944
    %6946 = vmatprep.subr.mxu0 0.0
    %6947 = vmatpush1.msra.mxu0 0.0
    %6948 = vmatprep.subr.mxu0 0.0
    %6949 = vmatpush1.msra.mxu0 0.0
    %6950 = vmatprep.subr.mxu0 0.0
    %6951 = vmatpush1.msra.mxu0 0.0
    %6952 = vmatprep.subr.mxu0 0.0
    %6953 = vmatpush1.msra.mxu0 0.0
    %6954 = vmatprep.subr.mxu0 0.0
    %6955 = vmatpush1.msra.mxu0 0.0
    %6956 = vmatprep.subr.mxu0 0.0
    %6957 = vmatpush1.msra.mxu0 0.0
    %6958 = vmatprep.subr.mxu0 0.0
    %6959 = vmatpush1.msra.mxu0 0.0
    %6960 = vmatprep.subr.mxu0 0.0
    %6961 = vmatpush1.msra.mxu0 0.0
    %6962 = vmatprep.subr.mxu0 0.0
    %6963 = vmatpush1.msra.mxu0 0.0
    %6964 = vmatprep.subr.mxu0 0.0
    %6965 = vmatpush1.msra.mxu0 0.0
    %6966 = vmatprep.subr.mxu0 0.0
    %6967 = vmatpush1.msra.mxu0 0.0
    %6968 = vmatprep.subr.mxu0 0.0
    %6969 = vmatpush1.msra.mxu0 0.0
    %6970 = vmatprep.subr.mxu0 0.0
    %6971 = vmatpush1.msra.mxu0 0.0
    %6972 = vmatprep.subr.mxu0 0.0
    %6973 = vmatpush1.msra.mxu0 0.0
    %6974 = vmatprep.subr.mxu0 0.0
    %6975 = vmatpush1.msra.mxu0 0.0
    %6976 = vmatprep.subr.mxu0 0.0
    %6977 = vmatpush1.msra.mxu0 0.0
    %6978 = vmatprep.subr.mxu0 0.0
    %6979 = vmatpush1.msra.mxu0 0.0
    %6980 = vmatprep.subr.mxu0 0.0
    %6981 = vmatpush1.msra.mxu0 0.0
    %6982 = vmatprep.subr.mxu0 0.0
    %6983 = vmatpush1.msra.mxu0 0.0
    %6984 = vmatprep.subr.mxu0 0.0
    %6985 = vmatpush1.msra.mxu0 0.0
    %6986 = vmatprep.subr.mxu0 0.0
    %6987 = vmatpush1.msra.mxu0 0.0
    %6988 = vmatprep.subr.mxu0 0.0
    %6989 = vmatpush1.msra.mxu0 0.0
    %6990 = vmatprep.subr.mxu0 0.0
    %6991 = vmatpush1.msra.mxu0 0.0
    %6992 = vmatprep.subr.mxu0 0.0
    %6993 = vmatpush1.msra.mxu0 0.0
    %6994 = vmatprep.subr.mxu0 0.0
    %6995 = vmatpush1.msra.mxu0 0.0
    %6996 = vmatprep.subr.mxu0 0.0
    %6997 = vmatpush1.msra.mxu0 0.0
    %6998 = vmatprep.subr.mxu0 0.0
    %6999 = vmatpush1.msra.mxu0 0.0
    %7000 = vmatprep.subr.mxu0 0.0
    %7001 = vmatpush1.msra.mxu0 0.0
    %7002 = vmatprep.mubr.f32.mxu0 0.0
    %v7003 = vand.u32 %v6739, 4294901760
    %v7004 = vsub.f32 %v6739, %v7003
    %7005 = vmatmul.mubr.f32.gmra.mrb[0].mxu0 %v7004
    %v7006 = vpop.f32.mrb[0].mxu0
    %v7007 = vadd.f32 %v6921, %v7006
    %v7008 = vpop.f32.mrb[0].mxu0
    %7009 = vmatprep.mubr.f32.mxu0 0.0
    %v7010 = vand.u32 %v6742, 4294901760
    %v7011 = vsub.f32 %v6742, %v7010
    %7012 = vmatmul.mubr.f32.gmra.mrb[0].mxu0 %v7011
    %v7013 = vpop.f32.mrb[0].mxu0
    %v7014 = vadd.f32 %v6927, %v7013
    %v7015 = vpop.f32.mrb[0].mxu0
    %7016 = vdwg.mxu0
    %7017 = vmatprep.subr.mxu0 0.0
    %v7018 = vand.u32 %v6727, 4294901760
    %7019 = vmatpush1.msra.mxu0 %v7018
    %7020 = vmatprep.subr.mxu0 0.0
    %v7021 = vand.u32 %v6728, 4294901760
    %7022 = vmatpush1.msra.mxu0 %v7021
    %7023 = vmatprep.subr.mxu0 0.0
    %v7024 = vand.u32 %v6729, 4294901760
    %7025 = vmatpush1.msra.mxu0 %v7024
    %7026 = vmatprep.subr.mxu0 0.0
    %v7027 = vand.u32 %v6730, 4294901760
    %7028 = vmatpush1.msra.mxu0 %v7027
    %7029 = vmatprep.subr.mxu0 0.0
    %7030 = vmatpush1.msra.mxu0 0.0
    %7031 = vmatprep.subr.mxu0 0.0
    %7032 = vmatpush1.msra.mxu0 0.0
    %7033 = vmatprep.subr.mxu0 0.0
    %7034 = vmatpush1.msra.mxu0 0.0
    %7035 = vmatprep.subr.mxu0 0.0
    %7036 = vmatpush1.msra.mxu0 0.0
    %7037 = vmatprep.subr.mxu0 0.0
    %7038 = vmatpush1.msra.mxu0 0.0
    %7039 = vmatprep.subr.mxu0 0.0
    %7040 = vmatpush1.msra.mxu0 0.0
    %7041 = vmatprep.subr.mxu0 0.0
    %7042 = vmatpush1.msra.mxu0 0.0
    %7043 = vmatprep.subr.mxu0 0.0
    %7044 = vmatpush1.msra.mxu0 0.0
    %7045 = vmatprep.subr.mxu0 0.0
    %7046 = vmatpush1.msra.mxu0 0.0
    %7047 = vmatprep.subr.mxu0 0.0
    %7048 = vmatpush1.msra.mxu0 0.0
    %7049 = vmatprep.subr.mxu0 0.0
    %7050 = vmatpush1.msra.mxu0 0.0
    %7051 = vmatprep.subr.mxu0 0.0
    %7052 = vmatpush1.msra.mxu0 0.0
    %7053 = vmatprep.subr.mxu0 0.0
    %7054 = vmatpush1.msra.mxu0 0.0
    %7055 = vmatprep.subr.mxu0 0.0
    %7056 = vmatpush1.msra.mxu0 0.0
    %7057 = vmatprep.subr.mxu0 0.0
    %7058 = vmatpush1.msra.mxu0 0.0
    %7059 = vmatprep.subr.mxu0 0.0
    %7060 = vmatpush1.msra.mxu0 0.0
    %7061 = vmatprep.subr.mxu0 0.0
    %7062 = vmatpush1.msra.mxu0 0.0
    %7063 = vmatprep.subr.mxu0 0.0
    %7064 = vmatpush1.msra.mxu0 0.0
    %7065 = vmatprep.subr.mxu0 0.0
    %7066 = vmatpush1.msra.mxu0 0.0
    %7067 = vmatprep.subr.mxu0 0.0
    %7068 = vmatpush1.msra.mxu0 0.0
    %7069 = vmatprep.subr.mxu0 0.0
    %7070 = vmatpush1.msra.mxu0 0.0
    %7071 = vmatprep.subr.mxu0 0.0
    %7072 = vmatpush1.msra.mxu0 0.0
    %7073 = vmatprep.subr.mxu0 0.0
    %7074 = vmatpush1.msra.mxu0 0.0
    %7075 = vmatprep.subr.mxu0 0.0
    %7076 = vmatpush1.msra.mxu0 0.0
    %7077 = vmatprep.subr.mxu0 0.0
    %7078 = vmatpush1.msra.mxu0 0.0
    %7079 = vmatprep.subr.mxu0 0.0
    %7080 = vmatpush1.msra.mxu0 0.0
    %7081 = vmatprep.subr.mxu0 0.0
    %7082 = vmatpush1.msra.mxu0 0.0
    %7083 = vmatprep.subr.mxu0 0.0
    %7084 = vmatpush1.msra.mxu0 0.0
    %7085 = vmatprep.mubr.f32.mxu0 0.0
    %v7086 = vand.u32 %v6739, 4294901760
    %v7087 = vsub.f32 %v6739, %v7086
    %v7088 = vand.u32 %v7087, 4294901760
    %7089 = vmatmul.mubr.f32.gmra.mrb[0].mxu0 %v7088
    %v7090 = vpop.f32.mrb[0].mxu0
    %v7091 = vadd.f32 %v7007, %v7090
    %v7092 = vpop.f32.mrb[0].mxu0
    %7093 = vmatprep.mubr.f32.mxu0 0.0
    %v7094 = vand.u32 %v6742, 4294901760
    %v7095 = vsub.f32 %v6742, %v7094
    %v7096 = vand.u32 %v7095, 4294901760
    %7097 = vmatmul.mubr.f32.gmra.mrb[0].mxu0 %v7096
    %v7098 = vpop.f32.mrb[0].mxu0
    %v7099 = vadd.f32 %v7014, %v7098
    %v7100 = vpop.f32.mrb[0].mxu0
    %7101 = vdwg.mxu0
    %7102 = vmatprep.subr.mxu0 0.0
    %v7103 = vand.u32 %v6727, 4294901760
    %v7104 = vsub.f32 %v6727, %v7103
    %v7105 = vand.u32 %v7104, 4294901760
    %7106 = vmatpush1.msra.mxu0 %v7105
    %7107 = vmatprep.subr.mxu0 0.0
    %v7108 = vand.u32 %v6728, 4294901760
    %v7109 = vsub.f32 %v6728, %v7108
    %v7110 = vand.u32 %v7109, 4294901760
    %7111 = vmatpush1.msra.mxu0 %v7110
    %7112 = vmatprep.subr.mxu0 0.0
    %v7113 = vand.u32 %v6729, 4294901760
    %v7114 = vsub.f32 %v6729, %v7113
    %v7115 = vand.u32 %v7114, 4294901760
    %7116 = vmatpush1.msra.mxu0 %v7115
    %7117 = vmatprep.subr.mxu0 0.0
    %v7118 = vand.u32 %v6730, 4294901760
    %v7119 = vsub.f32 %v6730, %v7118
    %v7120 = vand.u32 %v7119, 4294901760
    %7121 = vmatpush1.msra.mxu0 %v7120
    %7122 = vmatprep.subr.mxu0 0.0
    %7123 = vmatpush1.msra.mxu0 0.0
    %7124 = vmatprep.subr.mxu0 0.0
    %7125 = vmatpush1.msra.mxu0 0.0
    %7126 = vmatprep.subr.mxu0 0.0
    %7127 = vmatpush1.msra.mxu0 0.0
    %7128 = vmatprep.subr.mxu0 0.0
    %7129 = vmatpush1.msra.mxu0 0.0
    %7130 = vmatprep.subr.mxu0 0.0
    %7131 = vmatpush1.msra.mxu0 0.0
    %7132 = vmatprep.subr.mxu0 0.0
    %7133 = vmatpush1.msra.mxu0 0.0
    %7134 = vmatprep.subr.mxu0 0.0
    %7135 = vmatpush1.msra.mxu0 0.0
    %7136 = vmatprep.subr.mxu0 0.0
    %7137 = vmatpush1.msra.mxu0 0.0
    %7138 = vmatprep.subr.mxu0 0.0
    %7139 = vmatpush1.msra.mxu0 0.0
    %7140 = vmatprep.subr.mxu0 0.0
    %7141 = vmatpush1.msra.mxu0 0.0
    %7142 = vmatprep.subr.mxu0 0.0
    %7143 = vmatpush1.msra.mxu0 0.0
    %7144 = vmatprep.subr.mxu0 0.0
    %7145 = vmatpush1.msra.mxu0 0.0
    %7146 = vmatprep.subr.mxu0 0.0
    %7147 = vmatpush1.msra.mxu0 0.0
    %7148 = vmatprep.subr.mxu0 0.0
    %7149 = vmatpush1.msra.mxu0 0.0
    %7150 = vmatprep.subr.mxu0 0.0
    %7151 = vmatpush1.msra.mxu0 0.0
    %7152 = vmatprep.subr.mxu0 0.0
    %7153 = vmatpush1.msra.mxu0 0.0
    %7154 = vmatprep.subr.mxu0 0.0
    %7155 = vmatpush1.msra.mxu0 0.0
    %7156 = vmatprep.subr.mxu0 0.0
    %7157 = vmatpush1.msra.mxu0 0.0
    %7158 = vmatprep.subr.mxu0 0.0
    %7159 = vmatpush1.msra.mxu0 0.0
    %7160 = vmatprep.subr.mxu0 0.0
    %7161 = vmatpush1.msra.mxu0 0.0
    %7162 = vmatprep.subr.mxu0 0.0
    %7163 = vmatpush1.msra.mxu0 0.0
    %7164 = vmatprep.subr.mxu0 0.0
    %7165 = vmatpush1.msra.mxu0 0.0
    %7166 = vmatprep.subr.mxu0 0.0
    %7167 = vmatpush1.msra.mxu0 0.0
    %7168 = vmatprep.subr.mxu0 0.0
    %7169 = vmatpush1.msra.mxu0 0.0
    %7170 = vmatprep.subr.mxu0 0.0
    %7171 = vmatpush1.msra.mxu0 0.0
    %7172 = vmatprep.subr.mxu0 0.0
    %7173 = vmatpush1.msra.mxu0 0.0
    %7174 = vmatprep.subr.mxu0 0.0
    %7175 = vmatpush1.msra.mxu0 0.0
    %7176 = vmatprep.subr.mxu0 0.0
    %7177 = vmatpush1.msra.mxu0 0.0
    %7178 = vmatprep.mubr.f32.mxu0 0.0
    %v7179 = vand.u32 %v6739, 4294901760
    %7180 = vmatmul.mubr.f32.gmra.mrb[0].mxu0 %v7179
    %v7181 = vpop.f32.mrb[0].mxu0
    %v7182 = vadd.f32 %v7091, %v7181
    %v7183 = vpop.f32.mrb[0].mxu0
    %7184 = vmatprep.mubr.f32.mxu0 0.0
    %v7185 = vand.u32 %v6742, 4294901760
    %7186 = vmatmul.mubr.f32.gmra.mrb[0].mxu0 %v7185
    %v7187 = vpop.f32.mrb[0].mxu0
    %v7188 = vadd.f32 %v7099, %v7187
    %v7189 = vpop.f32.mrb[0].mxu0
    %7190 = vdwg.mxu0
    %7191 = vmatprep.subr.mxu0 0.0
    %v7192 = vand.u32 %v6727, 4294901760
    %7193 = vmatpush1.msra.mxu0 %v7192
    %7194 = vmatprep.subr.mxu0 0.0
    %v7195 = vand.u32 %v6728, 4294901760
    %7196 = vmatpush1.msra.mxu0 %v7195
    %7197 = vmatprep.subr.mxu0 0.0
    %v7198 = vand.u32 %v6729, 4294901760
    %7199 = vmatpush1.msra.mxu0 %v7198
    %7200 = vmatprep.subr.mxu0 0.0
    %v7201 = vand.u32 %v6730, 4294901760
    %7202 = vmatpush1.msra.mxu0 %v7201
    %7203 = vmatprep.subr.mxu0 0.0
    %7204 = vmatpush1.msra.mxu0 0.0
    %7205 = vmatprep.subr.mxu0 0.0
    %7206 = vmatpush1.msra.mxu0 0.0
    %7207 = vmatprep.subr.mxu0 0.0
    %7208 = vmatpush1.msra.mxu0 0.0
    %7209 = vmatprep.subr.mxu0 0.0
    %7210 = vmatpush1.msra.mxu0 0.0
    %7211 = vmatprep.subr.mxu0 0.0
    %7212 = vmatpush1.msra.mxu0 0.0
    %7213 = vmatprep.subr.mxu0 0.0
    %7214 = vmatpush1.msra.mxu0 0.0
    %7215 = vmatprep.subr.mxu0 0.0
    %7216 = vmatpush1.msra.mxu0 0.0
    %7217 = vmatprep.subr.mxu0 0.0
    %7218 = vmatpush1.msra.mxu0 0.0
    %7219 = vmatprep.subr.mxu0 0.0
    %7220 = vmatpush1.msra.mxu0 0.0
    %7221 = vmatprep.subr.mxu0 0.0
    %7222 = vmatpush1.msra.mxu0 0.0
    %7223 = vmatprep.subr.mxu0 0.0
    %7224 = vmatpush1.msra.mxu0 0.0
    %7225 = vmatprep.subr.mxu0 0.0
    %7226 = vmatpush1.msra.mxu0 0.0
    %7227 = vmatprep.subr.mxu0 0.0
    %7228 = vmatpush1.msra.mxu0 0.0
    %7229 = vmatprep.subr.mxu0 0.0
    %7230 = vmatpush1.msra.mxu0 0.0
    %7231 = vmatprep.subr.mxu0 0.0
    %7232 = vmatpush1.msra.mxu0 0.0
    %7233 = vmatprep.subr.mxu0 0.0
    %7234 = vmatpush1.msra.mxu0 0.0
    %7235 = vmatprep.subr.mxu0 0.0
    %7236 = vmatpush1.msra.mxu0 0.0
    %7237 = vmatprep.subr.mxu0 0.0
    %7238 = vmatpush1.msra.mxu0 0.0
    %7239 = vmatprep.subr.mxu0 0.0
    %7240 = vmatpush1.msra.mxu0 0.0
    %7241 = vmatprep.subr.mxu0 0.0
    %7242 = vmatpush1.msra.mxu0 0.0
    %7243 = vmatprep.subr.mxu0 0.0
    %7244 = vmatpush1.msra.mxu0 0.0
    %7245 = vmatprep.subr.mxu0 0.0
    %7246 = vmatpush1.msra.mxu0 0.0
    %7247 = vmatprep.subr.mxu0 0.0
    %7248 = vmatpush1.msra.mxu0 0.0
    %7249 = vmatprep.subr.mxu0 0.0
    %7250 = vmatpush1.msra.mxu0 0.0
    %7251 = vmatprep.subr.mxu0 0.0
    %7252 = vmatpush1.msra.mxu0 0.0
    %7253 = vmatprep.subr.mxu0 0.0
    %7254 = vmatpush1.msra.mxu0 0.0
    %7255 = vmatprep.subr.mxu0 0.0
    %7256 = vmatpush1.msra.mxu0 0.0
    %7257 = vmatprep.subr.mxu0 0.0
    %7258 = vmatpush1.msra.mxu0 0.0
    %7259 = vmatprep.mubr.f32.mxu0 0.0
    %v7260 = vand.u32 %v6739, 4294901760
    %7261 = vmatmul.mubr.f32.gmra.mrb[0].mxu0 %v7260
    %v7262 = vpop.f32.mrb[0].mxu0
    %v7263 = vadd.f32 %v7182, %v7262
    %v7264 = vpop.f32.mrb[0].mxu0
    %7265 = vmatprep.mubr.f32.mxu0 0.0
    %v7266 = vand.u32 %v6742, 4294901760
    %7267 = vmatmul.mubr.f32.gmra.mrb[0].mxu0 %v7266
    %v7268 = vpop.f32.mrb[0].mxu0
    %v7269 = vadd.f32 %v7188, %v7268
    %v7270 = vpop.f32.mrb[0].mxu0
    %7271 = vdwg.mxu0
    %v7272 = vmax.f32 %v7263, 0.0
    %v7273 = vmax.f32 %v7269, 0.0
    %v7274 = vld [vmem:[%s20] sm:$0xff]
    %v7275 = vld [vmem:[%s20 + $0x8] sm:$0xff]
    %v7276 = vld [vmem:[%s20 + $0x10] sm:$0xff]
    %v7277 = vld [vmem:[%s20 + $0x18] sm:$0xff]
    %v7278 = vld [vmem:[%s20 + $0x20] sm:$0xff]
    %v7279 = vld [vmem:[%s20 + $0x28] sm:$0xff]
    %v7280 = vld [vmem:[%s20 + $0x30] sm:$0xff]
    %v7281 = vld [vmem:[%s20 + $0x38] sm:$0xff]
    %v7282 = vld [vmem:[%s20 + $0x40] sm:$0xff]
    %v7283 = vld [vmem:[%s20 + $0x48] sm:$0xff]
    %v7284 = vld [vmem:[%s20 + $0x50] sm:$0xff]
    %v7285 = vld [vmem:[%s20 + $0x58] sm:$0xff]
    %v7286 = vld [vmem:[%s20 + $0x60] sm:$0xff]
    %v7287 = vld [vmem:[%s20 + $0x68] sm:$0xff]
    %v7288 = vld [vmem:[%s20 + $0x70] sm:$0xff]
    %v7289 = vld [vmem:[%s20 + $0x78] sm:$0xff]
    %v7290 = vld [vmem:[%s21] sm:$0x1]
    %v7292 = vlaneseq
    %v7293 = vshrl.u32 %v7292, 7
    %v7294 = vsub.s32 0, %v7293
    %v7295 = vrot.slane %v7290, %v7294
    %7297 = vmatprep.subr.mxu0 0.0
    %v7298 = vand.u32 %v7274, 4294901760
    %7299 = vmatpush1.msra.mxu0 %v7298
    %7300 = vmatprep.subr.mxu0 0.0
    %v7301 = vand.u32 %v7275, 4294901760
    %7302 = vmatpush1.msra.mxu0 %v7301
    %7303 = vmatprep.subr.mxu0 0.0
    %v7304 = vand.u32 %v7276, 4294901760
    %7305 = vmatpush1.msra.mxu0 %v7304
    %7306 = vmatprep.subr.mxu0 0.0
    %v7307 = vand.u32 %v7277, 4294901760
    %7308 = vmatpush1.msra.mxu0 %v7307
    %7309 = vmatprep.subr.mxu0 0.0
    %v7310 = vand.u32 %v7278, 4294901760
    %7311 = vmatpush1.msra.mxu0 %v7310
    %7312 = vmatprep.subr.mxu0 0.0
    %v7313 = vand.u32 %v7279, 4294901760
    %7314 = vmatpush1.msra.mxu0 %v7313
    %7315 = vmatprep.subr.mxu0 0.0
    %v7316 = vand.u32 %v7280, 4294901760
    %7317 = vmatpush1.msra.mxu0 %v7316
    %7318 = vmatprep.subr.mxu0 0.0
    %v7319 = vand.u32 %v7281, 4294901760
    %7320 = vmatpush1.msra.mxu0 %v7319
    %7321 = vmatprep.subr.mxu0 0.0
    %v7322 = vand.u32 %v7282, 4294901760
    %7323 = vmatpush1.msra.mxu0 %v7322
    %7324 = vmatprep.subr.mxu0 0.0
    %v7325 = vand.u32 %v7283, 4294901760
    %7326 = vmatpush1.msra.mxu0 %v7325
    %7327 = vmatprep.subr.mxu0 0.0
    %v7328 = vand.u32 %v7284, 4294901760
    %7329 = vmatpush1.msra.mxu0 %v7328
    %7330 = vmatprep.subr.mxu0 0.0
    %v7331 = vand.u32 %v7285, 4294901760
    %7332 = vmatpush1.msra.mxu0 %v7331
    %7333 = vmatprep.subr.mxu0 0.0
    %v7334 = vand.u32 %v7286, 4294901760
    %7335 = vmatpush1.msra.mxu0 %v7334
    %7336 = vmatprep.subr.mxu0 0.0
    %v7337 = vand.u32 %v7287, 4294901760
    %7338 = vmatpush1.msra.mxu0 %v7337
    %7339 = vmatprep.subr.mxu0 0.0
    %v7340 = vand.u32 %v7288, 4294901760
    %7341 = vmatpush1.msra.mxu0 %v7340
    %7342 = vmatprep.subr.mxu0 0.0
    %v7343 = vand.u32 %v7289, 4294901760
    %7344 = vmatpush1.msra.mxu0 %v7343
    %7345 = vmatprep.subr.mxu0 0.0
    %7346 = vmatpush1.msra.mxu0 0.0
    %7347 = vmatprep.subr.mxu0 0.0
    %7348 = vmatpush1.msra.mxu0 0.0
    %7349 = vmatprep.subr.mxu0 0.0
    %7350 = vmatpush1.msra.mxu0 0.0
    %7351 = vmatprep.subr.mxu0 0.0
    %7352 = vmatpush1.msra.mxu0 0.0
    %7353 = vmatprep.subr.mxu0 0.0
    %7354 = vmatpush1.msra.mxu0 0.0
    %7355 = vmatprep.subr.mxu0 0.0
    %7356 = vmatpush1.msra.mxu0 0.0
    %7357 = vmatprep.subr.mxu0 0.0
    %7358 = vmatpush1.msra.mxu0 0.0
    %7359 = vmatprep.subr.mxu0 0.0
    %7360 = vmatpush1.msra.mxu0 0.0
    %7361 = vmatprep.subr.mxu0 0.0
    %7362 = vmatpush1.msra.mxu0 0.0
    %7363 = vmatprep.subr.mxu0 0.0
    %7364 = vmatpush1.msra.mxu0 0.0
    %7365 = vmatprep.subr.mxu0 0.0
    %7366 = vmatpush1.msra.mxu0 0.0
    %7367 = vmatprep.subr.mxu0 0.0
    %7368 = vmatpush1.msra.mxu0 0.0
    %7369 = vmatprep.subr.mxu0 0.0
    %7370 = vmatpush1.msra.mxu0 0.0
    %7371 = vmatprep.subr.mxu0 0.0
    %7372 = vmatpush1.msra.mxu0 0.0
    %7373 = vmatprep.subr.mxu0 0.0
    %7374 = vmatpush1.msra.mxu0 0.0
    %7375 = vmatprep.subr.mxu0 0.0
    %7376 = vmatpush1.msra.mxu0 0.0
    %7377 = vmatprep.mubr.f32.mxu0 0.0
    %v7378 = vand.u32 %v7272, 4294901760
    %v7379 = vsub.f32 %v7272, %v7378
    %v7380 = vand.u32 %v7379, 4294901760
    %v7381 = vsub.f32 %v7379, %v7380
    %v7382 = vand.u32 %v7381, 4294901760
    %7383 = vmatmul.mubr.f32.gmra.mrb[0].mxu0 %v7382
    %v7384 = vpop.f32.mrb[0].mxu0
    %v7385 = vadd.f32 %v7295, %v7384
    %v7386 = vpop.f32.mrb[0].mxu0
    %7387 = vmatprep.mubr.f32.mxu0 0.0
    %v7388 = vand.u32 %v7273, 4294901760
    %v7389 = vsub.f32 %v7273, %v7388
    %v7390 = vand.u32 %v7389, 4294901760
    %v7391 = vsub.f32 %v7389, %v7390
    %v7392 = vand.u32 %v7391, 4294901760
    %7393 = vmatmul.mubr.f32.gmra.mrb[0].mxu0 %v7392
    %v7394 = vpop.f32.mrb[0].mxu0
    %v7395 = vadd.f32 %v7295, %v7394
    %v7396 = vpop.f32.mrb[0].mxu0
    %7397 = vdwg.mxu0
    %7398 = vmatprep.subr.mxu0 0.0
    %v7399 = vand.u32 %v7274, 4294901760
    %v7400 = vsub.f32 %v7274, %v7399
    %v7401 = vand.u32 %v7400, 4294901760
    %v7402 = vsub.f32 %v7400, %v7401
    %v7403 = vand.u32 %v7402, 4294901760
    %7404 = vmatpush1.msra.mxu0 %v7403
    %7405 = vmatprep.subr.mxu0 0.0
    %v7406 = vand.u32 %v7275, 4294901760
    %v7407 = vsub.f32 %v7275, %v7406
    %v7408 = vand.u32 %v7407, 4294901760
    %v7409 = vsub.f32 %v7407, %v7408
    %v7410 = vand.u32 %v7409, 4294901760
    %7411 = vmatpush1.msra.mxu0 %v7410
    %7412 = vmatprep.subr.mxu0 0.0
    %v7413 = vand.u32 %v7276, 4294901760
    %v7414 = vsub.f32 %v7276, %v7413
    %v7415 = vand.u32 %v7414, 4294901760
    %v7416 = vsub.f32 %v7414, %v7415
    %v7417 = vand.u32 %v7416, 4294901760
    %7418 = vmatpush1.msra.mxu0 %v7417
    %7419 = vmatprep.subr.mxu0 0.0
    %v7420 = vand.u32 %v7277, 4294901760
    %v7421 = vsub.f32 %v7277, %v7420
    %v7422 = vand.u32 %v7421, 4294901760
    %v7423 = vsub.f32 %v7421, %v7422
    %v7424 = vand.u32 %v7423, 4294901760
    %7425 = vmatpush1.msra.mxu0 %v7424
    %7426 = vmatprep.subr.mxu0 0.0
    %v7427 = vand.u32 %v7278, 4294901760
    %v7428 = vsub.f32 %v7278, %v7427
    %v7429 = vand.u32 %v7428, 4294901760
    %v7430 = vsub.f32 %v7428, %v7429
    %v7431 = vand.u32 %v7430, 4294901760
    %7432 = vmatpush1.msra.mxu0 %v7431
    %7433 = vmatprep.subr.mxu0 0.0
    %v7434 = vand.u32 %v7279, 4294901760
    %v7435 = vsub.f32 %v7279, %v7434
    %v7436 = vand.u32 %v7435, 4294901760
    %v7437 = vsub.f32 %v7435, %v7436
    %v7438 = vand.u32 %v7437, 4294901760
    %7439 = vmatpush1.msra.mxu0 %v7438
    %7440 = vmatprep.subr.mxu0 0.0
    %v7441 = vand.u32 %v7280, 4294901760
    %v7442 = vsub.f32 %v7280, %v7441
    %v7443 = vand.u32 %v7442, 4294901760
    %v7444 = vsub.f32 %v7442, %v7443
    %v7445 = vand.u32 %v7444, 4294901760
    %7446 = vmatpush1.msra.mxu0 %v7445
    %7447 = vmatprep.subr.mxu0 0.0
    %v7448 = vand.u32 %v7281, 4294901760
    %v7449 = vsub.f32 %v7281, %v7448
    %v7450 = vand.u32 %v7449, 4294901760
    %v7451 = vsub.f32 %v7449, %v7450
    %v7452 = vand.u32 %v7451, 4294901760
    %7453 = vmatpush1.msra.mxu0 %v7452
    %7454 = vmatprep.subr.mxu0 0.0
    %v7455 = vand.u32 %v7282, 4294901760
    %v7456 = vsub.f32 %v7282, %v7455
    %v7457 = vand.u32 %v7456, 4294901760
    %v7458 = vsub.f32 %v7456, %v7457
    %v7459 = vand.u32 %v7458, 4294901760
    %7460 = vmatpush1.msra.mxu0 %v7459
    %7461 = vmatprep.subr.mxu0 0.0
    %v7462 = vand.u32 %v7283, 4294901760
    %v7463 = vsub.f32 %v7283, %v7462
    %v7464 = vand.u32 %v7463, 4294901760
    %v7465 = vsub.f32 %v7463, %v7464
    %v7466 = vand.u32 %v7465, 4294901760
    %7467 = vmatpush1.msra.mxu0 %v7466
    %7468 = vmatprep.subr.mxu0 0.0
    %v7469 = vand.u32 %v7284, 4294901760
    %v7470 = vsub.f32 %v7284, %v7469
    %v7471 = vand.u32 %v7470, 4294901760
    %v7472 = vsub.f32 %v7470, %v7471
    %v7473 = vand.u32 %v7472, 4294901760
    %7474 = vmatpush1.msra.mxu0 %v7473
    %7475 = vmatprep.subr.mxu0 0.0
    %v7476 = vand.u32 %v7285, 4294901760
    %v7477 = vsub.f32 %v7285, %v7476
    %v7478 = vand.u32 %v7477, 4294901760
    %v7479 = vsub.f32 %v7477, %v7478
    %v7480 = vand.u32 %v7479, 4294901760
    %7481 = vmatpush1.msra.mxu0 %v7480
    %7482 = vmatprep.subr.mxu0 0.0
    %v7483 = vand.u32 %v7286, 4294901760
    %v7484 = vsub.f32 %v7286, %v7483
    %v7485 = vand.u32 %v7484, 4294901760
    %v7486 = vsub.f32 %v7484, %v7485
    %v7487 = vand.u32 %v7486, 4294901760
    %7488 = vmatpush1.msra.mxu0 %v7487
    %7489 = vmatprep.subr.mxu0 0.0
    %v7490 = vand.u32 %v7287, 4294901760
    %v7491 = vsub.f32 %v7287, %v7490
    %v7492 = vand.u32 %v7491, 4294901760
    %v7493 = vsub.f32 %v7491, %v7492
    %v7494 = vand.u32 %v7493, 4294901760
    %7495 = vmatpush1.msra.mxu0 %v7494
    %7496 = vmatprep.subr.mxu0 0.0
    %v7497 = vand.u32 %v7288, 4294901760
    %v7498 = vsub.f32 %v7288, %v7497
    %v7499 = vand.u32 %v7498, 4294901760
    %v7500 = vsub.f32 %v7498, %v7499
    %v7501 = vand.u32 %v7500, 4294901760
    %7502 = vmatpush1.msra.mxu0 %v7501
    %7503 = vmatprep.subr.mxu0 0.0
    %v7504 = vand.u32 %v7289, 4294901760
    %v7505 = vsub.f32 %v7289, %v7504
    %v7506 = vand.u32 %v7505, 4294901760
    %v7507 = vsub.f32 %v7505, %v7506
    %v7508 = vand.u32 %v7507, 4294901760
    %7509 = vmatpush1.msra.mxu0 %v7508
    %7510 = vmatprep.subr.mxu0 0.0
    %7511 = vmatpush1.msra.mxu0 0.0
    %7512 = vmatprep.subr.mxu0 0.0
    %7513 = vmatpush1.msra.mxu0 0.0
    %7514 = vmatprep.subr.mxu0 0.0
    %7515 = vmatpush1.msra.mxu0 0.0
    %7516 = vmatprep.subr.mxu0 0.0
    %7517 = vmatpush1.msra.mxu0 0.0
    %7518 = vmatprep.subr.mxu0 0.0
    %7519 = vmatpush1.msra.mxu0 0.0
    %7520 = vmatprep.subr.mxu0 0.0
    %7521 = vmatpush1.msra.mxu0 0.0
    %7522 = vmatprep.subr.mxu0 0.0
    %7523 = vmatpush1.msra.mxu0 0.0
    %7524 = vmatprep.subr.mxu0 0.0
    %7525 = vmatpush1.msra.mxu0 0.0
    %7526 = vmatprep.subr.mxu0 0.0
    %7527 = vmatpush1.msra.mxu0 0.0
    %7528 = vmatprep.subr.mxu0 0.0
    %7529 = vmatpush1.msra.mxu0 0.0
    %7530 = vmatprep.subr.mxu0 0.0
    %7531 = vmatpush1.msra.mxu0 0.0
    %7532 = vmatprep.subr.mxu0 0.0
    %7533 = vmatpush1.msra.mxu0 0.0
    %7534 = vmatprep.subr.mxu0 0.0
    %7535 = vmatpush1.msra.mxu0 0.0
    %7536 = vmatprep.subr.mxu0 0.0
    %7537 = vmatpush1.msra.mxu0 0.0
    %7538 = vmatprep.subr.mxu0 0.0
    %7539 = vmatpush1.msra.mxu0 0.0
    %7540 = vmatprep.subr.mxu0 0.0
    %7541 = vmatpush1.msra.mxu0 0.0
    %7542 = vmatprep.mubr.f32.mxu0 0.0
    %v7543 = vand.u32 %v7272, 4294901760
    %7544 = vmatmul.mubr.f32.gmra.mrb[0].mxu0 %v7543
    %v7545 = vpop.f32.mrb[0].mxu0
    %v7546 = vadd.f32 %v7385, %v7545
    %v7547 = vpop.f32.mrb[0].mxu0
    %7548 = vmatprep.mubr.f32.mxu0 0.0
    %v7549 = vand.u32 %v7273, 4294901760
    %7550 = vmatmul.mubr.f32.gmra.mrb[0].mxu0 %v7549
    %v7551 = vpop.f32.mrb[0].mxu0
    %v7552 = vadd.f32 %v7395, %v7551
    %v7553 = vpop.f32.mrb[0].mxu0
    %7554 = vdwg.mxu0
    %7555 = vmatprep.subr.mxu0 0.0
    %v7556 = vand.u32 %v7274, 4294901760
    %v7557 = vsub.f32 %v7274, %v7556
    %7558 = vmatpush1.msra.mxu0 %v7557
    %7559 = vmatprep.subr.mxu0 0.0
    %v7560 = vand.u32 %v7275, 4294901760
    %v7561 = vsub.f32 %v7275, %v7560
    %7562 = vmatpush1.msra.mxu0 %v7561
    %7563 = vmatprep.subr.mxu0 0.0
    %v7564 = vand.u32 %v7276, 4294901760
    %v7565 = vsub.f32 %v7276, %v7564
    %7566 = vmatpush1.msra.mxu0 %v7565
    %7567 = vmatprep.subr.mxu0 0.0
    %v7568 = vand.u32 %v7277, 4294901760
    %v7569 = vsub.f32 %v7277, %v7568
    %7570 = vmatpush1.msra.mxu0 %v7569
    %7571 = vmatprep.subr.mxu0 0.0
    %v7572 = vand.u32 %v7278, 4294901760
    %v7573 = vsub.f32 %v7278, %v7572
    %7574 = vmatpush1.msra.mxu0 %v7573
    %7575 = vmatprep.subr.mxu0 0.0
    %v7576 = vand.u32 %v7279, 4294901760
    %v7577 = vsub.f32 %v7279, %v7576
    %7578 = vmatpush1.msra.mxu0 %v7577
    %7579 = vmatprep.subr.mxu0 0.0
    %v7580 = vand.u32 %v7280, 4294901760
    %v7581 = vsub.f32 %v7280, %v7580
    %7582 = vmatpush1.msra.mxu0 %v7581
    %7583 = vmatprep.subr.mxu0 0.0
    %v7584 = vand.u32 %v7281, 4294901760
    %v7585 = vsub.f32 %v7281, %v7584
    %7586 = vmatpush1.msra.mxu0 %v7585
    %7587 = vmatprep.subr.mxu0 0.0
    %v7588 = vand.u32 %v7282, 4294901760
    %v7589 = vsub.f32 %v7282, %v7588
    %7590 = vmatpush1.msra.mxu0 %v7589
    %7591 = vmatprep.subr.mxu0 0.0
    %v7592 = vand.u32 %v7283, 4294901760
    %v7593 = vsub.f32 %v7283, %v7592
    %7594 = vmatpush1.msra.mxu0 %v7593
    %7595 = vmatprep.subr.mxu0 0.0
    %v7596 = vand.u32 %v7284, 4294901760
    %v7597 = vsub.f32 %v7284, %v7596
    %7598 = vmatpush1.msra.mxu0 %v7597
    %7599 = vmatprep.subr.mxu0 0.0
    %v7600 = vand.u32 %v7285, 4294901760
    %v7601 = vsub.f32 %v7285, %v7600
    %7602 = vmatpush1.msra.mxu0 %v7601
    %7603 = vmatprep.subr.mxu0 0.0
    %v7604 = vand.u32 %v7286, 4294901760
    %v7605 = vsub.f32 %v7286, %v7604
    %7606 = vmatpush1.msra.mxu0 %v7605
    %7607 = vmatprep.subr.mxu0 0.0
    %v7608 = vand.u32 %v7287, 4294901760
    %v7609 = vsub.f32 %v7287, %v7608
    %7610 = vmatpush1.msra.mxu0 %v7609
    %7611 = vmatprep.subr.mxu0 0.0
    %v7612 = vand.u32 %v7288, 4294901760
    %v7613 = vsub.f32 %v7288, %v7612
    %7614 = vmatpush1.msra.mxu0 %v7613
    %7615 = vmatprep.subr.mxu0 0.0
    %v7616 = vand.u32 %v7289, 4294901760
    %v7617 = vsub.f32 %v7289, %v7616
    %7618 = vmatpush1.msra.mxu0 %v7617
    %7619 = vmatprep.subr.mxu0 0.0
    %7620 = vmatpush1.msra.mxu0 0.0
    %7621 = vmatprep.subr.mxu0 0.0
    %7622 = vmatpush1.msra.mxu0 0.0
    %7623 = vmatprep.subr.mxu0 0.0
    %7624 = vmatpush1.msra.mxu0 0.0
    %7625 = vmatprep.subr.mxu0 0.0
    %7626 = vmatpush1.msra.mxu0 0.0
    %7627 = vmatprep.subr.mxu0 0.0
    %7628 = vmatpush1.msra.mxu0 0.0
    %7629 = vmatprep.subr.mxu0 0.0
    %7630 = vmatpush1.msra.mxu0 0.0
    %7631 = vmatprep.subr.mxu0 0.0
    %7632 = vmatpush1.msra.mxu0 0.0
    %7633 = vmatprep.subr.mxu0 0.0
    %7634 = vmatpush1.msra.mxu0 0.0
    %7635 = vmatprep.subr.mxu0 0.0
    %7636 = vmatpush1.msra.mxu0 0.0
    %7637 = vmatprep.subr.mxu0 0.0
    %7638 = vmatpush1.msra.mxu0 0.0
    %7639 = vmatprep.subr.mxu0 0.0
    %7640 = vmatpush1.msra.mxu0 0.0
    %7641 = vmatprep.subr.mxu0 0.0
    %7642 = vmatpush1.msra.mxu0 0.0
    %7643 = vmatprep.subr.mxu0 0.0
    %7644 = vmatpush1.msra.mxu0 0.0
    %7645 = vmatprep.subr.mxu0 0.0
    %7646 = vmatpush1.msra.mxu0 0.0
    %7647 = vmatprep.subr.mxu0 0.0
    %7648 = vmatpush1.msra.mxu0 0.0
    %7649 = vmatprep.subr.mxu0 0.0
    %7650 = vmatpush1.msra.mxu0 0.0
    %7651 = vmatprep.mubr.f32.mxu0 0.0
    %v7652 = vand.u32 %v7272, 4294901760
    %v7653 = vsub.f32 %v7272, %v7652
    %7654 = vmatmul.mubr.f32.gmra.mrb[0].mxu0 %v7653
    %v7655 = vpop.f32.mrb[0].mxu0
    %v7656 = vadd.f32 %v7546, %v7655
    %v7657 = vpop.f32.mrb[0].mxu0
    %7658 = vmatprep.mubr.f32.mxu0 0.0
    %v7659 = vand.u32 %v7273, 4294901760
    %v7660 = vsub.f32 %v7273, %v7659
    %7661 = vmatmul.mubr.f32.gmra.mrb[0].mxu0 %v7660
    %v7662 = vpop.f32.mrb[0].mxu0
    %v7663 = vadd.f32 %v7552, %v7662
    %v7664 = vpop.f32.mrb[0].mxu0
    %7665 = vdwg.mxu0
    %7666 = vmatprep.subr.mxu0 0.0
    %v7667 = vand.u32 %v7274, 4294901760
    %7668 = vmatpush1.msra.mxu0 %v7667
    %7669 = vmatprep.subr.mxu0 0.0
    %v7670 = vand.u32 %v7275, 4294901760
    %7671 = vmatpush1.msra.mxu0 %v7670
    %7672 = vmatprep.subr.mxu0 0.0
    %v7673 = vand.u32 %v7276, 4294901760
    %7674 = vmatpush1.msra.mxu0 %v7673
    %7675 = vmatprep.subr.mxu0 0.0
    %v7676 = vand.u32 %v7277, 4294901760
    %7677 = vmatpush1.msra.mxu0 %v7676
    %7678 = vmatprep.subr.mxu0 0.0
    %v7679 = vand.u32 %v7278, 4294901760
    %7680 = vmatpush1.msra.mxu0 %v7679
    %7681 = vmatprep.subr.mxu0 0.0
    %v7682 = vand.u32 %v7279, 4294901760
    %7683 = vmatpush1.msra.mxu0 %v7682
    %7684 = vmatprep.subr.mxu0 0.0
    %v7685 = vand.u32 %v7280, 4294901760
    %7686 = vmatpush1.msra.mxu0 %v7685
    %7687 = vmatprep.subr.mxu0 0.0
    %v7688 = vand.u32 %v7281, 4294901760
    %7689 = vmatpush1.msra.mxu0 %v7688
    %7690 = vmatprep.subr.mxu0 0.0
    %v7691 = vand.u32 %v7282, 4294901760
    %7692 = vmatpush1.msra.mxu0 %v7691
    %7693 = vmatprep.subr.mxu0 0.0
    %v7694 = vand.u32 %v7283, 4294901760
    %7695 = vmatpush1.msra.mxu0 %v7694
    %7696 = vmatprep.subr.mxu0 0.0
    %v7697 = vand.u32 %v7284, 4294901760
    %7698 = vmatpush1.msra.mxu0 %v7697
    %7699 = vmatprep.subr.mxu0 0.0
    %v7700 = vand.u32 %v7285, 4294901760
    %7701 = vmatpush1.msra.mxu0 %v7700
    %7702 = vmatprep.subr.mxu0 0.0
    %v7703 = vand.u32 %v7286, 4294901760
    %7704 = vmatpush1.msra.mxu0 %v7703
    %7705 = vmatprep.subr.mxu0 0.0
    %v7706 = vand.u32 %v7287, 4294901760
    %7707 = vmatpush1.msra.mxu0 %v7706
    %7708 = vmatprep.subr.mxu0 0.0
    %v7709 = vand.u32 %v7288, 4294901760
    %7710 = vmatpush1.msra.mxu0 %v7709
    %7711 = vmatprep.subr.mxu0 0.0
    %v7712 = vand.u32 %v7289, 4294901760
    %7713 = vmatpush1.msra.mxu0 %v7712
    %7714 = vmatprep.subr.mxu0 0.0
    %7715 = vmatpush1.msra.mxu0 0.0
    %7716 = vmatprep.subr.mxu0 0.0
    %7717 = vmatpush1.msra.mxu0 0.0
    %7718 = vmatprep.subr.mxu0 0.0
    %7719 = vmatpush1.msra.mxu0 0.0
    %7720 = vmatprep.subr.mxu0 0.0
    %7721 = vmatpush1.msra.mxu0 0.0
    %7722 = vmatprep.subr.mxu0 0.0
    %7723 = vmatpush1.msra.mxu0 0.0
    %7724 = vmatprep.subr.mxu0 0.0
    %7725 = vmatpush1.msra.mxu0 0.0
    %7726 = vmatprep.subr.mxu0 0.0
    %7727 = vmatpush1.msra.mxu0 0.0
    %7728 = vmatprep.subr.mxu0 0.0
    %7729 = vmatpush1.msra.mxu0 0.0
    %7730 = vmatprep.subr.mxu0 0.0
    %7731 = vmatpush1.msra.mxu0 0.0
    %7732 = vmatprep.subr.mxu0 0.0
    %7733 = vmatpush1.msra.mxu0 0.0
    %7734 = vmatprep.subr.mxu0 0.0
    %7735 = vmatpush1.msra.mxu0 0.0
    %7736 = vmatprep.subr.mxu0 0.0
    %7737 = vmatpush1.msra.mxu0 0.0
    %7738 = vmatprep.subr.mxu0 0.0
    %7739 = vmatpush1.msra.mxu0 0.0
    %7740 = vmatprep.subr.mxu0 0.0
    %7741 = vmatpush1.msra.mxu0 0.0
    %7742 = vmatprep.subr.mxu0 0.0
    %7743 = vmatpush1.msra.mxu0 0.0
    %7744 = vmatprep.subr.mxu0 0.0
    %7745 = vmatpush1.msra.mxu0 0.0
    %7746 = vmatprep.mubr.f32.mxu0 0.0
    %v7747 = vand.u32 %v7272, 4294901760
    %v7748 = vsub.f32 %v7272, %v7747
    %v7749 = vand.u32 %v7748, 4294901760
    %7750 = vmatmul.mubr.f32.gmra.mrb[0].mxu0 %v7749
    %v7751 = vpop.f32.mrb[0].mxu0
    %v7752 = vadd.f32 %v7656, %v7751
    %v7753 = vpop.f32.mrb[0].mxu0
    %7754 = vmatprep.mubr.f32.mxu0 0.0
    %v7755 = vand.u32 %v7273, 4294901760
    %v7756 = vsub.f32 %v7273, %v7755
    %v7757 = vand.u32 %v7756, 4294901760
    %7758 = vmatmul.mubr.f32.gmra.mrb[0].mxu0 %v7757
    %v7759 = vpop.f32.mrb[0].mxu0
    %v7760 = vadd.f32 %v7663, %v7759
    %v7761 = vpop.f32.mrb[0].mxu0
    %7762 = vdwg.mxu0
    %7763 = vmatprep.subr.mxu0 0.0
    %v7764 = vand.u32 %v7274, 4294901760
    %v7765 = vsub.f32 %v7274, %v7764
    %v7766 = vand.u32 %v7765, 4294901760
    %7767 = vmatpush1.msra.mxu0 %v7766
    %7768 = vmatprep.subr.mxu0 0.0
    %v7769 = vand.u32 %v7275, 4294901760
    %v7770 = vsub.f32 %v7275, %v7769
    %v7771 = vand.u32 %v7770, 4294901760
    %7772 = vmatpush1.msra.mxu0 %v7771
    %7773 = vmatprep.subr.mxu0 0.0
    %v7774 = vand.u32 %v7276, 4294901760
    %v7775 = vsub.f32 %v7276, %v7774
    %v7776 = vand.u32 %v7775, 4294901760
    %7777 = vmatpush1.msra.mxu0 %v7776
    %7778 = vmatprep.subr.mxu0 0.0
    %v7779 = vand.u32 %v7277, 4294901760
    %v7780 = vsub.f32 %v7277, %v7779
    %v7781 = vand.u32 %v7780, 4294901760
    %7782 = vmatpush1.msra.mxu0 %v7781
    %7783 = vmatprep.subr.mxu0 0.0
    %v7784 = vand.u32 %v7278, 4294901760
    %v7785 = vsub.f32 %v7278, %v7784
    %v7786 = vand.u32 %v7785, 4294901760
    %7787 = vmatpush1.msra.mxu0 %v7786
    %7788 = vmatprep.subr.mxu0 0.0
    %v7789 = vand.u32 %v7279, 4294901760
    %v7790 = vsub.f32 %v7279, %v7789
    %v7791 = vand.u32 %v7790, 4294901760
    %7792 = vmatpush1.msra.mxu0 %v7791
    %7793 = vmatprep.subr.mxu0 0.0
    %v7794 = vand.u32 %v7280, 4294901760
    %v7795 = vsub.f32 %v7280, %v7794
    %v7796 = vand.u32 %v7795, 4294901760
    %7797 = vmatpush1.msra.mxu0 %v7796
    %7798 = vmatprep.subr.mxu0 0.0
    %v7799 = vand.u32 %v7281, 4294901760
    %v7800 = vsub.f32 %v7281, %v7799
    %v7801 = vand.u32 %v7800, 4294901760
    %7802 = vmatpush1.msra.mxu0 %v7801
    %7803 = vmatprep.subr.mxu0 0.0
    %v7804 = vand.u32 %v7282, 4294901760
    %v7805 = vsub.f32 %v7282, %v7804
    %v7806 = vand.u32 %v7805, 4294901760
    %7807 = vmatpush1.msra.mxu0 %v7806
    %7808 = vmatprep.subr.mxu0 0.0
    %v7809 = vand.u32 %v7283, 4294901760
    %v7810 = vsub.f32 %v7283, %v7809
    %v7811 = vand.u32 %v7810, 4294901760
    %7812 = vmatpush1.msra.mxu0 %v7811
    %7813 = vmatprep.subr.mxu0 0.0
    %v7814 = vand.u32 %v7284, 4294901760
    %v7815 = vsub.f32 %v7284, %v7814
    %v7816 = vand.u32 %v7815, 4294901760
    %7817 = vmatpush1.msra.mxu0 %v7816
    %7818 = vmatprep.subr.mxu0 0.0
    %v7819 = vand.u32 %v7285, 4294901760
    %v7820 = vsub.f32 %v7285, %v7819
    %v7821 = vand.u32 %v7820, 4294901760
    %7822 = vmatpush1.msra.mxu0 %v7821
    %7823 = vmatprep.subr.mxu0 0.0
    %v7824 = vand.u32 %v7286, 4294901760
    %v7825 = vsub.f32 %v7286, %v7824
    %v7826 = vand.u32 %v7825, 4294901760
    %7827 = vmatpush1.msra.mxu0 %v7826
    %7828 = vmatprep.subr.mxu0 0.0
    %v7829 = vand.u32 %v7287, 4294901760
    %v7830 = vsub.f32 %v7287, %v7829
    %v7831 = vand.u32 %v7830, 4294901760
    %7832 = vmatpush1.msra.mxu0 %v7831
    %7833 = vmatprep.subr.mxu0 0.0
    %v7834 = vand.u32 %v7288, 4294901760
    %v7835 = vsub.f32 %v7288, %v7834
    %v7836 = vand.u32 %v7835, 4294901760
    %7837 = vmatpush1.msra.mxu0 %v7836
    %7838 = vmatprep.subr.mxu0 0.0
    %v7839 = vand.u32 %v7289, 4294901760
    %v7840 = vsub.f32 %v7289, %v7839
    %v7841 = vand.u32 %v7840, 4294901760
    %7842 = vmatpush1.msra.mxu0 %v7841
    %7843 = vmatprep.subr.mxu0 0.0
    %7844 = vmatpush1.msra.mxu0 0.0
    %7845 = vmatprep.subr.mxu0 0.0
    %7846 = vmatpush1.msra.mxu0 0.0
    %7847 = vmatprep.subr.mxu0 0.0
    %7848 = vmatpush1.msra.mxu0 0.0
    %7849 = vmatprep.subr.mxu0 0.0
    %7850 = vmatpush1.msra.mxu0 0.0
    %7851 = vmatprep.subr.mxu0 0.0
    %7852 = vmatpush1.msra.mxu0 0.0
    %7853 = vmatprep.subr.mxu0 0.0
    %7854 = vmatpush1.msra.mxu0 0.0
    %7855 = vmatprep.subr.mxu0 0.0
    %7856 = vmatpush1.msra.mxu0 0.0
    %7857 = vmatprep.subr.mxu0 0.0
    %7858 = vmatpush1.msra.mxu0 0.0
    %7859 = vmatprep.subr.mxu0 0.0
    %7860 = vmatpush1.msra.mxu0 0.0
    %7861 = vmatprep.subr.mxu0 0.0
    %7862 = vmatpush1.msra.mxu0 0.0
    %7863 = vmatprep.subr.mxu0 0.0
    %7864 = vmatpush1.msra.mxu0 0.0
    %7865 = vmatprep.subr.mxu0 0.0
    %7866 = vmatpush1.msra.mxu0 0.0
    %7867 = vmatprep.subr.mxu0 0.0
    %7868 = vmatpush1.msra.mxu0 0.0
    %7869 = vmatprep.subr.mxu0 0.0
    %7870 = vmatpush1.msra.mxu0 0.0
    %7871 = vmatprep.subr.mxu0 0.0
    %7872 = vmatpush1.msra.mxu0 0.0
    %7873 = vmatprep.subr.mxu0 0.0
    %7874 = vmatpush1.msra.mxu0 0.0
    %7875 = vmatprep.mubr.f32.mxu0 0.0
    %v7876 = vand.u32 %v7272, 4294901760
    %7877 = vmatmul.mubr.f32.gmra.mrb[0].mxu0 %v7876
    %v7878 = vpop.f32.mrb[0].mxu0
    %v7879 = vadd.f32 %v7752, %v7878
    %v7880 = vpop.f32.mrb[0].mxu0
    %7881 = vmatprep.mubr.f32.mxu0 0.0
    %v7882 = vand.u32 %v7273, 4294901760
    %7883 = vmatmul.mubr.f32.gmra.mrb[0].mxu0 %v7882
    %v7884 = vpop.f32.mrb[0].mxu0
    %v7885 = vadd.f32 %v7760, %v7884
    %v7886 = vpop.f32.mrb[0].mxu0
    %7887 = vdwg.mxu0
    %7888 = vmatprep.subr.mxu0 0.0
    %v7889 = vand.u32 %v7274, 4294901760
    %7890 = vmatpush1.msra.mxu0 %v7889
    %7891 = vmatprep.subr.mxu0 0.0
    %v7892 = vand.u32 %v7275, 4294901760
    %7893 = vmatpush1.msra.mxu0 %v7892
    %7894 = vmatprep.subr.mxu0 0.0
    %v7895 = vand.u32 %v7276, 4294901760
    %7896 = vmatpush1.msra.mxu0 %v7895
    %7897 = vmatprep.subr.mxu0 0.0
    %v7898 = vand.u32 %v7277, 4294901760
    %7899 = vmatpush1.msra.mxu0 %v7898
    %7900 = vmatprep.subr.mxu0 0.0
    %v7901 = vand.u32 %v7278, 4294901760
    %7902 = vmatpush1.msra.mxu0 %v7901
    %7903 = vmatprep.subr.mxu0 0.0
    %v7904 = vand.u32 %v7279, 4294901760
    %7905 = vmatpush1.msra.mxu0 %v7904
    %7906 = vmatprep.subr.mxu0 0.0
    %v7907 = vand.u32 %v7280, 4294901760
    %7908 = vmatpush1.msra.mxu0 %v7907
    %7909 = vmatprep.subr.mxu0 0.0
    %v7910 = vand.u32 %v7281, 4294901760
    %7911 = vmatpush1.msra.mxu0 %v7910
    %7912 = vmatprep.subr.mxu0 0.0
    %v7913 = vand.u32 %v7282, 4294901760
    %7914 = vmatpush1.msra.mxu0 %v7913
    %7915 = vmatprep.subr.mxu0 0.0
    %v7916 = vand.u32 %v7283, 4294901760
    %7917 = vmatpush1.msra.mxu0 %v7916
    %7918 = vmatprep.subr.mxu0 0.0
    %v7919 = vand.u32 %v7284, 4294901760
    %7920 = vmatpush1.msra.mxu0 %v7919
    %7921 = vmatprep.subr.mxu0 0.0
    %v7922 = vand.u32 %v7285, 4294901760
    %7923 = vmatpush1.msra.mxu0 %v7922
    %7924 = vmatprep.subr.mxu0 0.0
    %v7925 = vand.u32 %v7286, 4294901760
    %7926 = vmatpush1.msra.mxu0 %v7925
    %7927 = vmatprep.subr.mxu0 0.0
    %v7928 = vand.u32 %v7287, 4294901760
    %7929 = vmatpush1.msra.mxu0 %v7928
    %7930 = vmatprep.subr.mxu0 0.0
    %v7931 = vand.u32 %v7288, 4294901760
    %7932 = vmatpush1.msra.mxu0 %v7931
    %7933 = vmatprep.subr.mxu0 0.0
    %v7934 = vand.u32 %v7289, 4294901760
    %7935 = vmatpush1.msra.mxu0 %v7934
    %7936 = vmatprep.subr.mxu0 0.0
    %7937 = vmatpush1.msra.mxu0 0.0
    %7938 = vmatprep.subr.mxu0 0.0
    %7939 = vmatpush1.msra.mxu0 0.0
    %7940 = vmatprep.subr.mxu0 0.0
    %7941 = vmatpush1.msra.mxu0 0.0
    %7942 = vmatprep.subr.mxu0 0.0
    %7943 = vmatpush1.msra.mxu0 0.0
    %7944 = vmatprep.subr.mxu0 0.0
    %7945 = vmatpush1.msra.mxu0 0.0
    %7946 = vmatprep.subr.mxu0 0.0
    %7947 = vmatpush1.msra.mxu0 0.0
    %7948 = vmatprep.subr.mxu0 0.0
    %7949 = vmatpush1.msra.mxu0 0.0
    %7950 = vmatprep.subr.mxu0 0.0
    %7951 = vmatpush1.msra.mxu0 0.0
    %7952 = vmatprep.subr.mxu0 0.0
    %7953 = vmatpush1.msra.mxu0 0.0
    %7954 = vmatprep.subr.mxu0 0.0
    %7955 = vmatpush1.msra.mxu0 0.0
    %7956 = vmatprep.subr.mxu0 0.0
    %7957 = vmatpush1.msra.mxu0 0.0
    %7958 = vmatprep.subr.mxu0 0.0
    %7959 = vmatpush1.msra.mxu0 0.0
    %7960 = vmatprep.subr.mxu0 0.0
    %7961 = vmatpush1.msra.mxu0 0.0
    %7962 = vmatprep.subr.mxu0 0.0
    %7963 = vmatpush1.msra.mxu0 0.0
    %7964 = vmatprep.subr.mxu0 0.0
    %7965 = vmatpush1.msra.mxu0 0.0
    %7966 = vmatprep.subr.mxu0 0.0
    %7967 = vmatpush1.msra.mxu0 0.0
    %7968 = vmatprep.mubr.f32.mxu0 0.0
    %v7969 = vand.u32 %v7272, 4294901760
    %7970 = vmatmul.mubr.f32.gmra.mrb[0].mxu0 %v7969
    %v7971 = vpop.f32.mrb[0].mxu0
    %v7972 = vadd.f32 %v7879, %v7971
    %v7973 = vpop.f32.mrb[0].mxu0
    %7974 = vmatprep.mubr.f32.mxu0 0.0
    %v7975 = vand.u32 %v7273, 4294901760
    %7976 = vmatmul.mubr.f32.gmra.mrb[0].mxu0 %v7975
    %v7977 = vpop.f32.mrb[0].mxu0
    %v7978 = vadd.f32 %v7885, %v7977
    %v7979 = vpop.f32.mrb[0].mxu0
    %7980 = vdwg.mxu0
    %v7981 = vadd.f32 %v7972, %v6725
    %v7982 = vadd.f32 %v7978, %v6726
    %v7983 = vld [vmem:[%s22] sm:$0x1]
    %v7984 = vld [vmem:[%s23] sm:$0x1]
    %v7985 = vsel %vm93, %v7981, 0.0
    %7986 = vadd.xlane.f32.xlu0 %v7985
    %v7987 = vpop.xlane.xlu0 %7986
    %v7988 = vsel %vm93, %v7982, 0.0
    %7989 = vadd.xlane.f32.xlu0 %v7988
    %v7990 = vpop.xlane.xlu0 %7989
    %v7991 = vmul.f32 %v7987, %v3099
    %v7992 = vmul.f32 %v7990, %v3099
    %v7993 = vsub.f32 %v7981, %v7991
    %v7994 = vsub.f32 %v7982, %v7992
    %v7995 = vmul.f32 %v7993, %v7993
    %v7996 = vmul.f32 %v7994, %v7994
    %v7997 = vsel %vm93, %v7995, 0.0
    %7998 = vadd.xlane.f32.xlu0 %v7997
    %v7999 = vpop.xlane.xlu0 %7998
    %v8000 = vsel %vm93, %v7996, 0.0
    %8001 = vadd.xlane.f32.xlu0 %v8000
    %v8002 = vpop.xlane.xlu0 %8001
    %v8003 = vmul.f32 %v7999, %v3099
    %v8004 = vmul.f32 %v8002, %v3099
    %v8005 = vadd.f32 %v8003, 1e-05
    %v8006 = vadd.f32 %v8004, 1e-05
    %v8007 = vrsqrt.pop %v8005
    %v8008 = vrsqrt.pop %v8006
    %v8009 = vmul.f32 %v7993, %v8007
    %v8010 = vmul.f32 %v7994, %v8008
    %v8012 = vlaneseq
    %v8013 = vshrl.u32 %v8012, 7
    %v8014 = vsub.s32 0, %v8013
    %v8015 = vrot.slane %v7983, %v8014
    %v8017 = vmul.f32 %v8009, %v8015
    %v8018 = vmul.f32 %v8010, %v8015
    %v8020 = vlaneseq
    %v8021 = vshrl.u32 %v8020, 7
    %v8022 = vsub.s32 0, %v8021
    %v8023 = vrot.slane %v7984, %v8022
    %v8025 = vadd.f32 %v8017, %v8023
    %v8026 = vadd.f32 %v8018, %v8023
    %8027 = vst.msk [vmem:[#allocation2] sm:$0xff] %vm93, %v8025
    %8028 = vst.msk [vmem:[#allocation2 + $0x8] sm:$0xff] %vm93, %v8026
    // Predicated region
    $region98: #{decoder_block.1} parent=1 // pred_check
      _
    $region99: #{decoder_block.1} parent=1 // pred_check_branch
      %8030 = sbr.rel (0) target = $region101
    $region100: #{decoder_block.1} parent=1 // pred_region
      %s8032 = ssub.s32 256, 256
      %8033 = vsyncadd [#allocation3], %s8032
      %s8034 = sshll.u32 [#allocation2], 4
      %s8035 = int_to_ptr.vmem [resolvable:$true] %s8034
      %8040 = dma.vmem_to_hbm [thread:$0]  %s8035, 256, %s24, [#allocation3], 128, 128, 8
    $region101: #{decoder_block.1} parent=1 // pred_fallthru
      _
    // Predicated region
    $region102: #{decoder_block.1} parent=1 // pred_check
      _
    $region103: #{decoder_block.1} parent=1 // pred_check_branch
      %8042 = sbr.rel (0) target = $region105
    $region104: #{decoder_block.1} parent=1 // pred_region
      %8043 = dma.done [#allocation3], 256
    $region105: #{decoder_block.1} parent=1 // pred_fallthru
      _
    %8044 = vsyncpa [#allocation3], 1

</llo_original>
